<compile_context>
chip_gen: v6e
topology: v6e:2x2x1
jax: 0.10.0
libtpu: 0.0.40
codegen_flags: <defaults>
</compile_context>

<pallas_src>
import functools

import jax
import jax.numpy as jnp
from jax.experimental import pallas as pl
from jax.experimental.pallas import tpu as pltpu

BN_EPS = 1e-3  # matches nn.BatchNorm2d(out_channel, eps=0.001)

_VMEM = pl.BlockSpec(memory_space=pltpu.MemorySpace.VMEM)


# ---------------------------------------------------------------------------
# In-kernel helpers
# ---------------------------------------------------------------------------
def _bn_relu(y, gamma, beta):
    """Training-mode BatchNorm (batch stats, biased var, eps=1e-3) + ReLU.

    y: (C, M) float32, statistics over the lane axis M = N*H*W.
    Two-pass variance (E[(y-mean)^2]) to avoid catastrophic cancellation.
    gamma / beta: (C, 1).
    """
    inv_m = jnp.float32(1.0 / y.shape[1])
    mean = jnp.sum(y, axis=1, keepdims=True) * inv_m
    d = y - mean
    var = jnp.sum(d * d, axis=1, keepdims=True) * inv_m
    return jnp.maximum(d * jax.lax.rsqrt(var + BN_EPS) * gamma + beta, 0.0)


# ---------------------------------------------------------------------------
# Fused inception kernel (gridless; toy shapes fit VMEM easily)
# ---------------------------------------------------------------------------
def _inception_kernel(
    x_ref,                                   # (Cin, M)    M = N*H*W on lanes
    hpos_ref, wpos_ref,                      # (1, M) int32 pixel coordinates
    w1_ref, g1_ref, b1_ref,                  # packed 1x1: rows [b2a | b3a | b1]
    w2_ref, g2_ref, b2_ref,                  # (9,  c2, c2a) per-tap 3x3
    w3_ref, g3_ref, b3_ref,                  # (25, c3, c3a) per-tap 5x5
    w4_ref, g4_ref, b4_ref,                  # (c4, Cin) pool 1x1
    o_ref,                                   # (c1+c2+c3+c4, M)
    *, N, H, W, Cin, c1, c2a, c2, c3a, c3, c4,
):
    f32 = jnp.float32
    M = N * H * W
    dt = o_ref.dtype

    x = x_ref[...].astype(f32)               # (Cin, M), ~2 vregs, resident once
    hpos = hpos_ref[...]
    wpos = wpos_ref[...]

    def tap_mask(dh, dw):
        """(1, M) validity mask for tap offset (dh, dw); None == all valid."""
        conds = []
        if dh > 0:
            conds.append(hpos < H - dh)
        elif dh < 0:
            conds.append(hpos >= -dh)
        if dw > 0:
            conds.append(wpos < W - dw)
        elif dw < 0:
            conds.append(wpos >= -dw)
        if not conds:
            return None
        msk = conds[0]
        for c in conds[1:]:
            msk = jnp.logical_and(msk, c)
        return msk

    def tap_shift(v, dh, dw):
        """Circular lane shift so lane m holds pixel (h+dh, w+dw) of v."""
        off = dh * W + dw
        if off == 0:
            return v
        return pltpu.roll(v, (-off) % M, 1)   # XLU lane rotation (VPU-free)

    # ---- branch1 + branch2/3 reducers: one packed 1x1 matmul + one BN/ReLU.
    #      Row order [b2a | b3a | b1]: branch splits are sublane slices, and
    #      branch1 is tile-aligned.  (Conv bias omitted: training-mode BN's
    #      batch-mean subtraction cancels it; fp-rounding-level differences.)
    z1 = _bn_relu(
        jnp.dot(w1_ref[...].astype(f32), x, preferred_element_type=f32),
        g1_ref[...], b1_ref[...])                      # (c2a+c3a+c1, M)
    a2 = z1[0:c2a, :]
    a3 = z1[c2a:c2a + c3a, :]
    o_ref[0:c1, :] = z1[c2a + c3a:c2a + c3a + c1, :].astype(dt)   # store now

    # ---- branch4: 3x3/s1/p1 max-pool (masked shift-max on resident x) -> 1x1.
    xmax = x
    for dh in (-1, 0, 1):
        for dw in (-1, 0, 1):
            if dh == 0 and dw == 0:
                continue
            v = tap_shift(x, dh, dw)
            msk = tap_mask(dh, dw)
            if msk is None:
                xmax = jnp.maximum(xmax, v)
            else:
                xmax = jnp.where(msk, jnp.maximum(xmax, v), xmax)
    f4 = _bn_relu(
        jnp.dot(w4_ref[...].astype(f32), xmax, preferred_element_type=f32),
        g4_ref[...], b4_ref[...])
    o_ref[c1 + c2 + c3:c1 + c2 + c3 + c4, :] = f4.astype(dt)       # store now

    # ---- branch2: 3x3 'same' conv = 9 masked-shift tap matmuls (no im2col).
    acc2 = jnp.zeros((c2, M), f32)
    for dh in (-1, 0, 1):
        for dw in (-1, 0, 1):
            t = (dh + 1) * 3 + (dw + 1)
            v = tap_shift(a2, dh, dw)
            msk = tap_mask(dh, dw)
            if msk is not None:
                v = jnp.where(msk, v, 0.0)
            acc2 = acc2 + jnp.dot(w2_ref[t].astype(f32), v,
                                  preferred_element_type=f32)
    o_ref[c1:c1 + c2, :] = _bn_relu(acc2, g2_ref[...], b2_ref[...]).astype(dt)

    # ---- branch3: 5x5 'same' conv = 25 masked-shift tap matmuls.
    acc3 = jnp.zeros((c3, M), f32)
    for dh in (-2, -1, 0, 1, 2):
        for dw in (-2, -1, 0, 1, 2):
            t = (dh + 2) * 5 + (dw + 2)
            v = tap_shift(a3, dh, dw)
            msk = tap_mask(dh, dw)
            if msk is not None:
                v = jnp.where(msk, v, 0.0)
            acc3 = acc3 + jnp.dot(w3_ref[t].astype(f32), v,
                                  preferred_element_type=f32)
    o_ref[c1 + c2:c1 + c2 + c3, :] = _bn_relu(
        acc3, g3_ref[...], b3_ref[...]).astype(dt)


# ---------------------------------------------------------------------------
# Forward wrapper (NCHW in / NCHW out, matching the PyTorch module)
# ---------------------------------------------------------------------------
def _inception_forward_impl(x_nchw, params):
    N, Cin, H, W = x_nchw.shape
    M = N * H * W

    c1 = params["b1"]["w"].shape[3]
    c2a = params["b2a"]["w"].shape[3]
    c2 = params["b2b"]["w"].shape[3]
    c3a = params["b3a"]["w"].shape[3]
    c3 = params["b3b"]["w"].shape[3]
    c4 = params["b4"]["w"].shape[3]
    c_total = c1 + c2 + c3 + c4

    # Lane-dense (C, M) activation layout: channels on sublanes, pixels on lanes.
    x_cm = jnp.transpose(x_nchw, (1, 0, 2, 3)).reshape(Cin, M)

    # Pixel-coordinate maps used in-kernel to mask shifted taps at borders.
    lane = jnp.arange(M, dtype=jnp.int32).reshape(1, M)
    hpos = (lane // W) % H
    wpos = lane % W

    def t1x1(p):   # (1,1,Cin,Cout) -> (Cout, Cin)
        return p["w"].reshape(Cin, -1).T

    # Packed 1x1 weights / BN params, row order [b2a | b3a | b1].
    w1 = jnp.concatenate([t1x1(params["b2a"]), t1x1(params["b3a"]),
                          t1x1(params["b1"])], axis=0)
    g1 = jnp.concatenate([params["b2a"]["gamma"], params["b3a"]["gamma"],
                          params["b1"]["gamma"]]).reshape(-1, 1)
    be1 = jnp.concatenate([params["b2a"]["beta"], params["b3a"]["beta"],
                           params["b1"]["beta"]]).reshape(-1, 1)

    # Per-tap conv weights: (K*K, Cout, Cin_reduced).
    w2 = jnp.transpose(params["b2b"]["w"].reshape(9, c2a, c2), (0, 2, 1))
    w3 = jnp.transpose(params["b3b"]["w"].reshape(25, c3a, c3), (0, 2, 1))
    w4 = t1x1(params["b4"])

    kernel = functools.partial(
        _inception_kernel, N=N, H=H, W=W, Cin=Cin,
        c1=c1, c2a=c2a, c2=c2, c3a=c3a, c3=c3, c4=c4)

    # TODO(synk): gridless whole-array kernel (toy shapes only).  Scaling to
    # real inception sizes needs a grid over N / row blocks with a cross-tile
    # BN statistics reduction and an explicit vmem_limit_bytes.
    out_cm = pl.pallas_call(
        kernel,
        out_shape=jax.ShapeDtypeStruct((c_total, M), x_nchw.dtype),
        in_specs=[_VMEM] * 15,
        out_specs=_VMEM,
    )(x_cm, hpos, wpos,
      w1, g1, be1,
      w2, params["b2b"]["gamma"].reshape(-1, 1), params["b2b"]["beta"].reshape(-1, 1),
      w3, params["b3b"]["gamma"].reshape(-1, 1), params["b3b"]["beta"].reshape(-1, 1),
      w4, params["b4"]["gamma"].reshape(-1, 1), params["b4"]["beta"].reshape(-1, 1))

    # (c_total, N*H*W) -> (N, c_total, H, W): cheap boundary glue.
    return jnp.transpose(out_cm.reshape(c_total, N, H, W), (1, 0, 2, 3))


inception_forward = jax.jit(_inception_forward_impl)


# ---------------------------------------------------------------------------
# Pure JAX/XLA reference (training-mode Conv+BN+ReLU, matches the nn.Module)
# ---------------------------------------------------------------------------
def _conv_bn_relu_ref(x, p, pad):
    y = jax.lax.conv_general_dilated(
        x, p["w"], window_strides=(1, 1),
        padding=[(pad, pad), (pad, pad)],
        dimension_numbers=("NCHW", "HWIO", "NCHW"))
    y = y + p["b"].reshape(1, -1, 1, 1)
    mean = jnp.mean(y, axis=(0, 2, 3), keepdims=True)
    var = jnp.mean((y - mean) ** 2, axis=(0, 2, 3), keepdims=True)
    y = (y - mean) * jax.lax.rsqrt(var + BN_EPS)
    y = y * p["gamma"].reshape(1, -1, 1, 1) + p["beta"].reshape(1, -1, 1, 1)
    return jnp.maximum(y, 0.0)


def inception_reference(x, params):
    f1 = _conv_bn_relu_ref(x, params["b1"], 0)
    f2 = _conv_bn_relu_ref(_conv_bn_relu_ref(x, params["b2a"], 0),
                           params["b2b"], 1)
    f3 = _conv_bn_relu_ref(_conv_bn_relu_ref(x, params["b3a"], 0),
                           params["b3b"], 2)
    xp = jax.lax.reduce_window(x, -jnp.inf, jax.lax.max,
                               (1, 1, 3, 3), (1, 1, 1, 1),
                               [(0, 0), (0, 0), (1, 1), (1, 1)])
    f4 = _conv_bn_relu_ref(xp, params["b4"], 0)
    return jnp.concatenate([f1, f2, f3, f4], axis=1)


# ---------------------------------------------------------------------------
# Parameter construction (deterministic, synthetic)
# ---------------------------------------------------------------------------
def make_conv_params(key, cin, cout, k):
    kw, kb = jax.random.split(key)
    # PyTorch Conv2d weight is (Cout, Cin, K, K); stored here as (K, K, Cin, Cout).
    w = 0.1 * jax.random.normal(kw, (k, k, cin, cout), jnp.float32)
    # Bias kept for module parity; mathematically cancelled by training-mode
    # BatchNorm mean subtraction, so the kernel never uses it.
    b = 0.05 * jax.random.normal(kb, (cout,), jnp.float32)
    gamma = jnp.ones((cout,), jnp.float32)   # BN default init
    beta = jnp.zeros((cout,), jnp.float32)
    return {"w": w, "b": b, "gamma": gamma, "beta": beta}


def make_inception_params(key, in_channel, out1_1, out2_1, out2_3,
                          out3_1, out3_5, out4_1):
    ks = jax.random.split(key, 6)
    return {
        "b1": make_conv_params(ks[0], in_channel, out1_1, 1),
        "b2a": make_conv_params(ks[1], in_channel, out2_1, 1),
        "b2b": make_conv_params(ks[2], out2_1, out2_3, 3),
        "b3a": make_conv_params(ks[3], in_channel, out3_1, 1),
        "b3b": make_conv_params(ks[4], out3_1, out3_5, 5),
        "b4": make_conv_params(ks[5], in_channel, out4_1, 1),
    }


# ---------------------------------------------------------------------------
if __name__ == "__main__":
    key = jax.random.PRNGKey(0)
    k_x, k_p = jax.random.split(key)

    # Small shapes consistent with the module: inception(4, 8, 4, 8, 4, 8, 8)
    N, Cin, H, W = 2, 4, 16, 16
    out1_1, out2_1, out2_3, out3_1, out3_5, out4_1 = 8, 4, 8, 4, 8, 8

    x = jax.random.normal(k_x, (N, Cin, H, W), jnp.float32)
    params = make_inception_params(k_p, Cin, out1_1, out2_1, out2_3,
                                   out3_1, out3_5, out4_1)

    y = jax.block_until_ready(inception_forward(x, params))

    expected_c = out1_1 + out2_3 + out3_5 + out4_1
    assert y.shape == (N, expected_c, H, W), y.shape
    assert bool(jnp.all(jnp.isfinite(y)))
    assert bool(jnp.all(y >= 0.0))  # ReLU output

    y_ref = jax.block_until_ready(inception_reference(x, params))
    max_err = float(jnp.max(jnp.abs(y - y_ref)))
    assert max_err < 1e-3, f"max abs err vs JAX reference: {max_err}"

    print("KERNEL_OK")
</pallas_src>

<mosaic_0001>
module attributes {stable_mosaic.version = 11 : i64} {
  func.func @_inception_kernel(%arg0: memref<4x512xf32, #tpu.memory_space<vmem>>, %arg1: memref<1x512xi32, #tpu.memory_space<vmem>>, %arg2: memref<1x512xi32, #tpu.memory_space<vmem>>, %arg3: memref<16x4xf32, #tpu.memory_space<vmem>>, %arg4: memref<16x1xf32, #tpu.memory_space<vmem>>, %arg5: memref<16x1xf32, #tpu.memory_space<vmem>>, %arg6: memref<9x8x4xf32, #tpu.memory_space<vmem>>, %arg7: memref<8x1xf32, #tpu.memory_space<vmem>>, %arg8: memref<8x1xf32, #tpu.memory_space<vmem>>, %arg9: memref<25x8x4xf32, #tpu.memory_space<vmem>>, %arg10: memref<8x1xf32, #tpu.memory_space<vmem>>, %arg11: memref<8x1xf32, #tpu.memory_space<vmem>>, %arg12: memref<8x4xf32, #tpu.memory_space<vmem>>, %arg13: memref<8x1xf32, #tpu.memory_space<vmem>>, %arg14: memref<8x1xf32, #tpu.memory_space<vmem>>, %arg15: memref<32x512xf32, #tpu.memory_space<vmem>>) attributes {dimension_semantics = [], scalar_prefetch = 0 : i64, scratch_operands = 0 : i64, tpu.core_type = #tpu.core_type<tc>} {
    %c0 = arith.constant 0 : index
    %c0_0 = arith.constant 0 : index
    %0 = vector.load %arg0[%c0, %c0_0] : memref<4x512xf32, #tpu.memory_space<vmem>>, vector<4x512xf32>
    %c0_1 = arith.constant 0 : index
    %c0_2 = arith.constant 0 : index
    %1 = vector.load %arg1[%c0_1, %c0_2] : memref<1x512xi32, #tpu.memory_space<vmem>>, vector<1x512xi32>
    %c0_3 = arith.constant 0 : index
    %c0_4 = arith.constant 0 : index
    %2 = vector.load %arg2[%c0_3, %c0_4] : memref<1x512xi32, #tpu.memory_space<vmem>>, vector<1x512xi32>
    %c0_5 = arith.constant 0 : index
    %c0_6 = arith.constant 0 : index
    %3 = vector.load %arg3[%c0_5, %c0_6] : memref<16x4xf32, #tpu.memory_space<vmem>>, vector<16x4xf32>
    %cst = arith.constant dense<0.000000e+00> : vector<16x512xf32>
    %4 = tpu.matmul %3, %0, %cst {dimension_numbers = #tpu.dot_dimension_numbers<[1], [0], [0], [1], [0, 0, 1, 1], [], []>} : vector<16x4xf32>, vector<4x512xf32>, vector<16x512xf32> -> vector<16x512xf32>
    %c0_7 = arith.constant 0 : index
    %c0_8 = arith.constant 0 : index
    %5 = vector.load %arg4[%c0_7, %c0_8] : memref<16x1xf32, #tpu.memory_space<vmem>>, vector<16x1xf32>
    %c0_9 = arith.constant 0 : index
    %c0_10 = arith.constant 0 : index
    %6 = vector.load %arg5[%c0_9, %c0_10] : memref<16x1xf32, #tpu.memory_space<vmem>>, vector<16x1xf32>
    %cst_11 = arith.constant dense<0.000000e+00> : vector<16xf32>
    %7 = vector.multi_reduction <add>, %4, %cst_11 [1] : vector<16x512xf32> to vector<16xf32>
    %8 = vector.shape_cast %7 : vector<16xf32> to vector<16x1xf32>
    %cst_12 = arith.constant 0.001953125 : f32
    %9 = vector.broadcast %cst_12 : f32 to vector<16x1xf32>
    %10 = arith.mulf %8, %9 : vector<16x1xf32>
    %11 = vector.broadcast %10 : vector<16x1xf32> to vector<16x512xf32>
    %12 = arith.subf %4, %11 : vector<16x512xf32>
    %13 = arith.mulf %12, %12 : vector<16x512xf32>
    %cst_13 = arith.constant dense<0.000000e+00> : vector<16xf32>
    %14 = vector.multi_reduction <add>, %13, %cst_13 [1] : vector<16x512xf32> to vector<16xf32>
    %15 = vector.shape_cast %14 : vector<16xf32> to vector<16x1xf32>
    %cst_14 = arith.constant 0.001953125 : f32
    %16 = vector.broadcast %cst_14 : f32 to vector<16x1xf32>
    %17 = arith.mulf %15, %16 : vector<16x1xf32>
    %cst_15 = arith.constant 1.000000e-03 : f32
    %18 = vector.broadcast %cst_15 : f32 to vector<16x1xf32>
    %19 = arith.addf %17, %18 : vector<16x1xf32>
    %20 = math.rsqrt %19 : vector<16x1xf32>
    %21 = vector.broadcast %20 : vector<16x1xf32> to vector<16x512xf32>
    %22 = arith.mulf %12, %21 : vector<16x512xf32>
    %23 = vector.broadcast %5 : vector<16x1xf32> to vector<16x512xf32>
    %24 = arith.mulf %22, %23 : vector<16x512xf32>
    %25 = vector.broadcast %6 : vector<16x1xf32> to vector<16x512xf32>
    %26 = arith.addf %24, %25 : vector<16x512xf32>
    %cst_16 = arith.constant 0.000000e+00 : f32
    %27 = vector.broadcast %cst_16 : f32 to vector<16x512xf32>
    %28 = arith.maximumf %26, %27 : vector<16x512xf32>
    %29 = vector.extract_strided_slice %28 {offsets = [0, 0], sizes = [4, 512], strides = [1, 1]} : vector<16x512xf32> to vector<4x512xf32>
    %30 = vector.extract_strided_slice %28 {offsets = [4, 0], sizes = [4, 512], strides = [1, 1]} : vector<16x512xf32> to vector<4x512xf32>
    %31 = vector.extract_strided_slice %28 {offsets = [8, 0], sizes = [8, 512], strides = [1, 1]} : vector<16x512xf32> to vector<8x512xf32>
    %c0_17 = arith.constant 0 : index
    %c0_18 = arith.constant 0 : index
    %32 = vector.load %arg15[%c0_17, %c0_18] : memref<32x512xf32, #tpu.memory_space<vmem>>, vector<8x512xf32>
    tpu.vector_store %arg15[%c0_17, %c0_18], %31 {strides = array<i32>} : memref<32x512xf32, #tpu.memory_space<vmem>>, vector<8x512xf32>,
    %c17_i32 = arith.constant 17 : i32
    %33 = tpu.dynamic_rotate %0 by %c17_i32 dim 1 : vector<4x512xf32>, i32 -> vector<4x512xf32>
    %c1_i32 = arith.constant 1 : i32
    %34 = vector.broadcast %c1_i32 : i32 to vector<1x512xi32>
    %35 = arith.cmpi sge, %1, %34 : vector<1x512xi32>
    %c1_i32_19 = arith.constant 1 : i32
    %36 = vector.broadcast %c1_i32_19 : i32 to vector<1x512xi32>
    %37 = arith.cmpi sge, %2, %36 : vector<1x512xi32>
    %38 = arith.andi %35, %37 : vector<1x512xi1>
    %39 = arith.maximumf %0, %33 : vector<4x512xf32>
    %40 = vector.shape_cast %38 : vector<1x512xi1> to vector<1x512xi1>
    %41 = vector.broadcast %40 : vector<1x512xi1> to vector<4x512xi1>
    %42 = arith.select %41, %39, %0 : vector<4x512xi1>, vector<4x512xf32>
    %c16_i32 = arith.constant 16 : i32
    %43 = tpu.dynamic_rotate %0 by %c16_i32 dim 1 : vector<4x512xf32>, i32 -> vector<4x512xf32>
    %c1_i32_20 = arith.constant 1 : i32
    %44 = vector.broadcast %c1_i32_20 : i32 to vector<1x512xi32>
    %45 = arith.cmpi sge, %1, %44 : vector<1x512xi32>
    %46 = arith.maximumf %42, %43 : vector<4x512xf32>
    %47 = vector.shape_cast %45 : vector<1x512xi1> to vector<1x512xi1>
    %48 = vector.broadcast %47 : vector<1x512xi1> to vector<4x512xi1>
    %49 = arith.select %48, %46, %42 : vector<4x512xi1>, vector<4x512xf32>
    %c15_i32 = arith.constant 15 : i32
    %50 = tpu.dynamic_rotate %0 by %c15_i32 dim 1 : vector<4x512xf32>, i32 -> vector<4x512xf32>
    %c1_i32_21 = arith.constant 1 : i32
    %51 = vector.broadcast %c1_i32_21 : i32 to vector<1x512xi32>
    %52 = arith.cmpi sge, %1, %51 : vector<1x512xi32>
    %c15_i32_22 = arith.constant 15 : i32
    %53 = vector.broadcast %c15_i32_22 : i32 to vector<1x512xi32>
    %54 = arith.cmpi slt, %2, %53 : vector<1x512xi32>
    %55 = arith.andi %52, %54 : vector<1x512xi1>
    %56 = arith.maximumf %49, %50 : vector<4x512xf32>
    %57 = vector.shape_cast %55 : vector<1x512xi1> to vector<1x512xi1>
    %58 = vector.broadcast %57 : vector<1x512xi1> to vector<4x512xi1>
    %59 = arith.select %58, %56, %49 : vector<4x512xi1>, vector<4x512xf32>
    %c1_i32_23 = arith.constant 1 : i32
    %60 = tpu.dynamic_rotate %0 by %c1_i32_23 dim 1 : vector<4x512xf32>, i32 -> vector<4x512xf32>
    %c1_i32_24 = arith.constant 1 : i32
    %61 = vector.broadcast %c1_i32_24 : i32 to vector<1x512xi32>
    %62 = arith.cmpi sge, %2, %61 : vector<1x512xi32>
    %63 = arith.maximumf %59, %60 : vector<4x512xf32>
    %64 = vector.shape_cast %62 : vector<1x512xi1> to vector<1x512xi1>
    %65 = vector.broadcast %64 : vector<1x512xi1> to vector<4x512xi1>
    %66 = arith.select %65, %63, %59 : vector<4x512xi1>, vector<4x512xf32>
    %c511_i32 = arith.constant 511 : i32
    %67 = tpu.dynamic_rotate %0 by %c511_i32 dim 1 : vector<4x512xf32>, i32 -> vector<4x512xf32>
    %c15_i32_25 = arith.constant 15 : i32
    %68 = vector.broadcast %c15_i32_25 : i32 to vector<1x512xi32>
    %69 = arith.cmpi slt, %2, %68 : vector<1x512xi32>
    %70 = arith.maximumf %66, %67 : vector<4x512xf32>
    %71 = vector.shape_cast %69 : vector<1x512xi1> to vector<1x512xi1>
    %72 = vector.broadcast %71 : vector<1x512xi1> to vector<4x512xi1>
    %73 = arith.select %72, %70, %66 : vector<4x512xi1>, vector<4x512xf32>
    %c497_i32 = arith.constant 497 : i32
    %74 = tpu.dynamic_rotate %0 by %c497_i32 dim 1 : vector<4x512xf32>, i32 -> vector<4x512xf32>
    %c15_i32_26 = arith.constant 15 : i32
    %75 = vector.broadcast %c15_i32_26 : i32 to vector<1x512xi32>
    %76 = arith.cmpi slt, %1, %75 : vector<1x512xi32>
    %c1_i32_27 = arith.constant 1 : i32
    %77 = vector.broadcast %c1_i32_27 : i32 to vector<1x512xi32>
    %78 = arith.cmpi sge, %2, %77 : vector<1x512xi32>
    %79 = arith.andi %76, %78 : vector<1x512xi1>
    %80 = arith.maximumf %73, %74 : vector<4x512xf32>
    %81 = vector.shape_cast %79 : vector<1x512xi1> to vector<1x512xi1>
    %82 = vector.broadcast %81 : vector<1x512xi1> to vector<4x512xi1>
    %83 = arith.select %82, %80, %73 : vector<4x512xi1>, vector<4x512xf32>
    %c496_i32 = arith.constant 496 : i32
    %84 = tpu.dynamic_rotate %0 by %c496_i32 dim 1 : vector<4x512xf32>, i32 -> vector<4x512xf32>
    %c15_i32_28 = arith.constant 15 : i32
    %85 = vector.broadcast %c15_i32_28 : i32 to vector<1x512xi32>
    %86 = arith.cmpi slt, %1, %85 : vector<1x512xi32>
    %87 = arith.maximumf %83, %84 : vector<4x512xf32>
    %88 = vector.shape_cast %86 : vector<1x512xi1> to vector<1x512xi1>
    %89 = vector.broadcast %88 : vector<1x512xi1> to vector<4x512xi1>
    %90 = arith.select %89, %87, %83 : vector<4x512xi1>, vector<4x512xf32>
    %c495_i32 = arith.constant 495 : i32
    %91 = tpu.dynamic_rotate %0 by %c495_i32 dim 1 : vector<4x512xf32>, i32 -> vector<4x512xf32>
    %c15_i32_29 = arith.constant 15 : i32
    %92 = vector.broadcast %c15_i32_29 : i32 to vector<1x512xi32>
    %93 = arith.cmpi slt, %1, %92 : vector<1x512xi32>
    %c15_i32_30 = arith.constant 15 : i32
    %94 = vector.broadcast %c15_i32_30 : i32 to vector<1x512xi32>
    %95 = arith.cmpi slt, %2, %94 : vector<1x512xi32>
    %96 = arith.andi %93, %95 : vector<1x512xi1>
    %97 = arith.maximumf %90, %91 : vector<4x512xf32>
    %98 = vector.shape_cast %96 : vector<1x512xi1> to vector<1x512xi1>
    %99 = vector.broadcast %98 : vector<1x512xi1> to vector<4x512xi1>
    %100 = arith.select %99, %97, %90 : vector<4x512xi1>, vector<4x512xf32>
    %c0_31 = arith.constant 0 : index
    %c0_32 = arith.constant 0 : index
    %101 = vector.load %arg12[%c0_31, %c0_32] : memref<8x4xf32, #tpu.memory_space<vmem>>, vector<8x4xf32>
    %cst_33 = arith.constant dense<0.000000e+00> : vector<8x512xf32>
    %102 = tpu.matmul %101, %100, %cst_33 {dimension_numbers = #tpu.dot_dimension_numbers<[1], [0], [0], [1], [0, 0, 1, 1], [], []>} : vector<8x4xf32>, vector<4x512xf32>, vector<8x512xf32> -> vector<8x512xf32>
    %c0_34 = arith.constant 0 : index
    %c0_35 = arith.constant 0 : index
    %103 = vector.load %arg13[%c0_34, %c0_35] : memref<8x1xf32, #tpu.memory_space<vmem>>, vector<8x1xf32>
    %c0_36 = arith.constant 0 : index
    %c0_37 = arith.constant 0 : index
    %104 = vector.load %arg14[%c0_36, %c0_37] : memref<8x1xf32, #tpu.memory_space<vmem>>, vector<8x1xf32>
    %cst_38 = arith.constant dense<0.000000e+00> : vector<8xf32>
    %105 = vector.multi_reduction <add>, %102, %cst_38 [1] : vector<8x512xf32> to vector<8xf32>
    %106 = vector.shape_cast %105 : vector<8xf32> to vector<8x1xf32>
    %cst_39 = arith.constant 0.001953125 : f32
    %107 = vector.broadcast %cst_39 : f32 to vector<8x1xf32>
    %108 = arith.mulf %106, %107 : vector<8x1xf32>
    %109 = vector.broadcast %108 : vector<8x1xf32> to vector<8x512xf32>
    %110 = arith.subf %102, %109 : vector<8x512xf32>
    %111 = arith.mulf %110, %110 : vector<8x512xf32>
    %cst_40 = arith.constant dense<0.000000e+00> : vector<8xf32>
    %112 = vector.multi_reduction <add>, %111, %cst_40 [1] : vector<8x512xf32> to vector<8xf32>
    %113 = vector.shape_cast %112 : vector<8xf32> to vector<8x1xf32>
    %cst_41 = arith.constant 0.001953125 : f32
    %114 = vector.broadcast %cst_41 : f32 to vector<8x1xf32>
    %115 = arith.mulf %113, %114 : vector<8x1xf32>
    %cst_42 = arith.constant 1.000000e-03 : f32
    %116 = vector.broadcast %cst_42 : f32 to vector<8x1xf32>
    %117 = arith.addf %115, %116 : vector<8x1xf32>
    %118 = math.rsqrt %117 : vector<8x1xf32>
    %119 = vector.broadcast %118 : vector<8x1xf32> to vector<8x512xf32>
    %120 = arith.mulf %110, %119 : vector<8x512xf32>
    %121 = vector.broadcast %103 : vector<8x1xf32> to vector<8x512xf32>
    %122 = arith.mulf %120, %121 : vector<8x512xf32>
    %123 = vector.broadcast %104 : vector<8x1xf32> to vector<8x512xf32>
    %124 = arith.addf %122, %123 : vector<8x512xf32>
    %cst_43 = arith.constant 0.000000e+00 : f32
    %125 = vector.broadcast %cst_43 : f32 to vector<8x512xf32>
    %126 = arith.maximumf %124, %125 : vector<8x512xf32>
    %c24 = arith.constant 24 : index
    %c0_44 = arith.constant 0 : index
    %127 = vector.load %arg15[%c24, %c0_44] : memref<32x512xf32, #tpu.memory_space<vmem>>, vector<8x512xf32>
    tpu.vector_store %arg15[%c24, %c0_44], %126 {strides = array<i32>} : memref<32x512xf32, #tpu.memory_space<vmem>>, vector<8x512xf32>,
    %cst_45 = arith.constant 0.000000e+00 : f32
    %128 = vector.broadcast %cst_45 : f32 to vector<8x512xf32>
    %c17_i32_46 = arith.constant 17 : i32
    %129 = tpu.dynamic_rotate %29 by %c17_i32_46 dim 1 : vector<4x512xf32>, i32 -> vector<4x512xf32>
    %c1_i32_47 = arith.constant 1 : i32
    %130 = vector.broadcast %c1_i32_47 : i32 to vector<1x512xi32>
    %131 = arith.cmpi sge, %1, %130 : vector<1x512xi32>
    %c1_i32_48 = arith.constant 1 : i32
    %132 = vector.broadcast %c1_i32_48 : i32 to vector<1x512xi32>
    %133 = arith.cmpi sge, %2, %132 : vector<1x512xi32>
    %134 = arith.andi %131, %133 : vector<1x512xi1>
    %cst_49 = arith.constant 0.000000e+00 : f32
    %135 = vector.shape_cast %134 : vector<1x512xi1> to vector<1x512xi1>
    %136 = vector.broadcast %135 : vector<1x512xi1> to vector<4x512xi1>
    %137 = vector.broadcast %cst_49 : f32 to vector<4x512xf32>
    %138 = arith.select %136, %129, %137 : vector<4x512xi1>, vector<4x512xf32>
    %c0_50 = arith.constant 0 : index
    %c0_51 = arith.constant 0 : index
    %c0_52 = arith.constant 0 : index
    %139 = vector.load %arg6[%c0_50, %c0_51, %c0_52] : memref<9x8x4xf32, #tpu.memory_space<vmem>>, vector<1x8x4xf32>
    %140 = vector.shape_cast %139 : vector<1x8x4xf32> to vector<8x4xf32>
    %cst_53 = arith.constant dense<0.000000e+00> : vector<8x512xf32>
    %141 = tpu.matmul %140, %138, %cst_53 {dimension_numbers = #tpu.dot_dimension_numbers<[1], [0], [0], [1], [0, 0, 1, 1], [], []>} : vector<8x4xf32>, vector<4x512xf32>, vector<8x512xf32> -> vector<8x512xf32>
    %142 = arith.addf %128, %141 : vector<8x512xf32>
    %c16_i32_54 = arith.constant 16 : i32
    %143 = tpu.dynamic_rotate %29 by %c16_i32_54 dim 1 : vector<4x512xf32>, i32 -> vector<4x512xf32>
    %c1_i32_55 = arith.constant 1 : i32
    %144 = vector.broadcast %c1_i32_55 : i32 to vector<1x512xi32>
    %145 = arith.cmpi sge, %1, %144 : vector<1x512xi32>
    %cst_56 = arith.constant 0.000000e+00 : f32
    %146 = vector.shape_cast %145 : vector<1x512xi1> to vector<1x512xi1>
    %147 = vector.broadcast %146 : vector<1x512xi1> to vector<4x512xi1>
    %148 = vector.broadcast %cst_56 : f32 to vector<4x512xf32>
    %149 = arith.select %147, %143, %148 : vector<4x512xi1>, vector<4x512xf32>
    %c1 = arith.constant 1 : index
    %c0_57 = arith.constant 0 : index
    %c0_58 = arith.constant 0 : index
    %150 = vector.load %arg6[%c1, %c0_57, %c0_58] : memref<9x8x4xf32, #tpu.memory_space<vmem>>, vector<1x8x4xf32>
    %151 = vector.shape_cast %150 : vector<1x8x4xf32> to vector<8x4xf32>
    %cst_59 = arith.constant dense<0.000000e+00> : vector<8x512xf32>
    %152 = tpu.matmul %151, %149, %cst_59 {dimension_numbers = #tpu.dot_dimension_numbers<[1], [0], [0], [1], [0, 0, 1, 1], [], []>} : vector<8x4xf32>, vector<4x512xf32>, vector<8x512xf32> -> vector<8x512xf32>
    %153 = arith.addf %142, %152 : vector<8x512xf32>
    %c15_i32_60 = arith.constant 15 : i32
    %154 = tpu.dynamic_rotate %29 by %c15_i32_60 dim 1 : vector<4x512xf32>, i32 -> vector<4x512xf32>
    %c1_i32_61 = arith.constant 1 : i32
    %155 = vector.broadcast %c1_i32_61 : i32 to vector<1x512xi32>
    %156 = arith.cmpi sge, %1, %155 : vector<1x512xi32>
    %c15_i32_62 = arith.constant 15 : i32
    %157 = vector.broadcast %c15_i32_62 : i32 to vector<1x512xi32>
    %158 = arith.cmpi slt, %2, %157 : vector<1x512xi32>
    %159 = arith.andi %156, %158 : vector<1x512xi1>
    %cst_63 = arith.constant 0.000000e+00 : f32
    %160 = vector.shape_cast %159 : vector<1x512xi1> to vector<1x512xi1>
    %161 = vector.broadcast %160 : vector<1x512xi1> to vector<4x512xi1>
    %162 = vector.broadcast %cst_63 : f32 to vector<4x512xf32>
    %163 = arith.select %161, %154, %162 : vector<4x512xi1>, vector<4x512xf32>
    %c2 = arith.constant 2 : index
    %c0_64 = arith.constant 0 : index
    %c0_65 = arith.constant 0 : index
    %164 = vector.load %arg6[%c2, %c0_64, %c0_65] : memref<9x8x4xf32, #tpu.memory_space<vmem>>, vector<1x8x4xf32>
    %165 = vector.shape_cast %164 : vector<1x8x4xf32> to vector<8x4xf32>
    %cst_66 = arith.constant dense<0.000000e+00> : vector<8x512xf32>
    %166 = tpu.matmul %165, %163, %cst_66 {dimension_numbers = #tpu.dot_dimension_numbers<[1], [0], [0], [1], [0, 0, 1, 1], [], []>} : vector<8x4xf32>, vector<4x512xf32>, vector<8x512xf32> -> vector<8x512xf32>
    %167 = arith.addf %153, %166 : vector<8x512xf32>
    %c1_i32_67 = arith.constant 1 : i32
    %168 = tpu.dynamic_rotate %29 by %c1_i32_67 dim 1 : vector<4x512xf32>, i32 -> vector<4x512xf32>
    %c1_i32_68 = arith.constant 1 : i32
    %169 = vector.broadcast %c1_i32_68 : i32 to vector<1x512xi32>
    %170 = arith.cmpi sge, %2, %169 : vector<1x512xi32>
    %cst_69 = arith.constant 0.000000e+00 : f32
    %171 = vector.shape_cast %170 : vector<1x512xi1> to vector<1x512xi1>
    %172 = vector.broadcast %171 : vector<1x512xi1> to vector<4x512xi1>
    %173 = vector.broadcast %cst_69 : f32 to vector<4x512xf32>
    %174 = arith.select %172, %168, %173 : vector<4x512xi1>, vector<4x512xf32>
    %c3 = arith.constant 3 : index
    %c0_70 = arith.constant 0 : index
    %c0_71 = arith.constant 0 : index
    %175 = vector.load %arg6[%c3, %c0_70, %c0_71] : memref<9x8x4xf32, #tpu.memory_space<vmem>>, vector<1x8x4xf32>
    %176 = vector.shape_cast %175 : vector<1x8x4xf32> to vector<8x4xf32>
    %cst_72 = arith.constant dense<0.000000e+00> : vector<8x512xf32>
    %177 = tpu.matmul %176, %174, %cst_72 {dimension_numbers = #tpu.dot_dimension_numbers<[1], [0], [0], [1], [0, 0, 1, 1], [], []>} : vector<8x4xf32>, vector<4x512xf32>, vector<8x512xf32> -> vector<8x512xf32>
    %178 = arith.addf %167, %177 : vector<8x512xf32>
    %c4 = arith.constant 4 : index
    %c0_73 = arith.constant 0 : index
    %c0_74 = arith.constant 0 : index
    %179 = vector.load %arg6[%c4, %c0_73, %c0_74] : memref<9x8x4xf32, #tpu.memory_space<vmem>>, vector<1x8x4xf32>
    %180 = vector.shape_cast %179 : vector<1x8x4xf32> to vector<8x4xf32>
    %cst_75 = arith.constant dense<0.000000e+00> : vector<8x512xf32>
    %181 = tpu.matmul %180, %29, %cst_75 {dimension_numbers = #tpu.dot_dimension_numbers<[1], [0], [0], [1], [0, 0, 1, 1], [], []>} : vector<8x4xf32>, vector<4x512xf32>, vector<8x512xf32> -> vector<8x512xf32>
    %182 = arith.addf %178, %181 : vector<8x512xf32>
    %c511_i32_76 = arith.constant 511 : i32
    %183 = tpu.dynamic_rotate %29 by %c511_i32_76 dim 1 : vector<4x512xf32>, i32 -> vector<4x512xf32>
    %c15_i32_77 = arith.constant 15 : i32
    %184 = vector.broadcast %c15_i32_77 : i32 to vector<1x512xi32>
    %185 = arith.cmpi slt, %2, %184 : vector<1x512xi32>
    %cst_78 = arith.constant 0.000000e+00 : f32
    %186 = vector.shape_cast %185 : vector<1x512xi1> to vector<1x512xi1>
    %187 = vector.broadcast %186 : vector<1x512xi1> to vector<4x512xi1>
    %188 = vector.broadcast %cst_78 : f32 to vector<4x512xf32>
    %189 = arith.select %187, %183, %188 : vector<4x512xi1>, vector<4x512xf32>
    %c5 = arith.constant 5 : index
    %c0_79 = arith.constant 0 : index
    %c0_80 = arith.constant 0 : index
    %190 = vector.load %arg6[%c5, %c0_79, %c0_80] : memref<9x8x4xf32, #tpu.memory_space<vmem>>, vector<1x8x4xf32>
    %191 = vector.shape_cast %190 : vector<1x8x4xf32> to vector<8x4xf32>
    %cst_81 = arith.constant dense<0.000000e+00> : vector<8x512xf32>
    %192 = tpu.matmul %191, %189, %cst_81 {dimension_numbers = #tpu.dot_dimension_numbers<[1], [0], [0], [1], [0, 0, 1, 1], [], []>} : vector<8x4xf32>, vector<4x512xf32>, vector<8x512xf32> -> vector<8x512xf32>
    %193 = arith.addf %182, %192 : vector<8x512xf32>
    %c497_i32_82 = arith.constant 497 : i32
    %194 = tpu.dynamic_rotate %29 by %c497_i32_82 dim 1 : vector<4x512xf32>, i32 -> vector<4x512xf32>
    %c15_i32_83 = arith.constant 15 : i32
    %195 = vector.broadcast %c15_i32_83 : i32 to vector<1x512xi32>
    %196 = arith.cmpi slt, %1, %195 : vector<1x512xi32>
    %c1_i32_84 = arith.constant 1 : i32
    %197 = vector.broadcast %c1_i32_84 : i32 to vector<1x512xi32>
    %198 = arith.cmpi sge, %2, %197 : vector<1x512xi32>
    %199 = arith.andi %196, %198 : vector<1x512xi1>
    %cst_85 = arith.constant 0.000000e+00 : f32
    %200 = vector.shape_cast %199 : vector<1x512xi1> to vector<1x512xi1>
    %201 = vector.broadcast %200 : vector<1x512xi1> to vector<4x512xi1>
    %202 = vector.broadcast %cst_85 : f32 to vector<4x512xf32>
    %203 = arith.select %201, %194, %202 : vector<4x512xi1>, vector<4x512xf32>
    %c6 = arith.constant 6 : index
    %c0_86 = arith.constant 0 : index
    %c0_87 = arith.constant 0 : index
    %204 = vector.load %arg6[%c6, %c0_86, %c0_87] : memref<9x8x4xf32, #tpu.memory_space<vmem>>, vector<1x8x4xf32>
    %205 = vector.shape_cast %204 : vector<1x8x4xf32> to vector<8x4xf32>
    %cst_88 = arith.constant dense<0.000000e+00> : vector<8x512xf32>
    %206 = tpu.matmul %205, %203, %cst_88 {dimension_numbers = #tpu.dot_dimension_numbers<[1], [0], [0], [1], [0, 0, 1, 1], [], []>} : vector<8x4xf32>, vector<4x512xf32>, vector<8x512xf32> -> vector<8x512xf32>
    %207 = arith.addf %193, %206 : vector<8x512xf32>
    %c496_i32_89 = arith.constant 496 : i32
    %208 = tpu.dynamic_rotate %29 by %c496_i32_89 dim 1 : vector<4x512xf32>, i32 -> vector<4x512xf32>
    %c15_i32_90 = arith.constant 15 : i32
    %209 = vector.broadcast %c15_i32_90 : i32 to vector<1x512xi32>
    %210 = arith.cmpi slt, %1, %209 : vector<1x512xi32>
    %cst_91 = arith.constant 0.000000e+00 : f32
    %211 = vector.shape_cast %210 : vector<1x512xi1> to vector<1x512xi1>
    %212 = vector.broadcast %211 : vector<1x512xi1> to vector<4x512xi1>
    %213 = vector.broadcast %cst_91 : f32 to vector<4x512xf32>
    %214 = arith.select %212, %208, %213 : vector<4x512xi1>, vector<4x512xf32>
    %c7 = arith.constant 7 : index
    %c0_92 = arith.constant 0 : index
    %c0_93 = arith.constant 0 : index
    %215 = vector.load %arg6[%c7, %c0_92, %c0_93] : memref<9x8x4xf32, #tpu.memory_space<vmem>>, vector<1x8x4xf32>
    %216 = vector.shape_cast %215 : vector<1x8x4xf32> to vector<8x4xf32>
    %cst_94 = arith.constant dense<0.000000e+00> : vector<8x512xf32>
    %217 = tpu.matmul %216, %214, %cst_94 {dimension_numbers = #tpu.dot_dimension_numbers<[1], [0], [0], [1], [0, 0, 1, 1], [], []>} : vector<8x4xf32>, vector<4x512xf32>, vector<8x512xf32> -> vector<8x512xf32>
    %218 = arith.addf %207, %217 : vector<8x512xf32>
    %c495_i32_95 = arith.constant 495 : i32
    %219 = tpu.dynamic_rotate %29 by %c495_i32_95 dim 1 : vector<4x512xf32>, i32 -> vector<4x512xf32>
    %c15_i32_96 = arith.constant 15 : i32
    %220 = vector.broadcast %c15_i32_96 : i32 to vector<1x512xi32>
    %221 = arith.cmpi slt, %1, %220 : vector<1x512xi32>
    %c15_i32_97 = arith.constant 15 : i32
    %222 = vector.broadcast %c15_i32_97 : i32 to vector<1x512xi32>
    %223 = arith.cmpi slt, %2, %222 : vector<1x512xi32>
    %224 = arith.andi %221, %223 : vector<1x512xi1>
    %cst_98 = arith.constant 0.000000e+00 : f32
    %225 = vector.shape_cast %224 : vector<1x512xi1> to vector<1x512xi1>
    %226 = vector.broadcast %225 : vector<1x512xi1> to vector<4x512xi1>
    %227 = vector.broadcast %cst_98 : f32 to vector<4x512xf32>
    %228 = arith.select %226, %219, %227 : vector<4x512xi1>, vector<4x512xf32>
    %c8 = arith.constant 8 : index
    %c0_99 = arith.constant 0 : index
    %c0_100 = arith.constant 0 : index
    %229 = vector.load %arg6[%c8, %c0_99, %c0_100] : memref<9x8x4xf32, #tpu.memory_space<vmem>>, vector<1x8x4xf32>
    %230 = vector.shape_cast %229 : vector<1x8x4xf32> to vector<8x4xf32>
    %cst_101 = arith.constant dense<0.000000e+00> : vector<8x512xf32>
    %231 = tpu.matmul %230, %228, %cst_101 {dimension_numbers = #tpu.dot_dimension_numbers<[1], [0], [0], [1], [0, 0, 1, 1], [], []>} : vector<8x4xf32>, vector<4x512xf32>, vector<8x512xf32> -> vector<8x512xf32>
    %232 = arith.addf %218, %231 : vector<8x512xf32>
    %c0_102 = arith.constant 0 : index
    %c0_103 = arith.constant 0 : index
    %233 = vector.load %arg7[%c0_102, %c0_103] : memref<8x1xf32, #tpu.memory_space<vmem>>, vector<8x1xf32>
    %c0_104 = arith.constant 0 : index
    %c0_105 = arith.constant 0 : index
    %234 = vector.load %arg8[%c0_104, %c0_105] : memref<8x1xf32, #tpu.memory_space<vmem>>, vector<8x1xf32>
    %cst_106 = arith.constant dense<0.000000e+00> : vector<8xf32>
    %235 = vector.multi_reduction <add>, %232, %cst_106 [1] : vector<8x512xf32> to vector<8xf32>
    %236 = vector.shape_cast %235 : vector<8xf32> to vector<8x1xf32>
    %cst_107 = arith.constant 0.001953125 : f32
    %237 = vector.broadcast %cst_107 : f32 to vector<8x1xf32>
    %238 = arith.mulf %236, %237 : vector<8x1xf32>
    %239 = vector.broadcast %238 : vector<8x1xf32> to vector<8x512xf32>
    %240 = arith.subf %232, %239 : vector<8x512xf32>
    %241 = arith.mulf %240, %240 : vector<8x512xf32>
    %cst_108 = arith.constant dense<0.000000e+00> : vector<8xf32>
    %242 = vector.multi_reduction <add>, %241, %cst_108 [1] : vector<8x512xf32> to vector<8xf32>
    %243 = vector.shape_cast %242 : vector<8xf32> to vector<8x1xf32>
    %cst_109 = arith.constant 0.001953125 : f32
    %244 = vector.broadcast %cst_109 : f32 to vector<8x1xf32>
    %245 = arith.mulf %243, %244 : vector<8x1xf32>
    %cst_110 = arith.constant 1.000000e-03 : f32
    %246 = vector.broadcast %cst_110 : f32 to vector<8x1xf32>
    %247 = arith.addf %245, %246 : vector<8x1xf32>
    %248 = math.rsqrt %247 : vector<8x1xf32>
    %249 = vector.broadcast %248 : vector<8x1xf32> to vector<8x512xf32>
    %250 = arith.mulf %240, %249 : vector<8x512xf32>
    %251 = vector.broadcast %233 : vector<8x1xf32> to vector<8x512xf32>
    %252 = arith.mulf %250, %251 : vector<8x512xf32>
    %253 = vector.broadcast %234 : vector<8x1xf32> to vector<8x512xf32>
    %254 = arith.addf %252, %253 : vector<8x512xf32>
    %cst_111 = arith.constant 0.000000e+00 : f32
    %255 = vector.broadcast %cst_111 : f32 to vector<8x512xf32>
    %256 = arith.maximumf %254, %255 : vector<8x512xf32>
    %c8_112 = arith.constant 8 : index
    %c0_113 = arith.constant 0 : index
    %257 = vector.load %arg15[%c8_112, %c0_113] : memref<32x512xf32, #tpu.memory_space<vmem>>, vector<8x512xf32>
    tpu.vector_store %arg15[%c8_112, %c0_113], %256 {strides = array<i32>} : memref<32x512xf32, #tpu.memory_space<vmem>>, vector<8x512xf32>,
    %cst_114 = arith.constant 0.000000e+00 : f32
    %258 = vector.broadcast %cst_114 : f32 to vector<8x512xf32>
    %c34_i32 = arith.constant 34 : i32
    %259 = tpu.dynamic_rotate %30 by %c34_i32 dim 1 : vector<4x512xf32>, i32 -> vector<4x512xf32>
    %c2_i32 = arith.constant 2 : i32
    %260 = vector.broadcast %c2_i32 : i32 to vector<1x512xi32>
    %261 = arith.cmpi sge, %1, %260 : vector<1x512xi32>
    %c2_i32_115 = arith.constant 2 : i32
    %262 = vector.broadcast %c2_i32_115 : i32 to vector<1x512xi32>
    %263 = arith.cmpi sge, %2, %262 : vector<1x512xi32>
    %264 = arith.andi %261, %263 : vector<1x512xi1>
    %cst_116 = arith.constant 0.000000e+00 : f32
    %265 = vector.shape_cast %264 : vector<1x512xi1> to vector<1x512xi1>
    %266 = vector.broadcast %265 : vector<1x512xi1> to vector<4x512xi1>
    %267 = vector.broadcast %cst_116 : f32 to vector<4x512xf32>
    %268 = arith.select %266, %259, %267 : vector<4x512xi1>, vector<4x512xf32>
    %c0_117 = arith.constant 0 : index
    %c0_118 = arith.constant 0 : index
    %c0_119 = arith.constant 0 : index
    %269 = vector.load %arg9[%c0_117, %c0_118, %c0_119] : memref<25x8x4xf32, #tpu.memory_space<vmem>>, vector<1x8x4xf32>
    %270 = vector.shape_cast %269 : vector<1x8x4xf32> to vector<8x4xf32>
    %cst_120 = arith.constant dense<0.000000e+00> : vector<8x512xf32>
    %271 = tpu.matmul %270, %268, %cst_120 {dimension_numbers = #tpu.dot_dimension_numbers<[1], [0], [0], [1], [0, 0, 1, 1], [], []>} : vector<8x4xf32>, vector<4x512xf32>, vector<8x512xf32> -> vector<8x512xf32>
    %272 = arith.addf %258, %271 : vector<8x512xf32>
    %c33_i32 = arith.constant 33 : i32
    %273 = tpu.dynamic_rotate %30 by %c33_i32 dim 1 : vector<4x512xf32>, i32 -> vector<4x512xf32>
    %c2_i32_121 = arith.constant 2 : i32
    %274 = vector.broadcast %c2_i32_121 : i32 to vector<1x512xi32>
    %275 = arith.cmpi sge, %1, %274 : vector<1x512xi32>
    %c1_i32_122 = arith.constant 1 : i32
    %276 = vector.broadcast %c1_i32_122 : i32 to vector<1x512xi32>
    %277 = arith.cmpi sge, %2, %276 : vector<1x512xi32>
    %278 = arith.andi %275, %277 : vector<1x512xi1>
    %cst_123 = arith.constant 0.000000e+00 : f32
    %279 = vector.shape_cast %278 : vector<1x512xi1> to vector<1x512xi1>
    %280 = vector.broadcast %279 : vector<1x512xi1> to vector<4x512xi1>
    %281 = vector.broadcast %cst_123 : f32 to vector<4x512xf32>
    %282 = arith.select %280, %273, %281 : vector<4x512xi1>, vector<4x512xf32>
    %c1_124 = arith.constant 1 : index
    %c0_125 = arith.constant 0 : index
    %c0_126 = arith.constant 0 : index
    %283 = vector.load %arg9[%c1_124, %c0_125, %c0_126] : memref<25x8x4xf32, #tpu.memory_space<vmem>>, vector<1x8x4xf32>
    %284 = vector.shape_cast %283 : vector<1x8x4xf32> to vector<8x4xf32>
    %cst_127 = arith.constant dense<0.000000e+00> : vector<8x512xf32>
    %285 = tpu.matmul %284, %282, %cst_127 {dimension_numbers = #tpu.dot_dimension_numbers<[1], [0], [0], [1], [0, 0, 1, 1], [], []>} : vector<8x4xf32>, vector<4x512xf32>, vector<8x512xf32> -> vector<8x512xf32>
    %286 = arith.addf %272, %285 : vector<8x512xf32>
    %c32_i32 = arith.constant 32 : i32
    %287 = tpu.dynamic_rotate %30 by %c32_i32 dim 1 : vector<4x512xf32>, i32 -> vector<4x512xf32>
    %c2_i32_128 = arith.constant 2 : i32
    %288 = vector.broadcast %c2_i32_128 : i32 to vector<1x512xi32>
    %289 = arith.cmpi sge, %1, %288 : vector<1x512xi32>
    %cst_129 = arith.constant 0.000000e+00 : f32
    %290 = vector.shape_cast %289 : vector<1x512xi1> to vector<1x512xi1>
    %291 = vector.broadcast %290 : vector<1x512xi1> to vector<4x512xi1>
    %292 = vector.broadcast %cst_129 : f32 to vector<4x512xf32>
    %293 = arith.select %291, %287, %292 : vector<4x512xi1>, vector<4x512xf32>
    %c2_130 = arith.constant 2 : index
    %c0_131 = arith.constant 0 : index
    %c0_132 = arith.constant 0 : index
    %294 = vector.load %arg9[%c2_130, %c0_131, %c0_132] : memref<25x8x4xf32, #tpu.memory_space<vmem>>, vector<1x8x4xf32>
    %295 = vector.shape_cast %294 : vector<1x8x4xf32> to vector<8x4xf32>
    %cst_133 = arith.constant dense<0.000000e+00> : vector<8x512xf32>
    %296 = tpu.matmul %295, %293, %cst_133 {dimension_numbers = #tpu.dot_dimension_numbers<[1], [0], [0], [1], [0, 0, 1, 1], [], []>} : vector<8x4xf32>, vector<4x512xf32>, vector<8x512xf32> -> vector<8x512xf32>
    %297 = arith.addf %286, %296 : vector<8x512xf32>
    %c31_i32 = arith.constant 31 : i32
    %298 = tpu.dynamic_rotate %30 by %c31_i32 dim 1 : vector<4x512xf32>, i32 -> vector<4x512xf32>
    %c2_i32_134 = arith.constant 2 : i32
    %299 = vector.broadcast %c2_i32_134 : i32 to vector<1x512xi32>
    %300 = arith.cmpi sge, %1, %299 : vector<1x512xi32>
    %c15_i32_135 = arith.constant 15 : i32
    %301 = vector.broadcast %c15_i32_135 : i32 to vector<1x512xi32>
    %302 = arith.cmpi slt, %2, %301 : vector<1x512xi32>
    %303 = arith.andi %300, %302 : vector<1x512xi1>
    %cst_136 = arith.constant 0.000000e+00 : f32
    %304 = vector.shape_cast %303 : vector<1x512xi1> to vector<1x512xi1>
    %305 = vector.broadcast %304 : vector<1x512xi1> to vector<4x512xi1>
    %306 = vector.broadcast %cst_136 : f32 to vector<4x512xf32>
    %307 = arith.select %305, %298, %306 : vector<4x512xi1>, vector<4x512xf32>
    %c3_137 = arith.constant 3 : index
    %c0_138 = arith.constant 0 : index
    %c0_139 = arith.constant 0 : index
    %308 = vector.load %arg9[%c3_137, %c0_138, %c0_139] : memref<25x8x4xf32, #tpu.memory_space<vmem>>, vector<1x8x4xf32>
    %309 = vector.shape_cast %308 : vector<1x8x4xf32> to vector<8x4xf32>
    %cst_140 = arith.constant dense<0.000000e+00> : vector<8x512xf32>
    %310 = tpu.matmul %309, %307, %cst_140 {dimension_numbers = #tpu.dot_dimension_numbers<[1], [0], [0], [1], [0, 0, 1, 1], [], []>} : vector<8x4xf32>, vector<4x512xf32>, vector<8x512xf32> -> vector<8x512xf32>
    %311 = arith.addf %297, %310 : vector<8x512xf32>
    %c30_i32 = arith.constant 30 : i32
    %312 = tpu.dynamic_rotate %30 by %c30_i32 dim 1 : vector<4x512xf32>, i32 -> vector<4x512xf32>
    %c2_i32_141 = arith.constant 2 : i32
    %313 = vector.broadcast %c2_i32_141 : i32 to vector<1x512xi32>
    %314 = arith.cmpi sge, %1, %313 : vector<1x512xi32>
    %c14_i32 = arith.constant 14 : i32
    %315 = vector.broadcast %c14_i32 : i32 to vector<1x512xi32>
    %316 = arith.cmpi slt, %2, %315 : vector<1x512xi32>
    %317 = arith.andi %314, %316 : vector<1x512xi1>
    %cst_142 = arith.constant 0.000000e+00 : f32
    %318 = vector.shape_cast %317 : vector<1x512xi1> to vector<1x512xi1>
    %319 = vector.broadcast %318 : vector<1x512xi1> to vector<4x512xi1>
    %320 = vector.broadcast %cst_142 : f32 to vector<4x512xf32>
    %321 = arith.select %319, %312, %320 : vector<4x512xi1>, vector<4x512xf32>
    %c4_143 = arith.constant 4 : index
    %c0_144 = arith.constant 0 : index
    %c0_145 = arith.constant 0 : index
    %322 = vector.load %arg9[%c4_143, %c0_144, %c0_145] : memref<25x8x4xf32, #tpu.memory_space<vmem>>, vector<1x8x4xf32>
    %323 = vector.shape_cast %322 : vector<1x8x4xf32> to vector<8x4xf32>
    %cst_146 = arith.constant dense<0.000000e+00> : vector<8x512xf32>
    %324 = tpu.matmul %323, %321, %cst_146 {dimension_numbers = #tpu.dot_dimension_numbers<[1], [0], [0], [1], [0, 0, 1, 1], [], []>} : vector<8x4xf32>, vector<4x512xf32>, vector<8x512xf32> -> vector<8x512xf32>
    %325 = arith.addf %311, %324 : vector<8x512xf32>
    %c18_i32 = arith.constant 18 : i32
    %326 = tpu.dynamic_rotate %30 by %c18_i32 dim 1 : vector<4x512xf32>, i32 -> vector<4x512xf32>
    %c1_i32_147 = arith.constant 1 : i32
    %327 = vector.broadcast %c1_i32_147 : i32 to vector<1x512xi32>
    %328 = arith.cmpi sge, %1, %327 : vector<1x512xi32>
    %c2_i32_148 = arith.constant 2 : i32
    %329 = vector.broadcast %c2_i32_148 : i32 to vector<1x512xi32>
    %330 = arith.cmpi sge, %2, %329 : vector<1x512xi32>
    %331 = arith.andi %328, %330 : vector<1x512xi1>
    %cst_149 = arith.constant 0.000000e+00 : f32
    %332 = vector.shape_cast %331 : vector<1x512xi1> to vector<1x512xi1>
    %333 = vector.broadcast %332 : vector<1x512xi1> to vector<4x512xi1>
    %334 = vector.broadcast %cst_149 : f32 to vector<4x512xf32>
    %335 = arith.select %333, %326, %334 : vector<4x512xi1>, vector<4x512xf32>
    %c5_150 = arith.constant 5 : index
    %c0_151 = arith.constant 0 : index
    %c0_152 = arith.constant 0 : index
    %336 = vector.load %arg9[%c5_150, %c0_151, %c0_152] : memref<25x8x4xf32, #tpu.memory_space<vmem>>, vector<1x8x4xf32>
    %337 = vector.shape_cast %336 : vector<1x8x4xf32> to vector<8x4xf32>
    %cst_153 = arith.constant dense<0.000000e+00> : vector<8x512xf32>
    %338 = tpu.matmul %337, %335, %cst_153 {dimension_numbers = #tpu.dot_dimension_numbers<[1], [0], [0], [1], [0, 0, 1, 1], [], []>} : vector<8x4xf32>, vector<4x512xf32>, vector<8x512xf32> -> vector<8x512xf32>
    %339 = arith.addf %325, %338 : vector<8x512xf32>
    %c17_i32_154 = arith.constant 17 : i32
    %340 = tpu.dynamic_rotate %30 by %c17_i32_154 dim 1 : vector<4x512xf32>, i32 -> vector<4x512xf32>
    %c1_i32_155 = arith.constant 1 : i32
    %341 = vector.broadcast %c1_i32_155 : i32 to vector<1x512xi32>
    %342 = arith.cmpi sge, %1, %341 : vector<1x512xi32>
    %c1_i32_156 = arith.constant 1 : i32
    %343 = vector.broadcast %c1_i32_156 : i32 to vector<1x512xi32>
    %344 = arith.cmpi sge, %2, %343 : vector<1x512xi32>
    %345 = arith.andi %342, %344 : vector<1x512xi1>
    %cst_157 = arith.constant 0.000000e+00 : f32
    %346 = vector.shape_cast %345 : vector<1x512xi1> to vector<1x512xi1>
    %347 = vector.broadcast %346 : vector<1x512xi1> to vector<4x512xi1>
    %348 = vector.broadcast %cst_157 : f32 to vector<4x512xf32>
    %349 = arith.select %347, %340, %348 : vector<4x512xi1>, vector<4x512xf32>
    %c6_158 = arith.constant 6 : index
    %c0_159 = arith.constant 0 : index
    %c0_160 = arith.constant 0 : index
    %350 = vector.load %arg9[%c6_158, %c0_159, %c0_160] : memref<25x8x4xf32, #tpu.memory_space<vmem>>, vector<1x8x4xf32>
    %351 = vector.shape_cast %350 : vector<1x8x4xf32> to vector<8x4xf32>
    %cst_161 = arith.constant dense<0.000000e+00> : vector<8x512xf32>
    %352 = tpu.matmul %351, %349, %cst_161 {dimension_numbers = #tpu.dot_dimension_numbers<[1], [0], [0], [1], [0, 0, 1, 1], [], []>} : vector<8x4xf32>, vector<4x512xf32>, vector<8x512xf32> -> vector<8x512xf32>
    %353 = arith.addf %339, %352 : vector<8x512xf32>
    %c16_i32_162 = arith.constant 16 : i32
    %354 = tpu.dynamic_rotate %30 by %c16_i32_162 dim 1 : vector<4x512xf32>, i32 -> vector<4x512xf32>
    %c1_i32_163 = arith.constant 1 : i32
    %355 = vector.broadcast %c1_i32_163 : i32 to vector<1x512xi32>
    %356 = arith.cmpi sge, %1, %355 : vector<1x512xi32>
    %cst_164 = arith.constant 0.000000e+00 : f32
    %357 = vector.shape_cast %356 : vector<1x512xi1> to vector<1x512xi1>
    %358 = vector.broadcast %357 : vector<1x512xi1> to vector<4x512xi1>
    %359 = vector.broadcast %cst_164 : f32 to vector<4x512xf32>
    %360 = arith.select %358, %354, %359 : vector<4x512xi1>, vector<4x512xf32>
    %c7_165 = arith.constant 7 : index
    %c0_166 = arith.constant 0 : index
    %c0_167 = arith.constant 0 : index
    %361 = vector.load %arg9[%c7_165, %c0_166, %c0_167] : memref<25x8x4xf32, #tpu.memory_space<vmem>>, vector<1x8x4xf32>
    %362 = vector.shape_cast %361 : vector<1x8x4xf32> to vector<8x4xf32>
    %cst_168 = arith.constant dense<0.000000e+00> : vector<8x512xf32>
    %363 = tpu.matmul %362, %360, %cst_168 {dimension_numbers = #tpu.dot_dimension_numbers<[1], [0], [0], [1], [0, 0, 1, 1], [], []>} : vector<8x4xf32>, vector<4x512xf32>, vector<8x512xf32> -> vector<8x512xf32>
    %364 = arith.addf %353, %363 : vector<8x512xf32>
    %c15_i32_169 = arith.constant 15 : i32
    %365 = tpu.dynamic_rotate %30 by %c15_i32_169 dim 1 : vector<4x512xf32>, i32 -> vector<4x512xf32>
    %c1_i32_170 = arith.constant 1 : i32
    %366 = vector.broadcast %c1_i32_170 : i32 to vector<1x512xi32>
    %367 = arith.cmpi sge, %1, %366 : vector<1x512xi32>
    %c15_i32_171 = arith.constant 15 : i32
    %368 = vector.broadcast %c15_i32_171 : i32 to vector<1x512xi32>
    %369 = arith.cmpi slt, %2, %368 : vector<1x512xi32>
    %370 = arith.andi %367, %369 : vector<1x512xi1>
    %cst_172 = arith.constant 0.000000e+00 : f32
    %371 = vector.shape_cast %370 : vector<1x512xi1> to vector<1x512xi1>
    %372 = vector.broadcast %371 : vector<1x512xi1> to vector<4x512xi1>
    %373 = vector.broadcast %cst_172 : f32 to vector<4x512xf32>
    %374 = arith.select %372, %365, %373 : vector<4x512xi1>, vector<4x512xf32>
    %c8_173 = arith.constant 8 : index
    %c0_174 = arith.constant 0 : index
    %c0_175 = arith.constant 0 : index
    %375 = vector.load %arg9[%c8_173, %c0_174, %c0_175] : memref<25x8x4xf32, #tpu.memory_space<vmem>>, vector<1x8x4xf32>
    %376 = vector.shape_cast %375 : vector<1x8x4xf32> to vector<8x4xf32>
    %cst_176 = arith.constant dense<0.000000e+00> : vector<8x512xf32>
    %377 = tpu.matmul %376, %374, %cst_176 {dimension_numbers = #tpu.dot_dimension_numbers<[1], [0], [0], [1], [0, 0, 1, 1], [], []>} : vector<8x4xf32>, vector<4x512xf32>, vector<8x512xf32> -> vector<8x512xf32>
    %378 = arith.addf %364, %377 : vector<8x512xf32>
    %c14_i32_177 = arith.constant 14 : i32
    %379 = tpu.dynamic_rotate %30 by %c14_i32_177 dim 1 : vector<4x512xf32>, i32 -> vector<4x512xf32>
    %c1_i32_178 = arith.constant 1 : i32
    %380 = vector.broadcast %c1_i32_178 : i32 to vector<1x512xi32>
    %381 = arith.cmpi sge, %1, %380 : vector<1x512xi32>
    %c14_i32_179 = arith.constant 14 : i32
    %382 = vector.broadcast %c14_i32_179 : i32 to vector<1x512xi32>
    %383 = arith.cmpi slt, %2, %382 : vector<1x512xi32>
    %384 = arith.andi %381, %383 : vector<1x512xi1>
    %cst_180 = arith.constant 0.000000e+00 : f32
    %385 = vector.shape_cast %384 : vector<1x512xi1> to vector<1x512xi1>
    %386 = vector.broadcast %385 : vector<1x512xi1> to vector<4x512xi1>
    %387 = vector.broadcast %cst_180 : f32 to vector<4x512xf32>
    %388 = arith.select %386, %379, %387 : vector<4x512xi1>, vector<4x512xf32>
    %c9 = arith.constant 9 : index
    %c0_181 = arith.constant 0 : index
    %c0_182 = arith.constant 0 : index
    %389 = vector.load %arg9[%c9, %c0_181, %c0_182] : memref<25x8x4xf32, #tpu.memory_space<vmem>>, vector<1x8x4xf32>
    %390 = vector.shape_cast %389 : vector<1x8x4xf32> to vector<8x4xf32>
    %cst_183 = arith.constant dense<0.000000e+00> : vector<8x512xf32>
    %391 = tpu.matmul %390, %388, %cst_183 {dimension_numbers = #tpu.dot_dimension_numbers<[1], [0], [0], [1], [0, 0, 1, 1], [], []>} : vector<8x4xf32>, vector<4x512xf32>, vector<8x512xf32> -> vector<8x512xf32>
    %392 = arith.addf %378, %391 : vector<8x512xf32>
    %c2_i32_184 = arith.constant 2 : i32
    %393 = tpu.dynamic_rotate %30 by %c2_i32_184 dim 1 : vector<4x512xf32>, i32 -> vector<4x512xf32>
    %c2_i32_185 = arith.constant 2 : i32
    %394 = vector.broadcast %c2_i32_185 : i32 to vector<1x512xi32>
    %395 = arith.cmpi sge, %2, %394 : vector<1x512xi32>
    %cst_186 = arith.constant 0.000000e+00 : f32
    %396 = vector.shape_cast %395 : vector<1x512xi1> to vector<1x512xi1>
    %397 = vector.broadcast %396 : vector<1x512xi1> to vector<4x512xi1>
    %398 = vector.broadcast %cst_186 : f32 to vector<4x512xf32>
    %399 = arith.select %397, %393, %398 : vector<4x512xi1>, vector<4x512xf32>
    %c10 = arith.constant 10 : index
    %c0_187 = arith.constant 0 : index
    %c0_188 = arith.constant 0 : index
    %400 = vector.load %arg9[%c10, %c0_187, %c0_188] : memref<25x8x4xf32, #tpu.memory_space<vmem>>, vector<1x8x4xf32>
    %401 = vector.shape_cast %400 : vector<1x8x4xf32> to vector<8x4xf32>
    %cst_189 = arith.constant dense<0.000000e+00> : vector<8x512xf32>
    %402 = tpu.matmul %401, %399, %cst_189 {dimension_numbers = #tpu.dot_dimension_numbers<[1], [0], [0], [1], [0, 0, 1, 1], [], []>} : vector<8x4xf32>, vector<4x512xf32>, vector<8x512xf32> -> vector<8x512xf32>
    %403 = arith.addf %392, %402 : vector<8x512xf32>
    %c1_i32_190 = arith.constant 1 : i32
    %404 = tpu.dynamic_rotate %30 by %c1_i32_190 dim 1 : vector<4x512xf32>, i32 -> vector<4x512xf32>
    %c1_i32_191 = arith.constant 1 : i32
    %405 = vector.broadcast %c1_i32_191 : i32 to vector<1x512xi32>
    %406 = arith.cmpi sge, %2, %405 : vector<1x512xi32>
    %cst_192 = arith.constant 0.000000e+00 : f32
    %407 = vector.shape_cast %406 : vector<1x512xi1> to vector<1x512xi1>
    %408 = vector.broadcast %407 : vector<1x512xi1> to vector<4x512xi1>
    %409 = vector.broadcast %cst_192 : f32 to vector<4x512xf32>
    %410 = arith.select %408, %404, %409 : vector<4x512xi1>, vector<4x512xf32>
    %c11 = arith.constant 11 : index
    %c0_193 = arith.constant 0 : index
    %c0_194 = arith.constant 0 : index
    %411 = vector.load %arg9[%c11, %c0_193, %c0_194] : memref<25x8x4xf32, #tpu.memory_space<vmem>>, vector<1x8x4xf32>
    %412 = vector.shape_cast %411 : vector<1x8x4xf32> to vector<8x4xf32>
    %cst_195 = arith.constant dense<0.000000e+00> : vector<8x512xf32>
    %413 = tpu.matmul %412, %410, %cst_195 {dimension_numbers = #tpu.dot_dimension_numbers<[1], [0], [0], [1], [0, 0, 1, 1], [], []>} : vector<8x4xf32>, vector<4x512xf32>, vector<8x512xf32> -> vector<8x512xf32>
    %414 = arith.addf %403, %413 : vector<8x512xf32>
    %c12 = arith.constant 12 : index
    %c0_196 = arith.constant 0 : index
    %c0_197 = arith.constant 0 : index
    %415 = vector.load %arg9[%c12, %c0_196, %c0_197] : memref<25x8x4xf32, #tpu.memory_space<vmem>>, vector<1x8x4xf32>
    %416 = vector.shape_cast %415 : vector<1x8x4xf32> to vector<8x4xf32>
    %cst_198 = arith.constant dense<0.000000e+00> : vector<8x512xf32>
    %417 = tpu.matmul %416, %30, %cst_198 {dimension_numbers = #tpu.dot_dimension_numbers<[1], [0], [0], [1], [0, 0, 1, 1], [], []>} : vector<8x4xf32>, vector<4x512xf32>, vector<8x512xf32> -> vector<8x512xf32>
    %418 = arith.addf %414, %417 : vector<8x512xf32>
    %c511_i32_199 = arith.constant 511 : i32
    %419 = tpu.dynamic_rotate %30 by %c511_i32_199 dim 1 : vector<4x512xf32>, i32 -> vector<4x512xf32>
    %c15_i32_200 = arith.constant 15 : i32
    %420 = vector.broadcast %c15_i32_200 : i32 to vector<1x512xi32>
    %421 = arith.cmpi slt, %2, %420 : vector<1x512xi32>
    %cst_201 = arith.constant 0.000000e+00 : f32
    %422 = vector.shape_cast %421 : vector<1x512xi1> to vector<1x512xi1>
    %423 = vector.broadcast %422 : vector<1x512xi1> to vector<4x512xi1>
    %424 = vector.broadcast %cst_201 : f32 to vector<4x512xf32>
    %425 = arith.select %423, %419, %424 : vector<4x512xi1>, vector<4x512xf32>
    %c13 = arith.constant 13 : index
    %c0_202 = arith.constant 0 : index
    %c0_203 = arith.constant 0 : index
    %426 = vector.load %arg9[%c13, %c0_202, %c0_203] : memref<25x8x4xf32, #tpu.memory_space<vmem>>, vector<1x8x4xf32>
    %427 = vector.shape_cast %426 : vector<1x8x4xf32> to vector<8x4xf32>
    %cst_204 = arith.constant dense<0.000000e+00> : vector<8x512xf32>
    %428 = tpu.matmul %427, %425, %cst_204 {dimension_numbers = #tpu.dot_dimension_numbers<[1], [0], [0], [1], [0, 0, 1, 1], [], []>} : vector<8x4xf32>, vector<4x512xf32>, vector<8x512xf32> -> vector<8x512xf32>
    %429 = arith.addf %418, %428 : vector<8x512xf32>
    %c510_i32 = arith.constant 510 : i32
    %430 = tpu.dynamic_rotate %30 by %c510_i32 dim 1 : vector<4x512xf32>, i32 -> vector<4x512xf32>
    %c14_i32_205 = arith.constant 14 : i32
    %431 = vector.broadcast %c14_i32_205 : i32 to vector<1x512xi32>
    %432 = arith.cmpi slt, %2, %431 : vector<1x512xi32>
    %cst_206 = arith.constant 0.000000e+00 : f32
    %433 = vector.shape_cast %432 : vector<1x512xi1> to vector<1x512xi1>
    %434 = vector.broadcast %433 : vector<1x512xi1> to vector<4x512xi1>
    %435 = vector.broadcast %cst_206 : f32 to vector<4x512xf32>
    %436 = arith.select %434, %430, %435 : vector<4x512xi1>, vector<4x512xf32>
    %c14 = arith.constant 14 : index
    %c0_207 = arith.constant 0 : index
    %c0_208 = arith.constant 0 : index
    %437 = vector.load %arg9[%c14, %c0_207, %c0_208] : memref<25x8x4xf32, #tpu.memory_space<vmem>>, vector<1x8x4xf32>
    %438 = vector.shape_cast %437 : vector<1x8x4xf32> to vector<8x4xf32>
    %cst_209 = arith.constant dense<0.000000e+00> : vector<8x512xf32>
    %439 = tpu.matmul %438, %436, %cst_209 {dimension_numbers = #tpu.dot_dimension_numbers<[1], [0], [0], [1], [0, 0, 1, 1], [], []>} : vector<8x4xf32>, vector<4x512xf32>, vector<8x512xf32> -> vector<8x512xf32>
    %440 = arith.addf %429, %439 : vector<8x512xf32>
    %c498_i32 = arith.constant 498 : i32
    %441 = tpu.dynamic_rotate %30 by %c498_i32 dim 1 : vector<4x512xf32>, i32 -> vector<4x512xf32>
    %c15_i32_210 = arith.constant 15 : i32
    %442 = vector.broadcast %c15_i32_210 : i32 to vector<1x512xi32>
    %443 = arith.cmpi slt, %1, %442 : vector<1x512xi32>
    %c2_i32_211 = arith.constant 2 : i32
    %444 = vector.broadcast %c2_i32_211 : i32 to vector<1x512xi32>
    %445 = arith.cmpi sge, %2, %444 : vector<1x512xi32>
    %446 = arith.andi %443, %445 : vector<1x512xi1>
    %cst_212 = arith.constant 0.000000e+00 : f32
    %447 = vector.shape_cast %446 : vector<1x512xi1> to vector<1x512xi1>
    %448 = vector.broadcast %447 : vector<1x512xi1> to vector<4x512xi1>
    %449 = vector.broadcast %cst_212 : f32 to vector<4x512xf32>
    %450 = arith.select %448, %441, %449 : vector<4x512xi1>, vector<4x512xf32>
    %c15 = arith.constant 15 : index
    %c0_213 = arith.constant 0 : index
    %c0_214 = arith.constant 0 : index
    %451 = vector.load %arg9[%c15, %c0_213, %c0_214] : memref<25x8x4xf32, #tpu.memory_space<vmem>>, vector<1x8x4xf32>
    %452 = vector.shape_cast %451 : vector<1x8x4xf32> to vector<8x4xf32>
    %cst_215 = arith.constant dense<0.000000e+00> : vector<8x512xf32>
    %453 = tpu.matmul %452, %450, %cst_215 {dimension_numbers = #tpu.dot_dimension_numbers<[1], [0], [0], [1], [0, 0, 1, 1], [], []>} : vector<8x4xf32>, vector<4x512xf32>, vector<8x512xf32> -> vector<8x512xf32>
    %454 = arith.addf %440, %453 : vector<8x512xf32>
    %c497_i32_216 = arith.constant 497 : i32
    %455 = tpu.dynamic_rotate %30 by %c497_i32_216 dim 1 : vector<4x512xf32>, i32 -> vector<4x512xf32>
    %c15_i32_217 = arith.constant 15 : i32
    %456 = vector.broadcast %c15_i32_217 : i32 to vector<1x512xi32>
    %457 = arith.cmpi slt, %1, %456 : vector<1x512xi32>
    %c1_i32_218 = arith.constant 1 : i32
    %458 = vector.broadcast %c1_i32_218 : i32 to vector<1x512xi32>
    %459 = arith.cmpi sge, %2, %458 : vector<1x512xi32>
    %460 = arith.andi %457, %459 : vector<1x512xi1>
    %cst_219 = arith.constant 0.000000e+00 : f32
    %461 = vector.shape_cast %460 : vector<1x512xi1> to vector<1x512xi1>
    %462 = vector.broadcast %461 : vector<1x512xi1> to vector<4x512xi1>
    %463 = vector.broadcast %cst_219 : f32 to vector<4x512xf32>
    %464 = arith.select %462, %455, %463 : vector<4x512xi1>, vector<4x512xf32>
    %c16 = arith.constant 16 : index
    %c0_220 = arith.constant 0 : index
    %c0_221 = arith.constant 0 : index
    %465 = vector.load %arg9[%c16, %c0_220, %c0_221] : memref<25x8x4xf32, #tpu.memory_space<vmem>>, vector<1x8x4xf32>
    %466 = vector.shape_cast %465 : vector<1x8x4xf32> to vector<8x4xf32>
    %cst_222 = arith.constant dense<0.000000e+00> : vector<8x512xf32>
    %467 = tpu.matmul %466, %464, %cst_222 {dimension_numbers = #tpu.dot_dimension_numbers<[1], [0], [0], [1], [0, 0, 1, 1], [], []>} : vector<8x4xf32>, vector<4x512xf32>, vector<8x512xf32> -> vector<8x512xf32>
    %468 = arith.addf %454, %467 : vector<8x512xf32>
    %c496_i32_223 = arith.constant 496 : i32
    %469 = tpu.dynamic_rotate %30 by %c496_i32_223 dim 1 : vector<4x512xf32>, i32 -> vector<4x512xf32>
    %c15_i32_224 = arith.constant 15 : i32
    %470 = vector.broadcast %c15_i32_224 : i32 to vector<1x512xi32>
    %471 = arith.cmpi slt, %1, %470 : vector<1x512xi32>
    %cst_225 = arith.constant 0.000000e+00 : f32
    %472 = vector.shape_cast %471 : vector<1x512xi1> to vector<1x512xi1>
    %473 = vector.broadcast %472 : vector<1x512xi1> to vector<4x512xi1>
    %474 = vector.broadcast %cst_225 : f32 to vector<4x512xf32>
    %475 = arith.select %473, %469, %474 : vector<4x512xi1>, vector<4x512xf32>
    %c17 = arith.constant 17 : index
    %c0_226 = arith.constant 0 : index
    %c0_227 = arith.constant 0 : index
    %476 = vector.load %arg9[%c17, %c0_226, %c0_227] : memref<25x8x4xf32, #tpu.memory_space<vmem>>, vector<1x8x4xf32>
    %477 = vector.shape_cast %476 : vector<1x8x4xf32> to vector<8x4xf32>
    %cst_228 = arith.constant dense<0.000000e+00> : vector<8x512xf32>
    %478 = tpu.matmul %477, %475, %cst_228 {dimension_numbers = #tpu.dot_dimension_numbers<[1], [0], [0], [1], [0, 0, 1, 1], [], []>} : vector<8x4xf32>, vector<4x512xf32>, vector<8x512xf32> -> vector<8x512xf32>
    %479 = arith.addf %468, %478 : vector<8x512xf32>
    %c495_i32_229 = arith.constant 495 : i32
    %480 = tpu.dynamic_rotate %30 by %c495_i32_229 dim 1 : vector<4x512xf32>, i32 -> vector<4x512xf32>
    %c15_i32_230 = arith.constant 15 : i32
    %481 = vector.broadcast %c15_i32_230 : i32 to vector<1x512xi32>
    %482 = arith.cmpi slt, %1, %481 : vector<1x512xi32>
    %c15_i32_231 = arith.constant 15 : i32
    %483 = vector.broadcast %c15_i32_231 : i32 to vector<1x512xi32>
    %484 = arith.cmpi slt, %2, %483 : vector<1x512xi32>
    %485 = arith.andi %482, %484 : vector<1x512xi1>
    %cst_232 = arith.constant 0.000000e+00 : f32
    %486 = vector.shape_cast %485 : vector<1x512xi1> to vector<1x512xi1>
    %487 = vector.broadcast %486 : vector<1x512xi1> to vector<4x512xi1>
    %488 = vector.broadcast %cst_232 : f32 to vector<4x512xf32>
    %489 = arith.select %487, %480, %488 : vector<4x512xi1>, vector<4x512xf32>
    %c18 = arith.constant 18 : index
    %c0_233 = arith.constant 0 : index
    %c0_234 = arith.constant 0 : index
    %490 = vector.load %arg9[%c18, %c0_233, %c0_234] : memref<25x8x4xf32, #tpu.memory_space<vmem>>, vector<1x8x4xf32>
    %491 = vector.shape_cast %490 : vector<1x8x4xf32> to vector<8x4xf32>
    %cst_235 = arith.constant dense<0.000000e+00> : vector<8x512xf32>
    %492 = tpu.matmul %491, %489, %cst_235 {dimension_numbers = #tpu.dot_dimension_numbers<[1], [0], [0], [1], [0, 0, 1, 1], [], []>} : vector<8x4xf32>, vector<4x512xf32>, vector<8x512xf32> -> vector<8x512xf32>
    %493 = arith.addf %479, %492 : vector<8x512xf32>
    %c494_i32 = arith.constant 494 : i32
    %494 = tpu.dynamic_rotate %30 by %c494_i32 dim 1 : vector<4x512xf32>, i32 -> vector<4x512xf32>
    %c15_i32_236 = arith.constant 15 : i32
    %495 = vector.broadcast %c15_i32_236 : i32 to vector<1x512xi32>
    %496 = arith.cmpi slt, %1, %495 : vector<1x512xi32>
    %c14_i32_237 = arith.constant 14 : i32
    %497 = vector.broadcast %c14_i32_237 : i32 to vector<1x512xi32>
    %498 = arith.cmpi slt, %2, %497 : vector<1x512xi32>
    %499 = arith.andi %496, %498 : vector<1x512xi1>
    %cst_238 = arith.constant 0.000000e+00 : f32
    %500 = vector.shape_cast %499 : vector<1x512xi1> to vector<1x512xi1>
    %501 = vector.broadcast %500 : vector<1x512xi1> to vector<4x512xi1>
    %502 = vector.broadcast %cst_238 : f32 to vector<4x512xf32>
    %503 = arith.select %501, %494, %502 : vector<4x512xi1>, vector<4x512xf32>
    %c19 = arith.constant 19 : index
    %c0_239 = arith.constant 0 : index
    %c0_240 = arith.constant 0 : index
    %504 = vector.load %arg9[%c19, %c0_239, %c0_240] : memref<25x8x4xf32, #tpu.memory_space<vmem>>, vector<1x8x4xf32>
    %505 = vector.shape_cast %504 : vector<1x8x4xf32> to vector<8x4xf32>
    %cst_241 = arith.constant dense<0.000000e+00> : vector<8x512xf32>
    %506 = tpu.matmul %505, %503, %cst_241 {dimension_numbers = #tpu.dot_dimension_numbers<[1], [0], [0], [1], [0, 0, 1, 1], [], []>} : vector<8x4xf32>, vector<4x512xf32>, vector<8x512xf32> -> vector<8x512xf32>
    %507 = arith.addf %493, %506 : vector<8x512xf32>
    %c482_i32 = arith.constant 482 : i32
    %508 = tpu.dynamic_rotate %30 by %c482_i32 dim 1 : vector<4x512xf32>, i32 -> vector<4x512xf32>
    %c14_i32_242 = arith.constant 14 : i32
    %509 = vector.broadcast %c14_i32_242 : i32 to vector<1x512xi32>
    %510 = arith.cmpi slt, %1, %509 : vector<1x512xi32>
    %c2_i32_243 = arith.constant 2 : i32
    %511 = vector.broadcast %c2_i32_243 : i32 to vector<1x512xi32>
    %512 = arith.cmpi sge, %2, %511 : vector<1x512xi32>
    %513 = arith.andi %510, %512 : vector<1x512xi1>
    %cst_244 = arith.constant 0.000000e+00 : f32
    %514 = vector.shape_cast %513 : vector<1x512xi1> to vector<1x512xi1>
    %515 = vector.broadcast %514 : vector<1x512xi1> to vector<4x512xi1>
    %516 = vector.broadcast %cst_244 : f32 to vector<4x512xf32>
    %517 = arith.select %515, %508, %516 : vector<4x512xi1>, vector<4x512xf32>
    %c20 = arith.constant 20 : index
    %c0_245 = arith.constant 0 : index
    %c0_246 = arith.constant 0 : index
    %518 = vector.load %arg9[%c20, %c0_245, %c0_246] : memref<25x8x4xf32, #tpu.memory_space<vmem>>, vector<1x8x4xf32>
    %519 = vector.shape_cast %518 : vector<1x8x4xf32> to vector<8x4xf32>
    %cst_247 = arith.constant dense<0.000000e+00> : vector<8x512xf32>
    %520 = tpu.matmul %519, %517, %cst_247 {dimension_numbers = #tpu.dot_dimension_numbers<[1], [0], [0], [1], [0, 0, 1, 1], [], []>} : vector<8x4xf32>, vector<4x512xf32>, vector<8x512xf32> -> vector<8x512xf32>
    %521 = arith.addf %507, %520 : vector<8x512xf32>
    %c481_i32 = arith.constant 481 : i32
    %522 = tpu.dynamic_rotate %30 by %c481_i32 dim 1 : vector<4x512xf32>, i32 -> vector<4x512xf32>
    %c14_i32_248 = arith.constant 14 : i32
    %523 = vector.broadcast %c14_i32_248 : i32 to vector<1x512xi32>
    %524 = arith.cmpi slt, %1, %523 : vector<1x512xi32>
    %c1_i32_249 = arith.constant 1 : i32
    %525 = vector.broadcast %c1_i32_249 : i32 to vector<1x512xi32>
    %526 = arith.cmpi sge, %2, %525 : vector<1x512xi32>
    %527 = arith.andi %524, %526 : vector<1x512xi1>
    %cst_250 = arith.constant 0.000000e+00 : f32
    %528 = vector.shape_cast %527 : vector<1x512xi1> to vector<1x512xi1>
    %529 = vector.broadcast %528 : vector<1x512xi1> to vector<4x512xi1>
    %530 = vector.broadcast %cst_250 : f32 to vector<4x512xf32>
    %531 = arith.select %529, %522, %530 : vector<4x512xi1>, vector<4x512xf32>
    %c21 = arith.constant 21 : index
    %c0_251 = arith.constant 0 : index
    %c0_252 = arith.constant 0 : index
    %532 = vector.load %arg9[%c21, %c0_251, %c0_252] : memref<25x8x4xf32, #tpu.memory_space<vmem>>, vector<1x8x4xf32>
    %533 = vector.shape_cast %532 : vector<1x8x4xf32> to vector<8x4xf32>
    %cst_253 = arith.constant dense<0.000000e+00> : vector<8x512xf32>
    %534 = tpu.matmul %533, %531, %cst_253 {dimension_numbers = #tpu.dot_dimension_numbers<[1], [0], [0], [1], [0, 0, 1, 1], [], []>} : vector<8x4xf32>, vector<4x512xf32>, vector<8x512xf32> -> vector<8x512xf32>
    %535 = arith.addf %521, %534 : vector<8x512xf32>
    %c480_i32 = arith.constant 480 : i32
    %536 = tpu.dynamic_rotate %30 by %c480_i32 dim 1 : vector<4x512xf32>, i32 -> vector<4x512xf32>
    %c14_i32_254 = arith.constant 14 : i32
    %537 = vector.broadcast %c14_i32_254 : i32 to vector<1x512xi32>
    %538 = arith.cmpi slt, %1, %537 : vector<1x512xi32>
    %cst_255 = arith.constant 0.000000e+00 : f32
    %539 = vector.shape_cast %538 : vector<1x512xi1> to vector<1x512xi1>
    %540 = vector.broadcast %539 : vector<1x512xi1> to vector<4x512xi1>
    %541 = vector.broadcast %cst_255 : f32 to vector<4x512xf32>
    %542 = arith.select %540, %536, %541 : vector<4x512xi1>, vector<4x512xf32>
    %c22 = arith.constant 22 : index
    %c0_256 = arith.constant 0 : index
    %c0_257 = arith.constant 0 : index
    %543 = vector.load %arg9[%c22, %c0_256, %c0_257] : memref<25x8x4xf32, #tpu.memory_space<vmem>>, vector<1x8x4xf32>
    %544 = vector.shape_cast %543 : vector<1x8x4xf32> to vector<8x4xf32>
    %cst_258 = arith.constant dense<0.000000e+00> : vector<8x512xf32>
    %545 = tpu.matmul %544, %542, %cst_258 {dimension_numbers = #tpu.dot_dimension_numbers<[1], [0], [0], [1], [0, 0, 1, 1], [], []>} : vector<8x4xf32>, vector<4x512xf32>, vector<8x512xf32> -> vector<8x512xf32>
    %546 = arith.addf %535, %545 : vector<8x512xf32>
    %c479_i32 = arith.constant 479 : i32
    %547 = tpu.dynamic_rotate %30 by %c479_i32 dim 1 : vector<4x512xf32>, i32 -> vector<4x512xf32>
    %c14_i32_259 = arith.constant 14 : i32
    %548 = vector.broadcast %c14_i32_259 : i32 to vector<1x512xi32>
    %549 = arith.cmpi slt, %1, %548 : vector<1x512xi32>
    %c15_i32_260 = arith.constant 15 : i32
    %550 = vector.broadcast %c15_i32_260 : i32 to vector<1x512xi32>
    %551 = arith.cmpi slt, %2, %550 : vector<1x512xi32>
    %552 = arith.andi %549, %551 : vector<1x512xi1>
    %cst_261 = arith.constant 0.000000e+00 : f32
    %553 = vector.shape_cast %552 : vector<1x512xi1> to vector<1x512xi1>
    %554 = vector.broadcast %553 : vector<1x512xi1> to vector<4x512xi1>
    %555 = vector.broadcast %cst_261 : f32 to vector<4x512xf32>
    %556 = arith.select %554, %547, %555 : vector<4x512xi1>, vector<4x512xf32>
    %c23 = arith.constant 23 : index
    %c0_262 = arith.constant 0 : index
    %c0_263 = arith.constant 0 : index
    %557 = vector.load %arg9[%c23, %c0_262, %c0_263] : memref<25x8x4xf32, #tpu.memory_space<vmem>>, vector<1x8x4xf32>
    %558 = vector.shape_cast %557 : vector<1x8x4xf32> to vector<8x4xf32>
    %cst_264 = arith.constant dense<0.000000e+00> : vector<8x512xf32>
    %559 = tpu.matmul %558, %556, %cst_264 {dimension_numbers = #tpu.dot_dimension_numbers<[1], [0], [0], [1], [0, 0, 1, 1], [], []>} : vector<8x4xf32>, vector<4x512xf32>, vector<8x512xf32> -> vector<8x512xf32>
    %560 = arith.addf %546, %559 : vector<8x512xf32>
    %c478_i32 = arith.constant 478 : i32
    %561 = tpu.dynamic_rotate %30 by %c478_i32 dim 1 : vector<4x512xf32>, i32 -> vector<4x512xf32>
    %c14_i32_265 = arith.constant 14 : i32
    %562 = vector.broadcast %c14_i32_265 : i32 to vector<1x512xi32>
    %563 = arith.cmpi slt, %1, %562 : vector<1x512xi32>
    %c14_i32_266 = arith.constant 14 : i32
    %564 = vector.broadcast %c14_i32_266 : i32 to vector<1x512xi32>
    %565 = arith.cmpi slt, %2, %564 : vector<1x512xi32>
    %566 = arith.andi %563, %565 : vector<1x512xi1>
    %cst_267 = arith.constant 0.000000e+00 : f32
    %567 = vector.shape_cast %566 : vector<1x512xi1> to vector<1x512xi1>
    %568 = vector.broadcast %567 : vector<1x512xi1> to vector<4x512xi1>
    %569 = vector.broadcast %cst_267 : f32 to vector<4x512xf32>
    %570 = arith.select %568, %561, %569 : vector<4x512xi1>, vector<4x512xf32>
    %c24_268 = arith.constant 24 : index
    %c0_269 = arith.constant 0 : index
    %c0_270 = arith.constant 0 : index
    %571 = vector.load %arg9[%c24_268, %c0_269, %c0_270] : memref<25x8x4xf32, #tpu.memory_space<vmem>>, vector<1x8x4xf32>
    %572 = vector.shape_cast %571 : vector<1x8x4xf32> to vector<8x4xf32>
    %cst_271 = arith.constant dense<0.000000e+00> : vector<8x512xf32>
    %573 = tpu.matmul %572, %570, %cst_271 {dimension_numbers = #tpu.dot_dimension_numbers<[1], [0], [0], [1], [0, 0, 1, 1], [], []>} : vector<8x4xf32>, vector<4x512xf32>, vector<8x512xf32> -> vector<8x512xf32>
    %574 = arith.addf %560, %573 : vector<8x512xf32>
    %c0_272 = arith.constant 0 : index
    %c0_273 = arith.constant 0 : index
    %575 = vector.load %arg10[%c0_272, %c0_273] : memref<8x1xf32, #tpu.memory_space<vmem>>, vector<8x1xf32>
    %c0_274 = arith.constant 0 : index
    %c0_275 = arith.constant 0 : index
    %576 = vector.load %arg11[%c0_274, %c0_275] : memref<8x1xf32, #tpu.memory_space<vmem>>, vector<8x1xf32>
    %cst_276 = arith.constant dense<0.000000e+00> : vector<8xf32>
    %577 = vector.multi_reduction <add>, %574, %cst_276 [1] : vector<8x512xf32> to vector<8xf32>
    %578 = vector.shape_cast %577 : vector<8xf32> to vector<8x1xf32>
    %cst_277 = arith.constant 0.001953125 : f32
    %579 = vector.broadcast %cst_277 : f32 to vector<8x1xf32>
    %580 = arith.mulf %578, %579 : vector<8x1xf32>
    %581 = vector.broadcast %580 : vector<8x1xf32> to vector<8x512xf32>
    %582 = arith.subf %574, %581 : vector<8x512xf32>
    %583 = arith.mulf %582, %582 : vector<8x512xf32>
    %cst_278 = arith.constant dense<0.000000e+00> : vector<8xf32>
    %584 = vector.multi_reduction <add>, %583, %cst_278 [1] : vector<8x512xf32> to vector<8xf32>
    %585 = vector.shape_cast %584 : vector<8xf32> to vector<8x1xf32>
    %cst_279 = arith.constant 0.001953125 : f32
    %586 = vector.broadcast %cst_279 : f32 to vector<8x1xf32>
    %587 = arith.mulf %585, %586 : vector<8x1xf32>
    %cst_280 = arith.constant 1.000000e-03 : f32
    %588 = vector.broadcast %cst_280 : f32 to vector<8x1xf32>
    %589 = arith.addf %587, %588 : vector<8x1xf32>
    %590 = math.rsqrt %589 : vector<8x1xf32>
    %591 = vector.broadcast %590 : vector<8x1xf32> to vector<8x512xf32>
    %592 = arith.mulf %582, %591 : vector<8x512xf32>
    %593 = vector.broadcast %575 : vector<8x1xf32> to vector<8x512xf32>
    %594 = arith.mulf %592, %593 : vector<8x512xf32>
    %595 = vector.broadcast %576 : vector<8x1xf32> to vector<8x512xf32>
    %596 = arith.addf %594, %595 : vector<8x512xf32>
    %cst_281 = arith.constant 0.000000e+00 : f32
    %597 = vector.broadcast %cst_281 : f32 to vector<8x512xf32>
    %598 = arith.maximumf %596, %597 : vector<8x512xf32>
    %c16_282 = arith.constant 16 : index
    %c0_283 = arith.constant 0 : index
    %599 = vector.load %arg15[%c16_282, %c0_283] : memref<32x512xf32, #tpu.memory_space<vmem>>, vector<8x512xf32>
    tpu.vector_store %arg15[%c16_282, %c0_283], %598 {strides = array<i32>} : memref<32x512xf32, #tpu.memory_space<vmem>>, vector<8x512xf32>,
    return
  }
}

</mosaic_0001>

<llo_original>
// kernel: _inception_forward_impl.1
$region0: #{_inception_forward_impl.1}
  #allocation0 [shape = 'u32[]', space=smem, size = 0x4, offset = 0x4, fixed_abs, tag = 'smem constant byte address 0x4 - core index']
  #allocation1 [shape = 'u32[144,128]{1,0:T(1,128)}', space=vmem, size = 0x12000, scoped, tag = 'internal scratch']
  %s0 = inlined_call_operand.vmem [shape: f32[4,512], index: 0, kind: input, shape index: {}]
  %s1 = inlined_call_operand.vmem [shape: s32[1,512], index: 1, kind: input, shape index: {}]
  %s2 = inlined_call_operand.vmem [shape: s32[1,512], index: 2, kind: input, shape index: {}]
  %s3 = inlined_call_operand.vmem [shape: f32[16,4], index: 3, kind: input, shape index: {}]
  %s4 = inlined_call_operand.vmem [shape: f32[16,1], index: 4, kind: input, shape index: {}]
  %s5 = inlined_call_operand.vmem [shape: f32[16,1], index: 5, kind: input, shape index: {}]
  %s6 = inlined_call_operand.vmem [shape: f32[9,8,4], index: 6, kind: input, shape index: {}]
  %s7 = inlined_call_operand.vmem [shape: f32[8,1], index: 7, kind: input, shape index: {}]
  %s8 = inlined_call_operand.vmem [shape: f32[8,1], index: 8, kind: input, shape index: {}]
  %s9 = inlined_call_operand.vmem [shape: f32[25,8,4], index: 9, kind: input, shape index: {}]
  %s10 = inlined_call_operand.vmem [shape: f32[8,1], index: 10, kind: input, shape index: {}]
  %s11 = inlined_call_operand.vmem [shape: f32[8,1], index: 11, kind: input, shape index: {}]
  %s12 = inlined_call_operand.vmem [shape: f32[8,4], index: 12, kind: input, shape index: {}]
  %s13 = inlined_call_operand.vmem [shape: f32[8,1], index: 13, kind: input, shape index: {}]
  %s14 = inlined_call_operand.vmem [shape: f32[8,1], index: 14, kind: input, shape index: {}]
  %s15 = inlined_call_operand.vmem [shape: f32[32,512], index: 15, kind: output, shape index: {}]
  %s16 = sld [smem:[#allocation0]]
  $region70: #{_inception_forward_impl.1} parent=0
    _
  %s18 = ssub.s32 1, %s16
  %s19 = scalar_select 0, %s18, %s16
  // Predicated region
  $region2: #{_inception_forward_impl.1} parent=0 // pred_check
    _
  $region3: #{_inception_forward_impl.1} parent=0 // pred_check_branch
    %21 = sbr.rel (0) target = $region5
  $region4: #{_inception_forward_impl.1} parent=0 // pred_region
    _
  $region5: #{_inception_forward_impl.1} parent=0 // pred_fallthru
    _
  // Predicated region
  $region6: #{_inception_forward_impl.1} parent=0 // pred_check
    _
  $region7: #{_inception_forward_impl.1} parent=0 // pred_check_branch
    %23 = sbr.rel (0) target = $region9
  $region8: #{_inception_forward_impl.1} parent=0 // pred_region
    _
  $region9: #{_inception_forward_impl.1} parent=0 // pred_fallthru
    _
  // Predicated region
  $region10: #{_inception_forward_impl.1} parent=0 // pred_check
    _
  $region11: #{_inception_forward_impl.1} parent=0 // pred_check_branch
    %25 = sbr.rel (0) target = $region13
  $region12: #{_inception_forward_impl.1} parent=0 // pred_region
    _
  $region13: #{_inception_forward_impl.1} parent=0 // pred_fallthru
    _
  // Predicated region
  $region14: #{_inception_forward_impl.1} parent=0 // pred_check
    _
  $region15: #{_inception_forward_impl.1} parent=0 // pred_check_branch
    %27 = sbr.rel (0) target = $region17
  $region16: #{_inception_forward_impl.1} parent=0 // pred_region
    _
  $region17: #{_inception_forward_impl.1} parent=0 // pred_fallthru
    _
  // Predicated region
  $region18: #{_inception_forward_impl.1} parent=0 // pred_check
    _
  $region19: #{_inception_forward_impl.1} parent=0 // pred_check_branch
    %29 = sbr.rel (0) target = $region21
  $region20: #{_inception_forward_impl.1} parent=0 // pred_region
    _
  $region21: #{_inception_forward_impl.1} parent=0 // pred_fallthru
    _
  // Predicated region
  $region22: #{_inception_forward_impl.1} parent=0 // pred_check
    _
  $region23: #{_inception_forward_impl.1} parent=0 // pred_check_branch
    %31 = sbr.rel (0) target = $region25
  $region24: #{_inception_forward_impl.1} parent=0 // pred_region
    _
  $region25: #{_inception_forward_impl.1} parent=0 // pred_fallthru
    _
  // Predicated region
  $region26: #{_inception_forward_impl.1} parent=0 // pred_check
    _
  $region27: #{_inception_forward_impl.1} parent=0 // pred_check_branch
    %33 = sbr.rel (0) target = $region29
  $region28: #{_inception_forward_impl.1} parent=0 // pred_region
    _
  $region29: #{_inception_forward_impl.1} parent=0 // pred_fallthru
    _
  // Predicated region
  $region30: #{_inception_forward_impl.1} parent=0 // pred_check
    _
  $region31: #{_inception_forward_impl.1} parent=0 // pred_check_branch
    %35 = sbr.rel (0) target = $region33
  $region32: #{_inception_forward_impl.1} parent=0 // pred_region
    _
  $region33: #{_inception_forward_impl.1} parent=0 // pred_fallthru
    _
  // Predicated region
  $region34: #{_inception_forward_impl.1} parent=0 // pred_check
    _
  $region35: #{_inception_forward_impl.1} parent=0 // pred_check_branch
    %37 = sbr.rel (0) target = $region37
  $region36: #{_inception_forward_impl.1} parent=0 // pred_region
    _
  $region37: #{_inception_forward_impl.1} parent=0 // pred_fallthru
    _
  // Predicated region
  $region38: #{_inception_forward_impl.1} parent=0 // pred_check
    _
  $region39: #{_inception_forward_impl.1} parent=0 // pred_check_branch
    %39 = sbr.rel (0) target = $region41
  $region40: #{_inception_forward_impl.1} parent=0 // pred_region
    _
  $region41: #{_inception_forward_impl.1} parent=0 // pred_fallthru
    _
  // Predicated region
  $region42: #{_inception_forward_impl.1} parent=0 // pred_check
    _
  $region43: #{_inception_forward_impl.1} parent=0 // pred_check_branch
    %41 = sbr.rel (0) target = $region45
  $region44: #{_inception_forward_impl.1} parent=0 // pred_region
    _
  $region45: #{_inception_forward_impl.1} parent=0 // pred_fallthru
    _
  // Predicated region
  $region46: #{_inception_forward_impl.1} parent=0 // pred_check
    _
  $region47: #{_inception_forward_impl.1} parent=0 // pred_check_branch
    %43 = sbr.rel (0) target = $region49
  $region48: #{_inception_forward_impl.1} parent=0 // pred_region
    _
  $region49: #{_inception_forward_impl.1} parent=0 // pred_fallthru
    _
  // Predicated region
  $region50: #{_inception_forward_impl.1} parent=0 // pred_check
    _
  $region51: #{_inception_forward_impl.1} parent=0 // pred_check_branch
    %45 = sbr.rel (0) target = $region53
  $region52: #{_inception_forward_impl.1} parent=0 // pred_region
    _
  $region53: #{_inception_forward_impl.1} parent=0 // pred_fallthru
    _
  // Predicated region
  $region54: #{_inception_forward_impl.1} parent=0 // pred_check
    _
  $region55: #{_inception_forward_impl.1} parent=0 // pred_check_branch
    %47 = sbr.rel (0) target = $region57
  $region56: #{_inception_forward_impl.1} parent=0 // pred_region
    _
  $region57: #{_inception_forward_impl.1} parent=0 // pred_fallthru
    _
  // Predicated region
  $region58: #{_inception_forward_impl.1} parent=0 // pred_check
    _
  $region59: #{_inception_forward_impl.1} parent=0 // pred_check_branch
    %49 = sbr.rel (0) target = $region61
  $region60: #{_inception_forward_impl.1} parent=0 // pred_region
    _
  $region61: #{_inception_forward_impl.1} parent=0 // pred_fallthru
    _
  %v50 = vld [vmem:[%s0] sm:$0xff]
  %v51 = vld [vmem:[%s0 + $0x8] sm:$0xff]
  %v52 = vld [vmem:[%s1] sm:$0xf]
  %v53 = vld [vmem:[%s2] sm:$0xf]
  %v54 = vld [vmem:[%s3] sm:$0xff]
  %v55 = vld [vmem:[%s3 + $0x8] sm:$0xff]
  %v58 = vcombine.high %v50, %v50
  %v59 = vcombine.high %v51, %v51
  %vm60 = vcmask 31744
  %v62 = vsel %vm60, %v54, 0
  %v65 = vsel %vm60, %v55, 0
  %vm67 = vcmask 1043456
  %v68 = vsel %vm67, %v50, 0
  %v70 = vsel %vm67, %v58, 0
  %v72 = vsel %vm67, %v51, 0
  %v74 = vsel %vm67, %v59, 0
  %76 = vmatprep.subr.mxu0 0.0
  %77 = vmatpush1.msra.mxu0 0.0
  %78 = vmatprep.subr.mxu0 0.0
  %79 = vmatpush1.msra.mxu0 0.0
  %80 = vmatprep.subr.mxu0 0.0
  %81 = vmatpush1.msra.mxu0 0.0
  %82 = vmatprep.subr.mxu0 0.0
  %83 = vmatpush1.msra.mxu0 0.0
  %84 = vmatprep.subr.mxu0 0.0
  %85 = vmatpush1.msra.mxu0 0.0
  %86 = vmatprep.subr.mxu0 0.0
  %87 = vmatpush1.msra.mxu0 0.0
  %88 = vmatprep.subr.mxu0 0.0
  %89 = vmatpush1.msra.mxu0 0.0
  %90 = vmatprep.subr.mxu0 0.0
  %91 = vmatpush1.msra.mxu0 0.0
  %92 = vmatprep.subr.mxu0 0.0
  %93 = vmatpush1.msra.mxu0 0.0
  %94 = vmatprep.subr.mxu0 0.0
  %95 = vmatpush1.msra.mxu0 0.0
  %96 = vmatprep.subr.mxu0 0.0
  %97 = vmatpush1.msra.mxu0 0.0
  %98 = vmatprep.subr.mxu0 0.0
  %99 = vmatpush1.msra.mxu0 0.0
  %100 = vmatprep.subr.mxu0 0.0
  %101 = vmatpush1.msra.mxu0 0.0
  %102 = vmatprep.subr.mxu0 0.0
  %103 = vmatpush1.msra.mxu0 0.0
  %104 = vmatprep.subr.mxu0 0.0
  %105 = vmatpush1.msra.mxu0 0.0
  %106 = vmatprep.subr.mxu0 %v70
  %107 = vmatpush1.msra.mxu0 %v68
  %108 = vmatprep.subr.mxu0 0.0
  %109 = vmatpush2.msra.mxu0 0.0
  %110 = vmatprep.subr.mxu0 0.0
  %111 = vmatpush2.msra.mxu0 0.0
  %112 = vmatprep.subr.mxu0 0.0
  %113 = vmatpush2.msra.mxu0 0.0
  %114 = vmatprep.subr.mxu0 0.0
  %115 = vmatpush2.msra.mxu0 0.0
  %116 = vmatprep.subr.mxu0 0.0
  %117 = vmatpush2.msra.mxu0 0.0
  %118 = vmatprep.subr.mxu0 0.0
  %119 = vmatpush2.msra.mxu0 0.0
  %120 = vmatprep.subr.mxu0 0.0
  %121 = vmatpush2.msra.mxu0 0.0
  %122 = vmatprep.subr.mxu0 0.0
  %123 = vmatpush2.msra.mxu0 0.0
  %124 = vmatprep.subr.mxu0 0.0
  %125 = vmatpush2.msra.mxu0 0.0
  %126 = vmatprep.subr.mxu0 0.0
  %127 = vmatpush2.msra.mxu0 0.0
  %128 = vmatprep.subr.mxu0 0.0
  %129 = vmatpush2.msra.mxu0 0.0
  %130 = vmatprep.subr.mxu0 0.0
  %131 = vmatpush2.msra.mxu0 0.0
  %132 = vmatprep.subr.mxu0 0.0
  %133 = vmatpush2.msra.mxu0 0.0
  %134 = vmatprep.subr.mxu0 0.0
  %135 = vmatpush2.msra.mxu0 0.0
  %136 = vmatprep.subr.mxu0 0.0
  %137 = vmatpush2.msra.mxu0 0.0
  %138 = vmatprep.subr.mxu0 0.0
  %139 = vmatpush2.msra.mxu0 0.0
  %140 = vmatprep.mubr.f32.mxu0 0.0
  %141 = vmatmul.mubr.f32.gmra.mxu0 %v62
  %v142 = vpop.f32.mrf.mxu0
  %v143 = vadd.f32 0.0, %v142
  %v144 = vpop.f32.mrf.mxu0
  %v145 = vadd.f32 0.0, %v144
  %146 = vmatprep.mubr.f32.mxu0 0.0
  %147 = vmatmul.mubr.f32.gmra.mxu0 %v65
  %v148 = vpop.f32.mrf.mxu0
  %v149 = vadd.f32 0.0, %v148
  %v150 = vpop.f32.mrf.mxu0
  %v151 = vadd.f32 0.0, %v150
  %152 = vdwg.mxu0
  %153 = vmatprep.subr.mxu0 0.0
  %154 = vmatpush1.msra.mxu0 0.0
  %155 = vmatprep.subr.mxu0 0.0
  %156 = vmatpush1.msra.mxu0 0.0
  %157 = vmatprep.subr.mxu0 0.0
  %158 = vmatpush1.msra.mxu0 0.0
  %159 = vmatprep.subr.mxu0 0.0
  %160 = vmatpush1.msra.mxu0 0.0
  %161 = vmatprep.subr.mxu0 0.0
  %162 = vmatpush1.msra.mxu0 0.0
  %163 = vmatprep.subr.mxu0 0.0
  %164 = vmatpush1.msra.mxu0 0.0
  %165 = vmatprep.subr.mxu0 0.0
  %166 = vmatpush1.msra.mxu0 0.0
  %167 = vmatprep.subr.mxu0 0.0
  %168 = vmatpush1.msra.mxu0 0.0
  %169 = vmatprep.subr.mxu0 0.0
  %170 = vmatpush1.msra.mxu0 0.0
  %171 = vmatprep.subr.mxu0 0.0
  %172 = vmatpush1.msra.mxu0 0.0
  %173 = vmatprep.subr.mxu0 0.0
  %174 = vmatpush1.msra.mxu0 0.0
  %175 = vmatprep.subr.mxu0 0.0
  %176 = vmatpush1.msra.mxu0 0.0
  %177 = vmatprep.subr.mxu0 0.0
  %178 = vmatpush1.msra.mxu0 0.0
  %179 = vmatprep.subr.mxu0 0.0
  %180 = vmatpush1.msra.mxu0 0.0
  %181 = vmatprep.subr.mxu0 0.0
  %182 = vmatpush1.msra.mxu0 0.0
  %183 = vmatprep.subr.mxu0 %v74
  %184 = vmatpush1.msra.mxu0 %v72
  %185 = vmatprep.subr.mxu0 0.0
  %186 = vmatpush2.msra.mxu0 0.0
  %187 = vmatprep.subr.mxu0 0.0
  %188 = vmatpush2.msra.mxu0 0.0
  %189 = vmatprep.subr.mxu0 0.0
  %190 = vmatpush2.msra.mxu0 0.0
  %191 = vmatprep.subr.mxu0 0.0
  %192 = vmatpush2.msra.mxu0 0.0
  %193 = vmatprep.subr.mxu0 0.0
  %194 = vmatpush2.msra.mxu0 0.0
  %195 = vmatprep.subr.mxu0 0.0
  %196 = vmatpush2.msra.mxu0 0.0
  %197 = vmatprep.subr.mxu0 0.0
  %198 = vmatpush2.msra.mxu0 0.0
  %199 = vmatprep.subr.mxu0 0.0
  %200 = vmatpush2.msra.mxu0 0.0
  %201 = vmatprep.subr.mxu0 0.0
  %202 = vmatpush2.msra.mxu0 0.0
  %203 = vmatprep.subr.mxu0 0.0
  %204 = vmatpush2.msra.mxu0 0.0
  %205 = vmatprep.subr.mxu0 0.0
  %206 = vmatpush2.msra.mxu0 0.0
  %207 = vmatprep.subr.mxu0 0.0
  %208 = vmatpush2.msra.mxu0 0.0
  %209 = vmatprep.subr.mxu0 0.0
  %210 = vmatpush2.msra.mxu0 0.0
  %211 = vmatprep.subr.mxu0 0.0
  %212 = vmatpush2.msra.mxu0 0.0
  %213 = vmatprep.subr.mxu0 0.0
  %214 = vmatpush2.msra.mxu0 0.0
  %215 = vmatprep.subr.mxu0 0.0
  %216 = vmatpush2.msra.mxu0 0.0
  %217 = vmatprep.mubr.f32.mxu0 0.0
  %218 = vmatmul.mubr.f32.gmra.mxu0 %v62
  %v219 = vpop.f32.mrf.mxu0
  %v220 = vadd.f32 0.0, %v219
  %v221 = vpop.f32.mrf.mxu0
  %v222 = vadd.f32 0.0, %v221
  %223 = vmatprep.mubr.f32.mxu0 0.0
  %224 = vmatmul.mubr.f32.gmra.mxu0 %v65
  %v225 = vpop.f32.mrf.mxu0
  %v226 = vadd.f32 0.0, %v225
  %v227 = vpop.f32.mrf.mxu0
  %v228 = vadd.f32 0.0, %v227
  %229 = vdwg.mxu0
  %v230 = vld [vmem:[%s4] sm:$0xff]
  %v231 = vld [vmem:[%s4 + $0x8] sm:$0xff]
  %v232 = vld [vmem:[%s5] sm:$0xff]
  %v233 = vld [vmem:[%s5 + $0x8] sm:$0xff]
  %v234 = vadd.f32 %v143, %v145
  %v235 = vadd.f32 %v234, %v220
  %v236 = vadd.f32 %v235, %v222
  %237 = vadd.xlane.f32.xlu0 %v236
  %v238 = vpop.xlane.xlu0 %237
  %v239 = vadd.f32 %v149, %v151
  %v240 = vadd.f32 %v239, %v226
  %v241 = vadd.f32 %v240, %v228
  %242 = vadd.xlane.f32.xlu0 %v241
  %v243 = vpop.xlane.xlu0 %242
  %v244 = vmul.f32 %v238, 0.001953125
  %v245 = vmul.f32 %v243, 0.001953125
  %v246 = vsub.f32 %v143, %v244
  %v247 = vsub.f32 %v145, %v244
  %v248 = vsub.f32 %v220, %v244
  %v249 = vsub.f32 %v222, %v244
  %v250 = vsub.f32 %v149, %v245
  %v251 = vsub.f32 %v151, %v245
  %v252 = vsub.f32 %v226, %v245
  %v253 = vsub.f32 %v228, %v245
  %v254 = vmul.f32 %v246, %v246
  %v255 = vmul.f32 %v247, %v247
  %v256 = vmul.f32 %v248, %v248
  %v257 = vmul.f32 %v249, %v249
  %v258 = vmul.f32 %v250, %v250
  %v259 = vmul.f32 %v251, %v251
  %v260 = vmul.f32 %v252, %v252
  %v261 = vmul.f32 %v253, %v253
  %v262 = vadd.f32 %v254, %v255
  %v263 = vadd.f32 %v262, %v256
  %v264 = vadd.f32 %v263, %v257
  %265 = vadd.xlane.f32.xlu0 %v264
  %v266 = vpop.xlane.xlu0 %265
  %v267 = vadd.f32 %v258, %v259
  %v268 = vadd.f32 %v267, %v260
  %v269 = vadd.f32 %v268, %v261
  %270 = vadd.xlane.f32.xlu0 %v269
  %v271 = vpop.xlane.xlu0 %270
  %v272 = vmul.f32 %v266, 0.001953125
  %v273 = vmul.f32 %v271, 0.001953125
  %v274 = vadd.f32 %v272, 0.001
  %v275 = vadd.f32 %v273, 0.001
  %v276 = vrsqrt.pop %v274
  %v277 = vrsqrt.pop %v275
  %v278 = vmul.f32 %v246, %v276
  %v279 = vmul.f32 %v247, %v276
  %v280 = vmul.f32 %v248, %v276
  %v281 = vmul.f32 %v249, %v276
  %v282 = vmul.f32 %v250, %v277
  %v283 = vmul.f32 %v251, %v277
  %v284 = vmul.f32 %v252, %v277
  %v285 = vmul.f32 %v253, %v277
  %287 = vset.pattern.permute.xlu0 0
  %288 = vperm.xlu0 %287, %v230
  %v289 = vpop.permute.xlu0 %288
  %292 = vset.pattern.permute.xlu0 0
  %293 = vperm.xlu0 %292, %v231
  %v294 = vpop.permute.xlu0 %293
  %v296 = vmul.f32 %v278, %v289
  %v297 = vmul.f32 %v279, %v289
  %v298 = vmul.f32 %v280, %v289
  %v299 = vmul.f32 %v281, %v289
  %v300 = vmul.f32 %v282, %v294
  %v301 = vmul.f32 %v283, %v294
  %v302 = vmul.f32 %v284, %v294
  %v303 = vmul.f32 %v285, %v294
  %305 = vset.pattern.permute.xlu0 0
  %306 = vperm.xlu0 %305, %v232
  %v307 = vpop.permute.xlu0 %306
  %310 = vset.pattern.permute.xlu0 0
  %311 = vperm.xlu0 %310, %v233
  %v312 = vpop.permute.xlu0 %311
  %v314 = vadd.f32 %v296, %v307
  %v315 = vadd.f32 %v297, %v307
  %v316 = vadd.f32 %v298, %v307
  %v317 = vadd.f32 %v299, %v307
  %v318 = vadd.f32 %v300, %v312
  %v319 = vadd.f32 %v301, %v312
  %v320 = vadd.f32 %v302, %v312
  %v321 = vadd.f32 %v303, %v312
  %v322 = vmax.f32 %v314, 0.0
  %v323 = vmax.f32 %v315, 0.0
  %v324 = vmax.f32 %v316, 0.0
  %v325 = vmax.f32 %v317, 0.0
  %v326 = vmax.f32 %v318, 0.0
  %v327 = vmax.f32 %v319, 0.0
  %v328 = vmax.f32 %v320, 0.0
  %v329 = vmax.f32 %v321, 0.0
  %330 = vst [vmem:[%s15] sm:$0xff] %v326
  %331 = vst [vmem:[%s15 + $0x8] sm:$0xff] %v327
  %332 = vst [vmem:[%s15 + $0x10] sm:$0xff] %v328
  %333 = vst [vmem:[%s15 + $0x18] sm:$0xff] %v329
  %336 = vrot.lane.b32.xlu0 %v50, 17
  %v337 = vpop.permute.xlu0 %336
  %338 = vrot.lane.b32.xlu0 %v58, 17
  %v339 = vpop.permute.xlu0 %338
  %340 = vrot.lane.b32.xlu0 %v51, 17
  %v341 = vpop.permute.xlu0 %340
  %342 = vrot.lane.b32.xlu0 %v59, 17
  %v343 = vpop.permute.xlu0 %342
  %v344 = vlaneseq
  %v345 = vand.u32 %v344, 127
  %vm346 = vcmp.lt.s32.totalorder %v345, 17
  %v347 = vsel %vm346, %v341, %v343
  %v348 = vsel %vm346, %v339, %v341
  %v349 = vsel %vm346, %v337, %v339
  %v350 = vsel %vm346, %v343, %v337
  %vm351 = vcmp.ge.s32.totalorder %v52, 1
  %vm352 = vcmp.ge.s32.totalorder %v53, 1
  %vm353 = vmand %vm351, %vm352
  %v358 = vcombine.low %v350, %v349
  %v359 = vcombine.low %v348, %v347
  %v362 = vmax.f32 %v50, %v358
  %v363 = vmax.f32 %v51, %v359
  %v364 = vsel %vm353, 1, 0
  %v365 = vlaneseq
  %v366 = vshrl.u32 %v365, 7
  %v367 = vsub.s32 0, %v366
  %v368 = vrot.slane %v364, %v367
  %v369 = vlaneseq
  %v370 = vshrl.u32 %v369, 7
  %v371 = vsub.s32 1, %v370
  %v372 = vrot.slane %v364, %v371
  %v373 = vlaneseq
  %v374 = vshrl.u32 %v373, 7
  %v375 = vsub.s32 2, %v374
  %v376 = vrot.slane %v364, %v375
  %v377 = vlaneseq
  %v378 = vshrl.u32 %v377, 7
  %v379 = vsub.s32 3, %v378
  %v380 = vrot.slane %v364, %v379
  %vm381 = vcmp.eq.s32.totalorder %v368, 1
  %vm382 = vcmp.eq.s32.totalorder %v372, 1
  %vm383 = vcmp.eq.s32.totalorder %v376, 1
  %vm384 = vcmp.eq.s32.totalorder %v380, 1
  %v387 = vcombine.high %v362, %v362
  %v388 = vcombine.high %v363, %v363
  %v391 = vsel %vm381, %v362, %v50
  %v392 = vsel %vm382, %v387, %v58
  %v393 = vsel %vm383, %v363, %v51
  %v394 = vsel %vm384, %v388, %v59
  %395 = vrot.lane.b32.xlu0 %v50, 16
  %v396 = vpop.permute.xlu0 %395
  %397 = vrot.lane.b32.xlu0 %v58, 16
  %v398 = vpop.permute.xlu0 %397
  %399 = vrot.lane.b32.xlu0 %v51, 16
  %v400 = vpop.permute.xlu0 %399
  %401 = vrot.lane.b32.xlu0 %v59, 16
  %v402 = vpop.permute.xlu0 %401
  %vm403 = vcmp.lt.s32.totalorder %v345, 16
  %v404 = vsel %vm403, %v400, %v402
  %v405 = vsel %vm403, %v398, %v400
  %v406 = vsel %vm403, %v396, %v398
  %v407 = vsel %vm403, %v402, %v396
  %v408 = vmax.f32 %v391, %v407
  %v409 = vmax.f32 %v392, %v406
  %v410 = vmax.f32 %v393, %v405
  %v411 = vmax.f32 %v394, %v404
  %v412 = vsel %vm351, 1, 0
  %v413 = vlaneseq
  %v414 = vshrl.u32 %v413, 7
  %v415 = vsub.s32 0, %v414
  %v416 = vrot.slane %v412, %v415
  %v417 = vlaneseq
  %v418 = vshrl.u32 %v417, 7
  %v419 = vsub.s32 1, %v418
  %v420 = vrot.slane %v412, %v419
  %v421 = vlaneseq
  %v422 = vshrl.u32 %v421, 7
  %v423 = vsub.s32 2, %v422
  %v424 = vrot.slane %v412, %v423
  %v425 = vlaneseq
  %v426 = vshrl.u32 %v425, 7
  %v427 = vsub.s32 3, %v426
  %v428 = vrot.slane %v412, %v427
  %vm429 = vcmp.eq.s32.totalorder %v416, 1
  %vm430 = vcmp.eq.s32.totalorder %v420, 1
  %vm431 = vcmp.eq.s32.totalorder %v424, 1
  %vm432 = vcmp.eq.s32.totalorder %v428, 1
  %v433 = vsel %vm429, %v408, %v391
  %v434 = vsel %vm430, %v409, %v392
  %v435 = vsel %vm431, %v410, %v393
  %v436 = vsel %vm432, %v411, %v394
  %437 = vrot.lane.b32.xlu0 %v50, 15
  %v438 = vpop.permute.xlu0 %437
  %439 = vrot.lane.b32.xlu0 %v58, 15
  %v440 = vpop.permute.xlu0 %439
  %441 = vrot.lane.b32.xlu0 %v51, 15
  %v442 = vpop.permute.xlu0 %441
  %443 = vrot.lane.b32.xlu0 %v59, 15
  %v444 = vpop.permute.xlu0 %443
  %vm445 = vcmp.lt.s32.totalorder %v345, 15
  %v446 = vsel %vm445, %v442, %v444
  %v447 = vsel %vm445, %v440, %v442
  %v448 = vsel %vm445, %v438, %v440
  %v449 = vsel %vm445, %v444, %v438
  %vm450 = vcmp.lt.s32.totalorder %v53, 15
  %vm451 = vmand %vm351, %vm450
  %v452 = vmax.f32 %v433, %v449
  %v453 = vmax.f32 %v434, %v448
  %v454 = vmax.f32 %v435, %v447
  %v455 = vmax.f32 %v436, %v446
  %v456 = vsel %vm451, 1, 0
  %v457 = vlaneseq
  %v458 = vshrl.u32 %v457, 7
  %v459 = vsub.s32 0, %v458
  %v460 = vrot.slane %v456, %v459
  %v461 = vlaneseq
  %v462 = vshrl.u32 %v461, 7
  %v463 = vsub.s32 1, %v462
  %v464 = vrot.slane %v456, %v463
  %v465 = vlaneseq
  %v466 = vshrl.u32 %v465, 7
  %v467 = vsub.s32 2, %v466
  %v468 = vrot.slane %v456, %v467
  %v469 = vlaneseq
  %v470 = vshrl.u32 %v469, 7
  %v471 = vsub.s32 3, %v470
  %v472 = vrot.slane %v456, %v471
  %vm473 = vcmp.eq.s32.totalorder %v460, 1
  %vm474 = vcmp.eq.s32.totalorder %v464, 1
  %vm475 = vcmp.eq.s32.totalorder %v468, 1
  %vm476 = vcmp.eq.s32.totalorder %v472, 1
  %v477 = vsel %vm473, %v452, %v433
  %v478 = vsel %vm474, %v453, %v434
  %v479 = vsel %vm475, %v454, %v435
  %v480 = vsel %vm476, %v455, %v436
  %481 = vrot.lane.b32.xlu0 %v50, 1
  %v482 = vpop.permute.xlu0 %481
  %483 = vrot.lane.b32.xlu0 %v58, 1
  %v484 = vpop.permute.xlu0 %483
  %485 = vrot.lane.b32.xlu0 %v51, 1
  %v486 = vpop.permute.xlu0 %485
  %487 = vrot.lane.b32.xlu0 %v59, 1
  %v488 = vpop.permute.xlu0 %487
  %vm489 = vcmp.lt.s32.totalorder %v345, 1
  %v490 = vsel %vm489, %v486, %v488
  %v491 = vsel %vm489, %v484, %v486
  %v492 = vsel %vm489, %v482, %v484
  %v493 = vsel %vm489, %v488, %v482
  %v494 = vmax.f32 %v477, %v493
  %v495 = vmax.f32 %v478, %v492
  %v496 = vmax.f32 %v479, %v491
  %v497 = vmax.f32 %v480, %v490
  %v498 = vsel %vm352, 1, 0
  %v499 = vlaneseq
  %v500 = vshrl.u32 %v499, 7
  %v501 = vsub.s32 0, %v500
  %v502 = vrot.slane %v498, %v501
  %v503 = vlaneseq
  %v504 = vshrl.u32 %v503, 7
  %v505 = vsub.s32 1, %v504
  %v506 = vrot.slane %v498, %v505
  %v507 = vlaneseq
  %v508 = vshrl.u32 %v507, 7
  %v509 = vsub.s32 2, %v508
  %v510 = vrot.slane %v498, %v509
  %v511 = vlaneseq
  %v512 = vshrl.u32 %v511, 7
  %v513 = vsub.s32 3, %v512
  %v514 = vrot.slane %v498, %v513
  %vm515 = vcmp.eq.s32.totalorder %v502, 1
  %vm516 = vcmp.eq.s32.totalorder %v506, 1
  %vm517 = vcmp.eq.s32.totalorder %v510, 1
  %vm518 = vcmp.eq.s32.totalorder %v514, 1
  %v519 = vsel %vm515, %v494, %v477
  %v520 = vsel %vm516, %v495, %v478
  %v521 = vsel %vm517, %v496, %v479
  %v522 = vsel %vm518, %v497, %v480
  %523 = vrot.lane.b32.xlu0 %v50, 127
  %v524 = vpop.permute.xlu0 %523
  %525 = vrot.lane.b32.xlu0 %v58, 127
  %v526 = vpop.permute.xlu0 %525
  %527 = vrot.lane.b32.xlu0 %v51, 127
  %v528 = vpop.permute.xlu0 %527
  %529 = vrot.lane.b32.xlu0 %v59, 127
  %v530 = vpop.permute.xlu0 %529
  %vm531 = vcmp.lt.s32.totalorder %v345, 127
  %v532 = vsel %vm531, %v528, %v530
  %v533 = vsel %vm531, %v526, %v528
  %v534 = vsel %vm531, %v524, %v526
  %v535 = vsel %vm531, %v530, %v524
  %v536 = vmax.f32 %v519, %v534
  %v537 = vmax.f32 %v520, %v533
  %v538 = vmax.f32 %v521, %v532
  %v539 = vmax.f32 %v522, %v535
  %v540 = vsel %vm450, 1, 0
  %v541 = vlaneseq
  %v542 = vshrl.u32 %v541, 7
  %v543 = vsub.s32 0, %v542
  %v544 = vrot.slane %v540, %v543
  %v545 = vlaneseq
  %v546 = vshrl.u32 %v545, 7
  %v547 = vsub.s32 1, %v546
  %v548 = vrot.slane %v540, %v547
  %v549 = vlaneseq
  %v550 = vshrl.u32 %v549, 7
  %v551 = vsub.s32 2, %v550
  %v552 = vrot.slane %v540, %v551
  %v553 = vlaneseq
  %v554 = vshrl.u32 %v553, 7
  %v555 = vsub.s32 3, %v554
  %v556 = vrot.slane %v540, %v555
  %vm557 = vcmp.eq.s32.totalorder %v544, 1
  %vm558 = vcmp.eq.s32.totalorder %v548, 1
  %vm559 = vcmp.eq.s32.totalorder %v552, 1
  %vm560 = vcmp.eq.s32.totalorder %v556, 1
  %v561 = vsel %vm557, %v536, %v519
  %v562 = vsel %vm558, %v537, %v520
  %v563 = vsel %vm559, %v538, %v521
  %v564 = vsel %vm560, %v539, %v522
  %565 = vrot.lane.b32.xlu0 %v50, 113
  %v566 = vpop.permute.xlu0 %565
  %567 = vrot.lane.b32.xlu0 %v58, 113
  %v568 = vpop.permute.xlu0 %567
  %569 = vrot.lane.b32.xlu0 %v51, 113
  %v570 = vpop.permute.xlu0 %569
  %571 = vrot.lane.b32.xlu0 %v59, 113
  %v572 = vpop.permute.xlu0 %571
  %vm573 = vcmp.lt.s32.totalorder %v345, 113
  %v574 = vsel %vm573, %v570, %v572
  %v575 = vsel %vm573, %v568, %v570
  %v576 = vsel %vm573, %v566, %v568
  %v577 = vsel %vm573, %v572, %v566
  %vm578 = vcmp.lt.s32.totalorder %v52, 15
  %vm579 = vmand %vm578, %vm352
  %v580 = vmax.f32 %v561, %v576
  %v581 = vmax.f32 %v562, %v575
  %v582 = vmax.f32 %v563, %v574
  %v583 = vmax.f32 %v564, %v577
  %v584 = vsel %vm579, 1, 0
  %v585 = vlaneseq
  %v586 = vshrl.u32 %v585, 7
  %v587 = vsub.s32 0, %v586
  %v588 = vrot.slane %v584, %v587
  %v589 = vlaneseq
  %v590 = vshrl.u32 %v589, 7
  %v591 = vsub.s32 1, %v590
  %v592 = vrot.slane %v584, %v591
  %v593 = vlaneseq
  %v594 = vshrl.u32 %v593, 7
  %v595 = vsub.s32 2, %v594
  %v596 = vrot.slane %v584, %v595
  %v597 = vlaneseq
  %v598 = vshrl.u32 %v597, 7
  %v599 = vsub.s32 3, %v598
  %v600 = vrot.slane %v584, %v599
  %vm601 = vcmp.eq.s32.totalorder %v588, 1
  %vm602 = vcmp.eq.s32.totalorder %v592, 1
  %vm603 = vcmp.eq.s32.totalorder %v596, 1
  %vm604 = vcmp.eq.s32.totalorder %v600, 1
  %v605 = vsel %vm601, %v580, %v561
  %v606 = vsel %vm602, %v581, %v562
  %v607 = vsel %vm603, %v582, %v563
  %v608 = vsel %vm604, %v583, %v564
  %609 = vrot.lane.b32.xlu0 %v50, 112
  %v610 = vpop.permute.xlu0 %609
  %611 = vrot.lane.b32.xlu0 %v58, 112
  %v612 = vpop.permute.xlu0 %611
  %613 = vrot.lane.b32.xlu0 %v51, 112
  %v614 = vpop.permute.xlu0 %613
  %615 = vrot.lane.b32.xlu0 %v59, 112
  %v616 = vpop.permute.xlu0 %615
  %vm617 = vcmp.lt.s32.totalorder %v345, 112
  %v618 = vsel %vm617, %v614, %v616
  %v619 = vsel %vm617, %v612, %v614
  %v620 = vsel %vm617, %v610, %v612
  %v621 = vsel %vm617, %v616, %v610
  %v622 = vmax.f32 %v605, %v620
  %v623 = vmax.f32 %v606, %v619
  %v624 = vmax.f32 %v607, %v618
  %v625 = vmax.f32 %v608, %v621
  %v626 = vsel %vm578, 1, 0
  %v627 = vlaneseq
  %v628 = vshrl.u32 %v627, 7
  %v629 = vsub.s32 0, %v628
  %v630 = vrot.slane %v626, %v629
  %v631 = vlaneseq
  %v632 = vshrl.u32 %v631, 7
  %v633 = vsub.s32 1, %v632
  %v634 = vrot.slane %v626, %v633
  %v635 = vlaneseq
  %v636 = vshrl.u32 %v635, 7
  %v637 = vsub.s32 2, %v636
  %v638 = vrot.slane %v626, %v637
  %v639 = vlaneseq
  %v640 = vshrl.u32 %v639, 7
  %v641 = vsub.s32 3, %v640
  %v642 = vrot.slane %v626, %v641
  %vm643 = vcmp.eq.s32.totalorder %v630, 1
  %vm644 = vcmp.eq.s32.totalorder %v634, 1
  %vm645 = vcmp.eq.s32.totalorder %v638, 1
  %vm646 = vcmp.eq.s32.totalorder %v642, 1
  %v647 = vsel %vm643, %v622, %v605
  %v648 = vsel %vm644, %v623, %v606
  %v649 = vsel %vm645, %v624, %v607
  %v650 = vsel %vm646, %v625, %v608
  %651 = vrot.lane.b32.xlu0 %v50, 111
  %v652 = vpop.permute.xlu0 %651
  %653 = vrot.lane.b32.xlu0 %v58, 111
  %v654 = vpop.permute.xlu0 %653
  %655 = vrot.lane.b32.xlu0 %v51, 111
  %v656 = vpop.permute.xlu0 %655
  %657 = vrot.lane.b32.xlu0 %v59, 111
  %v658 = vpop.permute.xlu0 %657
  %vm659 = vcmp.lt.s32.totalorder %v345, 111
  %v660 = vsel %vm659, %v656, %v658
  %v661 = vsel %vm659, %v654, %v656
  %v662 = vsel %vm659, %v652, %v654
  %v663 = vsel %vm659, %v658, %v652
  %vm664 = vmand %vm578, %vm450
  %v665 = vmax.f32 %v647, %v662
  %v666 = vmax.f32 %v648, %v661
  %v667 = vmax.f32 %v649, %v660
  %v668 = vmax.f32 %v650, %v663
  %v669 = vsel %vm664, 1, 0
  %v670 = vlaneseq
  %v671 = vshrl.u32 %v670, 7
  %v672 = vsub.s32 0, %v671
  %v673 = vrot.slane %v669, %v672
  %v674 = vlaneseq
  %v675 = vshrl.u32 %v674, 7
  %v676 = vsub.s32 1, %v675
  %v677 = vrot.slane %v669, %v676
  %v678 = vlaneseq
  %v679 = vshrl.u32 %v678, 7
  %v680 = vsub.s32 2, %v679
  %v681 = vrot.slane %v669, %v680
  %v682 = vlaneseq
  %v683 = vshrl.u32 %v682, 7
  %v684 = vsub.s32 3, %v683
  %v685 = vrot.slane %v669, %v684
  %vm686 = vcmp.eq.s32.totalorder %v673, 1
  %vm687 = vcmp.eq.s32.totalorder %v677, 1
  %vm688 = vcmp.eq.s32.totalorder %v681, 1
  %vm689 = vcmp.eq.s32.totalorder %v685, 1
  %v690 = vsel %vm686, %v665, %v647
  %v691 = vsel %vm687, %v666, %v648
  %v692 = vsel %vm688, %v667, %v649
  %v693 = vsel %vm689, %v668, %v650
  %v694 = vld [vmem:[%s12] sm:$0xff]
  %v696 = vsel %vm60, %v694, 0
  %v699 = vsel %vm67, %v690, 0
  %v702 = vsel %vm67, %v691, 0
  %v705 = vsel %vm67, %v692, 0
  %v708 = vsel %vm67, %v693, 0
  %710 = vmatprep.subr.mxu0 0.0
  %711 = vmatpush1.msra.mxu0 0.0
  %712 = vmatprep.subr.mxu0 0.0
  %713 = vmatpush1.msra.mxu0 0.0
  %714 = vmatprep.subr.mxu0 0.0
  %715 = vmatpush1.msra.mxu0 0.0
  %716 = vmatprep.subr.mxu0 0.0
  %717 = vmatpush1.msra.mxu0 0.0
  %718 = vmatprep.subr.mxu0 0.0
  %719 = vmatpush1.msra.mxu0 0.0
  %720 = vmatprep.subr.mxu0 0.0
  %721 = vmatpush1.msra.mxu0 0.0
  %722 = vmatprep.subr.mxu0 0.0
  %723 = vmatpush1.msra.mxu0 0.0
  %724 = vmatprep.subr.mxu0 0.0
  %725 = vmatpush1.msra.mxu0 0.0
  %726 = vmatprep.subr.mxu0 0.0
  %727 = vmatpush1.msra.mxu0 0.0
  %728 = vmatprep.subr.mxu0 0.0
  %729 = vmatpush1.msra.mxu0 0.0
  %730 = vmatprep.subr.mxu0 0.0
  %731 = vmatpush1.msra.mxu0 0.0
  %732 = vmatprep.subr.mxu0 0.0
  %733 = vmatpush1.msra.mxu0 0.0
  %734 = vmatprep.subr.mxu0 0.0
  %735 = vmatpush1.msra.mxu0 0.0
  %736 = vmatprep.subr.mxu0 0.0
  %737 = vmatpush1.msra.mxu0 0.0
  %738 = vmatprep.subr.mxu0 0.0
  %739 = vmatpush1.msra.mxu0 0.0
  %740 = vmatprep.subr.mxu0 %v702
  %741 = vmatpush1.msra.mxu0 %v699
  %742 = vmatprep.subr.mxu0 0.0
  %743 = vmatpush2.msra.mxu0 0.0
  %744 = vmatprep.subr.mxu0 0.0
  %745 = vmatpush2.msra.mxu0 0.0
  %746 = vmatprep.subr.mxu0 0.0
  %747 = vmatpush2.msra.mxu0 0.0
  %748 = vmatprep.subr.mxu0 0.0
  %749 = vmatpush2.msra.mxu0 0.0
  %750 = vmatprep.subr.mxu0 0.0
  %751 = vmatpush2.msra.mxu0 0.0
  %752 = vmatprep.subr.mxu0 0.0
  %753 = vmatpush2.msra.mxu0 0.0
  %754 = vmatprep.subr.mxu0 0.0
  %755 = vmatpush2.msra.mxu0 0.0
  %756 = vmatprep.subr.mxu0 0.0
  %757 = vmatpush2.msra.mxu0 0.0
  %758 = vmatprep.subr.mxu0 0.0
  %759 = vmatpush2.msra.mxu0 0.0
  %760 = vmatprep.subr.mxu0 0.0
  %761 = vmatpush2.msra.mxu0 0.0
  %762 = vmatprep.subr.mxu0 0.0
  %763 = vmatpush2.msra.mxu0 0.0
  %764 = vmatprep.subr.mxu0 0.0
  %765 = vmatpush2.msra.mxu0 0.0
  %766 = vmatprep.subr.mxu0 0.0
  %767 = vmatpush2.msra.mxu0 0.0
  %768 = vmatprep.subr.mxu0 0.0
  %769 = vmatpush2.msra.mxu0 0.0
  %770 = vmatprep.subr.mxu0 0.0
  %771 = vmatpush2.msra.mxu0 0.0
  %772 = vmatprep.subr.mxu0 0.0
  %773 = vmatpush2.msra.mxu0 0.0
  %774 = vmatprep.mubr.f32.mxu0 0.0
  %775 = vmatmul.mubr.f32.gmra.mxu0 %v696
  %v776 = vpop.f32.mrf.mxu0
  %v777 = vadd.f32 0.0, %v776
  %v778 = vpop.f32.mrf.mxu0
  %v779 = vadd.f32 0.0, %v778
  %780 = vdwg.mxu0
  %781 = vmatprep.subr.mxu0 0.0
  %782 = vmatpush1.msra.mxu0 0.0
  %783 = vmatprep.subr.mxu0 0.0
  %784 = vmatpush1.msra.mxu0 0.0
  %785 = vmatprep.subr.mxu0 0.0
  %786 = vmatpush1.msra.mxu0 0.0
  %787 = vmatprep.subr.mxu0 0.0
  %788 = vmatpush1.msra.mxu0 0.0
  %789 = vmatprep.subr.mxu0 0.0
  %790 = vmatpush1.msra.mxu0 0.0
  %791 = vmatprep.subr.mxu0 0.0
  %792 = vmatpush1.msra.mxu0 0.0
  %793 = vmatprep.subr.mxu0 0.0
  %794 = vmatpush1.msra.mxu0 0.0
  %795 = vmatprep.subr.mxu0 0.0
  %796 = vmatpush1.msra.mxu0 0.0
  %797 = vmatprep.subr.mxu0 0.0
  %798 = vmatpush1.msra.mxu0 0.0
  %799 = vmatprep.subr.mxu0 0.0
  %800 = vmatpush1.msra.mxu0 0.0
  %801 = vmatprep.subr.mxu0 0.0
  %802 = vmatpush1.msra.mxu0 0.0
  %803 = vmatprep.subr.mxu0 0.0
  %804 = vmatpush1.msra.mxu0 0.0
  %805 = vmatprep.subr.mxu0 0.0
  %806 = vmatpush1.msra.mxu0 0.0
  %807 = vmatprep.subr.mxu0 0.0
  %808 = vmatpush1.msra.mxu0 0.0
  %809 = vmatprep.subr.mxu0 0.0
  %810 = vmatpush1.msra.mxu0 0.0
  %811 = vmatprep.subr.mxu0 %v708
  %812 = vmatpush1.msra.mxu0 %v705
  %813 = vmatprep.subr.mxu0 0.0
  %814 = vmatpush2.msra.mxu0 0.0
  %815 = vmatprep.subr.mxu0 0.0
  %816 = vmatpush2.msra.mxu0 0.0
  %817 = vmatprep.subr.mxu0 0.0
  %818 = vmatpush2.msra.mxu0 0.0
  %819 = vmatprep.subr.mxu0 0.0
  %820 = vmatpush2.msra.mxu0 0.0
  %821 = vmatprep.subr.mxu0 0.0
  %822 = vmatpush2.msra.mxu0 0.0
  %823 = vmatprep.subr.mxu0 0.0
  %824 = vmatpush2.msra.mxu0 0.0
  %825 = vmatprep.subr.mxu0 0.0
  %826 = vmatpush2.msra.mxu0 0.0
  %827 = vmatprep.subr.mxu0 0.0
  %828 = vmatpush2.msra.mxu0 0.0
  %829 = vmatprep.subr.mxu0 0.0
  %830 = vmatpush2.msra.mxu0 0.0
  %831 = vmatprep.subr.mxu0 0.0
  %832 = vmatpush2.msra.mxu0 0.0
  %833 = vmatprep.subr.mxu0 0.0
  %834 = vmatpush2.msra.mxu0 0.0
  %835 = vmatprep.subr.mxu0 0.0
  %836 = vmatpush2.msra.mxu0 0.0
  %837 = vmatprep.subr.mxu0 0.0
  %838 = vmatpush2.msra.mxu0 0.0
  %839 = vmatprep.subr.mxu0 0.0
  %840 = vmatpush2.msra.mxu0 0.0
  %841 = vmatprep.subr.mxu0 0.0
  %842 = vmatpush2.msra.mxu0 0.0
  %843 = vmatprep.subr.mxu0 0.0
  %844 = vmatpush2.msra.mxu0 0.0
  %845 = vmatprep.mubr.f32.mxu0 0.0
  %846 = vmatmul.mubr.f32.gmra.mxu0 %v696
  %v847 = vpop.f32.mrf.mxu0
  %v848 = vadd.f32 0.0, %v847
  %v849 = vpop.f32.mrf.mxu0
  %v850 = vadd.f32 0.0, %v849
  %851 = vdwg.mxu0
  %v852 = vld [vmem:[%s13] sm:$0xff]
  %v853 = vld [vmem:[%s14] sm:$0xff]
  %v854 = vadd.f32 %v777, %v779
  %v855 = vadd.f32 %v854, %v848
  %v856 = vadd.f32 %v855, %v850
  %857 = vadd.xlane.f32.xlu0 %v856
  %v858 = vpop.xlane.xlu0 %857
  %v859 = vmul.f32 %v858, 0.001953125
  %v860 = vsub.f32 %v777, %v859
  %v861 = vsub.f32 %v779, %v859
  %v862 = vsub.f32 %v848, %v859
  %v863 = vsub.f32 %v850, %v859
  %v864 = vmul.f32 %v860, %v860
  %v865 = vmul.f32 %v861, %v861
  %v866 = vmul.f32 %v862, %v862
  %v867 = vmul.f32 %v863, %v863
  %v868 = vadd.f32 %v864, %v865
  %v869 = vadd.f32 %v868, %v866
  %v870 = vadd.f32 %v869, %v867
  %871 = vadd.xlane.f32.xlu0 %v870
  %v872 = vpop.xlane.xlu0 %871
  %v873 = vmul.f32 %v872, 0.001953125
  %v874 = vadd.f32 %v873, 0.001
  %v875 = vrsqrt.pop %v874
  %v876 = vmul.f32 %v860, %v875
  %v877 = vmul.f32 %v861, %v875
  %v878 = vmul.f32 %v862, %v875
  %v879 = vmul.f32 %v863, %v875
  %881 = vset.pattern.permute.xlu0 0
  %882 = vperm.xlu0 %881, %v852
  %v883 = vpop.permute.xlu0 %882
  %v885 = vmul.f32 %v876, %v883
  %v886 = vmul.f32 %v877, %v883
  %v887 = vmul.f32 %v878, %v883
  %v888 = vmul.f32 %v879, %v883
  %890 = vset.pattern.permute.xlu0 0
  %891 = vperm.xlu0 %890, %v853
  %v892 = vpop.permute.xlu0 %891
  %v894 = vadd.f32 %v885, %v892
  %v895 = vadd.f32 %v886, %v892
  %v896 = vadd.f32 %v887, %v892
  %v897 = vadd.f32 %v888, %v892
  %v898 = vmax.f32 %v894, 0.0
  %v899 = vmax.f32 %v895, 0.0
  %v900 = vmax.f32 %v896, 0.0
  %v901 = vmax.f32 %v897, 0.0
  %902 = vst [vmem:[%s15 + $0x60] sm:$0xff] %v898
  %903 = vst [vmem:[%s15 + $0x68] sm:$0xff] %v899
  %904 = vst [vmem:[%s15 + $0x70] sm:$0xff] %v900
  %905 = vst [vmem:[%s15 + $0x78] sm:$0xff] %v901
  %906 = vrot.lane.b32.xlu0 %v322, 17
  %v907 = vpop.permute.xlu0 %906
  %908 = vrot.lane.b32.xlu0 %v323, 17
  %v909 = vpop.permute.xlu0 %908
  %910 = vrot.lane.b32.xlu0 %v324, 17
  %v911 = vpop.permute.xlu0 %910
  %912 = vrot.lane.b32.xlu0 %v325, 17
  %v913 = vpop.permute.xlu0 %912
  %v914 = vsel %vm346, %v911, %v913
  %v915 = vsel %vm346, %v909, %v911
  %v916 = vsel %vm346, %v907, %v909
  %v917 = vsel %vm346, %v913, %v907
  %v918 = vsel %vm381, %v917, 0.0
  %v919 = vsel %vm382, %v916, 0.0
  %v920 = vsel %vm383, %v915, 0.0
  %v921 = vsel %vm384, %v914, 0.0
  %v922 = vld [vmem:[%s6] sm:$0xff]
  %923 = vrot.lane.b32.xlu0 %v322, 16
  %v924 = vpop.permute.xlu0 %923
  %925 = vrot.lane.b32.xlu0 %v323, 16
  %v926 = vpop.permute.xlu0 %925
  %927 = vrot.lane.b32.xlu0 %v324, 16
  %v928 = vpop.permute.xlu0 %927
  %929 = vrot.lane.b32.xlu0 %v325, 16
  %v930 = vpop.permute.xlu0 %929
  %v931 = vsel %vm403, %v928, %v930
  %v932 = vsel %vm403, %v926, %v928
  %v933 = vsel %vm403, %v924, %v926
  %v934 = vsel %vm403, %v930, %v924
  %v935 = vsel %vm429, %v934, 0.0
  %v936 = vsel %vm430, %v933, 0.0
  %v937 = vsel %vm431, %v932, 0.0
  %v938 = vsel %vm432, %v931, 0.0
  %s939 = scalar_lea.vmem %s6, 8
  %v940 = vld [vmem:[%s939] sm:$0xff]
  %v942 = vsel %vm60, %v940, 0
  %v945 = vsel %vm67, %v935, 0
  %v948 = vsel %vm67, %v936, 0
  %v951 = vsel %vm67, %v937, 0
  %v954 = vsel %vm67, %v938, 0
  %956 = vmatprep.subr.mxu0 0.0
  %957 = vmatpush1.msra.mxu0 0.0
  %958 = vmatprep.subr.mxu0 0.0
  %959 = vmatpush1.msra.mxu0 0.0
  %960 = vmatprep.subr.mxu0 0.0
  %961 = vmatpush1.msra.mxu0 0.0
  %962 = vmatprep.subr.mxu0 0.0
  %963 = vmatpush1.msra.mxu0 0.0
  %964 = vmatprep.subr.mxu0 0.0
  %965 = vmatpush1.msra.mxu0 0.0
  %966 = vmatprep.subr.mxu0 0.0
  %967 = vmatpush1.msra.mxu0 0.0
  %968 = vmatprep.subr.mxu0 0.0
  %969 = vmatpush1.msra.mxu0 0.0
  %970 = vmatprep.subr.mxu0 0.0
  %971 = vmatpush1.msra.mxu0 0.0
  %972 = vmatprep.subr.mxu0 0.0
  %973 = vmatpush1.msra.mxu0 0.0
  %974 = vmatprep.subr.mxu0 0.0
  %975 = vmatpush1.msra.mxu0 0.0
  %976 = vmatprep.subr.mxu0 0.0
  %977 = vmatpush1.msra.mxu0 0.0
  %978 = vmatprep.subr.mxu0 0.0
  %979 = vmatpush1.msra.mxu0 0.0
  %980 = vmatprep.subr.mxu0 0.0
  %981 = vmatpush1.msra.mxu0 0.0
  %982 = vmatprep.subr.mxu0 0.0
  %983 = vmatpush1.msra.mxu0 0.0
  %984 = vmatprep.subr.mxu0 0.0
  %985 = vmatpush1.msra.mxu0 0.0
  %986 = vmatprep.subr.mxu0 %v948
  %987 = vmatpush1.msra.mxu0 %v945
  %988 = vmatprep.subr.mxu0 0.0
  %989 = vmatpush2.msra.mxu0 0.0
  %990 = vmatprep.subr.mxu0 0.0
  %991 = vmatpush2.msra.mxu0 0.0
  %992 = vmatprep.subr.mxu0 0.0
  %993 = vmatpush2.msra.mxu0 0.0
  %994 = vmatprep.subr.mxu0 0.0
  %995 = vmatpush2.msra.mxu0 0.0
  %996 = vmatprep.subr.mxu0 0.0
  %997 = vmatpush2.msra.mxu0 0.0
  %998 = vmatprep.subr.mxu0 0.0
  %999 = vmatpush2.msra.mxu0 0.0
  %1000 = vmatprep.subr.mxu0 0.0
  %1001 = vmatpush2.msra.mxu0 0.0
  %1002 = vmatprep.subr.mxu0 0.0
  %1003 = vmatpush2.msra.mxu0 0.0
  %1004 = vmatprep.subr.mxu0 0.0
  %1005 = vmatpush2.msra.mxu0 0.0
  %1006 = vmatprep.subr.mxu0 0.0
  %1007 = vmatpush2.msra.mxu0 0.0
  %1008 = vmatprep.subr.mxu0 0.0
  %1009 = vmatpush2.msra.mxu0 0.0
  %1010 = vmatprep.subr.mxu0 0.0
  %1011 = vmatpush2.msra.mxu0 0.0
  %1012 = vmatprep.subr.mxu0 0.0
  %1013 = vmatpush2.msra.mxu0 0.0
  %1014 = vmatprep.subr.mxu0 0.0
  %1015 = vmatpush2.msra.mxu0 0.0
  %1016 = vmatprep.subr.mxu0 0.0
  %1017 = vmatpush2.msra.mxu0 0.0
  %1018 = vmatprep.subr.mxu0 0.0
  %1019 = vmatpush2.msra.mxu0 0.0
  %1020 = vmatprep.mubr.f32.mxu0 0.0
  %1021 = vmatmul.mubr.f32.gmra.mxu0 %v942
  %v1022 = vpop.f32.mrf.mxu0
  %v1023 = vadd.f32 0.0, %v1022
  %v1024 = vpop.f32.mrf.mxu0
  %v1025 = vadd.f32 0.0, %v1024
  %1026 = vdwg.mxu0
  %1027 = vmatprep.subr.mxu0 0.0
  %1028 = vmatpush1.msra.mxu0 0.0
  %1029 = vmatprep.subr.mxu0 0.0
  %1030 = vmatpush1.msra.mxu0 0.0
  %1031 = vmatprep.subr.mxu0 0.0
  %1032 = vmatpush1.msra.mxu0 0.0
  %1033 = vmatprep.subr.mxu0 0.0
  %1034 = vmatpush1.msra.mxu0 0.0
  %1035 = vmatprep.subr.mxu0 0.0
  %1036 = vmatpush1.msra.mxu0 0.0
  %1037 = vmatprep.subr.mxu0 0.0
  %1038 = vmatpush1.msra.mxu0 0.0
  %1039 = vmatprep.subr.mxu0 0.0
  %1040 = vmatpush1.msra.mxu0 0.0
  %1041 = vmatprep.subr.mxu0 0.0
  %1042 = vmatpush1.msra.mxu0 0.0
  %1043 = vmatprep.subr.mxu0 0.0
  %1044 = vmatpush1.msra.mxu0 0.0
  %1045 = vmatprep.subr.mxu0 0.0
  %1046 = vmatpush1.msra.mxu0 0.0
  %1047 = vmatprep.subr.mxu0 0.0
  %1048 = vmatpush1.msra.mxu0 0.0
  %1049 = vmatprep.subr.mxu0 0.0
  %1050 = vmatpush1.msra.mxu0 0.0
  %1051 = vmatprep.subr.mxu0 0.0
  %1052 = vmatpush1.msra.mxu0 0.0
  %1053 = vmatprep.subr.mxu0 0.0
  %1054 = vmatpush1.msra.mxu0 0.0
  %1055 = vmatprep.subr.mxu0 0.0
  %1056 = vmatpush1.msra.mxu0 0.0
  %1057 = vmatprep.subr.mxu0 %v954
  %1058 = vmatpush1.msra.mxu0 %v951
  %1059 = vmatprep.subr.mxu0 0.0
  %1060 = vmatpush2.msra.mxu0 0.0
  %1061 = vmatprep.subr.mxu0 0.0
  %1062 = vmatpush2.msra.mxu0 0.0
  %1063 = vmatprep.subr.mxu0 0.0
  %1064 = vmatpush2.msra.mxu0 0.0
  %1065 = vmatprep.subr.mxu0 0.0
  %1066 = vmatpush2.msra.mxu0 0.0
  %1067 = vmatprep.subr.mxu0 0.0
  %1068 = vmatpush2.msra.mxu0 0.0
  %1069 = vmatprep.subr.mxu0 0.0
  %1070 = vmatpush2.msra.mxu0 0.0
  %1071 = vmatprep.subr.mxu0 0.0
  %1072 = vmatpush2.msra.mxu0 0.0
  %1073 = vmatprep.subr.mxu0 0.0
  %1074 = vmatpush2.msra.mxu0 0.0
  %1075 = vmatprep.subr.mxu0 0.0
  %1076 = vmatpush2.msra.mxu0 0.0
  %1077 = vmatprep.subr.mxu0 0.0
  %1078 = vmatpush2.msra.mxu0 0.0
  %1079 = vmatprep.subr.mxu0 0.0
  %1080 = vmatpush2.msra.mxu0 0.0
  %1081 = vmatprep.subr.mxu0 0.0
  %1082 = vmatpush2.msra.mxu0 0.0
  %1083 = vmatprep.subr.mxu0 0.0
  %1084 = vmatpush2.msra.mxu0 0.0
  %1085 = vmatprep.subr.mxu0 0.0
  %1086 = vmatpush2.msra.mxu0 0.0
  %1087 = vmatprep.subr.mxu0 0.0
  %1088 = vmatpush2.msra.mxu0 0.0
  %1089 = vmatprep.subr.mxu0 0.0
  %1090 = vmatpush2.msra.mxu0 0.0
  %1091 = vmatprep.mubr.f32.mxu0 0.0
  %1092 = vmatmul.mubr.f32.gmra.mxu0 %v942
  %v1093 = vpop.f32.mrf.mxu0
  %v1094 = vadd.f32 0.0, %v1093
  %v1095 = vpop.f32.mrf.mxu0
  %v1096 = vadd.f32 0.0, %v1095
  %1097 = vdwg.mxu0
  %v1099 = vsel %vm60, %v922, 0
  %v1102 = vsel %vm67, %v918, 0
  %v1105 = vsel %vm67, %v919, 0
  %v1108 = vsel %vm67, %v920, 0
  %v1111 = vsel %vm67, %v921, 0
  %1113 = vmatprep.subr.mxu0 0.0
  %1114 = vmatpush1.msra.mxu0 0.0
  %1115 = vmatprep.subr.mxu0 0.0
  %1116 = vmatpush1.msra.mxu0 0.0
  %1117 = vmatprep.subr.mxu0 0.0
  %1118 = vmatpush1.msra.mxu0 0.0
  %1119 = vmatprep.subr.mxu0 0.0
  %1120 = vmatpush1.msra.mxu0 0.0
  %1121 = vmatprep.subr.mxu0 0.0
  %1122 = vmatpush1.msra.mxu0 0.0
  %1123 = vmatprep.subr.mxu0 0.0
  %1124 = vmatpush1.msra.mxu0 0.0
  %1125 = vmatprep.subr.mxu0 0.0
  %1126 = vmatpush1.msra.mxu0 0.0
  %1127 = vmatprep.subr.mxu0 0.0
  %1128 = vmatpush1.msra.mxu0 0.0
  %1129 = vmatprep.subr.mxu0 0.0
  %1130 = vmatpush1.msra.mxu0 0.0
  %1131 = vmatprep.subr.mxu0 0.0
  %1132 = vmatpush1.msra.mxu0 0.0
  %1133 = vmatprep.subr.mxu0 0.0
  %1134 = vmatpush1.msra.mxu0 0.0
  %1135 = vmatprep.subr.mxu0 0.0
  %1136 = vmatpush1.msra.mxu0 0.0
  %1137 = vmatprep.subr.mxu0 0.0
  %1138 = vmatpush1.msra.mxu0 0.0
  %1139 = vmatprep.subr.mxu0 0.0
  %1140 = vmatpush1.msra.mxu0 0.0
  %1141 = vmatprep.subr.mxu0 0.0
  %1142 = vmatpush1.msra.mxu0 0.0
  %1143 = vmatprep.subr.mxu0 %v1105
  %1144 = vmatpush1.msra.mxu0 %v1102
  %1145 = vmatprep.subr.mxu0 0.0
  %1146 = vmatpush2.msra.mxu0 0.0
  %1147 = vmatprep.subr.mxu0 0.0
  %1148 = vmatpush2.msra.mxu0 0.0
  %1149 = vmatprep.subr.mxu0 0.0
  %1150 = vmatpush2.msra.mxu0 0.0
  %1151 = vmatprep.subr.mxu0 0.0
  %1152 = vmatpush2.msra.mxu0 0.0
  %1153 = vmatprep.subr.mxu0 0.0
  %1154 = vmatpush2.msra.mxu0 0.0
  %1155 = vmatprep.subr.mxu0 0.0
  %1156 = vmatpush2.msra.mxu0 0.0
  %1157 = vmatprep.subr.mxu0 0.0
  %1158 = vmatpush2.msra.mxu0 0.0
  %1159 = vmatprep.subr.mxu0 0.0
  %1160 = vmatpush2.msra.mxu0 0.0
  %1161 = vmatprep.subr.mxu0 0.0
  %1162 = vmatpush2.msra.mxu0 0.0
  %1163 = vmatprep.subr.mxu0 0.0
  %1164 = vmatpush2.msra.mxu0 0.0
  %1165 = vmatprep.subr.mxu0 0.0
  %1166 = vmatpush2.msra.mxu0 0.0
  %1167 = vmatprep.subr.mxu0 0.0
  %1168 = vmatpush2.msra.mxu0 0.0
  %1169 = vmatprep.subr.mxu0 0.0
  %1170 = vmatpush2.msra.mxu0 0.0
  %1171 = vmatprep.subr.mxu0 0.0
  %1172 = vmatpush2.msra.mxu0 0.0
  %1173 = vmatprep.subr.mxu0 0.0
  %1174 = vmatpush2.msra.mxu0 0.0
  %1175 = vmatprep.subr.mxu0 0.0
  %1176 = vmatpush2.msra.mxu0 0.0
  %1177 = vmatprep.mubr.f32.mxu0 0.0
  %1178 = vmatmul.mubr.f32.gmra.mxu0 %v1099
  %v1179 = vpop.f32.mrf.mxu0
  %v1180 = vadd.f32 %v1023, %v1179
  %v1181 = vpop.f32.mrf.mxu0
  %v1182 = vadd.f32 %v1025, %v1181
  %1183 = vdwg.mxu0
  %1184 = vmatprep.subr.mxu0 0.0
  %1185 = vmatpush1.msra.mxu0 0.0
  %1186 = vmatprep.subr.mxu0 0.0
  %1187 = vmatpush1.msra.mxu0 0.0
  %1188 = vmatprep.subr.mxu0 0.0
  %1189 = vmatpush1.msra.mxu0 0.0
  %1190 = vmatprep.subr.mxu0 0.0
  %1191 = vmatpush1.msra.mxu0 0.0
  %1192 = vmatprep.subr.mxu0 0.0
  %1193 = vmatpush1.msra.mxu0 0.0
  %1194 = vmatprep.subr.mxu0 0.0
  %1195 = vmatpush1.msra.mxu0 0.0
  %1196 = vmatprep.subr.mxu0 0.0
  %1197 = vmatpush1.msra.mxu0 0.0
  %1198 = vmatprep.subr.mxu0 0.0
  %1199 = vmatpush1.msra.mxu0 0.0
  %1200 = vmatprep.subr.mxu0 0.0
  %1201 = vmatpush1.msra.mxu0 0.0
  %1202 = vmatprep.subr.mxu0 0.0
  %1203 = vmatpush1.msra.mxu0 0.0
  %1204 = vmatprep.subr.mxu0 0.0
  %1205 = vmatpush1.msra.mxu0 0.0
  %1206 = vmatprep.subr.mxu0 0.0
  %1207 = vmatpush1.msra.mxu0 0.0
  %1208 = vmatprep.subr.mxu0 0.0
  %1209 = vmatpush1.msra.mxu0 0.0
  %1210 = vmatprep.subr.mxu0 0.0
  %1211 = vmatpush1.msra.mxu0 0.0
  %1212 = vmatprep.subr.mxu0 0.0
  %1213 = vmatpush1.msra.mxu0 0.0
  %1214 = vmatprep.subr.mxu0 %v1111
  %1215 = vmatpush1.msra.mxu0 %v1108
  %1216 = vmatprep.subr.mxu0 0.0
  %1217 = vmatpush2.msra.mxu0 0.0
  %1218 = vmatprep.subr.mxu0 0.0
  %1219 = vmatpush2.msra.mxu0 0.0
  %1220 = vmatprep.subr.mxu0 0.0
  %1221 = vmatpush2.msra.mxu0 0.0
  %1222 = vmatprep.subr.mxu0 0.0
  %1223 = vmatpush2.msra.mxu0 0.0
  %1224 = vmatprep.subr.mxu0 0.0
  %1225 = vmatpush2.msra.mxu0 0.0
  %1226 = vmatprep.subr.mxu0 0.0
  %1227 = vmatpush2.msra.mxu0 0.0
  %1228 = vmatprep.subr.mxu0 0.0
  %1229 = vmatpush2.msra.mxu0 0.0
  %1230 = vmatprep.subr.mxu0 0.0
  %1231 = vmatpush2.msra.mxu0 0.0
  %1232 = vmatprep.subr.mxu0 0.0
  %1233 = vmatpush2.msra.mxu0 0.0
  %1234 = vmatprep.subr.mxu0 0.0
  %1235 = vmatpush2.msra.mxu0 0.0
  %1236 = vmatprep.subr.mxu0 0.0
  %1237 = vmatpush2.msra.mxu0 0.0
  %1238 = vmatprep.subr.mxu0 0.0
  %1239 = vmatpush2.msra.mxu0 0.0
  %1240 = vmatprep.subr.mxu0 0.0
  %1241 = vmatpush2.msra.mxu0 0.0
  %1242 = vmatprep.subr.mxu0 0.0
  %1243 = vmatpush2.msra.mxu0 0.0
  %1244 = vmatprep.subr.mxu0 0.0
  %1245 = vmatpush2.msra.mxu0 0.0
  %1246 = vmatprep.subr.mxu0 0.0
  %1247 = vmatpush2.msra.mxu0 0.0
  %1248 = vmatprep.mubr.f32.mxu0 0.0
  %1249 = vmatmul.mubr.f32.gmra.mxu0 %v1099
  %v1250 = vpop.f32.mrf.mxu0
  %v1251 = vadd.f32 %v1094, %v1250
  %v1252 = vpop.f32.mrf.mxu0
  %v1253 = vadd.f32 %v1096, %v1252
  %1254 = vdwg.mxu0
  %1255 = vrot.lane.b32.xlu0 %v322, 15
  %v1256 = vpop.permute.xlu0 %1255
  %1257 = vrot.lane.b32.xlu0 %v323, 15
  %v1258 = vpop.permute.xlu0 %1257
  %1259 = vrot.lane.b32.xlu0 %v324, 15
  %v1260 = vpop.permute.xlu0 %1259
  %1261 = vrot.lane.b32.xlu0 %v325, 15
  %v1262 = vpop.permute.xlu0 %1261
  %v1263 = vsel %vm445, %v1260, %v1262
  %v1264 = vsel %vm445, %v1258, %v1260
  %v1265 = vsel %vm445, %v1256, %v1258
  %v1266 = vsel %vm445, %v1262, %v1256
  %v1267 = vsel %vm473, %v1266, 0.0
  %v1268 = vsel %vm474, %v1265, 0.0
  %v1269 = vsel %vm475, %v1264, 0.0
  %v1270 = vsel %vm476, %v1263, 0.0
  %s1271 = scalar_lea.vmem %s6, 16
  %v1272 = vld [vmem:[%s1271] sm:$0xff]
  %v1274 = vsel %vm60, %v1272, 0
  %v1277 = vsel %vm67, %v1267, 0
  %v1280 = vsel %vm67, %v1268, 0
  %v1283 = vsel %vm67, %v1269, 0
  %v1286 = vsel %vm67, %v1270, 0
  %1288 = vmatprep.subr.mxu0 0.0
  %1289 = vmatpush1.msra.mxu0 0.0
  %1290 = vmatprep.subr.mxu0 0.0
  %1291 = vmatpush1.msra.mxu0 0.0
  %1292 = vmatprep.subr.mxu0 0.0
  %1293 = vmatpush1.msra.mxu0 0.0
  %1294 = vmatprep.subr.mxu0 0.0
  %1295 = vmatpush1.msra.mxu0 0.0
  %1296 = vmatprep.subr.mxu0 0.0
  %1297 = vmatpush1.msra.mxu0 0.0
  %1298 = vmatprep.subr.mxu0 0.0
  %1299 = vmatpush1.msra.mxu0 0.0
  %1300 = vmatprep.subr.mxu0 0.0
  %1301 = vmatpush1.msra.mxu0 0.0
  %1302 = vmatprep.subr.mxu0 0.0
  %1303 = vmatpush1.msra.mxu0 0.0
  %1304 = vmatprep.subr.mxu0 0.0
  %1305 = vmatpush1.msra.mxu0 0.0
  %1306 = vmatprep.subr.mxu0 0.0
  %1307 = vmatpush1.msra.mxu0 0.0
  %1308 = vmatprep.subr.mxu0 0.0
  %1309 = vmatpush1.msra.mxu0 0.0
  %1310 = vmatprep.subr.mxu0 0.0
  %1311 = vmatpush1.msra.mxu0 0.0
  %1312 = vmatprep.subr.mxu0 0.0
  %1313 = vmatpush1.msra.mxu0 0.0
  %1314 = vmatprep.subr.mxu0 0.0
  %1315 = vmatpush1.msra.mxu0 0.0
  %1316 = vmatprep.subr.mxu0 0.0
  %1317 = vmatpush1.msra.mxu0 0.0
  %1318 = vmatprep.subr.mxu0 %v1280
  %1319 = vmatpush1.msra.mxu0 %v1277
  %1320 = vmatprep.subr.mxu0 0.0
  %1321 = vmatpush2.msra.mxu0 0.0
  %1322 = vmatprep.subr.mxu0 0.0
  %1323 = vmatpush2.msra.mxu0 0.0
  %1324 = vmatprep.subr.mxu0 0.0
  %1325 = vmatpush2.msra.mxu0 0.0
  %1326 = vmatprep.subr.mxu0 0.0
  %1327 = vmatpush2.msra.mxu0 0.0
  %1328 = vmatprep.subr.mxu0 0.0
  %1329 = vmatpush2.msra.mxu0 0.0
  %1330 = vmatprep.subr.mxu0 0.0
  %1331 = vmatpush2.msra.mxu0 0.0
  %1332 = vmatprep.subr.mxu0 0.0
  %1333 = vmatpush2.msra.mxu0 0.0
  %1334 = vmatprep.subr.mxu0 0.0
  %1335 = vmatpush2.msra.mxu0 0.0
  %1336 = vmatprep.subr.mxu0 0.0
  %1337 = vmatpush2.msra.mxu0 0.0
  %1338 = vmatprep.subr.mxu0 0.0
  %1339 = vmatpush2.msra.mxu0 0.0
  %1340 = vmatprep.subr.mxu0 0.0
  %1341 = vmatpush2.msra.mxu0 0.0
  %1342 = vmatprep.subr.mxu0 0.0
  %1343 = vmatpush2.msra.mxu0 0.0
  %1344 = vmatprep.subr.mxu0 0.0
  %1345 = vmatpush2.msra.mxu0 0.0
  %1346 = vmatprep.subr.mxu0 0.0
  %1347 = vmatpush2.msra.mxu0 0.0
  %1348 = vmatprep.subr.mxu0 0.0
  %1349 = vmatpush2.msra.mxu0 0.0
  %1350 = vmatprep.subr.mxu0 0.0
  %1351 = vmatpush2.msra.mxu0 0.0
  %1352 = vmatprep.mubr.f32.mxu0 0.0
  %1353 = vmatmul.mubr.f32.gmra.mxu0 %v1274
  %v1354 = vpop.f32.mrf.mxu0
  %v1355 = vadd.f32 0.0, %v1354
  %v1356 = vpop.f32.mrf.mxu0
  %v1357 = vadd.f32 0.0, %v1356
  %1358 = vdwg.mxu0
  %1359 = vmatprep.subr.mxu0 0.0
  %1360 = vmatpush1.msra.mxu0 0.0
  %1361 = vmatprep.subr.mxu0 0.0
  %1362 = vmatpush1.msra.mxu0 0.0
  %1363 = vmatprep.subr.mxu0 0.0
  %1364 = vmatpush1.msra.mxu0 0.0
  %1365 = vmatprep.subr.mxu0 0.0
  %1366 = vmatpush1.msra.mxu0 0.0
  %1367 = vmatprep.subr.mxu0 0.0
  %1368 = vmatpush1.msra.mxu0 0.0
  %1369 = vmatprep.subr.mxu0 0.0
  %1370 = vmatpush1.msra.mxu0 0.0
  %1371 = vmatprep.subr.mxu0 0.0
  %1372 = vmatpush1.msra.mxu0 0.0
  %1373 = vmatprep.subr.mxu0 0.0
  %1374 = vmatpush1.msra.mxu0 0.0
  %1375 = vmatprep.subr.mxu0 0.0
  %1376 = vmatpush1.msra.mxu0 0.0
  %1377 = vmatprep.subr.mxu0 0.0
  %1378 = vmatpush1.msra.mxu0 0.0
  %1379 = vmatprep.subr.mxu0 0.0
  %1380 = vmatpush1.msra.mxu0 0.0
  %1381 = vmatprep.subr.mxu0 0.0
  %1382 = vmatpush1.msra.mxu0 0.0
  %1383 = vmatprep.subr.mxu0 0.0
  %1384 = vmatpush1.msra.mxu0 0.0
  %1385 = vmatprep.subr.mxu0 0.0
  %1386 = vmatpush1.msra.mxu0 0.0
  %1387 = vmatprep.subr.mxu0 0.0
  %1388 = vmatpush1.msra.mxu0 0.0
  %1389 = vmatprep.subr.mxu0 %v1286
  %1390 = vmatpush1.msra.mxu0 %v1283
  %1391 = vmatprep.subr.mxu0 0.0
  %1392 = vmatpush2.msra.mxu0 0.0
  %1393 = vmatprep.subr.mxu0 0.0
  %1394 = vmatpush2.msra.mxu0 0.0
  %1395 = vmatprep.subr.mxu0 0.0
  %1396 = vmatpush2.msra.mxu0 0.0
  %1397 = vmatprep.subr.mxu0 0.0
  %1398 = vmatpush2.msra.mxu0 0.0
  %1399 = vmatprep.subr.mxu0 0.0
  %1400 = vmatpush2.msra.mxu0 0.0
  %1401 = vmatprep.subr.mxu0 0.0
  %1402 = vmatpush2.msra.mxu0 0.0
  %1403 = vmatprep.subr.mxu0 0.0
  %1404 = vmatpush2.msra.mxu0 0.0
  %1405 = vmatprep.subr.mxu0 0.0
  %1406 = vmatpush2.msra.mxu0 0.0
  %1407 = vmatprep.subr.mxu0 0.0
  %1408 = vmatpush2.msra.mxu0 0.0
  %1409 = vmatprep.subr.mxu0 0.0
  %1410 = vmatpush2.msra.mxu0 0.0
  %1411 = vmatprep.subr.mxu0 0.0
  %1412 = vmatpush2.msra.mxu0 0.0
  %1413 = vmatprep.subr.mxu0 0.0
  %1414 = vmatpush2.msra.mxu0 0.0
  %1415 = vmatprep.subr.mxu0 0.0
  %1416 = vmatpush2.msra.mxu0 0.0
  %1417 = vmatprep.subr.mxu0 0.0
  %1418 = vmatpush2.msra.mxu0 0.0
  %1419 = vmatprep.subr.mxu0 0.0
  %1420 = vmatpush2.msra.mxu0 0.0
  %1421 = vmatprep.subr.mxu0 0.0
  %1422 = vmatpush2.msra.mxu0 0.0
  %1423 = vmatprep.mubr.f32.mxu0 0.0
  %1424 = vmatmul.mubr.f32.gmra.mxu0 %v1274
  %v1425 = vpop.f32.mrf.mxu0
  %v1426 = vadd.f32 0.0, %v1425
  %v1427 = vpop.f32.mrf.mxu0
  %v1428 = vadd.f32 0.0, %v1427
  %1429 = vdwg.mxu0
  %v1430 = vadd.f32 %v1180, %v1355
  %v1431 = vadd.f32 %v1182, %v1357
  %v1432 = vadd.f32 %v1251, %v1426
  %v1433 = vadd.f32 %v1253, %v1428
  %1434 = vrot.lane.b32.xlu0 %v322, 1
  %v1435 = vpop.permute.xlu0 %1434
  %1436 = vrot.lane.b32.xlu0 %v323, 1
  %v1437 = vpop.permute.xlu0 %1436
  %1438 = vrot.lane.b32.xlu0 %v324, 1
  %v1439 = vpop.permute.xlu0 %1438
  %1440 = vrot.lane.b32.xlu0 %v325, 1
  %v1441 = vpop.permute.xlu0 %1440
  %v1442 = vsel %vm489, %v1439, %v1441
  %v1443 = vsel %vm489, %v1437, %v1439
  %v1444 = vsel %vm489, %v1435, %v1437
  %v1445 = vsel %vm489, %v1441, %v1435
  %v1446 = vsel %vm515, %v1445, 0.0
  %v1447 = vsel %vm516, %v1444, 0.0
  %v1448 = vsel %vm517, %v1443, 0.0
  %v1449 = vsel %vm518, %v1442, 0.0
  %s1450 = scalar_lea.vmem %s6, 24
  %v1451 = vld [vmem:[%s1450] sm:$0xff]
  %v1453 = vsel %vm60, %v1451, 0
  %v1456 = vsel %vm67, %v1446, 0
  %v1459 = vsel %vm67, %v1447, 0
  %v1462 = vsel %vm67, %v1448, 0
  %v1465 = vsel %vm67, %v1449, 0
  %1467 = vmatprep.subr.mxu0 0.0
  %1468 = vmatpush1.msra.mxu0 0.0
  %1469 = vmatprep.subr.mxu0 0.0
  %1470 = vmatpush1.msra.mxu0 0.0
  %1471 = vmatprep.subr.mxu0 0.0
  %1472 = vmatpush1.msra.mxu0 0.0
  %1473 = vmatprep.subr.mxu0 0.0
  %1474 = vmatpush1.msra.mxu0 0.0
  %1475 = vmatprep.subr.mxu0 0.0
  %1476 = vmatpush1.msra.mxu0 0.0
  %1477 = vmatprep.subr.mxu0 0.0
  %1478 = vmatpush1.msra.mxu0 0.0
  %1479 = vmatprep.subr.mxu0 0.0
  %1480 = vmatpush1.msra.mxu0 0.0
  %1481 = vmatprep.subr.mxu0 0.0
  %1482 = vmatpush1.msra.mxu0 0.0
  %1483 = vmatprep.subr.mxu0 0.0
  %1484 = vmatpush1.msra.mxu0 0.0
  %1485 = vmatprep.subr.mxu0 0.0
  %1486 = vmatpush1.msra.mxu0 0.0
  %1487 = vmatprep.subr.mxu0 0.0
  %1488 = vmatpush1.msra.mxu0 0.0
  %1489 = vmatprep.subr.mxu0 0.0
  %1490 = vmatpush1.msra.mxu0 0.0
  %1491 = vmatprep.subr.mxu0 0.0
  %1492 = vmatpush1.msra.mxu0 0.0
  %1493 = vmatprep.subr.mxu0 0.0
  %1494 = vmatpush1.msra.mxu0 0.0
  %1495 = vmatprep.subr.mxu0 0.0
  %1496 = vmatpush1.msra.mxu0 0.0
  %1497 = vmatprep.subr.mxu0 %v1459
  %1498 = vmatpush1.msra.mxu0 %v1456
  %1499 = vmatprep.subr.mxu0 0.0
  %1500 = vmatpush2.msra.mxu0 0.0
  %1501 = vmatprep.subr.mxu0 0.0
  %1502 = vmatpush2.msra.mxu0 0.0
  %1503 = vmatprep.subr.mxu0 0.0
  %1504 = vmatpush2.msra.mxu0 0.0
  %1505 = vmatprep.subr.mxu0 0.0
  %1506 = vmatpush2.msra.mxu0 0.0
  %1507 = vmatprep.subr.mxu0 0.0
  %1508 = vmatpush2.msra.mxu0 0.0
  %1509 = vmatprep.subr.mxu0 0.0
  %1510 = vmatpush2.msra.mxu0 0.0
  %1511 = vmatprep.subr.mxu0 0.0
  %1512 = vmatpush2.msra.mxu0 0.0
  %1513 = vmatprep.subr.mxu0 0.0
  %1514 = vmatpush2.msra.mxu0 0.0
  %1515 = vmatprep.subr.mxu0 0.0
  %1516 = vmatpush2.msra.mxu0 0.0
  %1517 = vmatprep.subr.mxu0 0.0
  %1518 = vmatpush2.msra.mxu0 0.0
  %1519 = vmatprep.subr.mxu0 0.0
  %1520 = vmatpush2.msra.mxu0 0.0
  %1521 = vmatprep.subr.mxu0 0.0
  %1522 = vmatpush2.msra.mxu0 0.0
  %1523 = vmatprep.subr.mxu0 0.0
  %1524 = vmatpush2.msra.mxu0 0.0
  %1525 = vmatprep.subr.mxu0 0.0
  %1526 = vmatpush2.msra.mxu0 0.0
  %1527 = vmatprep.subr.mxu0 0.0
  %1528 = vmatpush2.msra.mxu0 0.0
  %1529 = vmatprep.subr.mxu0 0.0
  %1530 = vmatpush2.msra.mxu0 0.0
  %1531 = vmatprep.mubr.f32.mxu0 0.0
  %1532 = vmatmul.mubr.f32.gmra.mxu0 %v1453
  %v1533 = vpop.f32.mrf.mxu0
  %v1534 = vadd.f32 0.0, %v1533
  %v1535 = vpop.f32.mrf.mxu0
  %v1536 = vadd.f32 0.0, %v1535
  %1537 = vdwg.mxu0
  %1538 = vmatprep.subr.mxu0 0.0
  %1539 = vmatpush1.msra.mxu0 0.0
  %1540 = vmatprep.subr.mxu0 0.0
  %1541 = vmatpush1.msra.mxu0 0.0
  %1542 = vmatprep.subr.mxu0 0.0
  %1543 = vmatpush1.msra.mxu0 0.0
  %1544 = vmatprep.subr.mxu0 0.0
  %1545 = vmatpush1.msra.mxu0 0.0
  %1546 = vmatprep.subr.mxu0 0.0
  %1547 = vmatpush1.msra.mxu0 0.0
  %1548 = vmatprep.subr.mxu0 0.0
  %1549 = vmatpush1.msra.mxu0 0.0
  %1550 = vmatprep.subr.mxu0 0.0
  %1551 = vmatpush1.msra.mxu0 0.0
  %1552 = vmatprep.subr.mxu0 0.0
  %1553 = vmatpush1.msra.mxu0 0.0
  %1554 = vmatprep.subr.mxu0 0.0
  %1555 = vmatpush1.msra.mxu0 0.0
  %1556 = vmatprep.subr.mxu0 0.0
  %1557 = vmatpush1.msra.mxu0 0.0
  %1558 = vmatprep.subr.mxu0 0.0
  %1559 = vmatpush1.msra.mxu0 0.0
  %1560 = vmatprep.subr.mxu0 0.0
  %1561 = vmatpush1.msra.mxu0 0.0
  %1562 = vmatprep.subr.mxu0 0.0
  %1563 = vmatpush1.msra.mxu0 0.0
  %1564 = vmatprep.subr.mxu0 0.0
  %1565 = vmatpush1.msra.mxu0 0.0
  %1566 = vmatprep.subr.mxu0 0.0
  %1567 = vmatpush1.msra.mxu0 0.0
  %1568 = vmatprep.subr.mxu0 %v1465
  %1569 = vmatpush1.msra.mxu0 %v1462
  %1570 = vmatprep.subr.mxu0 0.0
  %1571 = vmatpush2.msra.mxu0 0.0
  %1572 = vmatprep.subr.mxu0 0.0
  %1573 = vmatpush2.msra.mxu0 0.0
  %1574 = vmatprep.subr.mxu0 0.0
  %1575 = vmatpush2.msra.mxu0 0.0
  %1576 = vmatprep.subr.mxu0 0.0
  %1577 = vmatpush2.msra.mxu0 0.0
  %1578 = vmatprep.subr.mxu0 0.0
  %1579 = vmatpush2.msra.mxu0 0.0
  %1580 = vmatprep.subr.mxu0 0.0
  %1581 = vmatpush2.msra.mxu0 0.0
  %1582 = vmatprep.subr.mxu0 0.0
  %1583 = vmatpush2.msra.mxu0 0.0
  %1584 = vmatprep.subr.mxu0 0.0
  %1585 = vmatpush2.msra.mxu0 0.0
  %1586 = vmatprep.subr.mxu0 0.0
  %1587 = vmatpush2.msra.mxu0 0.0
  %1588 = vmatprep.subr.mxu0 0.0
  %1589 = vmatpush2.msra.mxu0 0.0
  %1590 = vmatprep.subr.mxu0 0.0
  %1591 = vmatpush2.msra.mxu0 0.0
  %1592 = vmatprep.subr.mxu0 0.0
  %1593 = vmatpush2.msra.mxu0 0.0
  %1594 = vmatprep.subr.mxu0 0.0
  %1595 = vmatpush2.msra.mxu0 0.0
  %1596 = vmatprep.subr.mxu0 0.0
  %1597 = vmatpush2.msra.mxu0 0.0
  %1598 = vmatprep.subr.mxu0 0.0
  %1599 = vmatpush2.msra.mxu0 0.0
  %1600 = vmatprep.subr.mxu0 0.0
  %1601 = vmatpush2.msra.mxu0 0.0
  %1602 = vmatprep.mubr.f32.mxu0 0.0
  %1603 = vmatmul.mubr.f32.gmra.mxu0 %v1453
  %v1604 = vpop.f32.mrf.mxu0
  %v1605 = vadd.f32 0.0, %v1604
  %v1606 = vpop.f32.mrf.mxu0
  %v1607 = vadd.f32 0.0, %v1606
  %1608 = vdwg.mxu0
  %v1609 = vadd.f32 %v1430, %v1534
  %v1610 = vadd.f32 %v1431, %v1536
  %v1611 = vadd.f32 %v1432, %v1605
  %v1612 = vadd.f32 %v1433, %v1607
  %s1613 = scalar_lea.vmem %s6, 32
  %v1614 = vld [vmem:[%s1613] sm:$0xff]
  %v1616 = vsel %vm60, %v1614, 0
  %v1619 = vsel %vm67, %v322, 0
  %v1622 = vsel %vm67, %v323, 0
  %v1625 = vsel %vm67, %v324, 0
  %v1628 = vsel %vm67, %v325, 0
  %1630 = vmatprep.subr.mxu0 0.0
  %1631 = vmatpush1.msra.mxu0 0.0
  %1632 = vmatprep.subr.mxu0 0.0
  %1633 = vmatpush1.msra.mxu0 0.0
  %1634 = vmatprep.subr.mxu0 0.0
  %1635 = vmatpush1.msra.mxu0 0.0
  %1636 = vmatprep.subr.mxu0 0.0
  %1637 = vmatpush1.msra.mxu0 0.0
  %1638 = vmatprep.subr.mxu0 0.0
  %1639 = vmatpush1.msra.mxu0 0.0
  %1640 = vmatprep.subr.mxu0 0.0
  %1641 = vmatpush1.msra.mxu0 0.0
  %1642 = vmatprep.subr.mxu0 0.0
  %1643 = vmatpush1.msra.mxu0 0.0
  %1644 = vmatprep.subr.mxu0 0.0
  %1645 = vmatpush1.msra.mxu0 0.0
  %1646 = vmatprep.subr.mxu0 0.0
  %1647 = vmatpush1.msra.mxu0 0.0
  %1648 = vmatprep.subr.mxu0 0.0
  %1649 = vmatpush1.msra.mxu0 0.0
  %1650 = vmatprep.subr.mxu0 0.0
  %1651 = vmatpush1.msra.mxu0 0.0
  %1652 = vmatprep.subr.mxu0 0.0
  %1653 = vmatpush1.msra.mxu0 0.0
  %1654 = vmatprep.subr.mxu0 0.0
  %1655 = vmatpush1.msra.mxu0 0.0
  %1656 = vmatprep.subr.mxu0 0.0
  %1657 = vmatpush1.msra.mxu0 0.0
  %1658 = vmatprep.subr.mxu0 0.0
  %1659 = vmatpush1.msra.mxu0 0.0
  %1660 = vmatprep.subr.mxu0 %v1622
  %1661 = vmatpush1.msra.mxu0 %v1619
  %1662 = vmatprep.subr.mxu0 0.0
  %1663 = vmatpush2.msra.mxu0 0.0
  %1664 = vmatprep.subr.mxu0 0.0
  %1665 = vmatpush2.msra.mxu0 0.0
  %1666 = vmatprep.subr.mxu0 0.0
  %1667 = vmatpush2.msra.mxu0 0.0
  %1668 = vmatprep.subr.mxu0 0.0
  %1669 = vmatpush2.msra.mxu0 0.0
  %1670 = vmatprep.subr.mxu0 0.0
  %1671 = vmatpush2.msra.mxu0 0.0
  %1672 = vmatprep.subr.mxu0 0.0
  %1673 = vmatpush2.msra.mxu0 0.0
  %1674 = vmatprep.subr.mxu0 0.0
  %1675 = vmatpush2.msra.mxu0 0.0
  %1676 = vmatprep.subr.mxu0 0.0
  %1677 = vmatpush2.msra.mxu0 0.0
  %1678 = vmatprep.subr.mxu0 0.0
  %1679 = vmatpush2.msra.mxu0 0.0
  %1680 = vmatprep.subr.mxu0 0.0
  %1681 = vmatpush2.msra.mxu0 0.0
  %1682 = vmatprep.subr.mxu0 0.0
  %1683 = vmatpush2.msra.mxu0 0.0
  %1684 = vmatprep.subr.mxu0 0.0
  %1685 = vmatpush2.msra.mxu0 0.0
  %1686 = vmatprep.subr.mxu0 0.0
  %1687 = vmatpush2.msra.mxu0 0.0
  %1688 = vmatprep.subr.mxu0 0.0
  %1689 = vmatpush2.msra.mxu0 0.0
  %1690 = vmatprep.subr.mxu0 0.0
  %1691 = vmatpush2.msra.mxu0 0.0
  %1692 = vmatprep.subr.mxu0 0.0
  %1693 = vmatpush2.msra.mxu0 0.0
  %1694 = vmatprep.mubr.f32.mxu0 0.0
  %1695 = vmatmul.mubr.f32.gmra.mxu0 %v1616
  %v1696 = vpop.f32.mrf.mxu0
  %v1697 = vadd.f32 0.0, %v1696
  %v1698 = vpop.f32.mrf.mxu0
  %v1699 = vadd.f32 0.0, %v1698
  %1700 = vdwg.mxu0
  %1701 = vmatprep.subr.mxu0 0.0
  %1702 = vmatpush1.msra.mxu0 0.0
  %1703 = vmatprep.subr.mxu0 0.0
  %1704 = vmatpush1.msra.mxu0 0.0
  %1705 = vmatprep.subr.mxu0 0.0
  %1706 = vmatpush1.msra.mxu0 0.0
  %1707 = vmatprep.subr.mxu0 0.0
  %1708 = vmatpush1.msra.mxu0 0.0
  %1709 = vmatprep.subr.mxu0 0.0
  %1710 = vmatpush1.msra.mxu0 0.0
  %1711 = vmatprep.subr.mxu0 0.0
  %1712 = vmatpush1.msra.mxu0 0.0
  %1713 = vmatprep.subr.mxu0 0.0
  %1714 = vmatpush1.msra.mxu0 0.0
  %1715 = vmatprep.subr.mxu0 0.0
  %1716 = vmatpush1.msra.mxu0 0.0
  %1717 = vmatprep.subr.mxu0 0.0
  %1718 = vmatpush1.msra.mxu0 0.0
  %1719 = vmatprep.subr.mxu0 0.0
  %1720 = vmatpush1.msra.mxu0 0.0
  %1721 = vmatprep.subr.mxu0 0.0
  %1722 = vmatpush1.msra.mxu0 0.0
  %1723 = vmatprep.subr.mxu0 0.0
  %1724 = vmatpush1.msra.mxu0 0.0
  %1725 = vmatprep.subr.mxu0 0.0
  %1726 = vmatpush1.msra.mxu0 0.0
  %1727 = vmatprep.subr.mxu0 0.0
  %1728 = vmatpush1.msra.mxu0 0.0
  %1729 = vmatprep.subr.mxu0 0.0
  %1730 = vmatpush1.msra.mxu0 0.0
  %1731 = vmatprep.subr.mxu0 %v1628
  %1732 = vmatpush1.msra.mxu0 %v1625
  %1733 = vmatprep.subr.mxu0 0.0
  %1734 = vmatpush2.msra.mxu0 0.0
  %1735 = vmatprep.subr.mxu0 0.0
  %1736 = vmatpush2.msra.mxu0 0.0
  %1737 = vmatprep.subr.mxu0 0.0
  %1738 = vmatpush2.msra.mxu0 0.0
  %1739 = vmatprep.subr.mxu0 0.0
  %1740 = vmatpush2.msra.mxu0 0.0
  %1741 = vmatprep.subr.mxu0 0.0
  %1742 = vmatpush2.msra.mxu0 0.0
  %1743 = vmatprep.subr.mxu0 0.0
  %1744 = vmatpush2.msra.mxu0 0.0
  %1745 = vmatprep.subr.mxu0 0.0
  %1746 = vmatpush2.msra.mxu0 0.0
  %1747 = vmatprep.subr.mxu0 0.0
  %1748 = vmatpush2.msra.mxu0 0.0
  %1749 = vmatprep.subr.mxu0 0.0
  %1750 = vmatpush2.msra.mxu0 0.0
  %1751 = vmatprep.subr.mxu0 0.0
  %1752 = vmatpush2.msra.mxu0 0.0
  %1753 = vmatprep.subr.mxu0 0.0
  %1754 = vmatpush2.msra.mxu0 0.0
  %1755 = vmatprep.subr.mxu0 0.0
  %1756 = vmatpush2.msra.mxu0 0.0
  %1757 = vmatprep.subr.mxu0 0.0
  %1758 = vmatpush2.msra.mxu0 0.0
  %1759 = vmatprep.subr.mxu0 0.0
  %1760 = vmatpush2.msra.mxu0 0.0
  %1761 = vmatprep.subr.mxu0 0.0
  %1762 = vmatpush2.msra.mxu0 0.0
  %1763 = vmatprep.subr.mxu0 0.0
  %1764 = vmatpush2.msra.mxu0 0.0
  %1765 = vmatprep.mubr.f32.mxu0 0.0
  %1766 = vmatmul.mubr.f32.gmra.mxu0 %v1616
  %v1767 = vpop.f32.mrf.mxu0
  %v1768 = vadd.f32 0.0, %v1767
  %v1769 = vpop.f32.mrf.mxu0
  %v1770 = vadd.f32 0.0, %v1769
  %1771 = vdwg.mxu0
  %v1772 = vadd.f32 %v1609, %v1697
  %v1773 = vadd.f32 %v1610, %v1699
  %v1774 = vadd.f32 %v1611, %v1768
  %v1775 = vadd.f32 %v1612, %v1770
  %1776 = vrot.lane.b32.xlu0 %v322, 127
  %v1777 = vpop.permute.xlu0 %1776
  %1778 = vrot.lane.b32.xlu0 %v323, 127
  %v1779 = vpop.permute.xlu0 %1778
  %1780 = vrot.lane.b32.xlu0 %v324, 127
  %v1781 = vpop.permute.xlu0 %1780
  %1782 = vrot.lane.b32.xlu0 %v325, 127
  %v1783 = vpop.permute.xlu0 %1782
  %v1784 = vsel %vm531, %v1781, %v1783
  %v1785 = vsel %vm531, %v1779, %v1781
  %v1786 = vsel %vm531, %v1777, %v1779
  %v1787 = vsel %vm531, %v1783, %v1777
  %v1788 = vsel %vm557, %v1786, 0.0
  %v1789 = vsel %vm558, %v1785, 0.0
  %v1790 = vsel %vm559, %v1784, 0.0
  %v1791 = vsel %vm560, %v1787, 0.0
  %s1792 = scalar_lea.vmem %s6, 40
  %v1793 = vld [vmem:[%s1792] sm:$0xff]
  %v1795 = vsel %vm60, %v1793, 0
  %v1798 = vsel %vm67, %v1788, 0
  %v1801 = vsel %vm67, %v1789, 0
  %v1804 = vsel %vm67, %v1790, 0
  %v1807 = vsel %vm67, %v1791, 0
  %1809 = vmatprep.subr.mxu0 0.0
  %1810 = vmatpush1.msra.mxu0 0.0
  %1811 = vmatprep.subr.mxu0 0.0
  %1812 = vmatpush1.msra.mxu0 0.0
  %1813 = vmatprep.subr.mxu0 0.0
  %1814 = vmatpush1.msra.mxu0 0.0
  %1815 = vmatprep.subr.mxu0 0.0
  %1816 = vmatpush1.msra.mxu0 0.0
  %1817 = vmatprep.subr.mxu0 0.0
  %1818 = vmatpush1.msra.mxu0 0.0
  %1819 = vmatprep.subr.mxu0 0.0
  %1820 = vmatpush1.msra.mxu0 0.0
  %1821 = vmatprep.subr.mxu0 0.0
  %1822 = vmatpush1.msra.mxu0 0.0
  %1823 = vmatprep.subr.mxu0 0.0
  %1824 = vmatpush1.msra.mxu0 0.0
  %1825 = vmatprep.subr.mxu0 0.0
  %1826 = vmatpush1.msra.mxu0 0.0
  %1827 = vmatprep.subr.mxu0 0.0
  %1828 = vmatpush1.msra.mxu0 0.0
  %1829 = vmatprep.subr.mxu0 0.0
  %1830 = vmatpush1.msra.mxu0 0.0
  %1831 = vmatprep.subr.mxu0 0.0
  %1832 = vmatpush1.msra.mxu0 0.0
  %1833 = vmatprep.subr.mxu0 0.0
  %1834 = vmatpush1.msra.mxu0 0.0
  %1835 = vmatprep.subr.mxu0 0.0
  %1836 = vmatpush1.msra.mxu0 0.0
  %1837 = vmatprep.subr.mxu0 0.0
  %1838 = vmatpush1.msra.mxu0 0.0
  %1839 = vmatprep.subr.mxu0 %v1801
  %1840 = vmatpush1.msra.mxu0 %v1798
  %1841 = vmatprep.subr.mxu0 0.0
  %1842 = vmatpush2.msra.mxu0 0.0
  %1843 = vmatprep.subr.mxu0 0.0
  %1844 = vmatpush2.msra.mxu0 0.0
  %1845 = vmatprep.subr.mxu0 0.0
  %1846 = vmatpush2.msra.mxu0 0.0
  %1847 = vmatprep.subr.mxu0 0.0
  %1848 = vmatpush2.msra.mxu0 0.0
  %1849 = vmatprep.subr.mxu0 0.0
  %1850 = vmatpush2.msra.mxu0 0.0
  %1851 = vmatprep.subr.mxu0 0.0
  %1852 = vmatpush2.msra.mxu0 0.0
  %1853 = vmatprep.subr.mxu0 0.0
  %1854 = vmatpush2.msra.mxu0 0.0
  %1855 = vmatprep.subr.mxu0 0.0
  %1856 = vmatpush2.msra.mxu0 0.0
  %1857 = vmatprep.subr.mxu0 0.0
  %1858 = vmatpush2.msra.mxu0 0.0
  %1859 = vmatprep.subr.mxu0 0.0
  %1860 = vmatpush2.msra.mxu0 0.0
  %1861 = vmatprep.subr.mxu0 0.0
  %1862 = vmatpush2.msra.mxu0 0.0
  %1863 = vmatprep.subr.mxu0 0.0
  %1864 = vmatpush2.msra.mxu0 0.0
  %1865 = vmatprep.subr.mxu0 0.0
  %1866 = vmatpush2.msra.mxu0 0.0
  %1867 = vmatprep.subr.mxu0 0.0
  %1868 = vmatpush2.msra.mxu0 0.0
  %1869 = vmatprep.subr.mxu0 0.0
  %1870 = vmatpush2.msra.mxu0 0.0
  %1871 = vmatprep.subr.mxu0 0.0
  %1872 = vmatpush2.msra.mxu0 0.0
  %1873 = vmatprep.mubr.f32.mxu0 0.0
  %1874 = vmatmul.mubr.f32.gmra.mxu0 %v1795
  %v1875 = vpop.f32.mrf.mxu0
  %v1876 = vadd.f32 0.0, %v1875
  %v1877 = vpop.f32.mrf.mxu0
  %v1878 = vadd.f32 0.0, %v1877
  %1879 = vdwg.mxu0
  %1880 = vmatprep.subr.mxu0 0.0
  %1881 = vmatpush1.msra.mxu0 0.0
  %1882 = vmatprep.subr.mxu0 0.0
  %1883 = vmatpush1.msra.mxu0 0.0
  %1884 = vmatprep.subr.mxu0 0.0
  %1885 = vmatpush1.msra.mxu0 0.0
  %1886 = vmatprep.subr.mxu0 0.0
  %1887 = vmatpush1.msra.mxu0 0.0
  %1888 = vmatprep.subr.mxu0 0.0
  %1889 = vmatpush1.msra.mxu0 0.0
  %1890 = vmatprep.subr.mxu0 0.0
  %1891 = vmatpush1.msra.mxu0 0.0
  %1892 = vmatprep.subr.mxu0 0.0
  %1893 = vmatpush1.msra.mxu0 0.0
  %1894 = vmatprep.subr.mxu0 0.0
  %1895 = vmatpush1.msra.mxu0 0.0
  %1896 = vmatprep.subr.mxu0 0.0
  %1897 = vmatpush1.msra.mxu0 0.0
  %1898 = vmatprep.subr.mxu0 0.0
  %1899 = vmatpush1.msra.mxu0 0.0
  %1900 = vmatprep.subr.mxu0 0.0
  %1901 = vmatpush1.msra.mxu0 0.0
  %1902 = vmatprep.subr.mxu0 0.0
  %1903 = vmatpush1.msra.mxu0 0.0
  %1904 = vmatprep.subr.mxu0 0.0
  %1905 = vmatpush1.msra.mxu0 0.0
  %1906 = vmatprep.subr.mxu0 0.0
  %1907 = vmatpush1.msra.mxu0 0.0
  %1908 = vmatprep.subr.mxu0 0.0
  %1909 = vmatpush1.msra.mxu0 0.0
  %1910 = vmatprep.subr.mxu0 %v1807
  %1911 = vmatpush1.msra.mxu0 %v1804
  %1912 = vmatprep.subr.mxu0 0.0
  %1913 = vmatpush2.msra.mxu0 0.0
  %1914 = vmatprep.subr.mxu0 0.0
  %1915 = vmatpush2.msra.mxu0 0.0
  %1916 = vmatprep.subr.mxu0 0.0
  %1917 = vmatpush2.msra.mxu0 0.0
  %1918 = vmatprep.subr.mxu0 0.0
  %1919 = vmatpush2.msra.mxu0 0.0
  %1920 = vmatprep.subr.mxu0 0.0
  %1921 = vmatpush2.msra.mxu0 0.0
  %1922 = vmatprep.subr.mxu0 0.0
  %1923 = vmatpush2.msra.mxu0 0.0
  %1924 = vmatprep.subr.mxu0 0.0
  %1925 = vmatpush2.msra.mxu0 0.0
  %1926 = vmatprep.subr.mxu0 0.0
  %1927 = vmatpush2.msra.mxu0 0.0
  %1928 = vmatprep.subr.mxu0 0.0
  %1929 = vmatpush2.msra.mxu0 0.0
  %1930 = vmatprep.subr.mxu0 0.0
  %1931 = vmatpush2.msra.mxu0 0.0
  %1932 = vmatprep.subr.mxu0 0.0
  %1933 = vmatpush2.msra.mxu0 0.0
  %1934 = vmatprep.subr.mxu0 0.0
  %1935 = vmatpush2.msra.mxu0 0.0
  %1936 = vmatprep.subr.mxu0 0.0
  %1937 = vmatpush2.msra.mxu0 0.0
  %1938 = vmatprep.subr.mxu0 0.0
  %1939 = vmatpush2.msra.mxu0 0.0
  %1940 = vmatprep.subr.mxu0 0.0
  %1941 = vmatpush2.msra.mxu0 0.0
  %1942 = vmatprep.subr.mxu0 0.0
  %1943 = vmatpush2.msra.mxu0 0.0
  %1944 = vmatprep.mubr.f32.mxu0 0.0
  %1945 = vmatmul.mubr.f32.gmra.mxu0 %v1795
  %v1946 = vpop.f32.mrf.mxu0
  %v1947 = vadd.f32 0.0, %v1946
  %v1948 = vpop.f32.mrf.mxu0
  %v1949 = vadd.f32 0.0, %v1948
  %1950 = vdwg.mxu0
  %v1951 = vadd.f32 %v1772, %v1876
  %v1952 = vadd.f32 %v1773, %v1878
  %v1953 = vadd.f32 %v1774, %v1947
  %v1954 = vadd.f32 %v1775, %v1949
  %1955 = vrot.lane.b32.xlu0 %v322, 113
  %v1956 = vpop.permute.xlu0 %1955
  %1957 = vrot.lane.b32.xlu0 %v323, 113
  %v1958 = vpop.permute.xlu0 %1957
  %1959 = vrot.lane.b32.xlu0 %v324, 113
  %v1960 = vpop.permute.xlu0 %1959
  %1961 = vrot.lane.b32.xlu0 %v325, 113
  %v1962 = vpop.permute.xlu0 %1961
  %v1963 = vsel %vm573, %v1960, %v1962
  %v1964 = vsel %vm573, %v1958, %v1960
  %v1965 = vsel %vm573, %v1956, %v1958
  %v1966 = vsel %vm573, %v1962, %v1956
  %v1967 = vsel %vm601, %v1965, 0.0
  %v1968 = vsel %vm602, %v1964, 0.0
  %v1969 = vsel %vm603, %v1963, 0.0
  %v1970 = vsel %vm604, %v1966, 0.0
  %s1971 = scalar_lea.vmem %s6, 48
  %v1972 = vld [vmem:[%s1971] sm:$0xff]
  %v1974 = vsel %vm60, %v1972, 0
  %v1977 = vsel %vm67, %v1967, 0
  %v1980 = vsel %vm67, %v1968, 0
  %v1983 = vsel %vm67, %v1969, 0
  %v1986 = vsel %vm67, %v1970, 0
  %1988 = vmatprep.subr.mxu0 0.0
  %1989 = vmatpush1.msra.mxu0 0.0
  %1990 = vmatprep.subr.mxu0 0.0
  %1991 = vmatpush1.msra.mxu0 0.0
  %1992 = vmatprep.subr.mxu0 0.0
  %1993 = vmatpush1.msra.mxu0 0.0
  %1994 = vmatprep.subr.mxu0 0.0
  %1995 = vmatpush1.msra.mxu0 0.0
  %1996 = vmatprep.subr.mxu0 0.0
  %1997 = vmatpush1.msra.mxu0 0.0
  %1998 = vmatprep.subr.mxu0 0.0
  %1999 = vmatpush1.msra.mxu0 0.0
  %2000 = vmatprep.subr.mxu0 0.0
  %2001 = vmatpush1.msra.mxu0 0.0
  %2002 = vmatprep.subr.mxu0 0.0
  %2003 = vmatpush1.msra.mxu0 0.0
  %2004 = vmatprep.subr.mxu0 0.0
  %2005 = vmatpush1.msra.mxu0 0.0
  %2006 = vmatprep.subr.mxu0 0.0
  %2007 = vmatpush1.msra.mxu0 0.0
  %2008 = vmatprep.subr.mxu0 0.0
  %2009 = vmatpush1.msra.mxu0 0.0
  %2010 = vmatprep.subr.mxu0 0.0
  %2011 = vmatpush1.msra.mxu0 0.0
  %2012 = vmatprep.subr.mxu0 0.0
  %2013 = vmatpush1.msra.mxu0 0.0
  %2014 = vmatprep.subr.mxu0 0.0
  %2015 = vmatpush1.msra.mxu0 0.0
  %2016 = vmatprep.subr.mxu0 0.0
  %2017 = vmatpush1.msra.mxu0 0.0
  %2018 = vmatprep.subr.mxu0 %v1980
  %2019 = vmatpush1.msra.mxu0 %v1977
  %2020 = vmatprep.subr.mxu0 0.0
  %2021 = vmatpush2.msra.mxu0 0.0
  %2022 = vmatprep.subr.mxu0 0.0
  %2023 = vmatpush2.msra.mxu0 0.0
  %2024 = vmatprep.subr.mxu0 0.0
  %2025 = vmatpush2.msra.mxu0 0.0
  %2026 = vmatprep.subr.mxu0 0.0
  %2027 = vmatpush2.msra.mxu0 0.0
  %2028 = vmatprep.subr.mxu0 0.0
  %2029 = vmatpush2.msra.mxu0 0.0
  %2030 = vmatprep.subr.mxu0 0.0
  %2031 = vmatpush2.msra.mxu0 0.0
  %2032 = vmatprep.subr.mxu0 0.0
  %2033 = vmatpush2.msra.mxu0 0.0
  %2034 = vmatprep.subr.mxu0 0.0
  %2035 = vmatpush2.msra.mxu0 0.0
  %2036 = vmatprep.subr.mxu0 0.0
  %2037 = vmatpush2.msra.mxu0 0.0
  %2038 = vmatprep.subr.mxu0 0.0
  %2039 = vmatpush2.msra.mxu0 0.0
  %2040 = vmatprep.subr.mxu0 0.0
  %2041 = vmatpush2.msra.mxu0 0.0
  %2042 = vmatprep.subr.mxu0 0.0
  %2043 = vmatpush2.msra.mxu0 0.0
  %2044 = vmatprep.subr.mxu0 0.0
  %2045 = vmatpush2.msra.mxu0 0.0
  %2046 = vmatprep.subr.mxu0 0.0
  %2047 = vmatpush2.msra.mxu0 0.0
  %2048 = vmatprep.subr.mxu0 0.0
  %2049 = vmatpush2.msra.mxu0 0.0
  %2050 = vmatprep.subr.mxu0 0.0
  %2051 = vmatpush2.msra.mxu0 0.0
  %2052 = vmatprep.mubr.f32.mxu0 0.0
  %2053 = vmatmul.mubr.f32.gmra.mxu0 %v1974
  %v2054 = vpop.f32.mrf.mxu0
  %v2055 = vadd.f32 0.0, %v2054
  %v2056 = vpop.f32.mrf.mxu0
  %v2057 = vadd.f32 0.0, %v2056
  %2058 = vdwg.mxu0
  %2059 = vmatprep.subr.mxu0 0.0
  %2060 = vmatpush1.msra.mxu0 0.0
  %2061 = vmatprep.subr.mxu0 0.0
  %2062 = vmatpush1.msra.mxu0 0.0
  %2063 = vmatprep.subr.mxu0 0.0
  %2064 = vmatpush1.msra.mxu0 0.0
  %2065 = vmatprep.subr.mxu0 0.0
  %2066 = vmatpush1.msra.mxu0 0.0
  %2067 = vmatprep.subr.mxu0 0.0
  %2068 = vmatpush1.msra.mxu0 0.0
  %2069 = vmatprep.subr.mxu0 0.0
  %2070 = vmatpush1.msra.mxu0 0.0
  %2071 = vmatprep.subr.mxu0 0.0
  %2072 = vmatpush1.msra.mxu0 0.0
  %2073 = vmatprep.subr.mxu0 0.0
  %2074 = vmatpush1.msra.mxu0 0.0
  %2075 = vmatprep.subr.mxu0 0.0
  %2076 = vmatpush1.msra.mxu0 0.0
  %2077 = vmatprep.subr.mxu0 0.0
  %2078 = vmatpush1.msra.mxu0 0.0
  %2079 = vmatprep.subr.mxu0 0.0
  %2080 = vmatpush1.msra.mxu0 0.0
  %2081 = vmatprep.subr.mxu0 0.0
  %2082 = vmatpush1.msra.mxu0 0.0
  %2083 = vmatprep.subr.mxu0 0.0
  %2084 = vmatpush1.msra.mxu0 0.0
  %2085 = vmatprep.subr.mxu0 0.0
  %2086 = vmatpush1.msra.mxu0 0.0
  %2087 = vmatprep.subr.mxu0 0.0
  %2088 = vmatpush1.msra.mxu0 0.0
  %2089 = vmatprep.subr.mxu0 %v1986
  %2090 = vmatpush1.msra.mxu0 %v1983
  %2091 = vmatprep.subr.mxu0 0.0
  %2092 = vmatpush2.msra.mxu0 0.0
  %2093 = vmatprep.subr.mxu0 0.0
  %2094 = vmatpush2.msra.mxu0 0.0
  %2095 = vmatprep.subr.mxu0 0.0
  %2096 = vmatpush2.msra.mxu0 0.0
  %2097 = vmatprep.subr.mxu0 0.0
  %2098 = vmatpush2.msra.mxu0 0.0
  %2099 = vmatprep.subr.mxu0 0.0
  %2100 = vmatpush2.msra.mxu0 0.0
  %2101 = vmatprep.subr.mxu0 0.0
  %2102 = vmatpush2.msra.mxu0 0.0
  %2103 = vmatprep.subr.mxu0 0.0
  %2104 = vmatpush2.msra.mxu0 0.0
  %2105 = vmatprep.subr.mxu0 0.0
  %2106 = vmatpush2.msra.mxu0 0.0
  %2107 = vmatprep.subr.mxu0 0.0
  %2108 = vmatpush2.msra.mxu0 0.0
  %2109 = vmatprep.subr.mxu0 0.0
  %2110 = vmatpush2.msra.mxu0 0.0
  %2111 = vmatprep.subr.mxu0 0.0
  %2112 = vmatpush2.msra.mxu0 0.0
  %2113 = vmatprep.subr.mxu0 0.0
  %2114 = vmatpush2.msra.mxu0 0.0
  %2115 = vmatprep.subr.mxu0 0.0
  %2116 = vmatpush2.msra.mxu0 0.0
  %2117 = vmatprep.subr.mxu0 0.0
  %2118 = vmatpush2.msra.mxu0 0.0
  %2119 = vmatprep.subr.mxu0 0.0
  %2120 = vmatpush2.msra.mxu0 0.0
  %2121 = vmatprep.subr.mxu0 0.0
  %2122 = vmatpush2.msra.mxu0 0.0
  %2123 = vmatprep.mubr.f32.mxu0 0.0
  %2124 = vmatmul.mubr.f32.gmra.mxu0 %v1974
  %v2125 = vpop.f32.mrf.mxu0
  %v2126 = vadd.f32 0.0, %v2125
  %v2127 = vpop.f32.mrf.mxu0
  %v2128 = vadd.f32 0.0, %v2127
  %2129 = vdwg.mxu0
  %v2130 = vadd.f32 %v1951, %v2055
  %v2131 = vadd.f32 %v1952, %v2057
  %v2132 = vadd.f32 %v1953, %v2126
  %v2133 = vadd.f32 %v1954, %v2128
  %2134 = vrot.lane.b32.xlu0 %v322, 112
  %v2135 = vpop.permute.xlu0 %2134
  %2136 = vrot.lane.b32.xlu0 %v323, 112
  %v2137 = vpop.permute.xlu0 %2136
  %2138 = vrot.lane.b32.xlu0 %v324, 112
  %v2139 = vpop.permute.xlu0 %2138
  %2140 = vrot.lane.b32.xlu0 %v325, 112
  %v2141 = vpop.permute.xlu0 %2140
  %v2142 = vsel %vm617, %v2139, %v2141
  %v2143 = vsel %vm617, %v2137, %v2139
  %v2144 = vsel %vm617, %v2135, %v2137
  %v2145 = vsel %vm617, %v2141, %v2135
  %v2146 = vsel %vm643, %v2144, 0.0
  %v2147 = vsel %vm644, %v2143, 0.0
  %v2148 = vsel %vm645, %v2142, 0.0
  %v2149 = vsel %vm646, %v2145, 0.0
  %s2150 = scalar_lea.vmem %s6, 56
  %v2151 = vld [vmem:[%s2150] sm:$0xff]
  %v2153 = vsel %vm60, %v2151, 0
  %v2156 = vsel %vm67, %v2146, 0
  %v2159 = vsel %vm67, %v2147, 0
  %v2162 = vsel %vm67, %v2148, 0
  %v2165 = vsel %vm67, %v2149, 0
  %2167 = vmatprep.subr.mxu0 0.0
  %2168 = vmatpush1.msra.mxu0 0.0
  %2169 = vmatprep.subr.mxu0 0.0
  %2170 = vmatpush1.msra.mxu0 0.0
  %2171 = vmatprep.subr.mxu0 0.0
  %2172 = vmatpush1.msra.mxu0 0.0
  %2173 = vmatprep.subr.mxu0 0.0
  %2174 = vmatpush1.msra.mxu0 0.0
  %2175 = vmatprep.subr.mxu0 0.0
  %2176 = vmatpush1.msra.mxu0 0.0
  %2177 = vmatprep.subr.mxu0 0.0
  %2178 = vmatpush1.msra.mxu0 0.0
  %2179 = vmatprep.subr.mxu0 0.0
  %2180 = vmatpush1.msra.mxu0 0.0
  %2181 = vmatprep.subr.mxu0 0.0
  %2182 = vmatpush1.msra.mxu0 0.0
  %2183 = vmatprep.subr.mxu0 0.0
  %2184 = vmatpush1.msra.mxu0 0.0
  %2185 = vmatprep.subr.mxu0 0.0
  %2186 = vmatpush1.msra.mxu0 0.0
  %2187 = vmatprep.subr.mxu0 0.0
  %2188 = vmatpush1.msra.mxu0 0.0
  %2189 = vmatprep.subr.mxu0 0.0
  %2190 = vmatpush1.msra.mxu0 0.0
  %2191 = vmatprep.subr.mxu0 0.0
  %2192 = vmatpush1.msra.mxu0 0.0
  %2193 = vmatprep.subr.mxu0 0.0
  %2194 = vmatpush1.msra.mxu0 0.0
  %2195 = vmatprep.subr.mxu0 0.0
  %2196 = vmatpush1.msra.mxu0 0.0
  %2197 = vmatprep.subr.mxu0 %v2159
  %2198 = vmatpush1.msra.mxu0 %v2156
  %2199 = vmatprep.subr.mxu0 0.0
  %2200 = vmatpush2.msra.mxu0 0.0
  %2201 = vmatprep.subr.mxu0 0.0
  %2202 = vmatpush2.msra.mxu0 0.0
  %2203 = vmatprep.subr.mxu0 0.0
  %2204 = vmatpush2.msra.mxu0 0.0
  %2205 = vmatprep.subr.mxu0 0.0
  %2206 = vmatpush2.msra.mxu0 0.0
  %2207 = vmatprep.subr.mxu0 0.0
  %2208 = vmatpush2.msra.mxu0 0.0
  %2209 = vmatprep.subr.mxu0 0.0
  %2210 = vmatpush2.msra.mxu0 0.0
  %2211 = vmatprep.subr.mxu0 0.0
  %2212 = vmatpush2.msra.mxu0 0.0
  %2213 = vmatprep.subr.mxu0 0.0
  %2214 = vmatpush2.msra.mxu0 0.0
  %2215 = vmatprep.subr.mxu0 0.0
  %2216 = vmatpush2.msra.mxu0 0.0
  %2217 = vmatprep.subr.mxu0 0.0
  %2218 = vmatpush2.msra.mxu0 0.0
  %2219 = vmatprep.subr.mxu0 0.0
  %2220 = vmatpush2.msra.mxu0 0.0
  %2221 = vmatprep.subr.mxu0 0.0
  %2222 = vmatpush2.msra.mxu0 0.0
  %2223 = vmatprep.subr.mxu0 0.0
  %2224 = vmatpush2.msra.mxu0 0.0
  %2225 = vmatprep.subr.mxu0 0.0
  %2226 = vmatpush2.msra.mxu0 0.0
  %2227 = vmatprep.subr.mxu0 0.0
  %2228 = vmatpush2.msra.mxu0 0.0
  %2229 = vmatprep.subr.mxu0 0.0
  %2230 = vmatpush2.msra.mxu0 0.0
  %2231 = vmatprep.mubr.f32.mxu0 0.0
  %2232 = vmatmul.mubr.f32.gmra.mxu0 %v2153
  %v2233 = vpop.f32.mrf.mxu0
  %v2234 = vadd.f32 0.0, %v2233
  %v2235 = vpop.f32.mrf.mxu0
  %v2236 = vadd.f32 0.0, %v2235
  %2237 = vdwg.mxu0
  %2238 = vmatprep.subr.mxu0 0.0
  %2239 = vmatpush1.msra.mxu0 0.0
  %2240 = vmatprep.subr.mxu0 0.0
  %2241 = vmatpush1.msra.mxu0 0.0
  %2242 = vmatprep.subr.mxu0 0.0
  %2243 = vmatpush1.msra.mxu0 0.0
  %2244 = vmatprep.subr.mxu0 0.0
  %2245 = vmatpush1.msra.mxu0 0.0
  %2246 = vmatprep.subr.mxu0 0.0
  %2247 = vmatpush1.msra.mxu0 0.0
  %2248 = vmatprep.subr.mxu0 0.0
  %2249 = vmatpush1.msra.mxu0 0.0
  %2250 = vmatprep.subr.mxu0 0.0
  %2251 = vmatpush1.msra.mxu0 0.0
  %2252 = vmatprep.subr.mxu0 0.0
  %2253 = vmatpush1.msra.mxu0 0.0
  %2254 = vmatprep.subr.mxu0 0.0
  %2255 = vmatpush1.msra.mxu0 0.0
  %2256 = vmatprep.subr.mxu0 0.0
  %2257 = vmatpush1.msra.mxu0 0.0
  %2258 = vmatprep.subr.mxu0 0.0
  %2259 = vmatpush1.msra.mxu0 0.0
  %2260 = vmatprep.subr.mxu0 0.0
  %2261 = vmatpush1.msra.mxu0 0.0
  %2262 = vmatprep.subr.mxu0 0.0
  %2263 = vmatpush1.msra.mxu0 0.0
  %2264 = vmatprep.subr.mxu0 0.0
  %2265 = vmatpush1.msra.mxu0 0.0
  %2266 = vmatprep.subr.mxu0 0.0
  %2267 = vmatpush1.msra.mxu0 0.0
  %2268 = vmatprep.subr.mxu0 %v2165
  %2269 = vmatpush1.msra.mxu0 %v2162
  %2270 = vmatprep.subr.mxu0 0.0
  %2271 = vmatpush2.msra.mxu0 0.0
  %2272 = vmatprep.subr.mxu0 0.0
  %2273 = vmatpush2.msra.mxu0 0.0
  %2274 = vmatprep.subr.mxu0 0.0
  %2275 = vmatpush2.msra.mxu0 0.0
  %2276 = vmatprep.subr.mxu0 0.0
  %2277 = vmatpush2.msra.mxu0 0.0
  %2278 = vmatprep.subr.mxu0 0.0
  %2279 = vmatpush2.msra.mxu0 0.0
  %2280 = vmatprep.subr.mxu0 0.0
  %2281 = vmatpush2.msra.mxu0 0.0
  %2282 = vmatprep.subr.mxu0 0.0
  %2283 = vmatpush2.msra.mxu0 0.0
  %2284 = vmatprep.subr.mxu0 0.0
  %2285 = vmatpush2.msra.mxu0 0.0
  %2286 = vmatprep.subr.mxu0 0.0
  %2287 = vmatpush2.msra.mxu0 0.0
  %2288 = vmatprep.subr.mxu0 0.0
  %2289 = vmatpush2.msra.mxu0 0.0
  %2290 = vmatprep.subr.mxu0 0.0
  %2291 = vmatpush2.msra.mxu0 0.0
  %2292 = vmatprep.subr.mxu0 0.0
  %2293 = vmatpush2.msra.mxu0 0.0
  %2294 = vmatprep.subr.mxu0 0.0
  %2295 = vmatpush2.msra.mxu0 0.0
  %2296 = vmatprep.subr.mxu0 0.0
  %2297 = vmatpush2.msra.mxu0 0.0
  %2298 = vmatprep.subr.mxu0 0.0
  %2299 = vmatpush2.msra.mxu0 0.0
  %2300 = vmatprep.subr.mxu0 0.0
  %2301 = vmatpush2.msra.mxu0 0.0
  %2302 = vmatprep.mubr.f32.mxu0 0.0
  %2303 = vmatmul.mubr.f32.gmra.mxu0 %v2153
  %v2304 = vpop.f32.mrf.mxu0
  %v2305 = vadd.f32 0.0, %v2304
  %v2306 = vpop.f32.mrf.mxu0
  %v2307 = vadd.f32 0.0, %v2306
  %2308 = vdwg.mxu0
  %v2309 = vadd.f32 %v2130, %v2234
  %v2310 = vadd.f32 %v2131, %v2236
  %v2311 = vadd.f32 %v2132, %v2305
  %v2312 = vadd.f32 %v2133, %v2307
  %2313 = vrot.lane.b32.xlu0 %v322, 111
  %v2314 = vpop.permute.xlu0 %2313
  %2315 = vrot.lane.b32.xlu0 %v323, 111
  %v2316 = vpop.permute.xlu0 %2315
  %2317 = vrot.lane.b32.xlu0 %v324, 111
  %v2318 = vpop.permute.xlu0 %2317
  %2319 = vrot.lane.b32.xlu0 %v325, 111
  %v2320 = vpop.permute.xlu0 %2319
  %v2321 = vsel %vm659, %v2318, %v2320
  %v2322 = vsel %vm659, %v2316, %v2318
  %v2323 = vsel %vm659, %v2314, %v2316
  %v2324 = vsel %vm659, %v2320, %v2314
  %v2325 = vsel %vm686, %v2323, 0.0
  %v2326 = vsel %vm687, %v2322, 0.0
  %v2327 = vsel %vm688, %v2321, 0.0
  %v2328 = vsel %vm689, %v2324, 0.0
  %s2329 = scalar_lea.vmem %s6, 64
  %v2330 = vld [vmem:[%s2329] sm:$0xff]
  %v2332 = vsel %vm60, %v2330, 0
  %v2335 = vsel %vm67, %v2325, 0
  %v2338 = vsel %vm67, %v2326, 0
  %v2341 = vsel %vm67, %v2327, 0
  %v2344 = vsel %vm67, %v2328, 0
  %2346 = vmatprep.subr.mxu0 0.0
  %2347 = vmatpush1.msra.mxu0 0.0
  %2348 = vmatprep.subr.mxu0 0.0
  %2349 = vmatpush1.msra.mxu0 0.0
  %2350 = vmatprep.subr.mxu0 0.0
  %2351 = vmatpush1.msra.mxu0 0.0
  %2352 = vmatprep.subr.mxu0 0.0
  %2353 = vmatpush1.msra.mxu0 0.0
  %2354 = vmatprep.subr.mxu0 0.0
  %2355 = vmatpush1.msra.mxu0 0.0
  %2356 = vmatprep.subr.mxu0 0.0
  %2357 = vmatpush1.msra.mxu0 0.0
  %2358 = vmatprep.subr.mxu0 0.0
  %2359 = vmatpush1.msra.mxu0 0.0
  %2360 = vmatprep.subr.mxu0 0.0
  %2361 = vmatpush1.msra.mxu0 0.0
  %2362 = vmatprep.subr.mxu0 0.0
  %2363 = vmatpush1.msra.mxu0 0.0
  %2364 = vmatprep.subr.mxu0 0.0
  %2365 = vmatpush1.msra.mxu0 0.0
  %2366 = vmatprep.subr.mxu0 0.0
  %2367 = vmatpush1.msra.mxu0 0.0
  %2368 = vmatprep.subr.mxu0 0.0
  %2369 = vmatpush1.msra.mxu0 0.0
  %2370 = vmatprep.subr.mxu0 0.0
  %2371 = vmatpush1.msra.mxu0 0.0
  %2372 = vmatprep.subr.mxu0 0.0
  %2373 = vmatpush1.msra.mxu0 0.0
  %2374 = vmatprep.subr.mxu0 0.0
  %2375 = vmatpush1.msra.mxu0 0.0
  %2376 = vmatprep.subr.mxu0 %v2338
  %2377 = vmatpush1.msra.mxu0 %v2335
  %2378 = vmatprep.subr.mxu0 0.0
  %2379 = vmatpush2.msra.mxu0 0.0
  %2380 = vmatprep.subr.mxu0 0.0
  %2381 = vmatpush2.msra.mxu0 0.0
  %2382 = vmatprep.subr.mxu0 0.0
  %2383 = vmatpush2.msra.mxu0 0.0
  %2384 = vmatprep.subr.mxu0 0.0
  %2385 = vmatpush2.msra.mxu0 0.0
  %2386 = vmatprep.subr.mxu0 0.0
  %2387 = vmatpush2.msra.mxu0 0.0
  %2388 = vmatprep.subr.mxu0 0.0
  %2389 = vmatpush2.msra.mxu0 0.0
  %2390 = vmatprep.subr.mxu0 0.0
  %2391 = vmatpush2.msra.mxu0 0.0
  %2392 = vmatprep.subr.mxu0 0.0
  %2393 = vmatpush2.msra.mxu0 0.0
  %2394 = vmatprep.subr.mxu0 0.0
  %2395 = vmatpush2.msra.mxu0 0.0
  %2396 = vmatprep.subr.mxu0 0.0
  %2397 = vmatpush2.msra.mxu0 0.0
  %2398 = vmatprep.subr.mxu0 0.0
  %2399 = vmatpush2.msra.mxu0 0.0
  %2400 = vmatprep.subr.mxu0 0.0
  %2401 = vmatpush2.msra.mxu0 0.0
  %2402 = vmatprep.subr.mxu0 0.0
  %2403 = vmatpush2.msra.mxu0 0.0
  %2404 = vmatprep.subr.mxu0 0.0
  %2405 = vmatpush2.msra.mxu0 0.0
  %2406 = vmatprep.subr.mxu0 0.0
  %2407 = vmatpush2.msra.mxu0 0.0
  %2408 = vmatprep.subr.mxu0 0.0
  %2409 = vmatpush2.msra.mxu0 0.0
  %2410 = vmatprep.mubr.f32.mxu0 0.0
  %2411 = vmatmul.mubr.f32.gmra.mxu0 %v2332
  %v2412 = vpop.f32.mrf.mxu0
  %v2413 = vadd.f32 0.0, %v2412
  %v2414 = vpop.f32.mrf.mxu0
  %v2415 = vadd.f32 0.0, %v2414
  %2416 = vdwg.mxu0
  %2417 = vmatprep.subr.mxu0 0.0
  %2418 = vmatpush1.msra.mxu0 0.0
  %2419 = vmatprep.subr.mxu0 0.0
  %2420 = vmatpush1.msra.mxu0 0.0
  %2421 = vmatprep.subr.mxu0 0.0
  %2422 = vmatpush1.msra.mxu0 0.0
  %2423 = vmatprep.subr.mxu0 0.0
  %2424 = vmatpush1.msra.mxu0 0.0
  %2425 = vmatprep.subr.mxu0 0.0
  %2426 = vmatpush1.msra.mxu0 0.0
  %2427 = vmatprep.subr.mxu0 0.0
  %2428 = vmatpush1.msra.mxu0 0.0
  %2429 = vmatprep.subr.mxu0 0.0
  %2430 = vmatpush1.msra.mxu0 0.0
  %2431 = vmatprep.subr.mxu0 0.0
  %2432 = vmatpush1.msra.mxu0 0.0
  %2433 = vmatprep.subr.mxu0 0.0
  %2434 = vmatpush1.msra.mxu0 0.0
  %2435 = vmatprep.subr.mxu0 0.0
  %2436 = vmatpush1.msra.mxu0 0.0
  %2437 = vmatprep.subr.mxu0 0.0
  %2438 = vmatpush1.msra.mxu0 0.0
  %2439 = vmatprep.subr.mxu0 0.0
  %2440 = vmatpush1.msra.mxu0 0.0
  %2441 = vmatprep.subr.mxu0 0.0
  %2442 = vmatpush1.msra.mxu0 0.0
  %2443 = vmatprep.subr.mxu0 0.0
  %2444 = vmatpush1.msra.mxu0 0.0
  %2445 = vmatprep.subr.mxu0 0.0
  %2446 = vmatpush1.msra.mxu0 0.0
  %2447 = vmatprep.subr.mxu0 %v2344
  %2448 = vmatpush1.msra.mxu0 %v2341
  %2449 = vmatprep.subr.mxu0 0.0
  %2450 = vmatpush2.msra.mxu0 0.0
  %2451 = vmatprep.subr.mxu0 0.0
  %2452 = vmatpush2.msra.mxu0 0.0
  %2453 = vmatprep.subr.mxu0 0.0
  %2454 = vmatpush2.msra.mxu0 0.0
  %2455 = vmatprep.subr.mxu0 0.0
  %2456 = vmatpush2.msra.mxu0 0.0
  %2457 = vmatprep.subr.mxu0 0.0
  %2458 = vmatpush2.msra.mxu0 0.0
  %2459 = vmatprep.subr.mxu0 0.0
  %2460 = vmatpush2.msra.mxu0 0.0
  %2461 = vmatprep.subr.mxu0 0.0
  %2462 = vmatpush2.msra.mxu0 0.0
  %2463 = vmatprep.subr.mxu0 0.0
  %2464 = vmatpush2.msra.mxu0 0.0
  %2465 = vmatprep.subr.mxu0 0.0
  %2466 = vmatpush2.msra.mxu0 0.0
  %2467 = vmatprep.subr.mxu0 0.0
  %2468 = vmatpush2.msra.mxu0 0.0
  %2469 = vmatprep.subr.mxu0 0.0
  %2470 = vmatpush2.msra.mxu0 0.0
  %2471 = vmatprep.subr.mxu0 0.0
  %2472 = vmatpush2.msra.mxu0 0.0
  %2473 = vmatprep.subr.mxu0 0.0
  %2474 = vmatpush2.msra.mxu0 0.0
  %2475 = vmatprep.subr.mxu0 0.0
  %2476 = vmatpush2.msra.mxu0 0.0
  %2477 = vmatprep.subr.mxu0 0.0
  %2478 = vmatpush2.msra.mxu0 0.0
  %2479 = vmatprep.subr.mxu0 0.0
  %2480 = vmatpush2.msra.mxu0 0.0
  %2481 = vmatprep.mubr.f32.mxu0 0.0
  %2482 = vmatmul.mubr.f32.gmra.mxu0 %v2332
  %v2483 = vpop.f32.mrf.mxu0
  %v2484 = vadd.f32 0.0, %v2483
  %v2485 = vpop.f32.mrf.mxu0
  %v2486 = vadd.f32 0.0, %v2485
  %2487 = vdwg.mxu0
  %v2488 = vadd.f32 %v2309, %v2413
  %v2489 = vadd.f32 %v2310, %v2415
  %v2490 = vadd.f32 %v2311, %v2484
  %v2491 = vadd.f32 %v2312, %v2486
  %v2492 = vld [vmem:[%s7] sm:$0xff]
  %v2493 = vld [vmem:[%s8] sm:$0xff]
  %v2494 = vadd.f32 %v2488, %v2489
  %v2495 = vadd.f32 %v2494, %v2490
  %v2496 = vadd.f32 %v2495, %v2491
  %2497 = vadd.xlane.f32.xlu0 %v2496
  %v2498 = vpop.xlane.xlu0 %2497
  %v2499 = vmul.f32 %v2498, 0.001953125
  %v2500 = vsub.f32 %v2488, %v2499
  %v2501 = vsub.f32 %v2489, %v2499
  %v2502 = vsub.f32 %v2490, %v2499
  %v2503 = vsub.f32 %v2491, %v2499
  %v2504 = vmul.f32 %v2500, %v2500
  %v2505 = vmul.f32 %v2501, %v2501
  %v2506 = vmul.f32 %v2502, %v2502
  %v2507 = vmul.f32 %v2503, %v2503
  %v2508 = vadd.f32 %v2504, %v2505
  %v2509 = vadd.f32 %v2508, %v2506
  %v2510 = vadd.f32 %v2509, %v2507
  %2511 = vadd.xlane.f32.xlu0 %v2510
  %v2512 = vpop.xlane.xlu0 %2511
  %v2513 = vmul.f32 %v2512, 0.001953125
  %v2514 = vadd.f32 %v2513, 0.001
  %v2515 = vrsqrt.pop %v2514
  %v2516 = vmul.f32 %v2500, %v2515
  %v2517 = vmul.f32 %v2501, %v2515
  %v2518 = vmul.f32 %v2502, %v2515
  %v2519 = vmul.f32 %v2503, %v2515
  %2521 = vset.pattern.permute.xlu0 0
  %2522 = vperm.xlu0 %2521, %v2492
  %v2523 = vpop.permute.xlu0 %2522
  %v2525 = vmul.f32 %v2516, %v2523
  %v2526 = vmul.f32 %v2517, %v2523
  %v2527 = vmul.f32 %v2518, %v2523
  %v2528 = vmul.f32 %v2519, %v2523
  %2530 = vset.pattern.permute.xlu0 0
  %2531 = vperm.xlu0 %2530, %v2493
  %v2532 = vpop.permute.xlu0 %2531
  %v2534 = vadd.f32 %v2525, %v2532
  %v2535 = vadd.f32 %v2526, %v2532
  %v2536 = vadd.f32 %v2527, %v2532
  %v2537 = vadd.f32 %v2528, %v2532
  %v2538 = vmax.f32 %v2534, 0.0
  %v2539 = vmax.f32 %v2535, 0.0
  %v2540 = vmax.f32 %v2536, 0.0
  %v2541 = vmax.f32 %v2537, 0.0
  %2542 = vst [vmem:[%s15 + $0x20] sm:$0xff] %v2538
  %2543 = vst [vmem:[%s15 + $0x28] sm:$0xff] %v2539
  %2544 = vst [vmem:[%s15 + $0x30] sm:$0xff] %v2540
  %2545 = vst [vmem:[%s15 + $0x38] sm:$0xff] %v2541
  %v2546 = vrot.slane %v322, 4
  %v2547 = vrot.slane %v323, 4
  %v2548 = vrot.slane %v324, 4
  %v2549 = vrot.slane %v325, 4
  %2554 = vrot.lane.b32.xlu0 %v2546, 34
  %v2555 = vpop.permute.xlu0 %2554
  %2556 = vrot.lane.b32.xlu0 %v2547, 34
  %v2557 = vpop.permute.xlu0 %2556
  %2558 = vrot.lane.b32.xlu0 %v2548, 34
  %v2559 = vpop.permute.xlu0 %2558
  %2560 = vrot.lane.b32.xlu0 %v2549, 34
  %v2561 = vpop.permute.xlu0 %2560
  %vm2562 = vcmp.lt.s32.totalorder %v345, 34
  %v2563 = vsel %vm2562, %v2559, %v2561
  %v2564 = vsel %vm2562, %v2557, %v2559
  %v2565 = vsel %vm2562, %v2555, %v2557
  %v2566 = vsel %vm2562, %v2561, %v2555
  %vm2567 = vcmp.ge.s32.totalorder %v52, 2
  %vm2568 = vcmp.ge.s32.totalorder %v53, 2
  %vm2569 = vmand %vm2567, %vm2568
  %v2570 = vsel %vm2569, 1, 0
  %v2571 = vlaneseq
  %v2572 = vshrl.u32 %v2571, 7
  %v2573 = vsub.s32 0, %v2572
  %v2574 = vrot.slane %v2570, %v2573
  %v2575 = vlaneseq
  %v2576 = vshrl.u32 %v2575, 7
  %v2577 = vsub.s32 1, %v2576
  %v2578 = vrot.slane %v2570, %v2577
  %v2579 = vlaneseq
  %v2580 = vshrl.u32 %v2579, 7
  %v2581 = vsub.s32 2, %v2580
  %v2582 = vrot.slane %v2570, %v2581
  %v2583 = vlaneseq
  %v2584 = vshrl.u32 %v2583, 7
  %v2585 = vsub.s32 3, %v2584
  %v2586 = vrot.slane %v2570, %v2585
  %vm2587 = vcmp.eq.s32.totalorder %v2574, 1
  %vm2588 = vcmp.eq.s32.totalorder %v2578, 1
  %vm2589 = vcmp.eq.s32.totalorder %v2582, 1
  %vm2590 = vcmp.eq.s32.totalorder %v2586, 1
  %v2591 = vsel %vm2587, %v2566, 0.0
  %v2592 = vsel %vm2588, %v2565, 0.0
  %v2593 = vsel %vm2589, %v2564, 0.0
  %v2594 = vsel %vm2590, %v2563, 0.0
  %v2595 = vld [vmem:[%s9] sm:$0xff]
  %2596 = vrot.lane.b32.xlu0 %v2546, 33
  %v2597 = vpop.permute.xlu0 %2596
  %2598 = vrot.lane.b32.xlu0 %v2547, 33
  %v2599 = vpop.permute.xlu0 %2598
  %2600 = vrot.lane.b32.xlu0 %v2548, 33
  %v2601 = vpop.permute.xlu0 %2600
  %2602 = vrot.lane.b32.xlu0 %v2549, 33
  %v2603 = vpop.permute.xlu0 %2602
  %vm2604 = vcmp.lt.s32.totalorder %v345, 33
  %v2605 = vsel %vm2604, %v2601, %v2603
  %v2606 = vsel %vm2604, %v2599, %v2601
  %v2607 = vsel %vm2604, %v2597, %v2599
  %v2608 = vsel %vm2604, %v2603, %v2597
  %vm2609 = vmand %vm2567, %vm352
  %v2610 = vsel %vm2609, 1, 0
  %v2611 = vlaneseq
  %v2612 = vshrl.u32 %v2611, 7
  %v2613 = vsub.s32 0, %v2612
  %v2614 = vrot.slane %v2610, %v2613
  %v2615 = vlaneseq
  %v2616 = vshrl.u32 %v2615, 7
  %v2617 = vsub.s32 1, %v2616
  %v2618 = vrot.slane %v2610, %v2617
  %v2619 = vlaneseq
  %v2620 = vshrl.u32 %v2619, 7
  %v2621 = vsub.s32 2, %v2620
  %v2622 = vrot.slane %v2610, %v2621
  %v2623 = vlaneseq
  %v2624 = vshrl.u32 %v2623, 7
  %v2625 = vsub.s32 3, %v2624
  %v2626 = vrot.slane %v2610, %v2625
  %vm2627 = vcmp.eq.s32.totalorder %v2614, 1
  %vm2628 = vcmp.eq.s32.totalorder %v2618, 1
  %vm2629 = vcmp.eq.s32.totalorder %v2622, 1
  %vm2630 = vcmp.eq.s32.totalorder %v2626, 1
  %v2631 = vsel %vm2627, %v2608, 0.0
  %v2632 = vsel %vm2628, %v2607, 0.0
  %v2633 = vsel %vm2629, %v2606, 0.0
  %v2634 = vsel %vm2630, %v2605, 0.0
  %s2635 = scalar_lea.vmem %s9, 8
  %v2636 = vld [vmem:[%s2635] sm:$0xff]
  %v2638 = vsel %vm60, %v2636, 0
  %v2641 = vsel %vm67, %v2631, 0
  %v2644 = vsel %vm67, %v2632, 0
  %v2647 = vsel %vm67, %v2633, 0
  %v2650 = vsel %vm67, %v2634, 0
  %2652 = vmatprep.subr.mxu0 0.0
  %2653 = vmatpush1.msra.mxu0 0.0
  %2654 = vmatprep.subr.mxu0 0.0
  %2655 = vmatpush1.msra.mxu0 0.0
  %2656 = vmatprep.subr.mxu0 0.0
  %2657 = vmatpush1.msra.mxu0 0.0
  %2658 = vmatprep.subr.mxu0 0.0
  %2659 = vmatpush1.msra.mxu0 0.0
  %2660 = vmatprep.subr.mxu0 0.0
  %2661 = vmatpush1.msra.mxu0 0.0
  %2662 = vmatprep.subr.mxu0 0.0
  %2663 = vmatpush1.msra.mxu0 0.0
  %2664 = vmatprep.subr.mxu0 0.0
  %2665 = vmatpush1.msra.mxu0 0.0
  %2666 = vmatprep.subr.mxu0 0.0
  %2667 = vmatpush1.msra.mxu0 0.0
  %2668 = vmatprep.subr.mxu0 0.0
  %2669 = vmatpush1.msra.mxu0 0.0
  %2670 = vmatprep.subr.mxu0 0.0
  %2671 = vmatpush1.msra.mxu0 0.0
  %2672 = vmatprep.subr.mxu0 0.0
  %2673 = vmatpush1.msra.mxu0 0.0
  %2674 = vmatprep.subr.mxu0 0.0
  %2675 = vmatpush1.msra.mxu0 0.0
  %2676 = vmatprep.subr.mxu0 0.0
  %2677 = vmatpush1.msra.mxu0 0.0
  %2678 = vmatprep.subr.mxu0 0.0
  %2679 = vmatpush1.msra.mxu0 0.0
  %2680 = vmatprep.subr.mxu0 0.0
  %2681 = vmatpush1.msra.mxu0 0.0
  %2682 = vmatprep.subr.mxu0 %v2644
  %2683 = vmatpush1.msra.mxu0 %v2641
  %2684 = vmatprep.subr.mxu0 0.0
  %2685 = vmatpush2.msra.mxu0 0.0
  %2686 = vmatprep.subr.mxu0 0.0
  %2687 = vmatpush2.msra.mxu0 0.0
  %2688 = vmatprep.subr.mxu0 0.0
  %2689 = vmatpush2.msra.mxu0 0.0
  %2690 = vmatprep.subr.mxu0 0.0
  %2691 = vmatpush2.msra.mxu0 0.0
  %2692 = vmatprep.subr.mxu0 0.0
  %2693 = vmatpush2.msra.mxu0 0.0
  %2694 = vmatprep.subr.mxu0 0.0
  %2695 = vmatpush2.msra.mxu0 0.0
  %2696 = vmatprep.subr.mxu0 0.0
  %2697 = vmatpush2.msra.mxu0 0.0
  %2698 = vmatprep.subr.mxu0 0.0
  %2699 = vmatpush2.msra.mxu0 0.0
  %2700 = vmatprep.subr.mxu0 0.0
  %2701 = vmatpush2.msra.mxu0 0.0
  %2702 = vmatprep.subr.mxu0 0.0
  %2703 = vmatpush2.msra.mxu0 0.0
  %2704 = vmatprep.subr.mxu0 0.0
  %2705 = vmatpush2.msra.mxu0 0.0
  %2706 = vmatprep.subr.mxu0 0.0
  %2707 = vmatpush2.msra.mxu0 0.0
  %2708 = vmatprep.subr.mxu0 0.0
  %2709 = vmatpush2.msra.mxu0 0.0
  %2710 = vmatprep.subr.mxu0 0.0
  %2711 = vmatpush2.msra.mxu0 0.0
  %2712 = vmatprep.subr.mxu0 0.0
  %2713 = vmatpush2.msra.mxu0 0.0
  %2714 = vmatprep.subr.mxu0 0.0
  %2715 = vmatpush2.msra.mxu0 0.0
  %2716 = vmatprep.mubr.f32.mxu0 0.0
  %2717 = vmatmul.mubr.f32.gmra.mxu0 %v2638
  %v2718 = vpop.f32.mrf.mxu0
  %v2719 = vadd.f32 0.0, %v2718
  %v2720 = vpop.f32.mrf.mxu0
  %v2721 = vadd.f32 0.0, %v2720
  %2722 = vdwg.mxu0
  %2723 = vmatprep.subr.mxu0 0.0
  %2724 = vmatpush1.msra.mxu0 0.0
  %2725 = vmatprep.subr.mxu0 0.0
  %2726 = vmatpush1.msra.mxu0 0.0
  %2727 = vmatprep.subr.mxu0 0.0
  %2728 = vmatpush1.msra.mxu0 0.0
  %2729 = vmatprep.subr.mxu0 0.0
  %2730 = vmatpush1.msra.mxu0 0.0
  %2731 = vmatprep.subr.mxu0 0.0
  %2732 = vmatpush1.msra.mxu0 0.0
  %2733 = vmatprep.subr.mxu0 0.0
  %2734 = vmatpush1.msra.mxu0 0.0
  %2735 = vmatprep.subr.mxu0 0.0
  %2736 = vmatpush1.msra.mxu0 0.0
  %2737 = vmatprep.subr.mxu0 0.0
  %2738 = vmatpush1.msra.mxu0 0.0
  %2739 = vmatprep.subr.mxu0 0.0
  %2740 = vmatpush1.msra.mxu0 0.0
  %2741 = vmatprep.subr.mxu0 0.0
  %2742 = vmatpush1.msra.mxu0 0.0
  %2743 = vmatprep.subr.mxu0 0.0
  %2744 = vmatpush1.msra.mxu0 0.0
  %2745 = vmatprep.subr.mxu0 0.0
  %2746 = vmatpush1.msra.mxu0 0.0
  %2747 = vmatprep.subr.mxu0 0.0
  %2748 = vmatpush1.msra.mxu0 0.0
  %2749 = vmatprep.subr.mxu0 0.0
  %2750 = vmatpush1.msra.mxu0 0.0
  %2751 = vmatprep.subr.mxu0 0.0
  %2752 = vmatpush1.msra.mxu0 0.0
  %2753 = vmatprep.subr.mxu0 %v2650
  %2754 = vmatpush1.msra.mxu0 %v2647
  %2755 = vmatprep.subr.mxu0 0.0
  %2756 = vmatpush2.msra.mxu0 0.0
  %2757 = vmatprep.subr.mxu0 0.0
  %2758 = vmatpush2.msra.mxu0 0.0
  %2759 = vmatprep.subr.mxu0 0.0
  %2760 = vmatpush2.msra.mxu0 0.0
  %2761 = vmatprep.subr.mxu0 0.0
  %2762 = vmatpush2.msra.mxu0 0.0
  %2763 = vmatprep.subr.mxu0 0.0
  %2764 = vmatpush2.msra.mxu0 0.0
  %2765 = vmatprep.subr.mxu0 0.0
  %2766 = vmatpush2.msra.mxu0 0.0
  %2767 = vmatprep.subr.mxu0 0.0
  %2768 = vmatpush2.msra.mxu0 0.0
  %2769 = vmatprep.subr.mxu0 0.0
  %2770 = vmatpush2.msra.mxu0 0.0
  %2771 = vmatprep.subr.mxu0 0.0
  %2772 = vmatpush2.msra.mxu0 0.0
  %2773 = vmatprep.subr.mxu0 0.0
  %2774 = vmatpush2.msra.mxu0 0.0
  %2775 = vmatprep.subr.mxu0 0.0
  %2776 = vmatpush2.msra.mxu0 0.0
  %2777 = vmatprep.subr.mxu0 0.0
  %2778 = vmatpush2.msra.mxu0 0.0
  %2779 = vmatprep.subr.mxu0 0.0
  %2780 = vmatpush2.msra.mxu0 0.0
  %2781 = vmatprep.subr.mxu0 0.0
  %2782 = vmatpush2.msra.mxu0 0.0
  %2783 = vmatprep.subr.mxu0 0.0
  %2784 = vmatpush2.msra.mxu0 0.0
  %2785 = vmatprep.subr.mxu0 0.0
  %2786 = vmatpush2.msra.mxu0 0.0
  %2787 = vmatprep.mubr.f32.mxu0 0.0
  %2788 = vmatmul.mubr.f32.gmra.mxu0 %v2638
  %v2789 = vpop.f32.mrf.mxu0
  %v2790 = vadd.f32 0.0, %v2789
  %v2791 = vpop.f32.mrf.mxu0
  %v2792 = vadd.f32 0.0, %v2791
  %2793 = vdwg.mxu0
  %v2795 = vsel %vm60, %v2595, 0
  %v2798 = vsel %vm67, %v2591, 0
  %v2801 = vsel %vm67, %v2592, 0
  %v2804 = vsel %vm67, %v2593, 0
  %v2807 = vsel %vm67, %v2594, 0
  %2809 = vmatprep.subr.mxu0 0.0
  %2810 = vmatpush1.msra.mxu0 0.0
  %2811 = vmatprep.subr.mxu0 0.0
  %2812 = vmatpush1.msra.mxu0 0.0
  %2813 = vmatprep.subr.mxu0 0.0
  %2814 = vmatpush1.msra.mxu0 0.0
  %2815 = vmatprep.subr.mxu0 0.0
  %2816 = vmatpush1.msra.mxu0 0.0
  %2817 = vmatprep.subr.mxu0 0.0
  %2818 = vmatpush1.msra.mxu0 0.0
  %2819 = vmatprep.subr.mxu0 0.0
  %2820 = vmatpush1.msra.mxu0 0.0
  %2821 = vmatprep.subr.mxu0 0.0
  %2822 = vmatpush1.msra.mxu0 0.0
  %2823 = vmatprep.subr.mxu0 0.0
  %2824 = vmatpush1.msra.mxu0 0.0
  %2825 = vmatprep.subr.mxu0 0.0
  %2826 = vmatpush1.msra.mxu0 0.0
  %2827 = vmatprep.subr.mxu0 0.0
  %2828 = vmatpush1.msra.mxu0 0.0
  %2829 = vmatprep.subr.mxu0 0.0
  %2830 = vmatpush1.msra.mxu0 0.0
  %2831 = vmatprep.subr.mxu0 0.0
  %2832 = vmatpush1.msra.mxu0 0.0
  %2833 = vmatprep.subr.mxu0 0.0
  %2834 = vmatpush1.msra.mxu0 0.0
  %2835 = vmatprep.subr.mxu0 0.0
  %2836 = vmatpush1.msra.mxu0 0.0
  %2837 = vmatprep.subr.mxu0 0.0
  %2838 = vmatpush1.msra.mxu0 0.0
  %2839 = vmatprep.subr.mxu0 %v2801
  %2840 = vmatpush1.msra.mxu0 %v2798
  %2841 = vmatprep.subr.mxu0 0.0
  %2842 = vmatpush2.msra.mxu0 0.0
  %2843 = vmatprep.subr.mxu0 0.0
  %2844 = vmatpush2.msra.mxu0 0.0
  %2845 = vmatprep.subr.mxu0 0.0
  %2846 = vmatpush2.msra.mxu0 0.0
  %2847 = vmatprep.subr.mxu0 0.0
  %2848 = vmatpush2.msra.mxu0 0.0
  %2849 = vmatprep.subr.mxu0 0.0
  %2850 = vmatpush2.msra.mxu0 0.0
  %2851 = vmatprep.subr.mxu0 0.0
  %2852 = vmatpush2.msra.mxu0 0.0
  %2853 = vmatprep.subr.mxu0 0.0
  %2854 = vmatpush2.msra.mxu0 0.0
  %2855 = vmatprep.subr.mxu0 0.0
  %2856 = vmatpush2.msra.mxu0 0.0
  %2857 = vmatprep.subr.mxu0 0.0
  %2858 = vmatpush2.msra.mxu0 0.0
  %2859 = vmatprep.subr.mxu0 0.0
  %2860 = vmatpush2.msra.mxu0 0.0
  %2861 = vmatprep.subr.mxu0 0.0
  %2862 = vmatpush2.msra.mxu0 0.0
  %2863 = vmatprep.subr.mxu0 0.0
  %2864 = vmatpush2.msra.mxu0 0.0
  %2865 = vmatprep.subr.mxu0 0.0
  %2866 = vmatpush2.msra.mxu0 0.0
  %2867 = vmatprep.subr.mxu0 0.0
  %2868 = vmatpush2.msra.mxu0 0.0
  %2869 = vmatprep.subr.mxu0 0.0
  %2870 = vmatpush2.msra.mxu0 0.0
  %2871 = vmatprep.subr.mxu0 0.0
  %2872 = vmatpush2.msra.mxu0 0.0
  %2873 = vmatprep.mubr.f32.mxu0 0.0
  %2874 = vmatmul.mubr.f32.gmra.mxu0 %v2795
  %v2875 = vpop.f32.mrf.mxu0
  %v2876 = vadd.f32 %v2719, %v2875
  %v2877 = vpop.f32.mrf.mxu0
  %v2878 = vadd.f32 %v2721, %v2877
  %2879 = vdwg.mxu0
  %2880 = vmatprep.subr.mxu0 0.0
  %2881 = vmatpush1.msra.mxu0 0.0
  %2882 = vmatprep.subr.mxu0 0.0
  %2883 = vmatpush1.msra.mxu0 0.0
  %2884 = vmatprep.subr.mxu0 0.0
  %2885 = vmatpush1.msra.mxu0 0.0
  %2886 = vmatprep.subr.mxu0 0.0
  %2887 = vmatpush1.msra.mxu0 0.0
  %2888 = vmatprep.subr.mxu0 0.0
  %2889 = vmatpush1.msra.mxu0 0.0
  %2890 = vmatprep.subr.mxu0 0.0
  %2891 = vmatpush1.msra.mxu0 0.0
  %2892 = vmatprep.subr.mxu0 0.0
  %2893 = vmatpush1.msra.mxu0 0.0
  %2894 = vmatprep.subr.mxu0 0.0
  %2895 = vmatpush1.msra.mxu0 0.0
  %2896 = vmatprep.subr.mxu0 0.0
  %2897 = vmatpush1.msra.mxu0 0.0
  %2898 = vmatprep.subr.mxu0 0.0
  %2899 = vmatpush1.msra.mxu0 0.0
  %2900 = vmatprep.subr.mxu0 0.0
  %2901 = vmatpush1.msra.mxu0 0.0
  %2902 = vmatprep.subr.mxu0 0.0
  %2903 = vmatpush1.msra.mxu0 0.0
  %2904 = vmatprep.subr.mxu0 0.0
  %2905 = vmatpush1.msra.mxu0 0.0
  %2906 = vmatprep.subr.mxu0 0.0
  %2907 = vmatpush1.msra.mxu0 0.0
  %2908 = vmatprep.subr.mxu0 0.0
  %2909 = vmatpush1.msra.mxu0 0.0
  %2910 = vmatprep.subr.mxu0 %v2807
  %2911 = vmatpush1.msra.mxu0 %v2804
  %2912 = vmatprep.subr.mxu0 0.0
  %2913 = vmatpush2.msra.mxu0 0.0
  %2914 = vmatprep.subr.mxu0 0.0
  %2915 = vmatpush2.msra.mxu0 0.0
  %2916 = vmatprep.subr.mxu0 0.0
  %2917 = vmatpush2.msra.mxu0 0.0
  %2918 = vmatprep.subr.mxu0 0.0
  %2919 = vmatpush2.msra.mxu0 0.0
  %2920 = vmatprep.subr.mxu0 0.0
  %2921 = vmatpush2.msra.mxu0 0.0
  %2922 = vmatprep.subr.mxu0 0.0
  %2923 = vmatpush2.msra.mxu0 0.0
  %2924 = vmatprep.subr.mxu0 0.0
  %2925 = vmatpush2.msra.mxu0 0.0
  %2926 = vmatprep.subr.mxu0 0.0
  %2927 = vmatpush2.msra.mxu0 0.0
  %2928 = vmatprep.subr.mxu0 0.0
  %2929 = vmatpush2.msra.mxu0 0.0
  %2930 = vmatprep.subr.mxu0 0.0
  %2931 = vmatpush2.msra.mxu0 0.0
  %2932 = vmatprep.subr.mxu0 0.0
  %2933 = vmatpush2.msra.mxu0 0.0
  %2934 = vmatprep.subr.mxu0 0.0
  %2935 = vmatpush2.msra.mxu0 0.0
  %2936 = vmatprep.subr.mxu0 0.0
  %2937 = vmatpush2.msra.mxu0 0.0
  %2938 = vmatprep.subr.mxu0 0.0
  %2939 = vmatpush2.msra.mxu0 0.0
  %2940 = vmatprep.subr.mxu0 0.0
  %2941 = vmatpush2.msra.mxu0 0.0
  %2942 = vmatprep.subr.mxu0 0.0
  %2943 = vmatpush2.msra.mxu0 0.0
  %2944 = vmatprep.mubr.f32.mxu0 0.0
  %2945 = vmatmul.mubr.f32.gmra.mxu0 %v2795
  %v2946 = vpop.f32.mrf.mxu0
  %v2947 = vadd.f32 %v2790, %v2946
  %v2948 = vpop.f32.mrf.mxu0
  %v2949 = vadd.f32 %v2792, %v2948
  %2950 = vdwg.mxu0
  %2951 = vrot.lane.b32.xlu0 %v2546, 32
  %v2952 = vpop.permute.xlu0 %2951
  %2953 = vrot.lane.b32.xlu0 %v2547, 32
  %v2954 = vpop.permute.xlu0 %2953
  %2955 = vrot.lane.b32.xlu0 %v2548, 32
  %v2956 = vpop.permute.xlu0 %2955
  %2957 = vrot.lane.b32.xlu0 %v2549, 32
  %v2958 = vpop.permute.xlu0 %2957
  %vm2959 = vcmp.lt.s32.totalorder %v345, 32
  %v2960 = vsel %vm2959, %v2956, %v2958
  %v2961 = vsel %vm2959, %v2954, %v2956
  %v2962 = vsel %vm2959, %v2952, %v2954
  %v2963 = vsel %vm2959, %v2958, %v2952
  %v2964 = vsel %vm2567, 1, 0
  %v2965 = vlaneseq
  %v2966 = vshrl.u32 %v2965, 7
  %v2967 = vsub.s32 0, %v2966
  %v2968 = vrot.slane %v2964, %v2967
  %v2969 = vlaneseq
  %v2970 = vshrl.u32 %v2969, 7
  %v2971 = vsub.s32 1, %v2970
  %v2972 = vrot.slane %v2964, %v2971
  %v2973 = vlaneseq
  %v2974 = vshrl.u32 %v2973, 7
  %v2975 = vsub.s32 2, %v2974
  %v2976 = vrot.slane %v2964, %v2975
  %v2977 = vlaneseq
  %v2978 = vshrl.u32 %v2977, 7
  %v2979 = vsub.s32 3, %v2978
  %v2980 = vrot.slane %v2964, %v2979
  %vm2981 = vcmp.eq.s32.totalorder %v2968, 1
  %vm2982 = vcmp.eq.s32.totalorder %v2972, 1
  %vm2983 = vcmp.eq.s32.totalorder %v2976, 1
  %vm2984 = vcmp.eq.s32.totalorder %v2980, 1
  %v2985 = vsel %vm2981, %v2963, 0.0
  %v2986 = vsel %vm2982, %v2962, 0.0
  %v2987 = vsel %vm2983, %v2961, 0.0
  %v2988 = vsel %vm2984, %v2960, 0.0
  %s2989 = scalar_lea.vmem %s9, 16
  %v2990 = vld [vmem:[%s2989] sm:$0xff]
  %v2992 = vsel %vm60, %v2990, 0
  %v2995 = vsel %vm67, %v2985, 0
  %v2998 = vsel %vm67, %v2986, 0
  %v3001 = vsel %vm67, %v2987, 0
  %v3004 = vsel %vm67, %v2988, 0
  %3006 = vmatprep.subr.mxu0 0.0
  %3007 = vmatpush1.msra.mxu0 0.0
  %3008 = vmatprep.subr.mxu0 0.0
  %3009 = vmatpush1.msra.mxu0 0.0
  %3010 = vmatprep.subr.mxu0 0.0
  %3011 = vmatpush1.msra.mxu0 0.0
  %3012 = vmatprep.subr.mxu0 0.0
  %3013 = vmatpush1.msra.mxu0 0.0
  %3014 = vmatprep.subr.mxu0 0.0
  %3015 = vmatpush1.msra.mxu0 0.0
  %3016 = vmatprep.subr.mxu0 0.0
  %3017 = vmatpush1.msra.mxu0 0.0
  %3018 = vmatprep.subr.mxu0 0.0
  %3019 = vmatpush1.msra.mxu0 0.0
  %3020 = vmatprep.subr.mxu0 0.0
  %3021 = vmatpush1.msra.mxu0 0.0
  %3022 = vmatprep.subr.mxu0 0.0
  %3023 = vmatpush1.msra.mxu0 0.0
  %3024 = vmatprep.subr.mxu0 0.0
  %3025 = vmatpush1.msra.mxu0 0.0
  %3026 = vmatprep.subr.mxu0 0.0
  %3027 = vmatpush1.msra.mxu0 0.0
  %3028 = vmatprep.subr.mxu0 0.0
  %3029 = vmatpush1.msra.mxu0 0.0
  %3030 = vmatprep.subr.mxu0 0.0
  %3031 = vmatpush1.msra.mxu0 0.0
  %3032 = vmatprep.subr.mxu0 0.0
  %3033 = vmatpush1.msra.mxu0 0.0
  %3034 = vmatprep.subr.mxu0 0.0
  %3035 = vmatpush1.msra.mxu0 0.0
  %3036 = vmatprep.subr.mxu0 %v2998
  %3037 = vmatpush1.msra.mxu0 %v2995
  %3038 = vmatprep.subr.mxu0 0.0
  %3039 = vmatpush2.msra.mxu0 0.0
  %3040 = vmatprep.subr.mxu0 0.0
  %3041 = vmatpush2.msra.mxu0 0.0
  %3042 = vmatprep.subr.mxu0 0.0
  %3043 = vmatpush2.msra.mxu0 0.0
  %3044 = vmatprep.subr.mxu0 0.0
  %3045 = vmatpush2.msra.mxu0 0.0
  %3046 = vmatprep.subr.mxu0 0.0
  %3047 = vmatpush2.msra.mxu0 0.0
  %3048 = vmatprep.subr.mxu0 0.0
  %3049 = vmatpush2.msra.mxu0 0.0
  %3050 = vmatprep.subr.mxu0 0.0
  %3051 = vmatpush2.msra.mxu0 0.0
  %3052 = vmatprep.subr.mxu0 0.0
  %3053 = vmatpush2.msra.mxu0 0.0
  %3054 = vmatprep.subr.mxu0 0.0
  %3055 = vmatpush2.msra.mxu0 0.0
  %3056 = vmatprep.subr.mxu0 0.0
  %3057 = vmatpush2.msra.mxu0 0.0
  %3058 = vmatprep.subr.mxu0 0.0
  %3059 = vmatpush2.msra.mxu0 0.0
  %3060 = vmatprep.subr.mxu0 0.0
  %3061 = vmatpush2.msra.mxu0 0.0
  %3062 = vmatprep.subr.mxu0 0.0
  %3063 = vmatpush2.msra.mxu0 0.0
  %3064 = vmatprep.subr.mxu0 0.0
  %3065 = vmatpush2.msra.mxu0 0.0
  %3066 = vmatprep.subr.mxu0 0.0
  %3067 = vmatpush2.msra.mxu0 0.0
  %3068 = vmatprep.subr.mxu0 0.0
  %3069 = vmatpush2.msra.mxu0 0.0
  %3070 = vmatprep.mubr.f32.mxu0 0.0
  %3071 = vmatmul.mubr.f32.gmra.mxu0 %v2992
  %v3072 = vpop.f32.mrf.mxu0
  %v3073 = vadd.f32 0.0, %v3072
  %v3074 = vpop.f32.mrf.mxu0
  %v3075 = vadd.f32 0.0, %v3074
  %3076 = vdwg.mxu0
  %3077 = vmatprep.subr.mxu0 0.0
  %3078 = vmatpush1.msra.mxu0 0.0
  %3079 = vmatprep.subr.mxu0 0.0
  %3080 = vmatpush1.msra.mxu0 0.0
  %3081 = vmatprep.subr.mxu0 0.0
  %3082 = vmatpush1.msra.mxu0 0.0
  %3083 = vmatprep.subr.mxu0 0.0
  %3084 = vmatpush1.msra.mxu0 0.0
  %3085 = vmatprep.subr.mxu0 0.0
  %3086 = vmatpush1.msra.mxu0 0.0
  %3087 = vmatprep.subr.mxu0 0.0
  %3088 = vmatpush1.msra.mxu0 0.0
  %3089 = vmatprep.subr.mxu0 0.0
  %3090 = vmatpush1.msra.mxu0 0.0
  %3091 = vmatprep.subr.mxu0 0.0
  %3092 = vmatpush1.msra.mxu0 0.0
  %3093 = vmatprep.subr.mxu0 0.0
  %3094 = vmatpush1.msra.mxu0 0.0
  %3095 = vmatprep.subr.mxu0 0.0
  %3096 = vmatpush1.msra.mxu0 0.0
  %3097 = vmatprep.subr.mxu0 0.0
  %3098 = vmatpush1.msra.mxu0 0.0
  %3099 = vmatprep.subr.mxu0 0.0
  %3100 = vmatpush1.msra.mxu0 0.0
  %3101 = vmatprep.subr.mxu0 0.0
  %3102 = vmatpush1.msra.mxu0 0.0
  %3103 = vmatprep.subr.mxu0 0.0
  %3104 = vmatpush1.msra.mxu0 0.0
  %3105 = vmatprep.subr.mxu0 0.0
  %3106 = vmatpush1.msra.mxu0 0.0
  %3107 = vmatprep.subr.mxu0 %v3004
  %3108 = vmatpush1.msra.mxu0 %v3001
  %3109 = vmatprep.subr.mxu0 0.0
  %3110 = vmatpush2.msra.mxu0 0.0
  %3111 = vmatprep.subr.mxu0 0.0
  %3112 = vmatpush2.msra.mxu0 0.0
  %3113 = vmatprep.subr.mxu0 0.0
  %3114 = vmatpush2.msra.mxu0 0.0
  %3115 = vmatprep.subr.mxu0 0.0
  %3116 = vmatpush2.msra.mxu0 0.0
  %3117 = vmatprep.subr.mxu0 0.0
  %3118 = vmatpush2.msra.mxu0 0.0
  %3119 = vmatprep.subr.mxu0 0.0
  %3120 = vmatpush2.msra.mxu0 0.0
  %3121 = vmatprep.subr.mxu0 0.0
  %3122 = vmatpush2.msra.mxu0 0.0
  %3123 = vmatprep.subr.mxu0 0.0
  %3124 = vmatpush2.msra.mxu0 0.0
  %3125 = vmatprep.subr.mxu0 0.0
  %3126 = vmatpush2.msra.mxu0 0.0
  %3127 = vmatprep.subr.mxu0 0.0
  %3128 = vmatpush2.msra.mxu0 0.0
  %3129 = vmatprep.subr.mxu0 0.0
  %3130 = vmatpush2.msra.mxu0 0.0
  %3131 = vmatprep.subr.mxu0 0.0
  %3132 = vmatpush2.msra.mxu0 0.0
  %3133 = vmatprep.subr.mxu0 0.0
  %3134 = vmatpush2.msra.mxu0 0.0
  %3135 = vmatprep.subr.mxu0 0.0
  %3136 = vmatpush2.msra.mxu0 0.0
  %3137 = vmatprep.subr.mxu0 0.0
  %3138 = vmatpush2.msra.mxu0 0.0
  %3139 = vmatprep.subr.mxu0 0.0
  %3140 = vmatpush2.msra.mxu0 0.0
  %3141 = vmatprep.mubr.f32.mxu0 0.0
  %3142 = vmatmul.mubr.f32.gmra.mxu0 %v2992
  %v3143 = vpop.f32.mrf.mxu0
  %v3144 = vadd.f32 0.0, %v3143
  %v3145 = vpop.f32.mrf.mxu0
  %v3146 = vadd.f32 0.0, %v3145
  %3147 = vdwg.mxu0
  %v3148 = vadd.f32 %v2876, %v3073
  %v3149 = vadd.f32 %v2878, %v3075
  %v3150 = vadd.f32 %v2947, %v3144
  %v3151 = vadd.f32 %v2949, %v3146
  %3152 = vrot.lane.b32.xlu0 %v2546, 31
  %v3153 = vpop.permute.xlu0 %3152
  %3154 = vrot.lane.b32.xlu0 %v2547, 31
  %v3155 = vpop.permute.xlu0 %3154
  %3156 = vrot.lane.b32.xlu0 %v2548, 31
  %v3157 = vpop.permute.xlu0 %3156
  %3158 = vrot.lane.b32.xlu0 %v2549, 31
  %v3159 = vpop.permute.xlu0 %3158
  %vm3160 = vcmp.lt.s32.totalorder %v345, 31
  %v3161 = vsel %vm3160, %v3157, %v3159
  %v3162 = vsel %vm3160, %v3155, %v3157
  %v3163 = vsel %vm3160, %v3153, %v3155
  %v3164 = vsel %vm3160, %v3159, %v3153
  %vm3165 = vmand %vm2567, %vm450
  %v3166 = vsel %vm3165, 1, 0
  %v3167 = vlaneseq
  %v3168 = vshrl.u32 %v3167, 7
  %v3169 = vsub.s32 0, %v3168
  %v3170 = vrot.slane %v3166, %v3169
  %v3171 = vlaneseq
  %v3172 = vshrl.u32 %v3171, 7
  %v3173 = vsub.s32 1, %v3172
  %v3174 = vrot.slane %v3166, %v3173
  %v3175 = vlaneseq
  %v3176 = vshrl.u32 %v3175, 7
  %v3177 = vsub.s32 2, %v3176
  %v3178 = vrot.slane %v3166, %v3177
  %v3179 = vlaneseq
  %v3180 = vshrl.u32 %v3179, 7
  %v3181 = vsub.s32 3, %v3180
  %v3182 = vrot.slane %v3166, %v3181
  %vm3183 = vcmp.eq.s32.totalorder %v3170, 1
  %vm3184 = vcmp.eq.s32.totalorder %v3174, 1
  %vm3185 = vcmp.eq.s32.totalorder %v3178, 1
  %vm3186 = vcmp.eq.s32.totalorder %v3182, 1
  %v3187 = vsel %vm3183, %v3164, 0.0
  %v3188 = vsel %vm3184, %v3163, 0.0
  %v3189 = vsel %vm3185, %v3162, 0.0
  %v3190 = vsel %vm3186, %v3161, 0.0
  %s3191 = scalar_lea.vmem %s9, 24
  %v3192 = vld [vmem:[%s3191] sm:$0xff]
  %v3194 = vsel %vm60, %v3192, 0
  %v3197 = vsel %vm67, %v3187, 0
  %v3200 = vsel %vm67, %v3188, 0
  %v3203 = vsel %vm67, %v3189, 0
  %v3206 = vsel %vm67, %v3190, 0
  %3208 = vmatprep.subr.mxu0 0.0
  %3209 = vmatpush1.msra.mxu0 0.0
  %3210 = vmatprep.subr.mxu0 0.0
  %3211 = vmatpush1.msra.mxu0 0.0
  %3212 = vmatprep.subr.mxu0 0.0
  %3213 = vmatpush1.msra.mxu0 0.0
  %3214 = vmatprep.subr.mxu0 0.0
  %3215 = vmatpush1.msra.mxu0 0.0
  %3216 = vmatprep.subr.mxu0 0.0
  %3217 = vmatpush1.msra.mxu0 0.0
  %3218 = vmatprep.subr.mxu0 0.0
  %3219 = vmatpush1.msra.mxu0 0.0
  %3220 = vmatprep.subr.mxu0 0.0
  %3221 = vmatpush1.msra.mxu0 0.0
  %3222 = vmatprep.subr.mxu0 0.0
  %3223 = vmatpush1.msra.mxu0 0.0
  %3224 = vmatprep.subr.mxu0 0.0
  %3225 = vmatpush1.msra.mxu0 0.0
  %3226 = vmatprep.subr.mxu0 0.0
  %3227 = vmatpush1.msra.mxu0 0.0
  %3228 = vmatprep.subr.mxu0 0.0
  %3229 = vmatpush1.msra.mxu0 0.0
  %3230 = vmatprep.subr.mxu0 0.0
  %3231 = vmatpush1.msra.mxu0 0.0
  %3232 = vmatprep.subr.mxu0 0.0
  %3233 = vmatpush1.msra.mxu0 0.0
  %3234 = vmatprep.subr.mxu0 0.0
  %3235 = vmatpush1.msra.mxu0 0.0
  %3236 = vmatprep.subr.mxu0 0.0
  %3237 = vmatpush1.msra.mxu0 0.0
  %3238 = vmatprep.subr.mxu0 %v3200
  %3239 = vmatpush1.msra.mxu0 %v3197
  %3240 = vmatprep.subr.mxu0 0.0
  %3241 = vmatpush2.msra.mxu0 0.0
  %3242 = vmatprep.subr.mxu0 0.0
  %3243 = vmatpush2.msra.mxu0 0.0
  %3244 = vmatprep.subr.mxu0 0.0
  %3245 = vmatpush2.msra.mxu0 0.0
  %3246 = vmatprep.subr.mxu0 0.0
  %3247 = vmatpush2.msra.mxu0 0.0
  %3248 = vmatprep.subr.mxu0 0.0
  %3249 = vmatpush2.msra.mxu0 0.0
  %3250 = vmatprep.subr.mxu0 0.0
  %3251 = vmatpush2.msra.mxu0 0.0
  %3252 = vmatprep.subr.mxu0 0.0
  %3253 = vmatpush2.msra.mxu0 0.0
  %3254 = vmatprep.subr.mxu0 0.0
  %3255 = vmatpush2.msra.mxu0 0.0
  %3256 = vmatprep.subr.mxu0 0.0
  %3257 = vmatpush2.msra.mxu0 0.0
  %3258 = vmatprep.subr.mxu0 0.0
  %3259 = vmatpush2.msra.mxu0 0.0
  %3260 = vmatprep.subr.mxu0 0.0
  %3261 = vmatpush2.msra.mxu0 0.0
  %3262 = vmatprep.subr.mxu0 0.0
  %3263 = vmatpush2.msra.mxu0 0.0
  %3264 = vmatprep.subr.mxu0 0.0
  %3265 = vmatpush2.msra.mxu0 0.0
  %3266 = vmatprep.subr.mxu0 0.0
  %3267 = vmatpush2.msra.mxu0 0.0
  %3268 = vmatprep.subr.mxu0 0.0
  %3269 = vmatpush2.msra.mxu0 0.0
  %3270 = vmatprep.subr.mxu0 0.0
  %3271 = vmatpush2.msra.mxu0 0.0
  %3272 = vmatprep.mubr.f32.mxu0 0.0
  %3273 = vmatmul.mubr.f32.gmra.mxu0 %v3194
  %v3274 = vpop.f32.mrf.mxu0
  %v3275 = vadd.f32 0.0, %v3274
  %v3276 = vpop.f32.mrf.mxu0
  %v3277 = vadd.f32 0.0, %v3276
  %3278 = vdwg.mxu0
  %3279 = vmatprep.subr.mxu0 0.0
  %3280 = vmatpush1.msra.mxu0 0.0
  %3281 = vmatprep.subr.mxu0 0.0
  %3282 = vmatpush1.msra.mxu0 0.0
  %3283 = vmatprep.subr.mxu0 0.0
  %3284 = vmatpush1.msra.mxu0 0.0
  %3285 = vmatprep.subr.mxu0 0.0
  %3286 = vmatpush1.msra.mxu0 0.0
  %3287 = vmatprep.subr.mxu0 0.0
  %3288 = vmatpush1.msra.mxu0 0.0
  %3289 = vmatprep.subr.mxu0 0.0
  %3290 = vmatpush1.msra.mxu0 0.0
  %3291 = vmatprep.subr.mxu0 0.0
  %3292 = vmatpush1.msra.mxu0 0.0
  %3293 = vmatprep.subr.mxu0 0.0
  %3294 = vmatpush1.msra.mxu0 0.0
  %3295 = vmatprep.subr.mxu0 0.0
  %3296 = vmatpush1.msra.mxu0 0.0
  %3297 = vmatprep.subr.mxu0 0.0
  %3298 = vmatpush1.msra.mxu0 0.0
  %3299 = vmatprep.subr.mxu0 0.0
  %3300 = vmatpush1.msra.mxu0 0.0
  %3301 = vmatprep.subr.mxu0 0.0
  %3302 = vmatpush1.msra.mxu0 0.0
  %3303 = vmatprep.subr.mxu0 0.0
  %3304 = vmatpush1.msra.mxu0 0.0
  %3305 = vmatprep.subr.mxu0 0.0
  %3306 = vmatpush1.msra.mxu0 0.0
  %3307 = vmatprep.subr.mxu0 0.0
  %3308 = vmatpush1.msra.mxu0 0.0
  %3309 = vmatprep.subr.mxu0 %v3206
  %3310 = vmatpush1.msra.mxu0 %v3203
  %3311 = vmatprep.subr.mxu0 0.0
  %3312 = vmatpush2.msra.mxu0 0.0
  %3313 = vmatprep.subr.mxu0 0.0
  %3314 = vmatpush2.msra.mxu0 0.0
  %3315 = vmatprep.subr.mxu0 0.0
  %3316 = vmatpush2.msra.mxu0 0.0
  %3317 = vmatprep.subr.mxu0 0.0
  %3318 = vmatpush2.msra.mxu0 0.0
  %3319 = vmatprep.subr.mxu0 0.0
  %3320 = vmatpush2.msra.mxu0 0.0
  %3321 = vmatprep.subr.mxu0 0.0
  %3322 = vmatpush2.msra.mxu0 0.0
  %3323 = vmatprep.subr.mxu0 0.0
  %3324 = vmatpush2.msra.mxu0 0.0
  %3325 = vmatprep.subr.mxu0 0.0
  %3326 = vmatpush2.msra.mxu0 0.0
  %3327 = vmatprep.subr.mxu0 0.0
  %3328 = vmatpush2.msra.mxu0 0.0
  %3329 = vmatprep.subr.mxu0 0.0
  %3330 = vmatpush2.msra.mxu0 0.0
  %3331 = vmatprep.subr.mxu0 0.0
  %3332 = vmatpush2.msra.mxu0 0.0
  %3333 = vmatprep.subr.mxu0 0.0
  %3334 = vmatpush2.msra.mxu0 0.0
  %3335 = vmatprep.subr.mxu0 0.0
  %3336 = vmatpush2.msra.mxu0 0.0
  %3337 = vmatprep.subr.mxu0 0.0
  %3338 = vmatpush2.msra.mxu0 0.0
  %3339 = vmatprep.subr.mxu0 0.0
  %3340 = vmatpush2.msra.mxu0 0.0
  %3341 = vmatprep.subr.mxu0 0.0
  %3342 = vmatpush2.msra.mxu0 0.0
  %3343 = vmatprep.mubr.f32.mxu0 0.0
  %3344 = vmatmul.mubr.f32.gmra.mxu0 %v3194
  %v3345 = vpop.f32.mrf.mxu0
  %v3346 = vadd.f32 0.0, %v3345
  %v3347 = vpop.f32.mrf.mxu0
  %v3348 = vadd.f32 0.0, %v3347
  %3349 = vdwg.mxu0
  %v3350 = vadd.f32 %v3148, %v3275
  %v3351 = vadd.f32 %v3149, %v3277
  %v3352 = vadd.f32 %v3150, %v3346
  %v3353 = vadd.f32 %v3151, %v3348
  %3354 = vrot.lane.b32.xlu0 %v2546, 30
  %v3355 = vpop.permute.xlu0 %3354
  %3356 = vrot.lane.b32.xlu0 %v2547, 30
  %v3357 = vpop.permute.xlu0 %3356
  %3358 = vrot.lane.b32.xlu0 %v2548, 30
  %v3359 = vpop.permute.xlu0 %3358
  %3360 = vrot.lane.b32.xlu0 %v2549, 30
  %v3361 = vpop.permute.xlu0 %3360
  %vm3362 = vcmp.lt.s32.totalorder %v345, 30
  %v3363 = vsel %vm3362, %v3359, %v3361
  %v3364 = vsel %vm3362, %v3357, %v3359
  %v3365 = vsel %vm3362, %v3355, %v3357
  %v3366 = vsel %vm3362, %v3361, %v3355
  %vm3367 = vcmp.lt.s32.totalorder %v53, 14
  %vm3368 = vmand %vm2567, %vm3367
  %v3369 = vsel %vm3368, 1, 0
  %v3370 = vlaneseq
  %v3371 = vshrl.u32 %v3370, 7
  %v3372 = vsub.s32 0, %v3371
  %v3373 = vrot.slane %v3369, %v3372
  %v3374 = vlaneseq
  %v3375 = vshrl.u32 %v3374, 7
  %v3376 = vsub.s32 1, %v3375
  %v3377 = vrot.slane %v3369, %v3376
  %v3378 = vlaneseq
  %v3379 = vshrl.u32 %v3378, 7
  %v3380 = vsub.s32 2, %v3379
  %v3381 = vrot.slane %v3369, %v3380
  %v3382 = vlaneseq
  %v3383 = vshrl.u32 %v3382, 7
  %v3384 = vsub.s32 3, %v3383
  %v3385 = vrot.slane %v3369, %v3384
  %vm3386 = vcmp.eq.s32.totalorder %v3373, 1
  %vm3387 = vcmp.eq.s32.totalorder %v3377, 1
  %vm3388 = vcmp.eq.s32.totalorder %v3381, 1
  %vm3389 = vcmp.eq.s32.totalorder %v3385, 1
  %v3390 = vsel %vm3386, %v3366, 0.0
  %v3391 = vsel %vm3387, %v3365, 0.0
  %v3392 = vsel %vm3388, %v3364, 0.0
  %v3393 = vsel %vm3389, %v3363, 0.0
  %s3394 = scalar_lea.vmem %s9, 32
  %v3395 = vld [vmem:[%s3394] sm:$0xff]
  %v3397 = vsel %vm60, %v3395, 0
  %v3400 = vsel %vm67, %v3390, 0
  %v3403 = vsel %vm67, %v3391, 0
  %v3406 = vsel %vm67, %v3392, 0
  %v3409 = vsel %vm67, %v3393, 0
  %3411 = vmatprep.subr.mxu0 0.0
  %3412 = vmatpush1.msra.mxu0 0.0
  %3413 = vmatprep.subr.mxu0 0.0
  %3414 = vmatpush1.msra.mxu0 0.0
  %3415 = vmatprep.subr.mxu0 0.0
  %3416 = vmatpush1.msra.mxu0 0.0
  %3417 = vmatprep.subr.mxu0 0.0
  %3418 = vmatpush1.msra.mxu0 0.0
  %3419 = vmatprep.subr.mxu0 0.0
  %3420 = vmatpush1.msra.mxu0 0.0
  %3421 = vmatprep.subr.mxu0 0.0
  %3422 = vmatpush1.msra.mxu0 0.0
  %3423 = vmatprep.subr.mxu0 0.0
  %3424 = vmatpush1.msra.mxu0 0.0
  %3425 = vmatprep.subr.mxu0 0.0
  %3426 = vmatpush1.msra.mxu0 0.0
  %3427 = vmatprep.subr.mxu0 0.0
  %3428 = vmatpush1.msra.mxu0 0.0
  %3429 = vmatprep.subr.mxu0 0.0
  %3430 = vmatpush1.msra.mxu0 0.0
  %3431 = vmatprep.subr.mxu0 0.0
  %3432 = vmatpush1.msra.mxu0 0.0
  %3433 = vmatprep.subr.mxu0 0.0
  %3434 = vmatpush1.msra.mxu0 0.0
  %3435 = vmatprep.subr.mxu0 0.0
  %3436 = vmatpush1.msra.mxu0 0.0
  %3437 = vmatprep.subr.mxu0 0.0
  %3438 = vmatpush1.msra.mxu0 0.0
  %3439 = vmatprep.subr.mxu0 0.0
  %3440 = vmatpush1.msra.mxu0 0.0
  %3441 = vmatprep.subr.mxu0 %v3403
  %3442 = vmatpush1.msra.mxu0 %v3400
  %3443 = vmatprep.subr.mxu0 0.0
  %3444 = vmatpush2.msra.mxu0 0.0
  %3445 = vmatprep.subr.mxu0 0.0
  %3446 = vmatpush2.msra.mxu0 0.0
  %3447 = vmatprep.subr.mxu0 0.0
  %3448 = vmatpush2.msra.mxu0 0.0
  %3449 = vmatprep.subr.mxu0 0.0
  %3450 = vmatpush2.msra.mxu0 0.0
  %3451 = vmatprep.subr.mxu0 0.0
  %3452 = vmatpush2.msra.mxu0 0.0
  %3453 = vmatprep.subr.mxu0 0.0
  %3454 = vmatpush2.msra.mxu0 0.0
  %3455 = vmatprep.subr.mxu0 0.0
  %3456 = vmatpush2.msra.mxu0 0.0
  %3457 = vmatprep.subr.mxu0 0.0
  %3458 = vmatpush2.msra.mxu0 0.0
  %3459 = vmatprep.subr.mxu0 0.0
  %3460 = vmatpush2.msra.mxu0 0.0
  %3461 = vmatprep.subr.mxu0 0.0
  %3462 = vmatpush2.msra.mxu0 0.0
  %3463 = vmatprep.subr.mxu0 0.0
  %3464 = vmatpush2.msra.mxu0 0.0
  %3465 = vmatprep.subr.mxu0 0.0
  %3466 = vmatpush2.msra.mxu0 0.0
  %3467 = vmatprep.subr.mxu0 0.0
  %3468 = vmatpush2.msra.mxu0 0.0
  %3469 = vmatprep.subr.mxu0 0.0
  %3470 = vmatpush2.msra.mxu0 0.0
  %3471 = vmatprep.subr.mxu0 0.0
  %3472 = vmatpush2.msra.mxu0 0.0
  %3473 = vmatprep.subr.mxu0 0.0
  %3474 = vmatpush2.msra.mxu0 0.0
  %3475 = vmatprep.mubr.f32.mxu0 0.0
  %3476 = vmatmul.mubr.f32.gmra.mxu0 %v3397
  %v3477 = vpop.f32.mrf.mxu0
  %v3478 = vadd.f32 0.0, %v3477
  %v3479 = vpop.f32.mrf.mxu0
  %v3480 = vadd.f32 0.0, %v3479
  %3481 = vdwg.mxu0
  %3482 = vmatprep.subr.mxu0 0.0
  %3483 = vmatpush1.msra.mxu0 0.0
  %3484 = vmatprep.subr.mxu0 0.0
  %3485 = vmatpush1.msra.mxu0 0.0
  %3486 = vmatprep.subr.mxu0 0.0
  %3487 = vmatpush1.msra.mxu0 0.0
  %3488 = vmatprep.subr.mxu0 0.0
  %3489 = vmatpush1.msra.mxu0 0.0
  %3490 = vmatprep.subr.mxu0 0.0
  %3491 = vmatpush1.msra.mxu0 0.0
  %3492 = vmatprep.subr.mxu0 0.0
  %3493 = vmatpush1.msra.mxu0 0.0
  %3494 = vmatprep.subr.mxu0 0.0
  %3495 = vmatpush1.msra.mxu0 0.0
  %3496 = vmatprep.subr.mxu0 0.0
  %3497 = vmatpush1.msra.mxu0 0.0
  %3498 = vmatprep.subr.mxu0 0.0
  %3499 = vmatpush1.msra.mxu0 0.0
  %3500 = vmatprep.subr.mxu0 0.0
  %3501 = vmatpush1.msra.mxu0 0.0
  %3502 = vmatprep.subr.mxu0 0.0
  %3503 = vmatpush1.msra.mxu0 0.0
  %3504 = vmatprep.subr.mxu0 0.0
  %3505 = vmatpush1.msra.mxu0 0.0
  %3506 = vmatprep.subr.mxu0 0.0
  %3507 = vmatpush1.msra.mxu0 0.0
  %3508 = vmatprep.subr.mxu0 0.0
  %3509 = vmatpush1.msra.mxu0 0.0
  %3510 = vmatprep.subr.mxu0 0.0
  %3511 = vmatpush1.msra.mxu0 0.0
  %3512 = vmatprep.subr.mxu0 %v3409
  %3513 = vmatpush1.msra.mxu0 %v3406
  %3514 = vmatprep.subr.mxu0 0.0
  %3515 = vmatpush2.msra.mxu0 0.0
  %3516 = vmatprep.subr.mxu0 0.0
  %3517 = vmatpush2.msra.mxu0 0.0
  %3518 = vmatprep.subr.mxu0 0.0
  %3519 = vmatpush2.msra.mxu0 0.0
  %3520 = vmatprep.subr.mxu0 0.0
  %3521 = vmatpush2.msra.mxu0 0.0
  %3522 = vmatprep.subr.mxu0 0.0
  %3523 = vmatpush2.msra.mxu0 0.0
  %3524 = vmatprep.subr.mxu0 0.0
  %3525 = vmatpush2.msra.mxu0 0.0
  %3526 = vmatprep.subr.mxu0 0.0
  %3527 = vmatpush2.msra.mxu0 0.0
  %3528 = vmatprep.subr.mxu0 0.0
  %3529 = vmatpush2.msra.mxu0 0.0
  %3530 = vmatprep.subr.mxu0 0.0
  %3531 = vmatpush2.msra.mxu0 0.0
  %3532 = vmatprep.subr.mxu0 0.0
  %3533 = vmatpush2.msra.mxu0 0.0
  %3534 = vmatprep.subr.mxu0 0.0
  %3535 = vmatpush2.msra.mxu0 0.0
  %3536 = vmatprep.subr.mxu0 0.0
  %3537 = vmatpush2.msra.mxu0 0.0
  %3538 = vmatprep.subr.mxu0 0.0
  %3539 = vmatpush2.msra.mxu0 0.0
  %3540 = vmatprep.subr.mxu0 0.0
  %3541 = vmatpush2.msra.mxu0 0.0
  %3542 = vmatprep.subr.mxu0 0.0
  %3543 = vmatpush2.msra.mxu0 0.0
  %3544 = vmatprep.subr.mxu0 0.0
  %3545 = vmatpush2.msra.mxu0 0.0
  %3546 = vmatprep.mubr.f32.mxu0 0.0
  %3547 = vmatmul.mubr.f32.gmra.mxu0 %v3397
  %v3548 = vpop.f32.mrf.mxu0
  %v3549 = vadd.f32 0.0, %v3548
  %v3550 = vpop.f32.mrf.mxu0
  %v3551 = vadd.f32 0.0, %v3550
  %3552 = vdwg.mxu0
  %v3553 = vadd.f32 %v3350, %v3478
  %v3554 = vadd.f32 %v3351, %v3480
  %v3555 = vadd.f32 %v3352, %v3549
  %v3556 = vadd.f32 %v3353, %v3551
  %3557 = vrot.lane.b32.xlu0 %v2546, 18
  %v3558 = vpop.permute.xlu0 %3557
  %3559 = vrot.lane.b32.xlu0 %v2547, 18
  %v3560 = vpop.permute.xlu0 %3559
  %3561 = vrot.lane.b32.xlu0 %v2548, 18
  %v3562 = vpop.permute.xlu0 %3561
  %3563 = vrot.lane.b32.xlu0 %v2549, 18
  %v3564 = vpop.permute.xlu0 %3563
  %vm3565 = vcmp.lt.s32.totalorder %v345, 18
  %v3566 = vsel %vm3565, %v3562, %v3564
  %v3567 = vsel %vm3565, %v3560, %v3562
  %v3568 = vsel %vm3565, %v3558, %v3560
  %v3569 = vsel %vm3565, %v3564, %v3558
  %vm3570 = vmand %vm351, %vm2568
  %v3571 = vsel %vm3570, 1, 0
  %v3572 = vlaneseq
  %v3573 = vshrl.u32 %v3572, 7
  %v3574 = vsub.s32 0, %v3573
  %v3575 = vrot.slane %v3571, %v3574
  %v3576 = vlaneseq
  %v3577 = vshrl.u32 %v3576, 7
  %v3578 = vsub.s32 1, %v3577
  %v3579 = vrot.slane %v3571, %v3578
  %v3580 = vlaneseq
  %v3581 = vshrl.u32 %v3580, 7
  %v3582 = vsub.s32 2, %v3581
  %v3583 = vrot.slane %v3571, %v3582
  %v3584 = vlaneseq
  %v3585 = vshrl.u32 %v3584, 7
  %v3586 = vsub.s32 3, %v3585
  %v3587 = vrot.slane %v3571, %v3586
  %vm3588 = vcmp.eq.s32.totalorder %v3575, 1
  %vm3589 = vcmp.eq.s32.totalorder %v3579, 1
  %vm3590 = vcmp.eq.s32.totalorder %v3583, 1
  %vm3591 = vcmp.eq.s32.totalorder %v3587, 1
  %v3592 = vsel %vm3588, %v3569, 0.0
  %v3593 = vsel %vm3589, %v3568, 0.0
  %v3594 = vsel %vm3590, %v3567, 0.0
  %v3595 = vsel %vm3591, %v3566, 0.0
  %s3596 = scalar_lea.vmem %s9, 40
  %v3597 = vld [vmem:[%s3596] sm:$0xff]
  %v3599 = vsel %vm60, %v3597, 0
  %v3602 = vsel %vm67, %v3592, 0
  %v3605 = vsel %vm67, %v3593, 0
  %v3608 = vsel %vm67, %v3594, 0
  %v3611 = vsel %vm67, %v3595, 0
  %3613 = vmatprep.subr.mxu0 0.0
  %3614 = vmatpush1.msra.mxu0 0.0
  %3615 = vmatprep.subr.mxu0 0.0
  %3616 = vmatpush1.msra.mxu0 0.0
  %3617 = vmatprep.subr.mxu0 0.0
  %3618 = vmatpush1.msra.mxu0 0.0
  %3619 = vmatprep.subr.mxu0 0.0
  %3620 = vmatpush1.msra.mxu0 0.0
  %3621 = vmatprep.subr.mxu0 0.0
  %3622 = vmatpush1.msra.mxu0 0.0
  %3623 = vmatprep.subr.mxu0 0.0
  %3624 = vmatpush1.msra.mxu0 0.0
  %3625 = vmatprep.subr.mxu0 0.0
  %3626 = vmatpush1.msra.mxu0 0.0
  %3627 = vmatprep.subr.mxu0 0.0
  %3628 = vmatpush1.msra.mxu0 0.0
  %3629 = vmatprep.subr.mxu0 0.0
  %3630 = vmatpush1.msra.mxu0 0.0
  %3631 = vmatprep.subr.mxu0 0.0
  %3632 = vmatpush1.msra.mxu0 0.0
  %3633 = vmatprep.subr.mxu0 0.0
  %3634 = vmatpush1.msra.mxu0 0.0
  %3635 = vmatprep.subr.mxu0 0.0
  %3636 = vmatpush1.msra.mxu0 0.0
  %3637 = vmatprep.subr.mxu0 0.0
  %3638 = vmatpush1.msra.mxu0 0.0
  %3639 = vmatprep.subr.mxu0 0.0
  %3640 = vmatpush1.msra.mxu0 0.0
  %3641 = vmatprep.subr.mxu0 0.0
  %3642 = vmatpush1.msra.mxu0 0.0
  %3643 = vmatprep.subr.mxu0 %v3605
  %3644 = vmatpush1.msra.mxu0 %v3602
  %3645 = vmatprep.subr.mxu0 0.0
  %3646 = vmatpush2.msra.mxu0 0.0
  %3647 = vmatprep.subr.mxu0 0.0
  %3648 = vmatpush2.msra.mxu0 0.0
  %3649 = vmatprep.subr.mxu0 0.0
  %3650 = vmatpush2.msra.mxu0 0.0
  %3651 = vmatprep.subr.mxu0 0.0
  %3652 = vmatpush2.msra.mxu0 0.0
  %3653 = vmatprep.subr.mxu0 0.0
  %3654 = vmatpush2.msra.mxu0 0.0
  %3655 = vmatprep.subr.mxu0 0.0
  %3656 = vmatpush2.msra.mxu0 0.0
  %3657 = vmatprep.subr.mxu0 0.0
  %3658 = vmatpush2.msra.mxu0 0.0
  %3659 = vmatprep.subr.mxu0 0.0
  %3660 = vmatpush2.msra.mxu0 0.0
  %3661 = vmatprep.subr.mxu0 0.0
  %3662 = vmatpush2.msra.mxu0 0.0
  %3663 = vmatprep.subr.mxu0 0.0
  %3664 = vmatpush2.msra.mxu0 0.0
  %3665 = vmatprep.subr.mxu0 0.0
  %3666 = vmatpush2.msra.mxu0 0.0
  %3667 = vmatprep.subr.mxu0 0.0
  %3668 = vmatpush2.msra.mxu0 0.0
  %3669 = vmatprep.subr.mxu0 0.0
  %3670 = vmatpush2.msra.mxu0 0.0
  %3671 = vmatprep.subr.mxu0 0.0
  %3672 = vmatpush2.msra.mxu0 0.0
  %3673 = vmatprep.subr.mxu0 0.0
  %3674 = vmatpush2.msra.mxu0 0.0
  %3675 = vmatprep.subr.mxu0 0.0
  %3676 = vmatpush2.msra.mxu0 0.0
  %3677 = vmatprep.mubr.f32.mxu0 0.0
  %3678 = vmatmul.mubr.f32.gmra.mxu0 %v3599
  %v3679 = vpop.f32.mrf.mxu0
  %v3680 = vadd.f32 0.0, %v3679
  %v3681 = vpop.f32.mrf.mxu0
  %v3682 = vadd.f32 0.0, %v3681
  %3683 = vdwg.mxu0
  %3684 = vmatprep.subr.mxu0 0.0
  %3685 = vmatpush1.msra.mxu0 0.0
  %3686 = vmatprep.subr.mxu0 0.0
  %3687 = vmatpush1.msra.mxu0 0.0
  %3688 = vmatprep.subr.mxu0 0.0
  %3689 = vmatpush1.msra.mxu0 0.0
  %3690 = vmatprep.subr.mxu0 0.0
  %3691 = vmatpush1.msra.mxu0 0.0
  %3692 = vmatprep.subr.mxu0 0.0
  %3693 = vmatpush1.msra.mxu0 0.0
  %3694 = vmatprep.subr.mxu0 0.0
  %3695 = vmatpush1.msra.mxu0 0.0
  %3696 = vmatprep.subr.mxu0 0.0
  %3697 = vmatpush1.msra.mxu0 0.0
  %3698 = vmatprep.subr.mxu0 0.0
  %3699 = vmatpush1.msra.mxu0 0.0
  %3700 = vmatprep.subr.mxu0 0.0
  %3701 = vmatpush1.msra.mxu0 0.0
  %3702 = vmatprep.subr.mxu0 0.0
  %3703 = vmatpush1.msra.mxu0 0.0
  %3704 = vmatprep.subr.mxu0 0.0
  %3705 = vmatpush1.msra.mxu0 0.0
  %3706 = vmatprep.subr.mxu0 0.0
  %3707 = vmatpush1.msra.mxu0 0.0
  %3708 = vmatprep.subr.mxu0 0.0
  %3709 = vmatpush1.msra.mxu0 0.0
  %3710 = vmatprep.subr.mxu0 0.0
  %3711 = vmatpush1.msra.mxu0 0.0
  %3712 = vmatprep.subr.mxu0 0.0
  %3713 = vmatpush1.msra.mxu0 0.0
  %3714 = vmatprep.subr.mxu0 %v3611
  %3715 = vmatpush1.msra.mxu0 %v3608
  %3716 = vmatprep.subr.mxu0 0.0
  %3717 = vmatpush2.msra.mxu0 0.0
  %3718 = vmatprep.subr.mxu0 0.0
  %3719 = vmatpush2.msra.mxu0 0.0
  %3720 = vmatprep.subr.mxu0 0.0
  %3721 = vmatpush2.msra.mxu0 0.0
  %3722 = vmatprep.subr.mxu0 0.0
  %3723 = vmatpush2.msra.mxu0 0.0
  %3724 = vmatprep.subr.mxu0 0.0
  %3725 = vmatpush2.msra.mxu0 0.0
  %3726 = vmatprep.subr.mxu0 0.0
  %3727 = vmatpush2.msra.mxu0 0.0
  %3728 = vmatprep.subr.mxu0 0.0
  %3729 = vmatpush2.msra.mxu0 0.0
  %3730 = vmatprep.subr.mxu0 0.0
  %3731 = vmatpush2.msra.mxu0 0.0
  %3732 = vmatprep.subr.mxu0 0.0
  %3733 = vmatpush2.msra.mxu0 0.0
  %3734 = vmatprep.subr.mxu0 0.0
  %3735 = vmatpush2.msra.mxu0 0.0
  %3736 = vmatprep.subr.mxu0 0.0
  %3737 = vmatpush2.msra.mxu0 0.0
  %3738 = vmatprep.subr.mxu0 0.0
  %3739 = vmatpush2.msra.mxu0 0.0
  %3740 = vmatprep.subr.mxu0 0.0
  %3741 = vmatpush2.msra.mxu0 0.0
  %3742 = vmatprep.subr.mxu0 0.0
  %3743 = vmatpush2.msra.mxu0 0.0
  %3744 = vmatprep.subr.mxu0 0.0
  %3745 = vmatpush2.msra.mxu0 0.0
  %3746 = vmatprep.subr.mxu0 0.0
  %3747 = vmatpush2.msra.mxu0 0.0
  %3748 = vmatprep.mubr.f32.mxu0 0.0
  %3749 = vmatmul.mubr.f32.gmra.mxu0 %v3599
  %v3750 = vpop.f32.mrf.mxu0
  %v3751 = vadd.f32 0.0, %v3750
  %v3752 = vpop.f32.mrf.mxu0
  %v3753 = vadd.f32 0.0, %v3752
  %3754 = vdwg.mxu0
  %v3755 = vadd.f32 %v3553, %v3680
  %v3756 = vadd.f32 %v3554, %v3682
  %v3757 = vadd.f32 %v3555, %v3751
  %v3758 = vadd.f32 %v3556, %v3753
  %3759 = vrot.lane.b32.xlu0 %v2546, 17
  %v3760 = vpop.permute.xlu0 %3759
  %3761 = vrot.lane.b32.xlu0 %v2547, 17
  %v3762 = vpop.permute.xlu0 %3761
  %3763 = vrot.lane.b32.xlu0 %v2548, 17
  %v3764 = vpop.permute.xlu0 %3763
  %3765 = vrot.lane.b32.xlu0 %v2549, 17
  %v3766 = vpop.permute.xlu0 %3765
  %v3767 = vsel %vm346, %v3764, %v3766
  %v3768 = vsel %vm346, %v3762, %v3764
  %v3769 = vsel %vm346, %v3760, %v3762
  %v3770 = vsel %vm346, %v3766, %v3760
  %v3771 = vsel %vm381, %v3770, 0.0
  %v3772 = vsel %vm382, %v3769, 0.0
  %v3773 = vsel %vm383, %v3768, 0.0
  %v3774 = vsel %vm384, %v3767, 0.0
  %s3775 = scalar_lea.vmem %s9, 48
  %v3776 = vld [vmem:[%s3775] sm:$0xff]
  %v3778 = vsel %vm60, %v3776, 0
  %v3781 = vsel %vm67, %v3771, 0
  %v3784 = vsel %vm67, %v3772, 0
  %v3787 = vsel %vm67, %v3773, 0
  %v3790 = vsel %vm67, %v3774, 0
  %3792 = vmatprep.subr.mxu0 0.0
  %3793 = vmatpush1.msra.mxu0 0.0
  %3794 = vmatprep.subr.mxu0 0.0
  %3795 = vmatpush1.msra.mxu0 0.0
  %3796 = vmatprep.subr.mxu0 0.0
  %3797 = vmatpush1.msra.mxu0 0.0
  %3798 = vmatprep.subr.mxu0 0.0
  %3799 = vmatpush1.msra.mxu0 0.0
  %3800 = vmatprep.subr.mxu0 0.0
  %3801 = vmatpush1.msra.mxu0 0.0
  %3802 = vmatprep.subr.mxu0 0.0
  %3803 = vmatpush1.msra.mxu0 0.0
  %3804 = vmatprep.subr.mxu0 0.0
  %3805 = vmatpush1.msra.mxu0 0.0
  %3806 = vmatprep.subr.mxu0 0.0
  %3807 = vmatpush1.msra.mxu0 0.0
  %3808 = vmatprep.subr.mxu0 0.0
  %3809 = vmatpush1.msra.mxu0 0.0
  %3810 = vmatprep.subr.mxu0 0.0
  %3811 = vmatpush1.msra.mxu0 0.0
  %3812 = vmatprep.subr.mxu0 0.0
  %3813 = vmatpush1.msra.mxu0 0.0
  %3814 = vmatprep.subr.mxu0 0.0
  %3815 = vmatpush1.msra.mxu0 0.0
  %3816 = vmatprep.subr.mxu0 0.0
  %3817 = vmatpush1.msra.mxu0 0.0
  %3818 = vmatprep.subr.mxu0 0.0
  %3819 = vmatpush1.msra.mxu0 0.0
  %3820 = vmatprep.subr.mxu0 0.0
  %3821 = vmatpush1.msra.mxu0 0.0
  %3822 = vmatprep.subr.mxu0 %v3784
  %3823 = vmatpush1.msra.mxu0 %v3781
  %3824 = vmatprep.subr.mxu0 0.0
  %3825 = vmatpush2.msra.mxu0 0.0
  %3826 = vmatprep.subr.mxu0 0.0
  %3827 = vmatpush2.msra.mxu0 0.0
  %3828 = vmatprep.subr.mxu0 0.0
  %3829 = vmatpush2.msra.mxu0 0.0
  %3830 = vmatprep.subr.mxu0 0.0
  %3831 = vmatpush2.msra.mxu0 0.0
  %3832 = vmatprep.subr.mxu0 0.0
  %3833 = vmatpush2.msra.mxu0 0.0
  %3834 = vmatprep.subr.mxu0 0.0
  %3835 = vmatpush2.msra.mxu0 0.0
  %3836 = vmatprep.subr.mxu0 0.0
  %3837 = vmatpush2.msra.mxu0 0.0
  %3838 = vmatprep.subr.mxu0 0.0
  %3839 = vmatpush2.msra.mxu0 0.0
  %3840 = vmatprep.subr.mxu0 0.0
  %3841 = vmatpush2.msra.mxu0 0.0
  %3842 = vmatprep.subr.mxu0 0.0
  %3843 = vmatpush2.msra.mxu0 0.0
  %3844 = vmatprep.subr.mxu0 0.0
  %3845 = vmatpush2.msra.mxu0 0.0
  %3846 = vmatprep.subr.mxu0 0.0
  %3847 = vmatpush2.msra.mxu0 0.0
  %3848 = vmatprep.subr.mxu0 0.0
  %3849 = vmatpush2.msra.mxu0 0.0
  %3850 = vmatprep.subr.mxu0 0.0
  %3851 = vmatpush2.msra.mxu0 0.0
  %3852 = vmatprep.subr.mxu0 0.0
  %3853 = vmatpush2.msra.mxu0 0.0
  %3854 = vmatprep.subr.mxu0 0.0
  %3855 = vmatpush2.msra.mxu0 0.0
  %3856 = vmatprep.mubr.f32.mxu0 0.0
  %3857 = vmatmul.mubr.f32.gmra.mxu0 %v3778
  %v3858 = vpop.f32.mrf.mxu0
  %v3859 = vadd.f32 0.0, %v3858
  %v3860 = vpop.f32.mrf.mxu0
  %v3861 = vadd.f32 0.0, %v3860
  %3862 = vdwg.mxu0
  %3863 = vmatprep.subr.mxu0 0.0
  %3864 = vmatpush1.msra.mxu0 0.0
  %3865 = vmatprep.subr.mxu0 0.0
  %3866 = vmatpush1.msra.mxu0 0.0
  %3867 = vmatprep.subr.mxu0 0.0
  %3868 = vmatpush1.msra.mxu0 0.0
  %3869 = vmatprep.subr.mxu0 0.0
  %3870 = vmatpush1.msra.mxu0 0.0
  %3871 = vmatprep.subr.mxu0 0.0
  %3872 = vmatpush1.msra.mxu0 0.0
  %3873 = vmatprep.subr.mxu0 0.0
  %3874 = vmatpush1.msra.mxu0 0.0
  %3875 = vmatprep.subr.mxu0 0.0
  %3876 = vmatpush1.msra.mxu0 0.0
  %3877 = vmatprep.subr.mxu0 0.0
  %3878 = vmatpush1.msra.mxu0 0.0
  %3879 = vmatprep.subr.mxu0 0.0
  %3880 = vmatpush1.msra.mxu0 0.0
  %3881 = vmatprep.subr.mxu0 0.0
  %3882 = vmatpush1.msra.mxu0 0.0
  %3883 = vmatprep.subr.mxu0 0.0
  %3884 = vmatpush1.msra.mxu0 0.0
  %3885 = vmatprep.subr.mxu0 0.0
  %3886 = vmatpush1.msra.mxu0 0.0
  %3887 = vmatprep.subr.mxu0 0.0
  %3888 = vmatpush1.msra.mxu0 0.0
  %3889 = vmatprep.subr.mxu0 0.0
  %3890 = vmatpush1.msra.mxu0 0.0
  %3891 = vmatprep.subr.mxu0 0.0
  %3892 = vmatpush1.msra.mxu0 0.0
  %3893 = vmatprep.subr.mxu0 %v3790
  %3894 = vmatpush1.msra.mxu0 %v3787
  %3895 = vmatprep.subr.mxu0 0.0
  %3896 = vmatpush2.msra.mxu0 0.0
  %3897 = vmatprep.subr.mxu0 0.0
  %3898 = vmatpush2.msra.mxu0 0.0
  %3899 = vmatprep.subr.mxu0 0.0
  %3900 = vmatpush2.msra.mxu0 0.0
  %3901 = vmatprep.subr.mxu0 0.0
  %3902 = vmatpush2.msra.mxu0 0.0
  %3903 = vmatprep.subr.mxu0 0.0
  %3904 = vmatpush2.msra.mxu0 0.0
  %3905 = vmatprep.subr.mxu0 0.0
  %3906 = vmatpush2.msra.mxu0 0.0
  %3907 = vmatprep.subr.mxu0 0.0
  %3908 = vmatpush2.msra.mxu0 0.0
  %3909 = vmatprep.subr.mxu0 0.0
  %3910 = vmatpush2.msra.mxu0 0.0
  %3911 = vmatprep.subr.mxu0 0.0
  %3912 = vmatpush2.msra.mxu0 0.0
  %3913 = vmatprep.subr.mxu0 0.0
  %3914 = vmatpush2.msra.mxu0 0.0
  %3915 = vmatprep.subr.mxu0 0.0
  %3916 = vmatpush2.msra.mxu0 0.0
  %3917 = vmatprep.subr.mxu0 0.0
  %3918 = vmatpush2.msra.mxu0 0.0
  %3919 = vmatprep.subr.mxu0 0.0
  %3920 = vmatpush2.msra.mxu0 0.0
  %3921 = vmatprep.subr.mxu0 0.0
  %3922 = vmatpush2.msra.mxu0 0.0
  %3923 = vmatprep.subr.mxu0 0.0
  %3924 = vmatpush2.msra.mxu0 0.0
  %3925 = vmatprep.subr.mxu0 0.0
  %3926 = vmatpush2.msra.mxu0 0.0
  %3927 = vmatprep.mubr.f32.mxu0 0.0
  %3928 = vmatmul.mubr.f32.gmra.mxu0 %v3778
  %v3929 = vpop.f32.mrf.mxu0
  %v3930 = vadd.f32 0.0, %v3929
  %v3931 = vpop.f32.mrf.mxu0
  %v3932 = vadd.f32 0.0, %v3931
  %3933 = vdwg.mxu0
  %v3934 = vadd.f32 %v3755, %v3859
  %v3935 = vadd.f32 %v3756, %v3861
  %v3936 = vadd.f32 %v3757, %v3930
  %v3937 = vadd.f32 %v3758, %v3932
  %3938 = vrot.lane.b32.xlu0 %v2546, 16
  %v3939 = vpop.permute.xlu0 %3938
  %3940 = vrot.lane.b32.xlu0 %v2547, 16
  %v3941 = vpop.permute.xlu0 %3940
  %3942 = vrot.lane.b32.xlu0 %v2548, 16
  %v3943 = vpop.permute.xlu0 %3942
  %3944 = vrot.lane.b32.xlu0 %v2549, 16
  %v3945 = vpop.permute.xlu0 %3944
  %v3946 = vsel %vm403, %v3943, %v3945
  %v3947 = vsel %vm403, %v3941, %v3943
  %v3948 = vsel %vm403, %v3939, %v3941
  %v3949 = vsel %vm403, %v3945, %v3939
  %v3950 = vsel %vm429, %v3949, 0.0
  %v3951 = vsel %vm430, %v3948, 0.0
  %v3952 = vsel %vm431, %v3947, 0.0
  %v3953 = vsel %vm432, %v3946, 0.0
  %s3954 = scalar_lea.vmem %s9, 56
  %v3955 = vld [vmem:[%s3954] sm:$0xff]
  %v3957 = vsel %vm60, %v3955, 0
  %v3960 = vsel %vm67, %v3950, 0
  %v3963 = vsel %vm67, %v3951, 0
  %v3966 = vsel %vm67, %v3952, 0
  %v3969 = vsel %vm67, %v3953, 0
  %3971 = vmatprep.subr.mxu0 0.0
  %3972 = vmatpush1.msra.mxu0 0.0
  %3973 = vmatprep.subr.mxu0 0.0
  %3974 = vmatpush1.msra.mxu0 0.0
  %3975 = vmatprep.subr.mxu0 0.0
  %3976 = vmatpush1.msra.mxu0 0.0
  %3977 = vmatprep.subr.mxu0 0.0
  %3978 = vmatpush1.msra.mxu0 0.0
  %3979 = vmatprep.subr.mxu0 0.0
  %3980 = vmatpush1.msra.mxu0 0.0
  %3981 = vmatprep.subr.mxu0 0.0
  %3982 = vmatpush1.msra.mxu0 0.0
  %3983 = vmatprep.subr.mxu0 0.0
  %3984 = vmatpush1.msra.mxu0 0.0
  %3985 = vmatprep.subr.mxu0 0.0
  %3986 = vmatpush1.msra.mxu0 0.0
  %3987 = vmatprep.subr.mxu0 0.0
  %3988 = vmatpush1.msra.mxu0 0.0
  %3989 = vmatprep.subr.mxu0 0.0
  %3990 = vmatpush1.msra.mxu0 0.0
  %3991 = vmatprep.subr.mxu0 0.0
  %3992 = vmatpush1.msra.mxu0 0.0
  %3993 = vmatprep.subr.mxu0 0.0
  %3994 = vmatpush1.msra.mxu0 0.0
  %3995 = vmatprep.subr.mxu0 0.0
  %3996 = vmatpush1.msra.mxu0 0.0
  %3997 = vmatprep.subr.mxu0 0.0
  %3998 = vmatpush1.msra.mxu0 0.0
  %3999 = vmatprep.subr.mxu0 0.0
  %4000 = vmatpush1.msra.mxu0 0.0
  %4001 = vmatprep.subr.mxu0 %v3963
  %4002 = vmatpush1.msra.mxu0 %v3960
  %4003 = vmatprep.subr.mxu0 0.0
  %4004 = vmatpush2.msra.mxu0 0.0
  %4005 = vmatprep.subr.mxu0 0.0
  %4006 = vmatpush2.msra.mxu0 0.0
  %4007 = vmatprep.subr.mxu0 0.0
  %4008 = vmatpush2.msra.mxu0 0.0
  %4009 = vmatprep.subr.mxu0 0.0
  %4010 = vmatpush2.msra.mxu0 0.0
  %4011 = vmatprep.subr.mxu0 0.0
  %4012 = vmatpush2.msra.mxu0 0.0
  %4013 = vmatprep.subr.mxu0 0.0
  %4014 = vmatpush2.msra.mxu0 0.0
  %4015 = vmatprep.subr.mxu0 0.0
  %4016 = vmatpush2.msra.mxu0 0.0
  %4017 = vmatprep.subr.mxu0 0.0
  %4018 = vmatpush2.msra.mxu0 0.0
  %4019 = vmatprep.subr.mxu0 0.0
  %4020 = vmatpush2.msra.mxu0 0.0
  %4021 = vmatprep.subr.mxu0 0.0
  %4022 = vmatpush2.msra.mxu0 0.0
  %4023 = vmatprep.subr.mxu0 0.0
  %4024 = vmatpush2.msra.mxu0 0.0
  %4025 = vmatprep.subr.mxu0 0.0
  %4026 = vmatpush2.msra.mxu0 0.0
  %4027 = vmatprep.subr.mxu0 0.0
  %4028 = vmatpush2.msra.mxu0 0.0
  %4029 = vmatprep.subr.mxu0 0.0
  %4030 = vmatpush2.msra.mxu0 0.0
  %4031 = vmatprep.subr.mxu0 0.0
  %4032 = vmatpush2.msra.mxu0 0.0
  %4033 = vmatprep.subr.mxu0 0.0
  %4034 = vmatpush2.msra.mxu0 0.0
  %4035 = vmatprep.mubr.f32.mxu0 0.0
  %4036 = vmatmul.mubr.f32.gmra.mxu0 %v3957
  %v4037 = vpop.f32.mrf.mxu0
  %v4038 = vadd.f32 0.0, %v4037
  %v4039 = vpop.f32.mrf.mxu0
  %v4040 = vadd.f32 0.0, %v4039
  %4041 = vdwg.mxu0
  %4042 = vmatprep.subr.mxu0 0.0
  %4043 = vmatpush1.msra.mxu0 0.0
  %4044 = vmatprep.subr.mxu0 0.0
  %4045 = vmatpush1.msra.mxu0 0.0
  %4046 = vmatprep.subr.mxu0 0.0
  %4047 = vmatpush1.msra.mxu0 0.0
  %4048 = vmatprep.subr.mxu0 0.0
  %4049 = vmatpush1.msra.mxu0 0.0
  %4050 = vmatprep.subr.mxu0 0.0
  %4051 = vmatpush1.msra.mxu0 0.0
  %4052 = vmatprep.subr.mxu0 0.0
  %4053 = vmatpush1.msra.mxu0 0.0
  %4054 = vmatprep.subr.mxu0 0.0
  %4055 = vmatpush1.msra.mxu0 0.0
  %4056 = vmatprep.subr.mxu0 0.0
  %4057 = vmatpush1.msra.mxu0 0.0
  %4058 = vmatprep.subr.mxu0 0.0
  %4059 = vmatpush1.msra.mxu0 0.0
  %4060 = vmatprep.subr.mxu0 0.0
  %4061 = vmatpush1.msra.mxu0 0.0
  %4062 = vmatprep.subr.mxu0 0.0
  %4063 = vmatpush1.msra.mxu0 0.0
  %4064 = vmatprep.subr.mxu0 0.0
  %4065 = vmatpush1.msra.mxu0 0.0
  %4066 = vmatprep.subr.mxu0 0.0
  %4067 = vmatpush1.msra.mxu0 0.0
  %4068 = vmatprep.subr.mxu0 0.0
  %4069 = vmatpush1.msra.mxu0 0.0
  %4070 = vmatprep.subr.mxu0 0.0
  %4071 = vmatpush1.msra.mxu0 0.0
  %4072 = vmatprep.subr.mxu0 %v3969
  %4073 = vmatpush1.msra.mxu0 %v3966
  %4074 = vmatprep.subr.mxu0 0.0
  %4075 = vmatpush2.msra.mxu0 0.0
  %4076 = vmatprep.subr.mxu0 0.0
  %4077 = vmatpush2.msra.mxu0 0.0
  %4078 = vmatprep.subr.mxu0 0.0
  %4079 = vmatpush2.msra.mxu0 0.0
  %4080 = vmatprep.subr.mxu0 0.0
  %4081 = vmatpush2.msra.mxu0 0.0
  %4082 = vmatprep.subr.mxu0 0.0
  %4083 = vmatpush2.msra.mxu0 0.0
  %4084 = vmatprep.subr.mxu0 0.0
  %4085 = vmatpush2.msra.mxu0 0.0
  %4086 = vmatprep.subr.mxu0 0.0
  %4087 = vmatpush2.msra.mxu0 0.0
  %4088 = vmatprep.subr.mxu0 0.0
  %4089 = vmatpush2.msra.mxu0 0.0
  %4090 = vmatprep.subr.mxu0 0.0
  %4091 = vmatpush2.msra.mxu0 0.0
  %4092 = vmatprep.subr.mxu0 0.0
  %4093 = vmatpush2.msra.mxu0 0.0
  %4094 = vmatprep.subr.mxu0 0.0
  %4095 = vmatpush2.msra.mxu0 0.0
  %4096 = vmatprep.subr.mxu0 0.0
  %4097 = vmatpush2.msra.mxu0 0.0
  %4098 = vmatprep.subr.mxu0 0.0
  %4099 = vmatpush2.msra.mxu0 0.0
  %4100 = vmatprep.subr.mxu0 0.0
  %4101 = vmatpush2.msra.mxu0 0.0
  %4102 = vmatprep.subr.mxu0 0.0
  %4103 = vmatpush2.msra.mxu0 0.0
  %4104 = vmatprep.subr.mxu0 0.0
  %4105 = vmatpush2.msra.mxu0 0.0
  %4106 = vmatprep.mubr.f32.mxu0 0.0
  %4107 = vmatmul.mubr.f32.gmra.mxu0 %v3957
  %v4108 = vpop.f32.mrf.mxu0
  %v4109 = vadd.f32 0.0, %v4108
  %v4110 = vpop.f32.mrf.mxu0
  %v4111 = vadd.f32 0.0, %v4110
  %4112 = vdwg.mxu0
  %v4113 = vadd.f32 %v3934, %v4038
  %v4114 = vadd.f32 %v3935, %v4040
  %v4115 = vadd.f32 %v3936, %v4109
  %v4116 = vadd.f32 %v3937, %v4111
  %4117 = vrot.lane.b32.xlu0 %v2546, 15
  %v4118 = vpop.permute.xlu0 %4117
  %4119 = vrot.lane.b32.xlu0 %v2547, 15
  %v4120 = vpop.permute.xlu0 %4119
  %4121 = vrot.lane.b32.xlu0 %v2548, 15
  %v4122 = vpop.permute.xlu0 %4121
  %4123 = vrot.lane.b32.xlu0 %v2549, 15
  %v4124 = vpop.permute.xlu0 %4123
  %v4125 = vsel %vm445, %v4122, %v4124
  %v4126 = vsel %vm445, %v4120, %v4122
  %v4127 = vsel %vm445, %v4118, %v4120
  %v4128 = vsel %vm445, %v4124, %v4118
  %v4129 = vsel %vm473, %v4128, 0.0
  %v4130 = vsel %vm474, %v4127, 0.0
  %v4131 = vsel %vm475, %v4126, 0.0
  %v4132 = vsel %vm476, %v4125, 0.0
  %s4133 = scalar_lea.vmem %s9, 64
  %v4134 = vld [vmem:[%s4133] sm:$0xff]
  %v4136 = vsel %vm60, %v4134, 0
  %v4139 = vsel %vm67, %v4129, 0
  %v4142 = vsel %vm67, %v4130, 0
  %v4145 = vsel %vm67, %v4131, 0
  %v4148 = vsel %vm67, %v4132, 0
  %4150 = vmatprep.subr.mxu0 0.0
  %4151 = vmatpush1.msra.mxu0 0.0
  %4152 = vmatprep.subr.mxu0 0.0
  %4153 = vmatpush1.msra.mxu0 0.0
  %4154 = vmatprep.subr.mxu0 0.0
  %4155 = vmatpush1.msra.mxu0 0.0
  %4156 = vmatprep.subr.mxu0 0.0
  %4157 = vmatpush1.msra.mxu0 0.0
  %4158 = vmatprep.subr.mxu0 0.0
  %4159 = vmatpush1.msra.mxu0 0.0
  %4160 = vmatprep.subr.mxu0 0.0
  %4161 = vmatpush1.msra.mxu0 0.0
  %4162 = vmatprep.subr.mxu0 0.0
  %4163 = vmatpush1.msra.mxu0 0.0
  %4164 = vmatprep.subr.mxu0 0.0
  %4165 = vmatpush1.msra.mxu0 0.0
  %4166 = vmatprep.subr.mxu0 0.0
  %4167 = vmatpush1.msra.mxu0 0.0
  %4168 = vmatprep.subr.mxu0 0.0
  %4169 = vmatpush1.msra.mxu0 0.0
  %4170 = vmatprep.subr.mxu0 0.0
  %4171 = vmatpush1.msra.mxu0 0.0
  %4172 = vmatprep.subr.mxu0 0.0
  %4173 = vmatpush1.msra.mxu0 0.0
  %4174 = vmatprep.subr.mxu0 0.0
  %4175 = vmatpush1.msra.mxu0 0.0
  %4176 = vmatprep.subr.mxu0 0.0
  %4177 = vmatpush1.msra.mxu0 0.0
  %4178 = vmatprep.subr.mxu0 0.0
  %4179 = vmatpush1.msra.mxu0 0.0
  %4180 = vmatprep.subr.mxu0 %v4142
  %4181 = vmatpush1.msra.mxu0 %v4139
  %4182 = vmatprep.subr.mxu0 0.0
  %4183 = vmatpush2.msra.mxu0 0.0
  %4184 = vmatprep.subr.mxu0 0.0
  %4185 = vmatpush2.msra.mxu0 0.0
  %4186 = vmatprep.subr.mxu0 0.0
  %4187 = vmatpush2.msra.mxu0 0.0
  %4188 = vmatprep.subr.mxu0 0.0
  %4189 = vmatpush2.msra.mxu0 0.0
  %4190 = vmatprep.subr.mxu0 0.0
  %4191 = vmatpush2.msra.mxu0 0.0
  %4192 = vmatprep.subr.mxu0 0.0
  %4193 = vmatpush2.msra.mxu0 0.0
  %4194 = vmatprep.subr.mxu0 0.0
  %4195 = vmatpush2.msra.mxu0 0.0
  %4196 = vmatprep.subr.mxu0 0.0
  %4197 = vmatpush2.msra.mxu0 0.0
  %4198 = vmatprep.subr.mxu0 0.0
  %4199 = vmatpush2.msra.mxu0 0.0
  %4200 = vmatprep.subr.mxu0 0.0
  %4201 = vmatpush2.msra.mxu0 0.0
  %4202 = vmatprep.subr.mxu0 0.0
  %4203 = vmatpush2.msra.mxu0 0.0
  %4204 = vmatprep.subr.mxu0 0.0
  %4205 = vmatpush2.msra.mxu0 0.0
  %4206 = vmatprep.subr.mxu0 0.0
  %4207 = vmatpush2.msra.mxu0 0.0
  %4208 = vmatprep.subr.mxu0 0.0
  %4209 = vmatpush2.msra.mxu0 0.0
  %4210 = vmatprep.subr.mxu0 0.0
  %4211 = vmatpush2.msra.mxu0 0.0
  %4212 = vmatprep.subr.mxu0 0.0
  %4213 = vmatpush2.msra.mxu0 0.0
  %4214 = vmatprep.mubr.f32.mxu0 0.0
  %4215 = vmatmul.mubr.f32.gmra.mxu0 %v4136
  %v4216 = vpop.f32.mrf.mxu0
  %v4217 = vadd.f32 0.0, %v4216
  %v4218 = vpop.f32.mrf.mxu0
  %v4219 = vadd.f32 0.0, %v4218
  %4220 = vdwg.mxu0
  %4221 = vmatprep.subr.mxu0 0.0
  %4222 = vmatpush1.msra.mxu0 0.0
  %4223 = vmatprep.subr.mxu0 0.0
  %4224 = vmatpush1.msra.mxu0 0.0
  %4225 = vmatprep.subr.mxu0 0.0
  %4226 = vmatpush1.msra.mxu0 0.0
  %4227 = vmatprep.subr.mxu0 0.0
  %4228 = vmatpush1.msra.mxu0 0.0
  %4229 = vmatprep.subr.mxu0 0.0
  %4230 = vmatpush1.msra.mxu0 0.0
  %4231 = vmatprep.subr.mxu0 0.0
  %4232 = vmatpush1.msra.mxu0 0.0
  %4233 = vmatprep.subr.mxu0 0.0
  %4234 = vmatpush1.msra.mxu0 0.0
  %4235 = vmatprep.subr.mxu0 0.0
  %4236 = vmatpush1.msra.mxu0 0.0
  %4237 = vmatprep.subr.mxu0 0.0
  %4238 = vmatpush1.msra.mxu0 0.0
  %4239 = vmatprep.subr.mxu0 0.0
  %4240 = vmatpush1.msra.mxu0 0.0
  %4241 = vmatprep.subr.mxu0 0.0
  %4242 = vmatpush1.msra.mxu0 0.0
  %4243 = vmatprep.subr.mxu0 0.0
  %4244 = vmatpush1.msra.mxu0 0.0
  %4245 = vmatprep.subr.mxu0 0.0
  %4246 = vmatpush1.msra.mxu0 0.0
  %4247 = vmatprep.subr.mxu0 0.0
  %4248 = vmatpush1.msra.mxu0 0.0
  %4249 = vmatprep.subr.mxu0 0.0
  %4250 = vmatpush1.msra.mxu0 0.0
  %4251 = vmatprep.subr.mxu0 %v4148
  %4252 = vmatpush1.msra.mxu0 %v4145
  %4253 = vmatprep.subr.mxu0 0.0
  %4254 = vmatpush2.msra.mxu0 0.0
  %4255 = vmatprep.subr.mxu0 0.0
  %4256 = vmatpush2.msra.mxu0 0.0
  %4257 = vmatprep.subr.mxu0 0.0
  %4258 = vmatpush2.msra.mxu0 0.0
  %4259 = vmatprep.subr.mxu0 0.0
  %4260 = vmatpush2.msra.mxu0 0.0
  %4261 = vmatprep.subr.mxu0 0.0
  %4262 = vmatpush2.msra.mxu0 0.0
  %4263 = vmatprep.subr.mxu0 0.0
  %4264 = vmatpush2.msra.mxu0 0.0
  %4265 = vmatprep.subr.mxu0 0.0
  %4266 = vmatpush2.msra.mxu0 0.0
  %4267 = vmatprep.subr.mxu0 0.0
  %4268 = vmatpush2.msra.mxu0 0.0
  %4269 = vmatprep.subr.mxu0 0.0
  %4270 = vmatpush2.msra.mxu0 0.0
  %4271 = vmatprep.subr.mxu0 0.0
  %4272 = vmatpush2.msra.mxu0 0.0
  %4273 = vmatprep.subr.mxu0 0.0
  %4274 = vmatpush2.msra.mxu0 0.0
  %4275 = vmatprep.subr.mxu0 0.0
  %4276 = vmatpush2.msra.mxu0 0.0
  %4277 = vmatprep.subr.mxu0 0.0
  %4278 = vmatpush2.msra.mxu0 0.0
  %4279 = vmatprep.subr.mxu0 0.0
  %4280 = vmatpush2.msra.mxu0 0.0
  %4281 = vmatprep.subr.mxu0 0.0
  %4282 = vmatpush2.msra.mxu0 0.0
  %4283 = vmatprep.subr.mxu0 0.0
  %4284 = vmatpush2.msra.mxu0 0.0
  %4285 = vmatprep.mubr.f32.mxu0 0.0
  %4286 = vmatmul.mubr.f32.gmra.mxu0 %v4136
  %v4287 = vpop.f32.mrf.mxu0
  %v4288 = vadd.f32 0.0, %v4287
  %v4289 = vpop.f32.mrf.mxu0
  %v4290 = vadd.f32 0.0, %v4289
  %4291 = vdwg.mxu0
  %v4292 = vadd.f32 %v4113, %v4217
  %v4293 = vadd.f32 %v4114, %v4219
  %v4294 = vadd.f32 %v4115, %v4288
  %v4295 = vadd.f32 %v4116, %v4290
  %4296 = vrot.lane.b32.xlu0 %v2546, 14
  %v4297 = vpop.permute.xlu0 %4296
  %4298 = vrot.lane.b32.xlu0 %v2547, 14
  %v4299 = vpop.permute.xlu0 %4298
  %4300 = vrot.lane.b32.xlu0 %v2548, 14
  %v4301 = vpop.permute.xlu0 %4300
  %4302 = vrot.lane.b32.xlu0 %v2549, 14
  %v4303 = vpop.permute.xlu0 %4302
  %vm4304 = vcmp.lt.s32.totalorder %v345, 14
  %v4305 = vsel %vm4304, %v4301, %v4303
  %v4306 = vsel %vm4304, %v4299, %v4301
  %v4307 = vsel %vm4304, %v4297, %v4299
  %v4308 = vsel %vm4304, %v4303, %v4297
  %vm4309 = vmand %vm351, %vm3367
  %v4310 = vsel %vm4309, 1, 0
  %v4311 = vlaneseq
  %v4312 = vshrl.u32 %v4311, 7
  %v4313 = vsub.s32 0, %v4312
  %v4314 = vrot.slane %v4310, %v4313
  %v4315 = vlaneseq
  %v4316 = vshrl.u32 %v4315, 7
  %v4317 = vsub.s32 1, %v4316
  %v4318 = vrot.slane %v4310, %v4317
  %v4319 = vlaneseq
  %v4320 = vshrl.u32 %v4319, 7
  %v4321 = vsub.s32 2, %v4320
  %v4322 = vrot.slane %v4310, %v4321
  %v4323 = vlaneseq
  %v4324 = vshrl.u32 %v4323, 7
  %v4325 = vsub.s32 3, %v4324
  %v4326 = vrot.slane %v4310, %v4325
  %vm4327 = vcmp.eq.s32.totalorder %v4314, 1
  %vm4328 = vcmp.eq.s32.totalorder %v4318, 1
  %vm4329 = vcmp.eq.s32.totalorder %v4322, 1
  %vm4330 = vcmp.eq.s32.totalorder %v4326, 1
  %v4331 = vsel %vm4327, %v4308, 0.0
  %v4332 = vsel %vm4328, %v4307, 0.0
  %v4333 = vsel %vm4329, %v4306, 0.0
  %v4334 = vsel %vm4330, %v4305, 0.0
  %s4335 = scalar_lea.vmem %s9, 72
  %v4336 = vld [vmem:[%s4335] sm:$0xff]
  %v4338 = vsel %vm60, %v4336, 0
  %v4341 = vsel %vm67, %v4331, 0
  %v4344 = vsel %vm67, %v4332, 0
  %v4347 = vsel %vm67, %v4333, 0
  %v4350 = vsel %vm67, %v4334, 0
  %4352 = vmatprep.subr.mxu0 0.0
  %4353 = vmatpush1.msra.mxu0 0.0
  %4354 = vmatprep.subr.mxu0 0.0
  %4355 = vmatpush1.msra.mxu0 0.0
  %4356 = vmatprep.subr.mxu0 0.0
  %4357 = vmatpush1.msra.mxu0 0.0
  %4358 = vmatprep.subr.mxu0 0.0
  %4359 = vmatpush1.msra.mxu0 0.0
  %4360 = vmatprep.subr.mxu0 0.0
  %4361 = vmatpush1.msra.mxu0 0.0
  %4362 = vmatprep.subr.mxu0 0.0
  %4363 = vmatpush1.msra.mxu0 0.0
  %4364 = vmatprep.subr.mxu0 0.0
  %4365 = vmatpush1.msra.mxu0 0.0
  %4366 = vmatprep.subr.mxu0 0.0
  %4367 = vmatpush1.msra.mxu0 0.0
  %4368 = vmatprep.subr.mxu0 0.0
  %4369 = vmatpush1.msra.mxu0 0.0
  %4370 = vmatprep.subr.mxu0 0.0
  %4371 = vmatpush1.msra.mxu0 0.0
  %4372 = vmatprep.subr.mxu0 0.0
  %4373 = vmatpush1.msra.mxu0 0.0
  %4374 = vmatprep.subr.mxu0 0.0
  %4375 = vmatpush1.msra.mxu0 0.0
  %4376 = vmatprep.subr.mxu0 0.0
  %4377 = vmatpush1.msra.mxu0 0.0
  %4378 = vmatprep.subr.mxu0 0.0
  %4379 = vmatpush1.msra.mxu0 0.0
  %4380 = vmatprep.subr.mxu0 0.0
  %4381 = vmatpush1.msra.mxu0 0.0
  %4382 = vmatprep.subr.mxu0 %v4344
  %4383 = vmatpush1.msra.mxu0 %v4341
  %4384 = vmatprep.subr.mxu0 0.0
  %4385 = vmatpush2.msra.mxu0 0.0
  %4386 = vmatprep.subr.mxu0 0.0
  %4387 = vmatpush2.msra.mxu0 0.0
  %4388 = vmatprep.subr.mxu0 0.0
  %4389 = vmatpush2.msra.mxu0 0.0
  %4390 = vmatprep.subr.mxu0 0.0
  %4391 = vmatpush2.msra.mxu0 0.0
  %4392 = vmatprep.subr.mxu0 0.0
  %4393 = vmatpush2.msra.mxu0 0.0
  %4394 = vmatprep.subr.mxu0 0.0
  %4395 = vmatpush2.msra.mxu0 0.0
  %4396 = vmatprep.subr.mxu0 0.0
  %4397 = vmatpush2.msra.mxu0 0.0
  %4398 = vmatprep.subr.mxu0 0.0
  %4399 = vmatpush2.msra.mxu0 0.0
  %4400 = vmatprep.subr.mxu0 0.0
  %4401 = vmatpush2.msra.mxu0 0.0
  %4402 = vmatprep.subr.mxu0 0.0
  %4403 = vmatpush2.msra.mxu0 0.0
  %4404 = vmatprep.subr.mxu0 0.0
  %4405 = vmatpush2.msra.mxu0 0.0
  %4406 = vmatprep.subr.mxu0 0.0
  %4407 = vmatpush2.msra.mxu0 0.0
  %4408 = vmatprep.subr.mxu0 0.0
  %4409 = vmatpush2.msra.mxu0 0.0
  %4410 = vmatprep.subr.mxu0 0.0
  %4411 = vmatpush2.msra.mxu0 0.0
  %4412 = vmatprep.subr.mxu0 0.0
  %4413 = vmatpush2.msra.mxu0 0.0
  %4414 = vmatprep.subr.mxu0 0.0
  %4415 = vmatpush2.msra.mxu0 0.0
  %4416 = vmatprep.mubr.f32.mxu0 0.0
  %4417 = vmatmul.mubr.f32.gmra.mxu0 %v4338
  %v4418 = vpop.f32.mrf.mxu0
  %v4419 = vadd.f32 0.0, %v4418
  %v4420 = vpop.f32.mrf.mxu0
  %v4421 = vadd.f32 0.0, %v4420
  %4422 = vdwg.mxu0
  %4423 = vmatprep.subr.mxu0 0.0
  %4424 = vmatpush1.msra.mxu0 0.0
  %4425 = vmatprep.subr.mxu0 0.0
  %4426 = vmatpush1.msra.mxu0 0.0
  %4427 = vmatprep.subr.mxu0 0.0
  %4428 = vmatpush1.msra.mxu0 0.0
  %4429 = vmatprep.subr.mxu0 0.0
  %4430 = vmatpush1.msra.mxu0 0.0
  %4431 = vmatprep.subr.mxu0 0.0
  %4432 = vmatpush1.msra.mxu0 0.0
  %4433 = vmatprep.subr.mxu0 0.0
  %4434 = vmatpush1.msra.mxu0 0.0
  %4435 = vmatprep.subr.mxu0 0.0
  %4436 = vmatpush1.msra.mxu0 0.0
  %4437 = vmatprep.subr.mxu0 0.0
  %4438 = vmatpush1.msra.mxu0 0.0
  %4439 = vmatprep.subr.mxu0 0.0
  %4440 = vmatpush1.msra.mxu0 0.0
  %4441 = vmatprep.subr.mxu0 0.0
  %4442 = vmatpush1.msra.mxu0 0.0
  %4443 = vmatprep.subr.mxu0 0.0
  %4444 = vmatpush1.msra.mxu0 0.0
  %4445 = vmatprep.subr.mxu0 0.0
  %4446 = vmatpush1.msra.mxu0 0.0
  %4447 = vmatprep.subr.mxu0 0.0
  %4448 = vmatpush1.msra.mxu0 0.0
  %4449 = vmatprep.subr.mxu0 0.0
  %4450 = vmatpush1.msra.mxu0 0.0
  %4451 = vmatprep.subr.mxu0 0.0
  %4452 = vmatpush1.msra.mxu0 0.0
  %4453 = vmatprep.subr.mxu0 %v4350
  %4454 = vmatpush1.msra.mxu0 %v4347
  %4455 = vmatprep.subr.mxu0 0.0
  %4456 = vmatpush2.msra.mxu0 0.0
  %4457 = vmatprep.subr.mxu0 0.0
  %4458 = vmatpush2.msra.mxu0 0.0
  %4459 = vmatprep.subr.mxu0 0.0
  %4460 = vmatpush2.msra.mxu0 0.0
  %4461 = vmatprep.subr.mxu0 0.0
  %4462 = vmatpush2.msra.mxu0 0.0
  %4463 = vmatprep.subr.mxu0 0.0
  %4464 = vmatpush2.msra.mxu0 0.0
  %4465 = vmatprep.subr.mxu0 0.0
  %4466 = vmatpush2.msra.mxu0 0.0
  %4467 = vmatprep.subr.mxu0 0.0
  %4468 = vmatpush2.msra.mxu0 0.0
  %4469 = vmatprep.subr.mxu0 0.0
  %4470 = vmatpush2.msra.mxu0 0.0
  %4471 = vmatprep.subr.mxu0 0.0
  %4472 = vmatpush2.msra.mxu0 0.0
  %4473 = vmatprep.subr.mxu0 0.0
  %4474 = vmatpush2.msra.mxu0 0.0
  %4475 = vmatprep.subr.mxu0 0.0
  %4476 = vmatpush2.msra.mxu0 0.0
  %4477 = vmatprep.subr.mxu0 0.0
  %4478 = vmatpush2.msra.mxu0 0.0
  %4479 = vmatprep.subr.mxu0 0.0
  %4480 = vmatpush2.msra.mxu0 0.0
  %4481 = vmatprep.subr.mxu0 0.0
  %4482 = vmatpush2.msra.mxu0 0.0
  %4483 = vmatprep.subr.mxu0 0.0
  %4484 = vmatpush2.msra.mxu0 0.0
  %4485 = vmatprep.subr.mxu0 0.0
  %4486 = vmatpush2.msra.mxu0 0.0
  %4487 = vmatprep.mubr.f32.mxu0 0.0
  %4488 = vmatmul.mubr.f32.gmra.mxu0 %v4338
  %v4489 = vpop.f32.mrf.mxu0
  %v4490 = vadd.f32 0.0, %v4489
  %v4491 = vpop.f32.mrf.mxu0
  %v4492 = vadd.f32 0.0, %v4491
  %4493 = vdwg.mxu0
  %v4494 = vadd.f32 %v4292, %v4419
  %v4495 = vadd.f32 %v4293, %v4421
  %v4496 = vadd.f32 %v4294, %v4490
  %v4497 = vadd.f32 %v4295, %v4492
  %4498 = vrot.lane.b32.xlu0 %v2546, 2
  %v4499 = vpop.permute.xlu0 %4498
  %4500 = vrot.lane.b32.xlu0 %v2547, 2
  %v4501 = vpop.permute.xlu0 %4500
  %4502 = vrot.lane.b32.xlu0 %v2548, 2
  %v4503 = vpop.permute.xlu0 %4502
  %4504 = vrot.lane.b32.xlu0 %v2549, 2
  %v4505 = vpop.permute.xlu0 %4504
  %vm4506 = vcmp.lt.s32.totalorder %v345, 2
  %v4507 = vsel %vm4506, %v4503, %v4505
  %v4508 = vsel %vm4506, %v4501, %v4503
  %v4509 = vsel %vm4506, %v4499, %v4501
  %v4510 = vsel %vm4506, %v4505, %v4499
  %v4511 = vsel %vm2568, 1, 0
  %v4512 = vlaneseq
  %v4513 = vshrl.u32 %v4512, 7
  %v4514 = vsub.s32 0, %v4513
  %v4515 = vrot.slane %v4511, %v4514
  %v4516 = vlaneseq
  %v4517 = vshrl.u32 %v4516, 7
  %v4518 = vsub.s32 1, %v4517
  %v4519 = vrot.slane %v4511, %v4518
  %v4520 = vlaneseq
  %v4521 = vshrl.u32 %v4520, 7
  %v4522 = vsub.s32 2, %v4521
  %v4523 = vrot.slane %v4511, %v4522
  %v4524 = vlaneseq
  %v4525 = vshrl.u32 %v4524, 7
  %v4526 = vsub.s32 3, %v4525
  %v4527 = vrot.slane %v4511, %v4526
  %vm4528 = vcmp.eq.s32.totalorder %v4515, 1
  %vm4529 = vcmp.eq.s32.totalorder %v4519, 1
  %vm4530 = vcmp.eq.s32.totalorder %v4523, 1
  %vm4531 = vcmp.eq.s32.totalorder %v4527, 1
  %v4532 = vsel %vm4528, %v4510, 0.0
  %v4533 = vsel %vm4529, %v4509, 0.0
  %v4534 = vsel %vm4530, %v4508, 0.0
  %v4535 = vsel %vm4531, %v4507, 0.0
  %s4536 = scalar_lea.vmem %s9, 80
  %v4537 = vld [vmem:[%s4536] sm:$0xff]
  %v4539 = vsel %vm60, %v4537, 0
  %v4542 = vsel %vm67, %v4532, 0
  %v4545 = vsel %vm67, %v4533, 0
  %v4548 = vsel %vm67, %v4534, 0
  %v4551 = vsel %vm67, %v4535, 0
  %4553 = vmatprep.subr.mxu0 0.0
  %4554 = vmatpush1.msra.mxu0 0.0
  %4555 = vmatprep.subr.mxu0 0.0
  %4556 = vmatpush1.msra.mxu0 0.0
  %4557 = vmatprep.subr.mxu0 0.0
  %4558 = vmatpush1.msra.mxu0 0.0
  %4559 = vmatprep.subr.mxu0 0.0
  %4560 = vmatpush1.msra.mxu0 0.0
  %4561 = vmatprep.subr.mxu0 0.0
  %4562 = vmatpush1.msra.mxu0 0.0
  %4563 = vmatprep.subr.mxu0 0.0
  %4564 = vmatpush1.msra.mxu0 0.0
  %4565 = vmatprep.subr.mxu0 0.0
  %4566 = vmatpush1.msra.mxu0 0.0
  %4567 = vmatprep.subr.mxu0 0.0
  %4568 = vmatpush1.msra.mxu0 0.0
  %4569 = vmatprep.subr.mxu0 0.0
  %4570 = vmatpush1.msra.mxu0 0.0
  %4571 = vmatprep.subr.mxu0 0.0
  %4572 = vmatpush1.msra.mxu0 0.0
  %4573 = vmatprep.subr.mxu0 0.0
  %4574 = vmatpush1.msra.mxu0 0.0
  %4575 = vmatprep.subr.mxu0 0.0
  %4576 = vmatpush1.msra.mxu0 0.0
  %4577 = vmatprep.subr.mxu0 0.0
  %4578 = vmatpush1.msra.mxu0 0.0
  %4579 = vmatprep.subr.mxu0 0.0
  %4580 = vmatpush1.msra.mxu0 0.0
  %4581 = vmatprep.subr.mxu0 0.0
  %4582 = vmatpush1.msra.mxu0 0.0
  %4583 = vmatprep.subr.mxu0 %v4545
  %4584 = vmatpush1.msra.mxu0 %v4542
  %4585 = vmatprep.subr.mxu0 0.0
  %4586 = vmatpush2.msra.mxu0 0.0
  %4587 = vmatprep.subr.mxu0 0.0
  %4588 = vmatpush2.msra.mxu0 0.0
  %4589 = vmatprep.subr.mxu0 0.0
  %4590 = vmatpush2.msra.mxu0 0.0
  %4591 = vmatprep.subr.mxu0 0.0
  %4592 = vmatpush2.msra.mxu0 0.0
  %4593 = vmatprep.subr.mxu0 0.0
  %4594 = vmatpush2.msra.mxu0 0.0
  %4595 = vmatprep.subr.mxu0 0.0
  %4596 = vmatpush2.msra.mxu0 0.0
  %4597 = vmatprep.subr.mxu0 0.0
  %4598 = vmatpush2.msra.mxu0 0.0
  %4599 = vmatprep.subr.mxu0 0.0
  %4600 = vmatpush2.msra.mxu0 0.0
  %4601 = vmatprep.subr.mxu0 0.0
  %4602 = vmatpush2.msra.mxu0 0.0
  %4603 = vmatprep.subr.mxu0 0.0
  %4604 = vmatpush2.msra.mxu0 0.0
  %4605 = vmatprep.subr.mxu0 0.0
  %4606 = vmatpush2.msra.mxu0 0.0
  %4607 = vmatprep.subr.mxu0 0.0
  %4608 = vmatpush2.msra.mxu0 0.0
  %4609 = vmatprep.subr.mxu0 0.0
  %4610 = vmatpush2.msra.mxu0 0.0
  %4611 = vmatprep.subr.mxu0 0.0
  %4612 = vmatpush2.msra.mxu0 0.0
  %4613 = vmatprep.subr.mxu0 0.0
  %4614 = vmatpush2.msra.mxu0 0.0
  %4615 = vmatprep.subr.mxu0 0.0
  %4616 = vmatpush2.msra.mxu0 0.0
  %4617 = vmatprep.mubr.f32.mxu0 0.0
  %4618 = vmatmul.mubr.f32.gmra.mxu0 %v4539
  %v4619 = vpop.f32.mrf.mxu0
  %v4620 = vadd.f32 0.0, %v4619
  %v4621 = vpop.f32.mrf.mxu0
  %v4622 = vadd.f32 0.0, %v4621
  %4623 = vdwg.mxu0
  %4624 = vmatprep.subr.mxu0 0.0
  %4625 = vmatpush1.msra.mxu0 0.0
  %4626 = vmatprep.subr.mxu0 0.0
  %4627 = vmatpush1.msra.mxu0 0.0
  %4628 = vmatprep.subr.mxu0 0.0
  %4629 = vmatpush1.msra.mxu0 0.0
  %4630 = vmatprep.subr.mxu0 0.0
  %4631 = vmatpush1.msra.mxu0 0.0
  %4632 = vmatprep.subr.mxu0 0.0
  %4633 = vmatpush1.msra.mxu0 0.0
  %4634 = vmatprep.subr.mxu0 0.0
  %4635 = vmatpush1.msra.mxu0 0.0
  %4636 = vmatprep.subr.mxu0 0.0
  %4637 = vmatpush1.msra.mxu0 0.0
  %4638 = vmatprep.subr.mxu0 0.0
  %4639 = vmatpush1.msra.mxu0 0.0
  %4640 = vmatprep.subr.mxu0 0.0
  %4641 = vmatpush1.msra.mxu0 0.0
  %4642 = vmatprep.subr.mxu0 0.0
  %4643 = vmatpush1.msra.mxu0 0.0
  %4644 = vmatprep.subr.mxu0 0.0
  %4645 = vmatpush1.msra.mxu0 0.0
  %4646 = vmatprep.subr.mxu0 0.0
  %4647 = vmatpush1.msra.mxu0 0.0
  %4648 = vmatprep.subr.mxu0 0.0
  %4649 = vmatpush1.msra.mxu0 0.0
  %4650 = vmatprep.subr.mxu0 0.0
  %4651 = vmatpush1.msra.mxu0 0.0
  %4652 = vmatprep.subr.mxu0 0.0
  %4653 = vmatpush1.msra.mxu0 0.0
  %4654 = vmatprep.subr.mxu0 %v4551
  %4655 = vmatpush1.msra.mxu0 %v4548
  %4656 = vmatprep.subr.mxu0 0.0
  %4657 = vmatpush2.msra.mxu0 0.0
  %4658 = vmatprep.subr.mxu0 0.0
  %4659 = vmatpush2.msra.mxu0 0.0
  %4660 = vmatprep.subr.mxu0 0.0
  %4661 = vmatpush2.msra.mxu0 0.0
  %4662 = vmatprep.subr.mxu0 0.0
  %4663 = vmatpush2.msra.mxu0 0.0
  %4664 = vmatprep.subr.mxu0 0.0
  %4665 = vmatpush2.msra.mxu0 0.0
  %4666 = vmatprep.subr.mxu0 0.0
  %4667 = vmatpush2.msra.mxu0 0.0
  %4668 = vmatprep.subr.mxu0 0.0
  %4669 = vmatpush2.msra.mxu0 0.0
  %4670 = vmatprep.subr.mxu0 0.0
  %4671 = vmatpush2.msra.mxu0 0.0
  %4672 = vmatprep.subr.mxu0 0.0
  %4673 = vmatpush2.msra.mxu0 0.0
  %4674 = vmatprep.subr.mxu0 0.0
  %4675 = vmatpush2.msra.mxu0 0.0
  %4676 = vmatprep.subr.mxu0 0.0
  %4677 = vmatpush2.msra.mxu0 0.0
  %4678 = vmatprep.subr.mxu0 0.0
  %4679 = vmatpush2.msra.mxu0 0.0
  %4680 = vmatprep.subr.mxu0 0.0
  %4681 = vmatpush2.msra.mxu0 0.0
  %4682 = vmatprep.subr.mxu0 0.0
  %4683 = vmatpush2.msra.mxu0 0.0
  %4684 = vmatprep.subr.mxu0 0.0
  %4685 = vmatpush2.msra.mxu0 0.0
  %4686 = vmatprep.subr.mxu0 0.0
  %4687 = vmatpush2.msra.mxu0 0.0
  %4688 = vmatprep.mubr.f32.mxu0 0.0
  %4689 = vmatmul.mubr.f32.gmra.mxu0 %v4539
  %v4690 = vpop.f32.mrf.mxu0
  %v4691 = vadd.f32 0.0, %v4690
  %v4692 = vpop.f32.mrf.mxu0
  %v4693 = vadd.f32 0.0, %v4692
  %4694 = vdwg.mxu0
  %v4695 = vadd.f32 %v4494, %v4620
  %v4696 = vadd.f32 %v4495, %v4622
  %v4697 = vadd.f32 %v4496, %v4691
  %v4698 = vadd.f32 %v4497, %v4693
  %4699 = vrot.lane.b32.xlu0 %v2546, 1
  %v4700 = vpop.permute.xlu0 %4699
  %4701 = vrot.lane.b32.xlu0 %v2547, 1
  %v4702 = vpop.permute.xlu0 %4701
  %4703 = vrot.lane.b32.xlu0 %v2548, 1
  %v4704 = vpop.permute.xlu0 %4703
  %4705 = vrot.lane.b32.xlu0 %v2549, 1
  %v4706 = vpop.permute.xlu0 %4705
  %v4707 = vsel %vm489, %v4704, %v4706
  %v4708 = vsel %vm489, %v4702, %v4704
  %v4709 = vsel %vm489, %v4700, %v4702
  %v4710 = vsel %vm489, %v4706, %v4700
  %v4711 = vsel %vm515, %v4710, 0.0
  %v4712 = vsel %vm516, %v4709, 0.0
  %v4713 = vsel %vm517, %v4708, 0.0
  %v4714 = vsel %vm518, %v4707, 0.0
  %s4715 = scalar_lea.vmem %s9, 88
  %v4716 = vld [vmem:[%s4715] sm:$0xff]
  %v4718 = vsel %vm60, %v4716, 0
  %v4721 = vsel %vm67, %v4711, 0
  %v4724 = vsel %vm67, %v4712, 0
  %v4727 = vsel %vm67, %v4713, 0
  %v4730 = vsel %vm67, %v4714, 0
  %4732 = vmatprep.subr.mxu0 0.0
  %4733 = vmatpush1.msra.mxu0 0.0
  %4734 = vmatprep.subr.mxu0 0.0
  %4735 = vmatpush1.msra.mxu0 0.0
  %4736 = vmatprep.subr.mxu0 0.0
  %4737 = vmatpush1.msra.mxu0 0.0
  %4738 = vmatprep.subr.mxu0 0.0
  %4739 = vmatpush1.msra.mxu0 0.0
  %4740 = vmatprep.subr.mxu0 0.0
  %4741 = vmatpush1.msra.mxu0 0.0
  %4742 = vmatprep.subr.mxu0 0.0
  %4743 = vmatpush1.msra.mxu0 0.0
  %4744 = vmatprep.subr.mxu0 0.0
  %4745 = vmatpush1.msra.mxu0 0.0
  %4746 = vmatprep.subr.mxu0 0.0
  %4747 = vmatpush1.msra.mxu0 0.0
  %4748 = vmatprep.subr.mxu0 0.0
  %4749 = vmatpush1.msra.mxu0 0.0
  %4750 = vmatprep.subr.mxu0 0.0
  %4751 = vmatpush1.msra.mxu0 0.0
  %4752 = vmatprep.subr.mxu0 0.0
  %4753 = vmatpush1.msra.mxu0 0.0
  %4754 = vmatprep.subr.mxu0 0.0
  %4755 = vmatpush1.msra.mxu0 0.0
  %4756 = vmatprep.subr.mxu0 0.0
  %4757 = vmatpush1.msra.mxu0 0.0
  %4758 = vmatprep.subr.mxu0 0.0
  %4759 = vmatpush1.msra.mxu0 0.0
  %4760 = vmatprep.subr.mxu0 0.0
  %4761 = vmatpush1.msra.mxu0 0.0
  %4762 = vmatprep.subr.mxu0 %v4724
  %4763 = vmatpush1.msra.mxu0 %v4721
  %4764 = vmatprep.subr.mxu0 0.0
  %4765 = vmatpush2.msra.mxu0 0.0
  %4766 = vmatprep.subr.mxu0 0.0
  %4767 = vmatpush2.msra.mxu0 0.0
  %4768 = vmatprep.subr.mxu0 0.0
  %4769 = vmatpush2.msra.mxu0 0.0
  %4770 = vmatprep.subr.mxu0 0.0
  %4771 = vmatpush2.msra.mxu0 0.0
  %4772 = vmatprep.subr.mxu0 0.0
  %4773 = vmatpush2.msra.mxu0 0.0
  %4774 = vmatprep.subr.mxu0 0.0
  %4775 = vmatpush2.msra.mxu0 0.0
  %4776 = vmatprep.subr.mxu0 0.0
  %4777 = vmatpush2.msra.mxu0 0.0
  %4778 = vmatprep.subr.mxu0 0.0
  %4779 = vmatpush2.msra.mxu0 0.0
  %4780 = vmatprep.subr.mxu0 0.0
  %4781 = vmatpush2.msra.mxu0 0.0
  %4782 = vmatprep.subr.mxu0 0.0
  %4783 = vmatpush2.msra.mxu0 0.0
  %4784 = vmatprep.subr.mxu0 0.0
  %4785 = vmatpush2.msra.mxu0 0.0
  %4786 = vmatprep.subr.mxu0 0.0
  %4787 = vmatpush2.msra.mxu0 0.0
  %4788 = vmatprep.subr.mxu0 0.0
  %4789 = vmatpush2.msra.mxu0 0.0
  %4790 = vmatprep.subr.mxu0 0.0
  %4791 = vmatpush2.msra.mxu0 0.0
  %4792 = vmatprep.subr.mxu0 0.0
  %4793 = vmatpush2.msra.mxu0 0.0
  %4794 = vmatprep.subr.mxu0 0.0
  %4795 = vmatpush2.msra.mxu0 0.0
  %4796 = vmatprep.mubr.f32.mxu0 0.0
  %4797 = vmatmul.mubr.f32.gmra.mxu0 %v4718
  %v4798 = vpop.f32.mrf.mxu0
  %v4799 = vadd.f32 0.0, %v4798
  %v4800 = vpop.f32.mrf.mxu0
  %v4801 = vadd.f32 0.0, %v4800
  %4802 = vdwg.mxu0
  %4803 = vmatprep.subr.mxu0 0.0
  %4804 = vmatpush1.msra.mxu0 0.0
  %4805 = vmatprep.subr.mxu0 0.0
  %4806 = vmatpush1.msra.mxu0 0.0
  %4807 = vmatprep.subr.mxu0 0.0
  %4808 = vmatpush1.msra.mxu0 0.0
  %4809 = vmatprep.subr.mxu0 0.0
  %4810 = vmatpush1.msra.mxu0 0.0
  %4811 = vmatprep.subr.mxu0 0.0
  %4812 = vmatpush1.msra.mxu0 0.0
  %4813 = vmatprep.subr.mxu0 0.0
  %4814 = vmatpush1.msra.mxu0 0.0
  %4815 = vmatprep.subr.mxu0 0.0
  %4816 = vmatpush1.msra.mxu0 0.0
  %4817 = vmatprep.subr.mxu0 0.0
  %4818 = vmatpush1.msra.mxu0 0.0
  %4819 = vmatprep.subr.mxu0 0.0
  %4820 = vmatpush1.msra.mxu0 0.0
  %4821 = vmatprep.subr.mxu0 0.0
  %4822 = vmatpush1.msra.mxu0 0.0
  %4823 = vmatprep.subr.mxu0 0.0
  %4824 = vmatpush1.msra.mxu0 0.0
  %4825 = vmatprep.subr.mxu0 0.0
  %4826 = vmatpush1.msra.mxu0 0.0
  %4827 = vmatprep.subr.mxu0 0.0
  %4828 = vmatpush1.msra.mxu0 0.0
  %4829 = vmatprep.subr.mxu0 0.0
  %4830 = vmatpush1.msra.mxu0 0.0
  %4831 = vmatprep.subr.mxu0 0.0
  %4832 = vmatpush1.msra.mxu0 0.0
  %4833 = vmatprep.subr.mxu0 %v4730
  %4834 = vmatpush1.msra.mxu0 %v4727
  %4835 = vmatprep.subr.mxu0 0.0
  %4836 = vmatpush2.msra.mxu0 0.0
  %4837 = vmatprep.subr.mxu0 0.0
  %4838 = vmatpush2.msra.mxu0 0.0
  %4839 = vmatprep.subr.mxu0 0.0
  %4840 = vmatpush2.msra.mxu0 0.0
  %4841 = vmatprep.subr.mxu0 0.0
  %4842 = vmatpush2.msra.mxu0 0.0
  %4843 = vmatprep.subr.mxu0 0.0
  %4844 = vmatpush2.msra.mxu0 0.0
  %4845 = vmatprep.subr.mxu0 0.0
  %4846 = vmatpush2.msra.mxu0 0.0
  %4847 = vmatprep.subr.mxu0 0.0
  %4848 = vmatpush2.msra.mxu0 0.0
  %4849 = vmatprep.subr.mxu0 0.0
  %4850 = vmatpush2.msra.mxu0 0.0
  %4851 = vmatprep.subr.mxu0 0.0
  %4852 = vmatpush2.msra.mxu0 0.0
  %4853 = vmatprep.subr.mxu0 0.0
  %4854 = vmatpush2.msra.mxu0 0.0
  %4855 = vmatprep.subr.mxu0 0.0
  %4856 = vmatpush2.msra.mxu0 0.0
  %4857 = vmatprep.subr.mxu0 0.0
  %4858 = vmatpush2.msra.mxu0 0.0
  %4859 = vmatprep.subr.mxu0 0.0
  %4860 = vmatpush2.msra.mxu0 0.0
  %4861 = vmatprep.subr.mxu0 0.0
  %4862 = vmatpush2.msra.mxu0 0.0
  %4863 = vmatprep.subr.mxu0 0.0
  %4864 = vmatpush2.msra.mxu0 0.0
  %4865 = vmatprep.subr.mxu0 0.0
  %4866 = vmatpush2.msra.mxu0 0.0
  %4867 = vmatprep.mubr.f32.mxu0 0.0
  %4868 = vmatmul.mubr.f32.gmra.mxu0 %v4718
  %v4869 = vpop.f32.mrf.mxu0
  %v4870 = vadd.f32 0.0, %v4869
  %v4871 = vpop.f32.mrf.mxu0
  %v4872 = vadd.f32 0.0, %v4871
  %4873 = vdwg.mxu0
  %v4874 = vadd.f32 %v4695, %v4799
  %v4875 = vadd.f32 %v4696, %v4801
  %v4876 = vadd.f32 %v4697, %v4870
  %v4877 = vadd.f32 %v4698, %v4872
  %s4878 = scalar_lea.vmem %s9, 96
  %v4879 = vld [vmem:[%s4878] sm:$0xff]
  %v4881 = vsel %vm60, %v4879, 0
  %v4883 = vsel %vm67, %v2546, 0
  %v4885 = vsel %vm67, %v2547, 0
  %v4887 = vsel %vm67, %v2548, 0
  %v4889 = vsel %vm67, %v2549, 0
  %4891 = vmatprep.subr.mxu0 0.0
  %4892 = vmatpush1.msra.mxu0 0.0
  %4893 = vmatprep.subr.mxu0 0.0
  %4894 = vmatpush1.msra.mxu0 0.0
  %4895 = vmatprep.subr.mxu0 0.0
  %4896 = vmatpush1.msra.mxu0 0.0
  %4897 = vmatprep.subr.mxu0 0.0
  %4898 = vmatpush1.msra.mxu0 0.0
  %4899 = vmatprep.subr.mxu0 0.0
  %4900 = vmatpush1.msra.mxu0 0.0
  %4901 = vmatprep.subr.mxu0 0.0
  %4902 = vmatpush1.msra.mxu0 0.0
  %4903 = vmatprep.subr.mxu0 0.0
  %4904 = vmatpush1.msra.mxu0 0.0
  %4905 = vmatprep.subr.mxu0 0.0
  %4906 = vmatpush1.msra.mxu0 0.0
  %4907 = vmatprep.subr.mxu0 0.0
  %4908 = vmatpush1.msra.mxu0 0.0
  %4909 = vmatprep.subr.mxu0 0.0
  %4910 = vmatpush1.msra.mxu0 0.0
  %4911 = vmatprep.subr.mxu0 0.0
  %4912 = vmatpush1.msra.mxu0 0.0
  %4913 = vmatprep.subr.mxu0 0.0
  %4914 = vmatpush1.msra.mxu0 0.0
  %4915 = vmatprep.subr.mxu0 0.0
  %4916 = vmatpush1.msra.mxu0 0.0
  %4917 = vmatprep.subr.mxu0 0.0
  %4918 = vmatpush1.msra.mxu0 0.0
  %4919 = vmatprep.subr.mxu0 0.0
  %4920 = vmatpush1.msra.mxu0 0.0
  %4921 = vmatprep.subr.mxu0 %v4885
  %4922 = vmatpush1.msra.mxu0 %v4883
  %4923 = vmatprep.subr.mxu0 0.0
  %4924 = vmatpush2.msra.mxu0 0.0
  %4925 = vmatprep.subr.mxu0 0.0
  %4926 = vmatpush2.msra.mxu0 0.0
  %4927 = vmatprep.subr.mxu0 0.0
  %4928 = vmatpush2.msra.mxu0 0.0
  %4929 = vmatprep.subr.mxu0 0.0
  %4930 = vmatpush2.msra.mxu0 0.0
  %4931 = vmatprep.subr.mxu0 0.0
  %4932 = vmatpush2.msra.mxu0 0.0
  %4933 = vmatprep.subr.mxu0 0.0
  %4934 = vmatpush2.msra.mxu0 0.0
  %4935 = vmatprep.subr.mxu0 0.0
  %4936 = vmatpush2.msra.mxu0 0.0
  %4937 = vmatprep.subr.mxu0 0.0
  %4938 = vmatpush2.msra.mxu0 0.0
  %4939 = vmatprep.subr.mxu0 0.0
  %4940 = vmatpush2.msra.mxu0 0.0
  %4941 = vmatprep.subr.mxu0 0.0
  %4942 = vmatpush2.msra.mxu0 0.0
  %4943 = vmatprep.subr.mxu0 0.0
  %4944 = vmatpush2.msra.mxu0 0.0
  %4945 = vmatprep.subr.mxu0 0.0
  %4946 = vmatpush2.msra.mxu0 0.0
  %4947 = vmatprep.subr.mxu0 0.0
  %4948 = vmatpush2.msra.mxu0 0.0
  %4949 = vmatprep.subr.mxu0 0.0
  %4950 = vmatpush2.msra.mxu0 0.0
  %4951 = vmatprep.subr.mxu0 0.0
  %4952 = vmatpush2.msra.mxu0 0.0
  %4953 = vmatprep.subr.mxu0 0.0
  %4954 = vmatpush2.msra.mxu0 0.0
  %4955 = vmatprep.mubr.f32.mxu0 0.0
  %4956 = vmatmul.mubr.f32.gmra.mxu0 %v4881
  %v4957 = vpop.f32.mrf.mxu0
  %v4958 = vadd.f32 0.0, %v4957
  %v4959 = vpop.f32.mrf.mxu0
  %v4960 = vadd.f32 0.0, %v4959
  %4961 = vdwg.mxu0
  %4962 = vmatprep.subr.mxu0 0.0
  %4963 = vmatpush1.msra.mxu0 0.0
  %4964 = vmatprep.subr.mxu0 0.0
  %4965 = vmatpush1.msra.mxu0 0.0
  %4966 = vmatprep.subr.mxu0 0.0
  %4967 = vmatpush1.msra.mxu0 0.0
  %4968 = vmatprep.subr.mxu0 0.0
  %4969 = vmatpush1.msra.mxu0 0.0
  %4970 = vmatprep.subr.mxu0 0.0
  %4971 = vmatpush1.msra.mxu0 0.0
  %4972 = vmatprep.subr.mxu0 0.0
  %4973 = vmatpush1.msra.mxu0 0.0
  %4974 = vmatprep.subr.mxu0 0.0
  %4975 = vmatpush1.msra.mxu0 0.0
  %4976 = vmatprep.subr.mxu0 0.0
  %4977 = vmatpush1.msra.mxu0 0.0
  %4978 = vmatprep.subr.mxu0 0.0
  %4979 = vmatpush1.msra.mxu0 0.0
  %4980 = vmatprep.subr.mxu0 0.0
  %4981 = vmatpush1.msra.mxu0 0.0
  %4982 = vmatprep.subr.mxu0 0.0
  %4983 = vmatpush1.msra.mxu0 0.0
  %4984 = vmatprep.subr.mxu0 0.0
  %4985 = vmatpush1.msra.mxu0 0.0
  %4986 = vmatprep.subr.mxu0 0.0
  %4987 = vmatpush1.msra.mxu0 0.0
  %4988 = vmatprep.subr.mxu0 0.0
  %4989 = vmatpush1.msra.mxu0 0.0
  %4990 = vmatprep.subr.mxu0 0.0
  %4991 = vmatpush1.msra.mxu0 0.0
  %4992 = vmatprep.subr.mxu0 %v4889
  %4993 = vmatpush1.msra.mxu0 %v4887
  %4994 = vmatprep.subr.mxu0 0.0
  %4995 = vmatpush2.msra.mxu0 0.0
  %4996 = vmatprep.subr.mxu0 0.0
  %4997 = vmatpush2.msra.mxu0 0.0
  %4998 = vmatprep.subr.mxu0 0.0
  %4999 = vmatpush2.msra.mxu0 0.0
  %5000 = vmatprep.subr.mxu0 0.0
  %5001 = vmatpush2.msra.mxu0 0.0
  %5002 = vmatprep.subr.mxu0 0.0
  %5003 = vmatpush2.msra.mxu0 0.0
  %5004 = vmatprep.subr.mxu0 0.0
  %5005 = vmatpush2.msra.mxu0 0.0
  %5006 = vmatprep.subr.mxu0 0.0
  %5007 = vmatpush2.msra.mxu0 0.0
  %5008 = vmatprep.subr.mxu0 0.0
  %5009 = vmatpush2.msra.mxu0 0.0
  %5010 = vmatprep.subr.mxu0 0.0
  %5011 = vmatpush2.msra.mxu0 0.0
  %5012 = vmatprep.subr.mxu0 0.0
  %5013 = vmatpush2.msra.mxu0 0.0
  %5014 = vmatprep.subr.mxu0 0.0
  %5015 = vmatpush2.msra.mxu0 0.0
  %5016 = vmatprep.subr.mxu0 0.0
  %5017 = vmatpush2.msra.mxu0 0.0
  %5018 = vmatprep.subr.mxu0 0.0
  %5019 = vmatpush2.msra.mxu0 0.0
  %5020 = vmatprep.subr.mxu0 0.0
  %5021 = vmatpush2.msra.mxu0 0.0
  %5022 = vmatprep.subr.mxu0 0.0
  %5023 = vmatpush2.msra.mxu0 0.0
  %5024 = vmatprep.subr.mxu0 0.0
  %5025 = vmatpush2.msra.mxu0 0.0
  %5026 = vmatprep.mubr.f32.mxu0 0.0
  %5027 = vmatmul.mubr.f32.gmra.mxu0 %v4881
  %v5028 = vpop.f32.mrf.mxu0
  %v5029 = vadd.f32 0.0, %v5028
  %v5030 = vpop.f32.mrf.mxu0
  %v5031 = vadd.f32 0.0, %v5030
  %5032 = vdwg.mxu0
  %v5033 = vadd.f32 %v4874, %v4958
  %v5034 = vadd.f32 %v4875, %v4960
  %v5035 = vadd.f32 %v4876, %v5029
  %v5036 = vadd.f32 %v4877, %v5031
  %5037 = vrot.lane.b32.xlu0 %v2546, 127
  %v5038 = vpop.permute.xlu0 %5037
  %5039 = vrot.lane.b32.xlu0 %v2547, 127
  %v5040 = vpop.permute.xlu0 %5039
  %5041 = vrot.lane.b32.xlu0 %v2548, 127
  %v5042 = vpop.permute.xlu0 %5041
  %5043 = vrot.lane.b32.xlu0 %v2549, 127
  %v5044 = vpop.permute.xlu0 %5043
  %v5045 = vsel %vm531, %v5042, %v5044
  %v5046 = vsel %vm531, %v5040, %v5042
  %v5047 = vsel %vm531, %v5038, %v5040
  %v5048 = vsel %vm531, %v5044, %v5038
  %v5049 = vsel %vm557, %v5047, 0.0
  %v5050 = vsel %vm558, %v5046, 0.0
  %v5051 = vsel %vm559, %v5045, 0.0
  %v5052 = vsel %vm560, %v5048, 0.0
  %s5053 = scalar_lea.vmem %s9, 104
  %v5054 = vld [vmem:[%s5053] sm:$0xff]
  %v5056 = vsel %vm60, %v5054, 0
  %v5059 = vsel %vm67, %v5049, 0
  %v5062 = vsel %vm67, %v5050, 0
  %v5065 = vsel %vm67, %v5051, 0
  %v5068 = vsel %vm67, %v5052, 0
  %5070 = vmatprep.subr.mxu0 0.0
  %5071 = vmatpush1.msra.mxu0 0.0
  %5072 = vmatprep.subr.mxu0 0.0
  %5073 = vmatpush1.msra.mxu0 0.0
  %5074 = vmatprep.subr.mxu0 0.0
  %5075 = vmatpush1.msra.mxu0 0.0
  %5076 = vmatprep.subr.mxu0 0.0
  %5077 = vmatpush1.msra.mxu0 0.0
  %5078 = vmatprep.subr.mxu0 0.0
  %5079 = vmatpush1.msra.mxu0 0.0
  %5080 = vmatprep.subr.mxu0 0.0
  %5081 = vmatpush1.msra.mxu0 0.0
  %5082 = vmatprep.subr.mxu0 0.0
  %5083 = vmatpush1.msra.mxu0 0.0
  %5084 = vmatprep.subr.mxu0 0.0
  %5085 = vmatpush1.msra.mxu0 0.0
  %5086 = vmatprep.subr.mxu0 0.0
  %5087 = vmatpush1.msra.mxu0 0.0
  %5088 = vmatprep.subr.mxu0 0.0
  %5089 = vmatpush1.msra.mxu0 0.0
  %5090 = vmatprep.subr.mxu0 0.0
  %5091 = vmatpush1.msra.mxu0 0.0
  %5092 = vmatprep.subr.mxu0 0.0
  %5093 = vmatpush1.msra.mxu0 0.0
  %5094 = vmatprep.subr.mxu0 0.0
  %5095 = vmatpush1.msra.mxu0 0.0
  %5096 = vmatprep.subr.mxu0 0.0
  %5097 = vmatpush1.msra.mxu0 0.0
  %5098 = vmatprep.subr.mxu0 0.0
  %5099 = vmatpush1.msra.mxu0 0.0
  %5100 = vmatprep.subr.mxu0 %v5062
  %5101 = vmatpush1.msra.mxu0 %v5059
  %5102 = vmatprep.subr.mxu0 0.0
  %5103 = vmatpush2.msra.mxu0 0.0
  %5104 = vmatprep.subr.mxu0 0.0
  %5105 = vmatpush2.msra.mxu0 0.0
  %5106 = vmatprep.subr.mxu0 0.0
  %5107 = vmatpush2.msra.mxu0 0.0
  %5108 = vmatprep.subr.mxu0 0.0
  %5109 = vmatpush2.msra.mxu0 0.0
  %5110 = vmatprep.subr.mxu0 0.0
  %5111 = vmatpush2.msra.mxu0 0.0
  %5112 = vmatprep.subr.mxu0 0.0
  %5113 = vmatpush2.msra.mxu0 0.0
  %5114 = vmatprep.subr.mxu0 0.0
  %5115 = vmatpush2.msra.mxu0 0.0
  %5116 = vmatprep.subr.mxu0 0.0
  %5117 = vmatpush2.msra.mxu0 0.0
  %5118 = vmatprep.subr.mxu0 0.0
  %5119 = vmatpush2.msra.mxu0 0.0
  %5120 = vmatprep.subr.mxu0 0.0
  %5121 = vmatpush2.msra.mxu0 0.0
  %5122 = vmatprep.subr.mxu0 0.0
  %5123 = vmatpush2.msra.mxu0 0.0
  %5124 = vmatprep.subr.mxu0 0.0
  %5125 = vmatpush2.msra.mxu0 0.0
  %5126 = vmatprep.subr.mxu0 0.0
  %5127 = vmatpush2.msra.mxu0 0.0
  %5128 = vmatprep.subr.mxu0 0.0
  %5129 = vmatpush2.msra.mxu0 0.0
  %5130 = vmatprep.subr.mxu0 0.0
  %5131 = vmatpush2.msra.mxu0 0.0
  %5132 = vmatprep.subr.mxu0 0.0
  %5133 = vmatpush2.msra.mxu0 0.0
  %5134 = vmatprep.mubr.f32.mxu0 0.0
  %5135 = vmatmul.mubr.f32.gmra.mxu0 %v5056
  %v5136 = vpop.f32.mrf.mxu0
  %v5137 = vadd.f32 0.0, %v5136
  %v5138 = vpop.f32.mrf.mxu0
  %v5139 = vadd.f32 0.0, %v5138
  %5140 = vdwg.mxu0
  %5141 = vmatprep.subr.mxu0 0.0
  %5142 = vmatpush1.msra.mxu0 0.0
  %5143 = vmatprep.subr.mxu0 0.0
  %5144 = vmatpush1.msra.mxu0 0.0
  %5145 = vmatprep.subr.mxu0 0.0
  %5146 = vmatpush1.msra.mxu0 0.0
  %5147 = vmatprep.subr.mxu0 0.0
  %5148 = vmatpush1.msra.mxu0 0.0
  %5149 = vmatprep.subr.mxu0 0.0
  %5150 = vmatpush1.msra.mxu0 0.0
  %5151 = vmatprep.subr.mxu0 0.0
  %5152 = vmatpush1.msra.mxu0 0.0
  %5153 = vmatprep.subr.mxu0 0.0
  %5154 = vmatpush1.msra.mxu0 0.0
  %5155 = vmatprep.subr.mxu0 0.0
  %5156 = vmatpush1.msra.mxu0 0.0
  %5157 = vmatprep.subr.mxu0 0.0
  %5158 = vmatpush1.msra.mxu0 0.0
  %5159 = vmatprep.subr.mxu0 0.0
  %5160 = vmatpush1.msra.mxu0 0.0
  %5161 = vmatprep.subr.mxu0 0.0
  %5162 = vmatpush1.msra.mxu0 0.0
  %5163 = vmatprep.subr.mxu0 0.0
  %5164 = vmatpush1.msra.mxu0 0.0
  %5165 = vmatprep.subr.mxu0 0.0
  %5166 = vmatpush1.msra.mxu0 0.0
  %5167 = vmatprep.subr.mxu0 0.0
  %5168 = vmatpush1.msra.mxu0 0.0
  %5169 = vmatprep.subr.mxu0 0.0
  %5170 = vmatpush1.msra.mxu0 0.0
  %5171 = vmatprep.subr.mxu0 %v5068
  %5172 = vmatpush1.msra.mxu0 %v5065
  %5173 = vmatprep.subr.mxu0 0.0
  %5174 = vmatpush2.msra.mxu0 0.0
  %5175 = vmatprep.subr.mxu0 0.0
  %5176 = vmatpush2.msra.mxu0 0.0
  %5177 = vmatprep.subr.mxu0 0.0
  %5178 = vmatpush2.msra.mxu0 0.0
  %5179 = vmatprep.subr.mxu0 0.0
  %5180 = vmatpush2.msra.mxu0 0.0
  %5181 = vmatprep.subr.mxu0 0.0
  %5182 = vmatpush2.msra.mxu0 0.0
  %5183 = vmatprep.subr.mxu0 0.0
  %5184 = vmatpush2.msra.mxu0 0.0
  %5185 = vmatprep.subr.mxu0 0.0
  %5186 = vmatpush2.msra.mxu0 0.0
  %5187 = vmatprep.subr.mxu0 0.0
  %5188 = vmatpush2.msra.mxu0 0.0
  %5189 = vmatprep.subr.mxu0 0.0
  %5190 = vmatpush2.msra.mxu0 0.0
  %5191 = vmatprep.subr.mxu0 0.0
  %5192 = vmatpush2.msra.mxu0 0.0
  %5193 = vmatprep.subr.mxu0 0.0
  %5194 = vmatpush2.msra.mxu0 0.0
  %5195 = vmatprep.subr.mxu0 0.0
  %5196 = vmatpush2.msra.mxu0 0.0
  %5197 = vmatprep.subr.mxu0 0.0
  %5198 = vmatpush2.msra.mxu0 0.0
  %5199 = vmatprep.subr.mxu0 0.0
  %5200 = vmatpush2.msra.mxu0 0.0
  %5201 = vmatprep.subr.mxu0 0.0
  %5202 = vmatpush2.msra.mxu0 0.0
  %5203 = vmatprep.subr.mxu0 0.0
  %5204 = vmatpush2.msra.mxu0 0.0
  %5205 = vmatprep.mubr.f32.mxu0 0.0
  %5206 = vmatmul.mubr.f32.gmra.mxu0 %v5056
  %v5207 = vpop.f32.mrf.mxu0
  %v5208 = vadd.f32 0.0, %v5207
  %v5209 = vpop.f32.mrf.mxu0
  %v5210 = vadd.f32 0.0, %v5209
  %5211 = vdwg.mxu0
  %v5212 = vadd.f32 %v5033, %v5137
  %v5213 = vadd.f32 %v5034, %v5139
  %v5214 = vadd.f32 %v5035, %v5208
  %v5215 = vadd.f32 %v5036, %v5210
  %5216 = vrot.lane.b32.xlu0 %v2546, 126
  %v5217 = vpop.permute.xlu0 %5216
  %5218 = vrot.lane.b32.xlu0 %v2547, 126
  %v5219 = vpop.permute.xlu0 %5218
  %5220 = vrot.lane.b32.xlu0 %v2548, 126
  %v5221 = vpop.permute.xlu0 %5220
  %5222 = vrot.lane.b32.xlu0 %v2549, 126
  %v5223 = vpop.permute.xlu0 %5222
  %vm5224 = vcmp.lt.s32.totalorder %v345, 126
  %v5225 = vsel %vm5224, %v5221, %v5223
  %v5226 = vsel %vm5224, %v5219, %v5221
  %v5227 = vsel %vm5224, %v5217, %v5219
  %v5228 = vsel %vm5224, %v5223, %v5217
  %v5229 = vsel %vm3367, 1, 0
  %v5230 = vlaneseq
  %v5231 = vshrl.u32 %v5230, 7
  %v5232 = vsub.s32 0, %v5231
  %v5233 = vrot.slane %v5229, %v5232
  %v5234 = vlaneseq
  %v5235 = vshrl.u32 %v5234, 7
  %v5236 = vsub.s32 1, %v5235
  %v5237 = vrot.slane %v5229, %v5236
  %v5238 = vlaneseq
  %v5239 = vshrl.u32 %v5238, 7
  %v5240 = vsub.s32 2, %v5239
  %v5241 = vrot.slane %v5229, %v5240
  %v5242 = vlaneseq
  %v5243 = vshrl.u32 %v5242, 7
  %v5244 = vsub.s32 3, %v5243
  %v5245 = vrot.slane %v5229, %v5244
  %vm5246 = vcmp.eq.s32.totalorder %v5233, 1
  %vm5247 = vcmp.eq.s32.totalorder %v5237, 1
  %vm5248 = vcmp.eq.s32.totalorder %v5241, 1
  %vm5249 = vcmp.eq.s32.totalorder %v5245, 1
  %v5250 = vsel %vm5246, %v5227, 0.0
  %v5251 = vsel %vm5247, %v5226, 0.0
  %v5252 = vsel %vm5248, %v5225, 0.0
  %v5253 = vsel %vm5249, %v5228, 0.0
  %s5254 = scalar_lea.vmem %s9, 112
  %v5255 = vld [vmem:[%s5254] sm:$0xff]
  %v5257 = vsel %vm60, %v5255, 0
  %v5260 = vsel %vm67, %v5250, 0
  %v5263 = vsel %vm67, %v5251, 0
  %v5266 = vsel %vm67, %v5252, 0
  %v5269 = vsel %vm67, %v5253, 0
  %5271 = vmatprep.subr.mxu0 0.0
  %5272 = vmatpush1.msra.mxu0 0.0
  %5273 = vmatprep.subr.mxu0 0.0
  %5274 = vmatpush1.msra.mxu0 0.0
  %5275 = vmatprep.subr.mxu0 0.0
  %5276 = vmatpush1.msra.mxu0 0.0
  %5277 = vmatprep.subr.mxu0 0.0
  %5278 = vmatpush1.msra.mxu0 0.0
  %5279 = vmatprep.subr.mxu0 0.0
  %5280 = vmatpush1.msra.mxu0 0.0
  %5281 = vmatprep.subr.mxu0 0.0
  %5282 = vmatpush1.msra.mxu0 0.0
  %5283 = vmatprep.subr.mxu0 0.0
  %5284 = vmatpush1.msra.mxu0 0.0
  %5285 = vmatprep.subr.mxu0 0.0
  %5286 = vmatpush1.msra.mxu0 0.0
  %5287 = vmatprep.subr.mxu0 0.0
  %5288 = vmatpush1.msra.mxu0 0.0
  %5289 = vmatprep.subr.mxu0 0.0
  %5290 = vmatpush1.msra.mxu0 0.0
  %5291 = vmatprep.subr.mxu0 0.0
  %5292 = vmatpush1.msra.mxu0 0.0
  %5293 = vmatprep.subr.mxu0 0.0
  %5294 = vmatpush1.msra.mxu0 0.0
  %5295 = vmatprep.subr.mxu0 0.0
  %5296 = vmatpush1.msra.mxu0 0.0
  %5297 = vmatprep.subr.mxu0 0.0
  %5298 = vmatpush1.msra.mxu0 0.0
  %5299 = vmatprep.subr.mxu0 0.0
  %5300 = vmatpush1.msra.mxu0 0.0
  %5301 = vmatprep.subr.mxu0 %v5263
  %5302 = vmatpush1.msra.mxu0 %v5260
  %5303 = vmatprep.subr.mxu0 0.0
  %5304 = vmatpush2.msra.mxu0 0.0
  %5305 = vmatprep.subr.mxu0 0.0
  %5306 = vmatpush2.msra.mxu0 0.0
  %5307 = vmatprep.subr.mxu0 0.0
  %5308 = vmatpush2.msra.mxu0 0.0
  %5309 = vmatprep.subr.mxu0 0.0
  %5310 = vmatpush2.msra.mxu0 0.0
  %5311 = vmatprep.subr.mxu0 0.0
  %5312 = vmatpush2.msra.mxu0 0.0
  %5313 = vmatprep.subr.mxu0 0.0
  %5314 = vmatpush2.msra.mxu0 0.0
  %5315 = vmatprep.subr.mxu0 0.0
  %5316 = vmatpush2.msra.mxu0 0.0
  %5317 = vmatprep.subr.mxu0 0.0
  %5318 = vmatpush2.msra.mxu0 0.0
  %5319 = vmatprep.subr.mxu0 0.0
  %5320 = vmatpush2.msra.mxu0 0.0
  %5321 = vmatprep.subr.mxu0 0.0
  %5322 = vmatpush2.msra.mxu0 0.0
  %5323 = vmatprep.subr.mxu0 0.0
  %5324 = vmatpush2.msra.mxu0 0.0
  %5325 = vmatprep.subr.mxu0 0.0
  %5326 = vmatpush2.msra.mxu0 0.0
  %5327 = vmatprep.subr.mxu0 0.0
  %5328 = vmatpush2.msra.mxu0 0.0
  %5329 = vmatprep.subr.mxu0 0.0
  %5330 = vmatpush2.msra.mxu0 0.0
  %5331 = vmatprep.subr.mxu0 0.0
  %5332 = vmatpush2.msra.mxu0 0.0
  %5333 = vmatprep.subr.mxu0 0.0
  %5334 = vmatpush2.msra.mxu0 0.0
  %5335 = vmatprep.mubr.f32.mxu0 0.0
  %5336 = vmatmul.mubr.f32.gmra.mxu0 %v5257
  %v5337 = vpop.f32.mrf.mxu0
  %v5338 = vadd.f32 0.0, %v5337
  %v5339 = vpop.f32.mrf.mxu0
  %v5340 = vadd.f32 0.0, %v5339
  %5341 = vdwg.mxu0
  %5342 = vmatprep.subr.mxu0 0.0
  %5343 = vmatpush1.msra.mxu0 0.0
  %5344 = vmatprep.subr.mxu0 0.0
  %5345 = vmatpush1.msra.mxu0 0.0
  %5346 = vmatprep.subr.mxu0 0.0
  %5347 = vmatpush1.msra.mxu0 0.0
  %5348 = vmatprep.subr.mxu0 0.0
  %5349 = vmatpush1.msra.mxu0 0.0
  %5350 = vmatprep.subr.mxu0 0.0
  %5351 = vmatpush1.msra.mxu0 0.0
  %5352 = vmatprep.subr.mxu0 0.0
  %5353 = vmatpush1.msra.mxu0 0.0
  %5354 = vmatprep.subr.mxu0 0.0
  %5355 = vmatpush1.msra.mxu0 0.0
  %5356 = vmatprep.subr.mxu0 0.0
  %5357 = vmatpush1.msra.mxu0 0.0
  %5358 = vmatprep.subr.mxu0 0.0
  %5359 = vmatpush1.msra.mxu0 0.0
  %5360 = vmatprep.subr.mxu0 0.0
  %5361 = vmatpush1.msra.mxu0 0.0
  %5362 = vmatprep.subr.mxu0 0.0
  %5363 = vmatpush1.msra.mxu0 0.0
  %5364 = vmatprep.subr.mxu0 0.0
  %5365 = vmatpush1.msra.mxu0 0.0
  %5366 = vmatprep.subr.mxu0 0.0
  %5367 = vmatpush1.msra.mxu0 0.0
  %5368 = vmatprep.subr.mxu0 0.0
  %5369 = vmatpush1.msra.mxu0 0.0
  %5370 = vmatprep.subr.mxu0 0.0
  %5371 = vmatpush1.msra.mxu0 0.0
  %5372 = vmatprep.subr.mxu0 %v5269
  %5373 = vmatpush1.msra.mxu0 %v5266
  %5374 = vmatprep.subr.mxu0 0.0
  %5375 = vmatpush2.msra.mxu0 0.0
  %5376 = vmatprep.subr.mxu0 0.0
  %5377 = vmatpush2.msra.mxu0 0.0
  %5378 = vmatprep.subr.mxu0 0.0
  %5379 = vmatpush2.msra.mxu0 0.0
  %5380 = vmatprep.subr.mxu0 0.0
  %5381 = vmatpush2.msra.mxu0 0.0
  %5382 = vmatprep.subr.mxu0 0.0
  %5383 = vmatpush2.msra.mxu0 0.0
  %5384 = vmatprep.subr.mxu0 0.0
  %5385 = vmatpush2.msra.mxu0 0.0
  %5386 = vmatprep.subr.mxu0 0.0
  %5387 = vmatpush2.msra.mxu0 0.0
  %5388 = vmatprep.subr.mxu0 0.0
  %5389 = vmatpush2.msra.mxu0 0.0
  %5390 = vmatprep.subr.mxu0 0.0
  %5391 = vmatpush2.msra.mxu0 0.0
  %5392 = vmatprep.subr.mxu0 0.0
  %5393 = vmatpush2.msra.mxu0 0.0
  %5394 = vmatprep.subr.mxu0 0.0
  %5395 = vmatpush2.msra.mxu0 0.0
  %5396 = vmatprep.subr.mxu0 0.0
  %5397 = vmatpush2.msra.mxu0 0.0
  %5398 = vmatprep.subr.mxu0 0.0
  %5399 = vmatpush2.msra.mxu0 0.0
  %5400 = vmatprep.subr.mxu0 0.0
  %5401 = vmatpush2.msra.mxu0 0.0
  %5402 = vmatprep.subr.mxu0 0.0
  %5403 = vmatpush2.msra.mxu0 0.0
  %5404 = vmatprep.subr.mxu0 0.0
  %5405 = vmatpush2.msra.mxu0 0.0
  %5406 = vmatprep.mubr.f32.mxu0 0.0
  %5407 = vmatmul.mubr.f32.gmra.mxu0 %v5257
  %v5408 = vpop.f32.mrf.mxu0
  %v5409 = vadd.f32 0.0, %v5408
  %v5410 = vpop.f32.mrf.mxu0
  %v5411 = vadd.f32 0.0, %v5410
  %5412 = vdwg.mxu0
  %v5413 = vadd.f32 %v5212, %v5338
  %v5414 = vadd.f32 %v5213, %v5340
  %v5415 = vadd.f32 %v5214, %v5409
  %v5416 = vadd.f32 %v5215, %v5411
  %5417 = vrot.lane.b32.xlu0 %v2546, 114
  %v5418 = vpop.permute.xlu0 %5417
  %5419 = vrot.lane.b32.xlu0 %v2547, 114
  %v5420 = vpop.permute.xlu0 %5419
  %5421 = vrot.lane.b32.xlu0 %v2548, 114
  %v5422 = vpop.permute.xlu0 %5421
  %5423 = vrot.lane.b32.xlu0 %v2549, 114
  %v5424 = vpop.permute.xlu0 %5423
  %vm5425 = vcmp.lt.s32.totalorder %v345, 114
  %v5426 = vsel %vm5425, %v5422, %v5424
  %v5427 = vsel %vm5425, %v5420, %v5422
  %v5428 = vsel %vm5425, %v5418, %v5420
  %v5429 = vsel %vm5425, %v5424, %v5418
  %vm5430 = vmand %vm578, %vm2568
  %v5431 = vsel %vm5430, 1, 0
  %v5432 = vlaneseq
  %v5433 = vshrl.u32 %v5432, 7
  %v5434 = vsub.s32 0, %v5433
  %v5435 = vrot.slane %v5431, %v5434
  %v5436 = vlaneseq
  %v5437 = vshrl.u32 %v5436, 7
  %v5438 = vsub.s32 1, %v5437
  %v5439 = vrot.slane %v5431, %v5438
  %v5440 = vlaneseq
  %v5441 = vshrl.u32 %v5440, 7
  %v5442 = vsub.s32 2, %v5441
  %v5443 = vrot.slane %v5431, %v5442
  %v5444 = vlaneseq
  %v5445 = vshrl.u32 %v5444, 7
  %v5446 = vsub.s32 3, %v5445
  %v5447 = vrot.slane %v5431, %v5446
  %vm5448 = vcmp.eq.s32.totalorder %v5435, 1
  %vm5449 = vcmp.eq.s32.totalorder %v5439, 1
  %vm5450 = vcmp.eq.s32.totalorder %v5443, 1
  %vm5451 = vcmp.eq.s32.totalorder %v5447, 1
  %v5452 = vsel %vm5448, %v5428, 0.0
  %v5453 = vsel %vm5449, %v5427, 0.0
  %v5454 = vsel %vm5450, %v5426, 0.0
  %v5455 = vsel %vm5451, %v5429, 0.0
  %s5456 = scalar_lea.vmem %s9, 120
  %v5457 = vld [vmem:[%s5456] sm:$0xff]
  %v5459 = vsel %vm60, %v5457, 0
  %v5462 = vsel %vm67, %v5452, 0
  %v5465 = vsel %vm67, %v5453, 0
  %v5468 = vsel %vm67, %v5454, 0
  %v5471 = vsel %vm67, %v5455, 0
  %5473 = vmatprep.subr.mxu0 0.0
  %5474 = vmatpush1.msra.mxu0 0.0
  %5475 = vmatprep.subr.mxu0 0.0
  %5476 = vmatpush1.msra.mxu0 0.0
  %5477 = vmatprep.subr.mxu0 0.0
  %5478 = vmatpush1.msra.mxu0 0.0
  %5479 = vmatprep.subr.mxu0 0.0
  %5480 = vmatpush1.msra.mxu0 0.0
  %5481 = vmatprep.subr.mxu0 0.0
  %5482 = vmatpush1.msra.mxu0 0.0
  %5483 = vmatprep.subr.mxu0 0.0
  %5484 = vmatpush1.msra.mxu0 0.0
  %5485 = vmatprep.subr.mxu0 0.0
  %5486 = vmatpush1.msra.mxu0 0.0
  %5487 = vmatprep.subr.mxu0 0.0
  %5488 = vmatpush1.msra.mxu0 0.0
  %5489 = vmatprep.subr.mxu0 0.0
  %5490 = vmatpush1.msra.mxu0 0.0
  %5491 = vmatprep.subr.mxu0 0.0
  %5492 = vmatpush1.msra.mxu0 0.0
  %5493 = vmatprep.subr.mxu0 0.0
  %5494 = vmatpush1.msra.mxu0 0.0
  %5495 = vmatprep.subr.mxu0 0.0
  %5496 = vmatpush1.msra.mxu0 0.0
  %5497 = vmatprep.subr.mxu0 0.0
  %5498 = vmatpush1.msra.mxu0 0.0
  %5499 = vmatprep.subr.mxu0 0.0
  %5500 = vmatpush1.msra.mxu0 0.0
  %5501 = vmatprep.subr.mxu0 0.0
  %5502 = vmatpush1.msra.mxu0 0.0
  %5503 = vmatprep.subr.mxu0 %v5465
  %5504 = vmatpush1.msra.mxu0 %v5462
  %5505 = vmatprep.subr.mxu0 0.0
  %5506 = vmatpush2.msra.mxu0 0.0
  %5507 = vmatprep.subr.mxu0 0.0
  %5508 = vmatpush2.msra.mxu0 0.0
  %5509 = vmatprep.subr.mxu0 0.0
  %5510 = vmatpush2.msra.mxu0 0.0
  %5511 = vmatprep.subr.mxu0 0.0
  %5512 = vmatpush2.msra.mxu0 0.0
  %5513 = vmatprep.subr.mxu0 0.0
  %5514 = vmatpush2.msra.mxu0 0.0
  %5515 = vmatprep.subr.mxu0 0.0
  %5516 = vmatpush2.msra.mxu0 0.0
  %5517 = vmatprep.subr.mxu0 0.0
  %5518 = vmatpush2.msra.mxu0 0.0
  %5519 = vmatprep.subr.mxu0 0.0
  %5520 = vmatpush2.msra.mxu0 0.0
  %5521 = vmatprep.subr.mxu0 0.0
  %5522 = vmatpush2.msra.mxu0 0.0
  %5523 = vmatprep.subr.mxu0 0.0
  %5524 = vmatpush2.msra.mxu0 0.0
  %5525 = vmatprep.subr.mxu0 0.0
  %5526 = vmatpush2.msra.mxu0 0.0
  %5527 = vmatprep.subr.mxu0 0.0
  %5528 = vmatpush2.msra.mxu0 0.0
  %5529 = vmatprep.subr.mxu0 0.0
  %5530 = vmatpush2.msra.mxu0 0.0
  %5531 = vmatprep.subr.mxu0 0.0
  %5532 = vmatpush2.msra.mxu0 0.0
  %5533 = vmatprep.subr.mxu0 0.0
  %5534 = vmatpush2.msra.mxu0 0.0
  %5535 = vmatprep.subr.mxu0 0.0
  %5536 = vmatpush2.msra.mxu0 0.0
  %5537 = vmatprep.mubr.f32.mxu0 0.0
  %5538 = vmatmul.mubr.f32.gmra.mxu0 %v5459
  %v5539 = vpop.f32.mrf.mxu0
  %v5540 = vadd.f32 0.0, %v5539
  %v5541 = vpop.f32.mrf.mxu0
  %v5542 = vadd.f32 0.0, %v5541
  %5543 = vdwg.mxu0
  %5544 = vmatprep.subr.mxu0 0.0
  %5545 = vmatpush1.msra.mxu0 0.0
  %5546 = vmatprep.subr.mxu0 0.0
  %5547 = vmatpush1.msra.mxu0 0.0
  %5548 = vmatprep.subr.mxu0 0.0
  %5549 = vmatpush1.msra.mxu0 0.0
  %5550 = vmatprep.subr.mxu0 0.0
  %5551 = vmatpush1.msra.mxu0 0.0
  %5552 = vmatprep.subr.mxu0 0.0
  %5553 = vmatpush1.msra.mxu0 0.0
  %5554 = vmatprep.subr.mxu0 0.0
  %5555 = vmatpush1.msra.mxu0 0.0
  %5556 = vmatprep.subr.mxu0 0.0
  %5557 = vmatpush1.msra.mxu0 0.0
  %5558 = vmatprep.subr.mxu0 0.0
  %5559 = vmatpush1.msra.mxu0 0.0
  %5560 = vmatprep.subr.mxu0 0.0
  %5561 = vmatpush1.msra.mxu0 0.0
  %5562 = vmatprep.subr.mxu0 0.0
  %5563 = vmatpush1.msra.mxu0 0.0
  %5564 = vmatprep.subr.mxu0 0.0
  %5565 = vmatpush1.msra.mxu0 0.0
  %5566 = vmatprep.subr.mxu0 0.0
  %5567 = vmatpush1.msra.mxu0 0.0
  %5568 = vmatprep.subr.mxu0 0.0
  %5569 = vmatpush1.msra.mxu0 0.0
  %5570 = vmatprep.subr.mxu0 0.0
  %5571 = vmatpush1.msra.mxu0 0.0
  %5572 = vmatprep.subr.mxu0 0.0
  %5573 = vmatpush1.msra.mxu0 0.0
  %5574 = vmatprep.subr.mxu0 %v5471
  %5575 = vmatpush1.msra.mxu0 %v5468
  %5576 = vmatprep.subr.mxu0 0.0
  %5577 = vmatpush2.msra.mxu0 0.0
  %5578 = vmatprep.subr.mxu0 0.0
  %5579 = vmatpush2.msra.mxu0 0.0
  %5580 = vmatprep.subr.mxu0 0.0
  %5581 = vmatpush2.msra.mxu0 0.0
  %5582 = vmatprep.subr.mxu0 0.0
  %5583 = vmatpush2.msra.mxu0 0.0
  %5584 = vmatprep.subr.mxu0 0.0
  %5585 = vmatpush2.msra.mxu0 0.0
  %5586 = vmatprep.subr.mxu0 0.0
  %5587 = vmatpush2.msra.mxu0 0.0
  %5588 = vmatprep.subr.mxu0 0.0
  %5589 = vmatpush2.msra.mxu0 0.0
  %5590 = vmatprep.subr.mxu0 0.0
  %5591 = vmatpush2.msra.mxu0 0.0
  %5592 = vmatprep.subr.mxu0 0.0
  %5593 = vmatpush2.msra.mxu0 0.0
  %5594 = vmatprep.subr.mxu0 0.0
  %5595 = vmatpush2.msra.mxu0 0.0
  %5596 = vmatprep.subr.mxu0 0.0
  %5597 = vmatpush2.msra.mxu0 0.0
  %5598 = vmatprep.subr.mxu0 0.0
  %5599 = vmatpush2.msra.mxu0 0.0
  %5600 = vmatprep.subr.mxu0 0.0
  %5601 = vmatpush2.msra.mxu0 0.0
  %5602 = vmatprep.subr.mxu0 0.0
  %5603 = vmatpush2.msra.mxu0 0.0
  %5604 = vmatprep.subr.mxu0 0.0
  %5605 = vmatpush2.msra.mxu0 0.0
  %5606 = vmatprep.subr.mxu0 0.0
  %5607 = vmatpush2.msra.mxu0 0.0
  %5608 = vmatprep.mubr.f32.mxu0 0.0
  %5609 = vmatmul.mubr.f32.gmra.mxu0 %v5459
  %v5610 = vpop.f32.mrf.mxu0
  %v5611 = vadd.f32 0.0, %v5610
  %v5612 = vpop.f32.mrf.mxu0
  %v5613 = vadd.f32 0.0, %v5612
  %5614 = vdwg.mxu0
  %v5615 = vadd.f32 %v5413, %v5540
  %v5616 = vadd.f32 %v5414, %v5542
  %v5617 = vadd.f32 %v5415, %v5611
  %v5618 = vadd.f32 %v5416, %v5613
  %5619 = vrot.lane.b32.xlu0 %v2546, 113
  %v5620 = vpop.permute.xlu0 %5619
  %5621 = vrot.lane.b32.xlu0 %v2547, 113
  %v5622 = vpop.permute.xlu0 %5621
  %5623 = vrot.lane.b32.xlu0 %v2548, 113
  %v5624 = vpop.permute.xlu0 %5623
  %5625 = vrot.lane.b32.xlu0 %v2549, 113
  %v5626 = vpop.permute.xlu0 %5625
  %v5627 = vsel %vm573, %v5624, %v5626
  %v5628 = vsel %vm573, %v5622, %v5624
  %v5629 = vsel %vm573, %v5620, %v5622
  %v5630 = vsel %vm573, %v5626, %v5620
  %v5631 = vsel %vm601, %v5629, 0.0
  %v5632 = vsel %vm602, %v5628, 0.0
  %v5633 = vsel %vm603, %v5627, 0.0
  %v5634 = vsel %vm604, %v5630, 0.0
  %s5635 = scalar_lea.vmem %s9, 128
  %v5636 = vld [vmem:[%s5635] sm:$0xff]
  %v5638 = vsel %vm60, %v5636, 0
  %v5641 = vsel %vm67, %v5631, 0
  %v5644 = vsel %vm67, %v5632, 0
  %v5647 = vsel %vm67, %v5633, 0
  %v5650 = vsel %vm67, %v5634, 0
  %5652 = vmatprep.subr.mxu0 0.0
  %5653 = vmatpush1.msra.mxu0 0.0
  %5654 = vmatprep.subr.mxu0 0.0
  %5655 = vmatpush1.msra.mxu0 0.0
  %5656 = vmatprep.subr.mxu0 0.0
  %5657 = vmatpush1.msra.mxu0 0.0
  %5658 = vmatprep.subr.mxu0 0.0
  %5659 = vmatpush1.msra.mxu0 0.0
  %5660 = vmatprep.subr.mxu0 0.0
  %5661 = vmatpush1.msra.mxu0 0.0
  %5662 = vmatprep.subr.mxu0 0.0
  %5663 = vmatpush1.msra.mxu0 0.0
  %5664 = vmatprep.subr.mxu0 0.0
  %5665 = vmatpush1.msra.mxu0 0.0
  %5666 = vmatprep.subr.mxu0 0.0
  %5667 = vmatpush1.msra.mxu0 0.0
  %5668 = vmatprep.subr.mxu0 0.0
  %5669 = vmatpush1.msra.mxu0 0.0
  %5670 = vmatprep.subr.mxu0 0.0
  %5671 = vmatpush1.msra.mxu0 0.0
  %5672 = vmatprep.subr.mxu0 0.0
  %5673 = vmatpush1.msra.mxu0 0.0
  %5674 = vmatprep.subr.mxu0 0.0
  %5675 = vmatpush1.msra.mxu0 0.0
  %5676 = vmatprep.subr.mxu0 0.0
  %5677 = vmatpush1.msra.mxu0 0.0
  %5678 = vmatprep.subr.mxu0 0.0
  %5679 = vmatpush1.msra.mxu0 0.0
  %5680 = vmatprep.subr.mxu0 0.0
  %5681 = vmatpush1.msra.mxu0 0.0
  %5682 = vmatprep.subr.mxu0 %v5644
  %5683 = vmatpush1.msra.mxu0 %v5641
  %5684 = vmatprep.subr.mxu0 0.0
  %5685 = vmatpush2.msra.mxu0 0.0
  %5686 = vmatprep.subr.mxu0 0.0
  %5687 = vmatpush2.msra.mxu0 0.0
  %5688 = vmatprep.subr.mxu0 0.0
  %5689 = vmatpush2.msra.mxu0 0.0
  %5690 = vmatprep.subr.mxu0 0.0
  %5691 = vmatpush2.msra.mxu0 0.0
  %5692 = vmatprep.subr.mxu0 0.0
  %5693 = vmatpush2.msra.mxu0 0.0
  %5694 = vmatprep.subr.mxu0 0.0
  %5695 = vmatpush2.msra.mxu0 0.0
  %5696 = vmatprep.subr.mxu0 0.0
  %5697 = vmatpush2.msra.mxu0 0.0
  %5698 = vmatprep.subr.mxu0 0.0
  %5699 = vmatpush2.msra.mxu0 0.0
  %5700 = vmatprep.subr.mxu0 0.0
  %5701 = vmatpush2.msra.mxu0 0.0
  %5702 = vmatprep.subr.mxu0 0.0
  %5703 = vmatpush2.msra.mxu0 0.0
  %5704 = vmatprep.subr.mxu0 0.0
  %5705 = vmatpush2.msra.mxu0 0.0
  %5706 = vmatprep.subr.mxu0 0.0
  %5707 = vmatpush2.msra.mxu0 0.0
  %5708 = vmatprep.subr.mxu0 0.0
  %5709 = vmatpush2.msra.mxu0 0.0
  %5710 = vmatprep.subr.mxu0 0.0
  %5711 = vmatpush2.msra.mxu0 0.0
  %5712 = vmatprep.subr.mxu0 0.0
  %5713 = vmatpush2.msra.mxu0 0.0
  %5714 = vmatprep.subr.mxu0 0.0
  %5715 = vmatpush2.msra.mxu0 0.0
  %5716 = vmatprep.mubr.f32.mxu0 0.0
  %5717 = vmatmul.mubr.f32.gmra.mxu0 %v5638
  %v5718 = vpop.f32.mrf.mxu0
  %v5719 = vadd.f32 0.0, %v5718
  %v5720 = vpop.f32.mrf.mxu0
  %v5721 = vadd.f32 0.0, %v5720
  %5722 = vdwg.mxu0
  %5723 = vmatprep.subr.mxu0 0.0
  %5724 = vmatpush1.msra.mxu0 0.0
  %5725 = vmatprep.subr.mxu0 0.0
  %5726 = vmatpush1.msra.mxu0 0.0
  %5727 = vmatprep.subr.mxu0 0.0
  %5728 = vmatpush1.msra.mxu0 0.0
  %5729 = vmatprep.subr.mxu0 0.0
  %5730 = vmatpush1.msra.mxu0 0.0
  %5731 = vmatprep.subr.mxu0 0.0
  %5732 = vmatpush1.msra.mxu0 0.0
  %5733 = vmatprep.subr.mxu0 0.0
  %5734 = vmatpush1.msra.mxu0 0.0
  %5735 = vmatprep.subr.mxu0 0.0
  %5736 = vmatpush1.msra.mxu0 0.0
  %5737 = vmatprep.subr.mxu0 0.0
  %5738 = vmatpush1.msra.mxu0 0.0
  %5739 = vmatprep.subr.mxu0 0.0
  %5740 = vmatpush1.msra.mxu0 0.0
  %5741 = vmatprep.subr.mxu0 0.0
  %5742 = vmatpush1.msra.mxu0 0.0
  %5743 = vmatprep.subr.mxu0 0.0
  %5744 = vmatpush1.msra.mxu0 0.0
  %5745 = vmatprep.subr.mxu0 0.0
  %5746 = vmatpush1.msra.mxu0 0.0
  %5747 = vmatprep.subr.mxu0 0.0
  %5748 = vmatpush1.msra.mxu0 0.0
  %5749 = vmatprep.subr.mxu0 0.0
  %5750 = vmatpush1.msra.mxu0 0.0
  %5751 = vmatprep.subr.mxu0 0.0
  %5752 = vmatpush1.msra.mxu0 0.0
  %5753 = vmatprep.subr.mxu0 %v5650
  %5754 = vmatpush1.msra.mxu0 %v5647
  %5755 = vmatprep.subr.mxu0 0.0
  %5756 = vmatpush2.msra.mxu0 0.0
  %5757 = vmatprep.subr.mxu0 0.0
  %5758 = vmatpush2.msra.mxu0 0.0
  %5759 = vmatprep.subr.mxu0 0.0
  %5760 = vmatpush2.msra.mxu0 0.0
  %5761 = vmatprep.subr.mxu0 0.0
  %5762 = vmatpush2.msra.mxu0 0.0
  %5763 = vmatprep.subr.mxu0 0.0
  %5764 = vmatpush2.msra.mxu0 0.0
  %5765 = vmatprep.subr.mxu0 0.0
  %5766 = vmatpush2.msra.mxu0 0.0
  %5767 = vmatprep.subr.mxu0 0.0
  %5768 = vmatpush2.msra.mxu0 0.0
  %5769 = vmatprep.subr.mxu0 0.0
  %5770 = vmatpush2.msra.mxu0 0.0
  %5771 = vmatprep.subr.mxu0 0.0
  %5772 = vmatpush2.msra.mxu0 0.0
  %5773 = vmatprep.subr.mxu0 0.0
  %5774 = vmatpush2.msra.mxu0 0.0
  %5775 = vmatprep.subr.mxu0 0.0
  %5776 = vmatpush2.msra.mxu0 0.0
  %5777 = vmatprep.subr.mxu0 0.0
  %5778 = vmatpush2.msra.mxu0 0.0
  %5779 = vmatprep.subr.mxu0 0.0
  %5780 = vmatpush2.msra.mxu0 0.0
  %5781 = vmatprep.subr.mxu0 0.0
  %5782 = vmatpush2.msra.mxu0 0.0
  %5783 = vmatprep.subr.mxu0 0.0
  %5784 = vmatpush2.msra.mxu0 0.0
  %5785 = vmatprep.subr.mxu0 0.0
  %5786 = vmatpush2.msra.mxu0 0.0
  %5787 = vmatprep.mubr.f32.mxu0 0.0
  %5788 = vmatmul.mubr.f32.gmra.mxu0 %v5638
  %v5789 = vpop.f32.mrf.mxu0
  %v5790 = vadd.f32 0.0, %v5789
  %v5791 = vpop.f32.mrf.mxu0
  %v5792 = vadd.f32 0.0, %v5791
  %5793 = vdwg.mxu0
  %v5794 = vadd.f32 %v5615, %v5719
  %v5795 = vadd.f32 %v5616, %v5721
  %v5796 = vadd.f32 %v5617, %v5790
  %v5797 = vadd.f32 %v5618, %v5792
  %5798 = vrot.lane.b32.xlu0 %v2546, 112
  %v5799 = vpop.permute.xlu0 %5798
  %5800 = vrot.lane.b32.xlu0 %v2547, 112
  %v5801 = vpop.permute.xlu0 %5800
  %5802 = vrot.lane.b32.xlu0 %v2548, 112
  %v5803 = vpop.permute.xlu0 %5802
  %5804 = vrot.lane.b32.xlu0 %v2549, 112
  %v5805 = vpop.permute.xlu0 %5804
  %v5806 = vsel %vm617, %v5803, %v5805
  %v5807 = vsel %vm617, %v5801, %v5803
  %v5808 = vsel %vm617, %v5799, %v5801
  %v5809 = vsel %vm617, %v5805, %v5799
  %v5810 = vsel %vm643, %v5808, 0.0
  %v5811 = vsel %vm644, %v5807, 0.0
  %v5812 = vsel %vm645, %v5806, 0.0
  %v5813 = vsel %vm646, %v5809, 0.0
  %s5814 = scalar_lea.vmem %s9, 136
  %v5815 = vld [vmem:[%s5814] sm:$0xff]
  %v5817 = vsel %vm60, %v5815, 0
  %v5820 = vsel %vm67, %v5810, 0
  %v5823 = vsel %vm67, %v5811, 0
  %v5826 = vsel %vm67, %v5812, 0
  %v5829 = vsel %vm67, %v5813, 0
  %5831 = vmatprep.subr.mxu0 0.0
  %5832 = vmatpush1.msra.mxu0 0.0
  %5833 = vmatprep.subr.mxu0 0.0
  %5834 = vmatpush1.msra.mxu0 0.0
  %5835 = vmatprep.subr.mxu0 0.0
  %5836 = vmatpush1.msra.mxu0 0.0
  %5837 = vmatprep.subr.mxu0 0.0
  %5838 = vmatpush1.msra.mxu0 0.0
  %5839 = vmatprep.subr.mxu0 0.0
  %5840 = vmatpush1.msra.mxu0 0.0
  %5841 = vmatprep.subr.mxu0 0.0
  %5842 = vmatpush1.msra.mxu0 0.0
  %5843 = vmatprep.subr.mxu0 0.0
  %5844 = vmatpush1.msra.mxu0 0.0
  %5845 = vmatprep.subr.mxu0 0.0
  %5846 = vmatpush1.msra.mxu0 0.0
  %5847 = vmatprep.subr.mxu0 0.0
  %5848 = vmatpush1.msra.mxu0 0.0
  %5849 = vmatprep.subr.mxu0 0.0
  %5850 = vmatpush1.msra.mxu0 0.0
  %5851 = vmatprep.subr.mxu0 0.0
  %5852 = vmatpush1.msra.mxu0 0.0
  %5853 = vmatprep.subr.mxu0 0.0
  %5854 = vmatpush1.msra.mxu0 0.0
  %5855 = vmatprep.subr.mxu0 0.0
  %5856 = vmatpush1.msra.mxu0 0.0
  %5857 = vmatprep.subr.mxu0 0.0
  %5858 = vmatpush1.msra.mxu0 0.0
  %5859 = vmatprep.subr.mxu0 0.0
  %5860 = vmatpush1.msra.mxu0 0.0
  %5861 = vmatprep.subr.mxu0 %v5823
  %5862 = vmatpush1.msra.mxu0 %v5820
  %5863 = vmatprep.subr.mxu0 0.0
  %5864 = vmatpush2.msra.mxu0 0.0
  %5865 = vmatprep.subr.mxu0 0.0
  %5866 = vmatpush2.msra.mxu0 0.0
  %5867 = vmatprep.subr.mxu0 0.0
  %5868 = vmatpush2.msra.mxu0 0.0
  %5869 = vmatprep.subr.mxu0 0.0
  %5870 = vmatpush2.msra.mxu0 0.0
  %5871 = vmatprep.subr.mxu0 0.0
  %5872 = vmatpush2.msra.mxu0 0.0
  %5873 = vmatprep.subr.mxu0 0.0
  %5874 = vmatpush2.msra.mxu0 0.0
  %5875 = vmatprep.subr.mxu0 0.0
  %5876 = vmatpush2.msra.mxu0 0.0
  %5877 = vmatprep.subr.mxu0 0.0
  %5878 = vmatpush2.msra.mxu0 0.0
  %5879 = vmatprep.subr.mxu0 0.0
  %5880 = vmatpush2.msra.mxu0 0.0
  %5881 = vmatprep.subr.mxu0 0.0
  %5882 = vmatpush2.msra.mxu0 0.0
  %5883 = vmatprep.subr.mxu0 0.0
  %5884 = vmatpush2.msra.mxu0 0.0
  %5885 = vmatprep.subr.mxu0 0.0
  %5886 = vmatpush2.msra.mxu0 0.0
  %5887 = vmatprep.subr.mxu0 0.0
  %5888 = vmatpush2.msra.mxu0 0.0
  %5889 = vmatprep.subr.mxu0 0.0
  %5890 = vmatpush2.msra.mxu0 0.0
  %5891 = vmatprep.subr.mxu0 0.0
  %5892 = vmatpush2.msra.mxu0 0.0
  %5893 = vmatprep.subr.mxu0 0.0
  %5894 = vmatpush2.msra.mxu0 0.0
  %5895 = vmatprep.mubr.f32.mxu0 0.0
  %5896 = vmatmul.mubr.f32.gmra.mxu0 %v5817
  %v5897 = vpop.f32.mrf.mxu0
  %v5898 = vadd.f32 0.0, %v5897
  %v5899 = vpop.f32.mrf.mxu0
  %v5900 = vadd.f32 0.0, %v5899
  %5901 = vdwg.mxu0
  %5902 = vmatprep.subr.mxu0 0.0
  %5903 = vmatpush1.msra.mxu0 0.0
  %5904 = vmatprep.subr.mxu0 0.0
  %5905 = vmatpush1.msra.mxu0 0.0
  %5906 = vmatprep.subr.mxu0 0.0
  %5907 = vmatpush1.msra.mxu0 0.0
  %5908 = vmatprep.subr.mxu0 0.0
  %5909 = vmatpush1.msra.mxu0 0.0
  %5910 = vmatprep.subr.mxu0 0.0
  %5911 = vmatpush1.msra.mxu0 0.0
  %5912 = vmatprep.subr.mxu0 0.0
  %5913 = vmatpush1.msra.mxu0 0.0
  %5914 = vmatprep.subr.mxu0 0.0
  %5915 = vmatpush1.msra.mxu0 0.0
  %5916 = vmatprep.subr.mxu0 0.0
  %5917 = vmatpush1.msra.mxu0 0.0
  %5918 = vmatprep.subr.mxu0 0.0
  %5919 = vmatpush1.msra.mxu0 0.0
  %5920 = vmatprep.subr.mxu0 0.0
  %5921 = vmatpush1.msra.mxu0 0.0
  %5922 = vmatprep.subr.mxu0 0.0
  %5923 = vmatpush1.msra.mxu0 0.0
  %5924 = vmatprep.subr.mxu0 0.0
  %5925 = vmatpush1.msra.mxu0 0.0
  %5926 = vmatprep.subr.mxu0 0.0
  %5927 = vmatpush1.msra.mxu0 0.0
  %5928 = vmatprep.subr.mxu0 0.0
  %5929 = vmatpush1.msra.mxu0 0.0
  %5930 = vmatprep.subr.mxu0 0.0
  %5931 = vmatpush1.msra.mxu0 0.0
  %5932 = vmatprep.subr.mxu0 %v5829
  %5933 = vmatpush1.msra.mxu0 %v5826
  %5934 = vmatprep.subr.mxu0 0.0
  %5935 = vmatpush2.msra.mxu0 0.0
  %5936 = vmatprep.subr.mxu0 0.0
  %5937 = vmatpush2.msra.mxu0 0.0
  %5938 = vmatprep.subr.mxu0 0.0
  %5939 = vmatpush2.msra.mxu0 0.0
  %5940 = vmatprep.subr.mxu0 0.0
  %5941 = vmatpush2.msra.mxu0 0.0
  %5942 = vmatprep.subr.mxu0 0.0
  %5943 = vmatpush2.msra.mxu0 0.0
  %5944 = vmatprep.subr.mxu0 0.0
  %5945 = vmatpush2.msra.mxu0 0.0
  %5946 = vmatprep.subr.mxu0 0.0
  %5947 = vmatpush2.msra.mxu0 0.0
  %5948 = vmatprep.subr.mxu0 0.0
  %5949 = vmatpush2.msra.mxu0 0.0
  %5950 = vmatprep.subr.mxu0 0.0
  %5951 = vmatpush2.msra.mxu0 0.0
  %5952 = vmatprep.subr.mxu0 0.0
  %5953 = vmatpush2.msra.mxu0 0.0
  %5954 = vmatprep.subr.mxu0 0.0
  %5955 = vmatpush2.msra.mxu0 0.0
  %5956 = vmatprep.subr.mxu0 0.0
  %5957 = vmatpush2.msra.mxu0 0.0
  %5958 = vmatprep.subr.mxu0 0.0
  %5959 = vmatpush2.msra.mxu0 0.0
  %5960 = vmatprep.subr.mxu0 0.0
  %5961 = vmatpush2.msra.mxu0 0.0
  %5962 = vmatprep.subr.mxu0 0.0
  %5963 = vmatpush2.msra.mxu0 0.0
  %5964 = vmatprep.subr.mxu0 0.0
  %5965 = vmatpush2.msra.mxu0 0.0
  %5966 = vmatprep.mubr.f32.mxu0 0.0
  %5967 = vmatmul.mubr.f32.gmra.mxu0 %v5817
  %v5968 = vpop.f32.mrf.mxu0
  %v5969 = vadd.f32 0.0, %v5968
  %v5970 = vpop.f32.mrf.mxu0
  %v5971 = vadd.f32 0.0, %v5970
  %5972 = vdwg.mxu0
  %v5973 = vadd.f32 %v5794, %v5898
  %v5974 = vadd.f32 %v5795, %v5900
  %v5975 = vadd.f32 %v5796, %v5969
  %v5976 = vadd.f32 %v5797, %v5971
  %5977 = vrot.lane.b32.xlu0 %v2546, 111
  %v5978 = vpop.permute.xlu0 %5977
  %5979 = vrot.lane.b32.xlu0 %v2547, 111
  %v5980 = vpop.permute.xlu0 %5979
  %5981 = vrot.lane.b32.xlu0 %v2548, 111
  %v5982 = vpop.permute.xlu0 %5981
  %5983 = vrot.lane.b32.xlu0 %v2549, 111
  %v5984 = vpop.permute.xlu0 %5983
  %v5985 = vsel %vm659, %v5982, %v5984
  %v5986 = vsel %vm659, %v5980, %v5982
  %v5987 = vsel %vm659, %v5978, %v5980
  %v5988 = vsel %vm659, %v5984, %v5978
  %v5989 = vsel %vm686, %v5987, 0.0
  %v5990 = vsel %vm687, %v5986, 0.0
  %v5991 = vsel %vm688, %v5985, 0.0
  %v5992 = vsel %vm689, %v5988, 0.0
  %s5993 = scalar_lea.vmem %s9, 144
  %v5994 = vld [vmem:[%s5993] sm:$0xff]
  %v5996 = vsel %vm60, %v5994, 0
  %v5999 = vsel %vm67, %v5989, 0
  %v6002 = vsel %vm67, %v5990, 0
  %v6005 = vsel %vm67, %v5991, 0
  %v6008 = vsel %vm67, %v5992, 0
  %6010 = vmatprep.subr.mxu0 0.0
  %6011 = vmatpush1.msra.mxu0 0.0
  %6012 = vmatprep.subr.mxu0 0.0
  %6013 = vmatpush1.msra.mxu0 0.0
  %6014 = vmatprep.subr.mxu0 0.0
  %6015 = vmatpush1.msra.mxu0 0.0
  %6016 = vmatprep.subr.mxu0 0.0
  %6017 = vmatpush1.msra.mxu0 0.0
  %6018 = vmatprep.subr.mxu0 0.0
  %6019 = vmatpush1.msra.mxu0 0.0
  %6020 = vmatprep.subr.mxu0 0.0
  %6021 = vmatpush1.msra.mxu0 0.0
  %6022 = vmatprep.subr.mxu0 0.0
  %6023 = vmatpush1.msra.mxu0 0.0
  %6024 = vmatprep.subr.mxu0 0.0
  %6025 = vmatpush1.msra.mxu0 0.0
  %6026 = vmatprep.subr.mxu0 0.0
  %6027 = vmatpush1.msra.mxu0 0.0
  %6028 = vmatprep.subr.mxu0 0.0
  %6029 = vmatpush1.msra.mxu0 0.0
  %6030 = vmatprep.subr.mxu0 0.0
  %6031 = vmatpush1.msra.mxu0 0.0
  %6032 = vmatprep.subr.mxu0 0.0
  %6033 = vmatpush1.msra.mxu0 0.0
  %6034 = vmatprep.subr.mxu0 0.0
  %6035 = vmatpush1.msra.mxu0 0.0
  %6036 = vmatprep.subr.mxu0 0.0
  %6037 = vmatpush1.msra.mxu0 0.0
  %6038 = vmatprep.subr.mxu0 0.0
  %6039 = vmatpush1.msra.mxu0 0.0
  %6040 = vmatprep.subr.mxu0 %v6002
  %6041 = vmatpush1.msra.mxu0 %v5999
  %6042 = vmatprep.subr.mxu0 0.0
  %6043 = vmatpush2.msra.mxu0 0.0
  %6044 = vmatprep.subr.mxu0 0.0
  %6045 = vmatpush2.msra.mxu0 0.0
  %6046 = vmatprep.subr.mxu0 0.0
  %6047 = vmatpush2.msra.mxu0 0.0
  %6048 = vmatprep.subr.mxu0 0.0
  %6049 = vmatpush2.msra.mxu0 0.0
  %6050 = vmatprep.subr.mxu0 0.0
  %6051 = vmatpush2.msra.mxu0 0.0
  %6052 = vmatprep.subr.mxu0 0.0
  %6053 = vmatpush2.msra.mxu0 0.0
  %6054 = vmatprep.subr.mxu0 0.0
  %6055 = vmatpush2.msra.mxu0 0.0
  %6056 = vmatprep.subr.mxu0 0.0
  %6057 = vmatpush2.msra.mxu0 0.0
  %6058 = vmatprep.subr.mxu0 0.0
  %6059 = vmatpush2.msra.mxu0 0.0
  %6060 = vmatprep.subr.mxu0 0.0
  %6061 = vmatpush2.msra.mxu0 0.0
  %6062 = vmatprep.subr.mxu0 0.0
  %6063 = vmatpush2.msra.mxu0 0.0
  %6064 = vmatprep.subr.mxu0 0.0
  %6065 = vmatpush2.msra.mxu0 0.0
  %6066 = vmatprep.subr.mxu0 0.0
  %6067 = vmatpush2.msra.mxu0 0.0
  %6068 = vmatprep.subr.mxu0 0.0
  %6069 = vmatpush2.msra.mxu0 0.0
  %6070 = vmatprep.subr.mxu0 0.0
  %6071 = vmatpush2.msra.mxu0 0.0
  %6072 = vmatprep.subr.mxu0 0.0
  %6073 = vmatpush2.msra.mxu0 0.0
  %6074 = vmatprep.mubr.f32.mxu0 0.0
  %6075 = vmatmul.mubr.f32.gmra.mxu0 %v5996
  %v6076 = vpop.f32.mrf.mxu0
  %v6077 = vadd.f32 0.0, %v6076
  %v6078 = vpop.f32.mrf.mxu0
  %v6079 = vadd.f32 0.0, %v6078
  %6080 = vdwg.mxu0
  %6081 = vmatprep.subr.mxu0 0.0
  %6082 = vmatpush1.msra.mxu0 0.0
  %6083 = vmatprep.subr.mxu0 0.0
  %6084 = vmatpush1.msra.mxu0 0.0
  %6085 = vmatprep.subr.mxu0 0.0
  %6086 = vmatpush1.msra.mxu0 0.0
  %6087 = vmatprep.subr.mxu0 0.0
  %6088 = vmatpush1.msra.mxu0 0.0
  %6089 = vmatprep.subr.mxu0 0.0
  %6090 = vmatpush1.msra.mxu0 0.0
  %6091 = vmatprep.subr.mxu0 0.0
  %6092 = vmatpush1.msra.mxu0 0.0
  %6093 = vmatprep.subr.mxu0 0.0
  %6094 = vmatpush1.msra.mxu0 0.0
  %6095 = vmatprep.subr.mxu0 0.0
  %6096 = vmatpush1.msra.mxu0 0.0
  %6097 = vmatprep.subr.mxu0 0.0
  %6098 = vmatpush1.msra.mxu0 0.0
  %6099 = vmatprep.subr.mxu0 0.0
  %6100 = vmatpush1.msra.mxu0 0.0
  %6101 = vmatprep.subr.mxu0 0.0
  %6102 = vmatpush1.msra.mxu0 0.0
  %6103 = vmatprep.subr.mxu0 0.0
  %6104 = vmatpush1.msra.mxu0 0.0
  %6105 = vmatprep.subr.mxu0 0.0
  %6106 = vmatpush1.msra.mxu0 0.0
  %6107 = vmatprep.subr.mxu0 0.0
  %6108 = vmatpush1.msra.mxu0 0.0
  %6109 = vmatprep.subr.mxu0 0.0
  %6110 = vmatpush1.msra.mxu0 0.0
  %6111 = vmatprep.subr.mxu0 %v6008
  %6112 = vmatpush1.msra.mxu0 %v6005
  %6113 = vmatprep.subr.mxu0 0.0
  %6114 = vmatpush2.msra.mxu0 0.0
  %6115 = vmatprep.subr.mxu0 0.0
  %6116 = vmatpush2.msra.mxu0 0.0
  %6117 = vmatprep.subr.mxu0 0.0
  %6118 = vmatpush2.msra.mxu0 0.0
  %6119 = vmatprep.subr.mxu0 0.0
  %6120 = vmatpush2.msra.mxu0 0.0
  %6121 = vmatprep.subr.mxu0 0.0
  %6122 = vmatpush2.msra.mxu0 0.0
  %6123 = vmatprep.subr.mxu0 0.0
  %6124 = vmatpush2.msra.mxu0 0.0
  %6125 = vmatprep.subr.mxu0 0.0
  %6126 = vmatpush2.msra.mxu0 0.0
  %6127 = vmatprep.subr.mxu0 0.0
  %6128 = vmatpush2.msra.mxu0 0.0
  %6129 = vmatprep.subr.mxu0 0.0
  %6130 = vmatpush2.msra.mxu0 0.0
  %6131 = vmatprep.subr.mxu0 0.0
  %6132 = vmatpush2.msra.mxu0 0.0
  %6133 = vmatprep.subr.mxu0 0.0
  %6134 = vmatpush2.msra.mxu0 0.0
  %6135 = vmatprep.subr.mxu0 0.0
  %6136 = vmatpush2.msra.mxu0 0.0
  %6137 = vmatprep.subr.mxu0 0.0
  %6138 = vmatpush2.msra.mxu0 0.0
  %6139 = vmatprep.subr.mxu0 0.0
  %6140 = vmatpush2.msra.mxu0 0.0
  %6141 = vmatprep.subr.mxu0 0.0
  %6142 = vmatpush2.msra.mxu0 0.0
  %6143 = vmatprep.subr.mxu0 0.0
  %6144 = vmatpush2.msra.mxu0 0.0
  %6145 = vmatprep.mubr.f32.mxu0 0.0
  %6146 = vmatmul.mubr.f32.gmra.mxu0 %v5996
  %v6147 = vpop.f32.mrf.mxu0
  %v6148 = vadd.f32 0.0, %v6147
  %v6149 = vpop.f32.mrf.mxu0
  %v6150 = vadd.f32 0.0, %v6149
  %6151 = vdwg.mxu0
  %v6152 = vadd.f32 %v5973, %v6077
  %v6153 = vadd.f32 %v5974, %v6079
  %v6154 = vadd.f32 %v5975, %v6148
  %v6155 = vadd.f32 %v5976, %v6150
  %6156 = vrot.lane.b32.xlu0 %v2546, 110
  %v6157 = vpop.permute.xlu0 %6156
  %6158 = vrot.lane.b32.xlu0 %v2547, 110
  %v6159 = vpop.permute.xlu0 %6158
  %6160 = vrot.lane.b32.xlu0 %v2548, 110
  %v6161 = vpop.permute.xlu0 %6160
  %6162 = vrot.lane.b32.xlu0 %v2549, 110
  %v6163 = vpop.permute.xlu0 %6162
  %vm6164 = vcmp.lt.s32.totalorder %v345, 110
  %v6165 = vsel %vm6164, %v6161, %v6163
  %v6166 = vsel %vm6164, %v6159, %v6161
  %v6167 = vsel %vm6164, %v6157, %v6159
  %v6168 = vsel %vm6164, %v6163, %v6157
  %vm6169 = vmand %vm578, %vm3367
  %v6170 = vsel %vm6169, 1, 0
  %v6171 = vlaneseq
  %v6172 = vshrl.u32 %v6171, 7
  %v6173 = vsub.s32 0, %v6172
  %v6174 = vrot.slane %v6170, %v6173
  %v6175 = vlaneseq
  %v6176 = vshrl.u32 %v6175, 7
  %v6177 = vsub.s32 1, %v6176
  %v6178 = vrot.slane %v6170, %v6177
  %v6179 = vlaneseq
  %v6180 = vshrl.u32 %v6179, 7
  %v6181 = vsub.s32 2, %v6180
  %v6182 = vrot.slane %v6170, %v6181
  %v6183 = vlaneseq
  %v6184 = vshrl.u32 %v6183, 7
  %v6185 = vsub.s32 3, %v6184
  %v6186 = vrot.slane %v6170, %v6185
  %vm6187 = vcmp.eq.s32.totalorder %v6174, 1
  %vm6188 = vcmp.eq.s32.totalorder %v6178, 1
  %vm6189 = vcmp.eq.s32.totalorder %v6182, 1
  %vm6190 = vcmp.eq.s32.totalorder %v6186, 1
  %v6191 = vsel %vm6187, %v6167, 0.0
  %v6192 = vsel %vm6188, %v6166, 0.0
  %v6193 = vsel %vm6189, %v6165, 0.0
  %v6194 = vsel %vm6190, %v6168, 0.0
  %s6195 = scalar_lea.vmem %s9, 152
  %v6196 = vld [vmem:[%s6195] sm:$0xff]
  %v6198 = vsel %vm60, %v6196, 0
  %v6201 = vsel %vm67, %v6191, 0
  %v6204 = vsel %vm67, %v6192, 0
  %v6207 = vsel %vm67, %v6193, 0
  %v6210 = vsel %vm67, %v6194, 0
  %6212 = vmatprep.subr.mxu0 0.0
  %6213 = vmatpush1.msra.mxu0 0.0
  %6214 = vmatprep.subr.mxu0 0.0
  %6215 = vmatpush1.msra.mxu0 0.0
  %6216 = vmatprep.subr.mxu0 0.0
  %6217 = vmatpush1.msra.mxu0 0.0
  %6218 = vmatprep.subr.mxu0 0.0
  %6219 = vmatpush1.msra.mxu0 0.0
  %6220 = vmatprep.subr.mxu0 0.0
  %6221 = vmatpush1.msra.mxu0 0.0
  %6222 = vmatprep.subr.mxu0 0.0
  %6223 = vmatpush1.msra.mxu0 0.0
  %6224 = vmatprep.subr.mxu0 0.0
  %6225 = vmatpush1.msra.mxu0 0.0
  %6226 = vmatprep.subr.mxu0 0.0
  %6227 = vmatpush1.msra.mxu0 0.0
  %6228 = vmatprep.subr.mxu0 0.0
  %6229 = vmatpush1.msra.mxu0 0.0
  %6230 = vmatprep.subr.mxu0 0.0
  %6231 = vmatpush1.msra.mxu0 0.0
  %6232 = vmatprep.subr.mxu0 0.0
  %6233 = vmatpush1.msra.mxu0 0.0
  %6234 = vmatprep.subr.mxu0 0.0
  %6235 = vmatpush1.msra.mxu0 0.0
  %6236 = vmatprep.subr.mxu0 0.0
  %6237 = vmatpush1.msra.mxu0 0.0
  %6238 = vmatprep.subr.mxu0 0.0
  %6239 = vmatpush1.msra.mxu0 0.0
  %6240 = vmatprep.subr.mxu0 0.0
  %6241 = vmatpush1.msra.mxu0 0.0
  %6242 = vmatprep.subr.mxu0 %v6204
  %6243 = vmatpush1.msra.mxu0 %v6201
  %6244 = vmatprep.subr.mxu0 0.0
  %6245 = vmatpush2.msra.mxu0 0.0
  %6246 = vmatprep.subr.mxu0 0.0
  %6247 = vmatpush2.msra.mxu0 0.0
  %6248 = vmatprep.subr.mxu0 0.0
  %6249 = vmatpush2.msra.mxu0 0.0
  %6250 = vmatprep.subr.mxu0 0.0
  %6251 = vmatpush2.msra.mxu0 0.0
  %6252 = vmatprep.subr.mxu0 0.0
  %6253 = vmatpush2.msra.mxu0 0.0
  %6254 = vmatprep.subr.mxu0 0.0
  %6255 = vmatpush2.msra.mxu0 0.0
  %6256 = vmatprep.subr.mxu0 0.0
  %6257 = vmatpush2.msra.mxu0 0.0
  %6258 = vmatprep.subr.mxu0 0.0
  %6259 = vmatpush2.msra.mxu0 0.0
  %6260 = vmatprep.subr.mxu0 0.0
  %6261 = vmatpush2.msra.mxu0 0.0
  %6262 = vmatprep.subr.mxu0 0.0
  %6263 = vmatpush2.msra.mxu0 0.0
  %6264 = vmatprep.subr.mxu0 0.0
  %6265 = vmatpush2.msra.mxu0 0.0
  %6266 = vmatprep.subr.mxu0 0.0
  %6267 = vmatpush2.msra.mxu0 0.0
  %6268 = vmatprep.subr.mxu0 0.0
  %6269 = vmatpush2.msra.mxu0 0.0
  %6270 = vmatprep.subr.mxu0 0.0
  %6271 = vmatpush2.msra.mxu0 0.0
  %6272 = vmatprep.subr.mxu0 0.0
  %6273 = vmatpush2.msra.mxu0 0.0
  %6274 = vmatprep.subr.mxu0 0.0
  %6275 = vmatpush2.msra.mxu0 0.0
  %6276 = vmatprep.mubr.f32.mxu0 0.0
  %6277 = vmatmul.mubr.f32.gmra.mxu0 %v6198
  %v6278 = vpop.f32.mrf.mxu0
  %v6279 = vadd.f32 0.0, %v6278
  %v6280 = vpop.f32.mrf.mxu0
  %v6281 = vadd.f32 0.0, %v6280
  %6282 = vdwg.mxu0
  %6283 = vmatprep.subr.mxu0 0.0
  %6284 = vmatpush1.msra.mxu0 0.0
  %6285 = vmatprep.subr.mxu0 0.0
  %6286 = vmatpush1.msra.mxu0 0.0
  %6287 = vmatprep.subr.mxu0 0.0
  %6288 = vmatpush1.msra.mxu0 0.0
  %6289 = vmatprep.subr.mxu0 0.0
  %6290 = vmatpush1.msra.mxu0 0.0
  %6291 = vmatprep.subr.mxu0 0.0
  %6292 = vmatpush1.msra.mxu0 0.0
  %6293 = vmatprep.subr.mxu0 0.0
  %6294 = vmatpush1.msra.mxu0 0.0
  %6295 = vmatprep.subr.mxu0 0.0
  %6296 = vmatpush1.msra.mxu0 0.0
  %6297 = vmatprep.subr.mxu0 0.0
  %6298 = vmatpush1.msra.mxu0 0.0
  %6299 = vmatprep.subr.mxu0 0.0
  %6300 = vmatpush1.msra.mxu0 0.0
  %6301 = vmatprep.subr.mxu0 0.0
  %6302 = vmatpush1.msra.mxu0 0.0
  %6303 = vmatprep.subr.mxu0 0.0
  %6304 = vmatpush1.msra.mxu0 0.0
  %6305 = vmatprep.subr.mxu0 0.0
  %6306 = vmatpush1.msra.mxu0 0.0
  %6307 = vmatprep.subr.mxu0 0.0
  %6308 = vmatpush1.msra.mxu0 0.0
  %6309 = vmatprep.subr.mxu0 0.0
  %6310 = vmatpush1.msra.mxu0 0.0
  %6311 = vmatprep.subr.mxu0 0.0
  %6312 = vmatpush1.msra.mxu0 0.0
  %6313 = vmatprep.subr.mxu0 %v6210
  %6314 = vmatpush1.msra.mxu0 %v6207
  %6315 = vmatprep.subr.mxu0 0.0
  %6316 = vmatpush2.msra.mxu0 0.0
  %6317 = vmatprep.subr.mxu0 0.0
  %6318 = vmatpush2.msra.mxu0 0.0
  %6319 = vmatprep.subr.mxu0 0.0
  %6320 = vmatpush2.msra.mxu0 0.0
  %6321 = vmatprep.subr.mxu0 0.0
  %6322 = vmatpush2.msra.mxu0 0.0
  %6323 = vmatprep.subr.mxu0 0.0
  %6324 = vmatpush2.msra.mxu0 0.0
  %6325 = vmatprep.subr.mxu0 0.0
  %6326 = vmatpush2.msra.mxu0 0.0
  %6327 = vmatprep.subr.mxu0 0.0
  %6328 = vmatpush2.msra.mxu0 0.0
  %6329 = vmatprep.subr.mxu0 0.0
  %6330 = vmatpush2.msra.mxu0 0.0
  %6331 = vmatprep.subr.mxu0 0.0
  %6332 = vmatpush2.msra.mxu0 0.0
  %6333 = vmatprep.subr.mxu0 0.0
  %6334 = vmatpush2.msra.mxu0 0.0
  %6335 = vmatprep.subr.mxu0 0.0
  %6336 = vmatpush2.msra.mxu0 0.0
  %6337 = vmatprep.subr.mxu0 0.0
  %6338 = vmatpush2.msra.mxu0 0.0
  %6339 = vmatprep.subr.mxu0 0.0
  %6340 = vmatpush2.msra.mxu0 0.0
  %6341 = vmatprep.subr.mxu0 0.0
  %6342 = vmatpush2.msra.mxu0 0.0
  %6343 = vmatprep.subr.mxu0 0.0
  %6344 = vmatpush2.msra.mxu0 0.0
  %6345 = vmatprep.subr.mxu0 0.0
  %6346 = vmatpush2.msra.mxu0 0.0
  %6347 = vmatprep.mubr.f32.mxu0 0.0
  %6348 = vmatmul.mubr.f32.gmra.mxu0 %v6198
  %v6349 = vpop.f32.mrf.mxu0
  %v6350 = vadd.f32 0.0, %v6349
  %v6351 = vpop.f32.mrf.mxu0
  %v6352 = vadd.f32 0.0, %v6351
  %6353 = vdwg.mxu0
  %v6354 = vadd.f32 %v6152, %v6279
  %v6355 = vadd.f32 %v6153, %v6281
  %v6356 = vadd.f32 %v6154, %v6350
  %v6357 = vadd.f32 %v6155, %v6352
  %6358 = vrot.lane.b32.xlu0 %v2546, 98
  %v6359 = vpop.permute.xlu0 %6358
  %6360 = vrot.lane.b32.xlu0 %v2547, 98
  %v6361 = vpop.permute.xlu0 %6360
  %6362 = vrot.lane.b32.xlu0 %v2548, 98
  %v6363 = vpop.permute.xlu0 %6362
  %6364 = vrot.lane.b32.xlu0 %v2549, 98
  %v6365 = vpop.permute.xlu0 %6364
  %vm6366 = vcmp.lt.s32.totalorder %v345, 98
  %v6367 = vsel %vm6366, %v6363, %v6365
  %v6368 = vsel %vm6366, %v6361, %v6363
  %v6369 = vsel %vm6366, %v6359, %v6361
  %v6370 = vsel %vm6366, %v6365, %v6359
  %vm6371 = vcmp.lt.s32.totalorder %v52, 14
  %vm6372 = vmand %vm6371, %vm2568
  %v6373 = vsel %vm6372, 1, 0
  %v6374 = vlaneseq
  %v6375 = vshrl.u32 %v6374, 7
  %v6376 = vsub.s32 0, %v6375
  %v6377 = vrot.slane %v6373, %v6376
  %v6378 = vlaneseq
  %v6379 = vshrl.u32 %v6378, 7
  %v6380 = vsub.s32 1, %v6379
  %v6381 = vrot.slane %v6373, %v6380
  %v6382 = vlaneseq
  %v6383 = vshrl.u32 %v6382, 7
  %v6384 = vsub.s32 2, %v6383
  %v6385 = vrot.slane %v6373, %v6384
  %v6386 = vlaneseq
  %v6387 = vshrl.u32 %v6386, 7
  %v6388 = vsub.s32 3, %v6387
  %v6389 = vrot.slane %v6373, %v6388
  %vm6390 = vcmp.eq.s32.totalorder %v6377, 1
  %vm6391 = vcmp.eq.s32.totalorder %v6381, 1
  %vm6392 = vcmp.eq.s32.totalorder %v6385, 1
  %vm6393 = vcmp.eq.s32.totalorder %v6389, 1
  %v6394 = vsel %vm6390, %v6369, 0.0
  %v6395 = vsel %vm6391, %v6368, 0.0
  %v6396 = vsel %vm6392, %v6367, 0.0
  %v6397 = vsel %vm6393, %v6370, 0.0
  %s6398 = scalar_lea.vmem %s9, 160
  %v6399 = vld [vmem:[%s6398] sm:$0xff]
  %v6401 = vsel %vm60, %v6399, 0
  %v6404 = vsel %vm67, %v6394, 0
  %v6407 = vsel %vm67, %v6395, 0
  %v6410 = vsel %vm67, %v6396, 0
  %v6413 = vsel %vm67, %v6397, 0
  %6415 = vmatprep.subr.mxu0 0.0
  %6416 = vmatpush1.msra.mxu0 0.0
  %6417 = vmatprep.subr.mxu0 0.0
  %6418 = vmatpush1.msra.mxu0 0.0
  %6419 = vmatprep.subr.mxu0 0.0
  %6420 = vmatpush1.msra.mxu0 0.0
  %6421 = vmatprep.subr.mxu0 0.0
  %6422 = vmatpush1.msra.mxu0 0.0
  %6423 = vmatprep.subr.mxu0 0.0
  %6424 = vmatpush1.msra.mxu0 0.0
  %6425 = vmatprep.subr.mxu0 0.0
  %6426 = vmatpush1.msra.mxu0 0.0
  %6427 = vmatprep.subr.mxu0 0.0
  %6428 = vmatpush1.msra.mxu0 0.0
  %6429 = vmatprep.subr.mxu0 0.0
  %6430 = vmatpush1.msra.mxu0 0.0
  %6431 = vmatprep.subr.mxu0 0.0
  %6432 = vmatpush1.msra.mxu0 0.0
  %6433 = vmatprep.subr.mxu0 0.0
  %6434 = vmatpush1.msra.mxu0 0.0
  %6435 = vmatprep.subr.mxu0 0.0
  %6436 = vmatpush1.msra.mxu0 0.0
  %6437 = vmatprep.subr.mxu0 0.0
  %6438 = vmatpush1.msra.mxu0 0.0
  %6439 = vmatprep.subr.mxu0 0.0
  %6440 = vmatpush1.msra.mxu0 0.0
  %6441 = vmatprep.subr.mxu0 0.0
  %6442 = vmatpush1.msra.mxu0 0.0
  %6443 = vmatprep.subr.mxu0 0.0
  %6444 = vmatpush1.msra.mxu0 0.0
  %6445 = vmatprep.subr.mxu0 %v6407
  %6446 = vmatpush1.msra.mxu0 %v6404
  %6447 = vmatprep.subr.mxu0 0.0
  %6448 = vmatpush2.msra.mxu0 0.0
  %6449 = vmatprep.subr.mxu0 0.0
  %6450 = vmatpush2.msra.mxu0 0.0
  %6451 = vmatprep.subr.mxu0 0.0
  %6452 = vmatpush2.msra.mxu0 0.0
  %6453 = vmatprep.subr.mxu0 0.0
  %6454 = vmatpush2.msra.mxu0 0.0
  %6455 = vmatprep.subr.mxu0 0.0
  %6456 = vmatpush2.msra.mxu0 0.0
  %6457 = vmatprep.subr.mxu0 0.0
  %6458 = vmatpush2.msra.mxu0 0.0
  %6459 = vmatprep.subr.mxu0 0.0
  %6460 = vmatpush2.msra.mxu0 0.0
  %6461 = vmatprep.subr.mxu0 0.0
  %6462 = vmatpush2.msra.mxu0 0.0
  %6463 = vmatprep.subr.mxu0 0.0
  %6464 = vmatpush2.msra.mxu0 0.0
  %6465 = vmatprep.subr.mxu0 0.0
  %6466 = vmatpush2.msra.mxu0 0.0
  %6467 = vmatprep.subr.mxu0 0.0
  %6468 = vmatpush2.msra.mxu0 0.0
  %6469 = vmatprep.subr.mxu0 0.0
  %6470 = vmatpush2.msra.mxu0 0.0
  %6471 = vmatprep.subr.mxu0 0.0
  %6472 = vmatpush2.msra.mxu0 0.0
  %6473 = vmatprep.subr.mxu0 0.0
  %6474 = vmatpush2.msra.mxu0 0.0
  %6475 = vmatprep.subr.mxu0 0.0
  %6476 = vmatpush2.msra.mxu0 0.0
  %6477 = vmatprep.subr.mxu0 0.0
  %6478 = vmatpush2.msra.mxu0 0.0
  %6479 = vmatprep.mubr.f32.mxu0 0.0
  %6480 = vmatmul.mubr.f32.gmra.mxu0 %v6401
  %v6481 = vpop.f32.mrf.mxu0
  %v6482 = vadd.f32 0.0, %v6481
  %v6483 = vpop.f32.mrf.mxu0
  %v6484 = vadd.f32 0.0, %v6483
  %6485 = vdwg.mxu0
  %6486 = vmatprep.subr.mxu0 0.0
  %6487 = vmatpush1.msra.mxu0 0.0
  %6488 = vmatprep.subr.mxu0 0.0
  %6489 = vmatpush1.msra.mxu0 0.0
  %6490 = vmatprep.subr.mxu0 0.0
  %6491 = vmatpush1.msra.mxu0 0.0
  %6492 = vmatprep.subr.mxu0 0.0
  %6493 = vmatpush1.msra.mxu0 0.0
  %6494 = vmatprep.subr.mxu0 0.0
  %6495 = vmatpush1.msra.mxu0 0.0
  %6496 = vmatprep.subr.mxu0 0.0
  %6497 = vmatpush1.msra.mxu0 0.0
  %6498 = vmatprep.subr.mxu0 0.0
  %6499 = vmatpush1.msra.mxu0 0.0
  %6500 = vmatprep.subr.mxu0 0.0
  %6501 = vmatpush1.msra.mxu0 0.0
  %6502 = vmatprep.subr.mxu0 0.0
  %6503 = vmatpush1.msra.mxu0 0.0
  %6504 = vmatprep.subr.mxu0 0.0
  %6505 = vmatpush1.msra.mxu0 0.0
  %6506 = vmatprep.subr.mxu0 0.0
  %6507 = vmatpush1.msra.mxu0 0.0
  %6508 = vmatprep.subr.mxu0 0.0
  %6509 = vmatpush1.msra.mxu0 0.0
  %6510 = vmatprep.subr.mxu0 0.0
  %6511 = vmatpush1.msra.mxu0 0.0
  %6512 = vmatprep.subr.mxu0 0.0
  %6513 = vmatpush1.msra.mxu0 0.0
  %6514 = vmatprep.subr.mxu0 0.0
  %6515 = vmatpush1.msra.mxu0 0.0
  %6516 = vmatprep.subr.mxu0 %v6413
  %6517 = vmatpush1.msra.mxu0 %v6410
  %6518 = vmatprep.subr.mxu0 0.0
  %6519 = vmatpush2.msra.mxu0 0.0
  %6520 = vmatprep.subr.mxu0 0.0
  %6521 = vmatpush2.msra.mxu0 0.0
  %6522 = vmatprep.subr.mxu0 0.0
  %6523 = vmatpush2.msra.mxu0 0.0
  %6524 = vmatprep.subr.mxu0 0.0
  %6525 = vmatpush2.msra.mxu0 0.0
  %6526 = vmatprep.subr.mxu0 0.0
  %6527 = vmatpush2.msra.mxu0 0.0
  %6528 = vmatprep.subr.mxu0 0.0
  %6529 = vmatpush2.msra.mxu0 0.0
  %6530 = vmatprep.subr.mxu0 0.0
  %6531 = vmatpush2.msra.mxu0 0.0
  %6532 = vmatprep.subr.mxu0 0.0
  %6533 = vmatpush2.msra.mxu0 0.0
  %6534 = vmatprep.subr.mxu0 0.0
  %6535 = vmatpush2.msra.mxu0 0.0
  %6536 = vmatprep.subr.mxu0 0.0
  %6537 = vmatpush2.msra.mxu0 0.0
  %6538 = vmatprep.subr.mxu0 0.0
  %6539 = vmatpush2.msra.mxu0 0.0
  %6540 = vmatprep.subr.mxu0 0.0
  %6541 = vmatpush2.msra.mxu0 0.0
  %6542 = vmatprep.subr.mxu0 0.0
  %6543 = vmatpush2.msra.mxu0 0.0
  %6544 = vmatprep.subr.mxu0 0.0
  %6545 = vmatpush2.msra.mxu0 0.0
  %6546 = vmatprep.subr.mxu0 0.0
  %6547 = vmatpush2.msra.mxu0 0.0
  %6548 = vmatprep.subr.mxu0 0.0
  %6549 = vmatpush2.msra.mxu0 0.0
  %6550 = vmatprep.mubr.f32.mxu0 0.0
  %6551 = vmatmul.mubr.f32.gmra.mxu0 %v6401
  %v6552 = vpop.f32.mrf.mxu0
  %v6553 = vadd.f32 0.0, %v6552
  %v6554 = vpop.f32.mrf.mxu0
  %v6555 = vadd.f32 0.0, %v6554
  %6556 = vdwg.mxu0
  %v6557 = vadd.f32 %v6354, %v6482
  %v6558 = vadd.f32 %v6355, %v6484
  %v6559 = vadd.f32 %v6356, %v6553
  %v6560 = vadd.f32 %v6357, %v6555
  %6561 = vrot.lane.b32.xlu0 %v2546, 97
  %v6562 = vpop.permute.xlu0 %6561
  %6563 = vrot.lane.b32.xlu0 %v2547, 97
  %v6564 = vpop.permute.xlu0 %6563
  %6565 = vrot.lane.b32.xlu0 %v2548, 97
  %v6566 = vpop.permute.xlu0 %6565
  %6567 = vrot.lane.b32.xlu0 %v2549, 97
  %v6568 = vpop.permute.xlu0 %6567
  %vm6569 = vcmp.lt.s32.totalorder %v345, 97
  %v6570 = vsel %vm6569, %v6566, %v6568
  %v6571 = vsel %vm6569, %v6564, %v6566
  %v6572 = vsel %vm6569, %v6562, %v6564
  %v6573 = vsel %vm6569, %v6568, %v6562
  %vm6574 = vmand %vm6371, %vm352
  %v6575 = vsel %vm6574, 1, 0
  %v6576 = vlaneseq
  %v6577 = vshrl.u32 %v6576, 7
  %v6578 = vsub.s32 0, %v6577
  %v6579 = vrot.slane %v6575, %v6578
  %v6580 = vlaneseq
  %v6581 = vshrl.u32 %v6580, 7
  %v6582 = vsub.s32 1, %v6581
  %v6583 = vrot.slane %v6575, %v6582
  %v6584 = vlaneseq
  %v6585 = vshrl.u32 %v6584, 7
  %v6586 = vsub.s32 2, %v6585
  %v6587 = vrot.slane %v6575, %v6586
  %v6588 = vlaneseq
  %v6589 = vshrl.u32 %v6588, 7
  %v6590 = vsub.s32 3, %v6589
  %v6591 = vrot.slane %v6575, %v6590
  %vm6592 = vcmp.eq.s32.totalorder %v6579, 1
  %vm6593 = vcmp.eq.s32.totalorder %v6583, 1
  %vm6594 = vcmp.eq.s32.totalorder %v6587, 1
  %vm6595 = vcmp.eq.s32.totalorder %v6591, 1
  %v6596 = vsel %vm6592, %v6572, 0.0
  %v6597 = vsel %vm6593, %v6571, 0.0
  %v6598 = vsel %vm6594, %v6570, 0.0
  %v6599 = vsel %vm6595, %v6573, 0.0
  %s6600 = scalar_lea.vmem %s9, 168
  %v6601 = vld [vmem:[%s6600] sm:$0xff]
  %v6603 = vsel %vm60, %v6601, 0
  %v6606 = vsel %vm67, %v6596, 0
  %v6609 = vsel %vm67, %v6597, 0
  %v6612 = vsel %vm67, %v6598, 0
  %v6615 = vsel %vm67, %v6599, 0
  %6617 = vmatprep.subr.mxu0 0.0
  %6618 = vmatpush1.msra.mxu0 0.0
  %6619 = vmatprep.subr.mxu0 0.0
  %6620 = vmatpush1.msra.mxu0 0.0
  %6621 = vmatprep.subr.mxu0 0.0
  %6622 = vmatpush1.msra.mxu0 0.0
  %6623 = vmatprep.subr.mxu0 0.0
  %6624 = vmatpush1.msra.mxu0 0.0
  %6625 = vmatprep.subr.mxu0 0.0
  %6626 = vmatpush1.msra.mxu0 0.0
  %6627 = vmatprep.subr.mxu0 0.0
  %6628 = vmatpush1.msra.mxu0 0.0
  %6629 = vmatprep.subr.mxu0 0.0
  %6630 = vmatpush1.msra.mxu0 0.0
  %6631 = vmatprep.subr.mxu0 0.0
  %6632 = vmatpush1.msra.mxu0 0.0
  %6633 = vmatprep.subr.mxu0 0.0
  %6634 = vmatpush1.msra.mxu0 0.0
  %6635 = vmatprep.subr.mxu0 0.0
  %6636 = vmatpush1.msra.mxu0 0.0
  %6637 = vmatprep.subr.mxu0 0.0
  %6638 = vmatpush1.msra.mxu0 0.0
  %6639 = vmatprep.subr.mxu0 0.0
  %6640 = vmatpush1.msra.mxu0 0.0
  %6641 = vmatprep.subr.mxu0 0.0
  %6642 = vmatpush1.msra.mxu0 0.0
  %6643 = vmatprep.subr.mxu0 0.0
  %6644 = vmatpush1.msra.mxu0 0.0
  %6645 = vmatprep.subr.mxu0 0.0
  %6646 = vmatpush1.msra.mxu0 0.0
  %6647 = vmatprep.subr.mxu0 %v6609
  %6648 = vmatpush1.msra.mxu0 %v6606
  %6649 = vmatprep.subr.mxu0 0.0
  %6650 = vmatpush2.msra.mxu0 0.0
  %6651 = vmatprep.subr.mxu0 0.0
  %6652 = vmatpush2.msra.mxu0 0.0
  %6653 = vmatprep.subr.mxu0 0.0
  %6654 = vmatpush2.msra.mxu0 0.0
  %6655 = vmatprep.subr.mxu0 0.0
  %6656 = vmatpush2.msra.mxu0 0.0
  %6657 = vmatprep.subr.mxu0 0.0
  %6658 = vmatpush2.msra.mxu0 0.0
  %6659 = vmatprep.subr.mxu0 0.0
  %6660 = vmatpush2.msra.mxu0 0.0
  %6661 = vmatprep.subr.mxu0 0.0
  %6662 = vmatpush2.msra.mxu0 0.0
  %6663 = vmatprep.subr.mxu0 0.0
  %6664 = vmatpush2.msra.mxu0 0.0
  %6665 = vmatprep.subr.mxu0 0.0
  %6666 = vmatpush2.msra.mxu0 0.0
  %6667 = vmatprep.subr.mxu0 0.0
  %6668 = vmatpush2.msra.mxu0 0.0
  %6669 = vmatprep.subr.mxu0 0.0
  %6670 = vmatpush2.msra.mxu0 0.0
  %6671 = vmatprep.subr.mxu0 0.0
  %6672 = vmatpush2.msra.mxu0 0.0
  %6673 = vmatprep.subr.mxu0 0.0
  %6674 = vmatpush2.msra.mxu0 0.0
  %6675 = vmatprep.subr.mxu0 0.0
  %6676 = vmatpush2.msra.mxu0 0.0
  %6677 = vmatprep.subr.mxu0 0.0
  %6678 = vmatpush2.msra.mxu0 0.0
  %6679 = vmatprep.subr.mxu0 0.0
  %6680 = vmatpush2.msra.mxu0 0.0
  %6681 = vmatprep.mubr.f32.mxu0 0.0
  %6682 = vmatmul.mubr.f32.gmra.mxu0 %v6603
  %v6683 = vpop.f32.mrf.mxu0
  %v6684 = vadd.f32 0.0, %v6683
  %v6685 = vpop.f32.mrf.mxu0
  %v6686 = vadd.f32 0.0, %v6685
  %6687 = vdwg.mxu0
  %6688 = vmatprep.subr.mxu0 0.0
  %6689 = vmatpush1.msra.mxu0 0.0
  %6690 = vmatprep.subr.mxu0 0.0
  %6691 = vmatpush1.msra.mxu0 0.0
  %6692 = vmatprep.subr.mxu0 0.0
  %6693 = vmatpush1.msra.mxu0 0.0
  %6694 = vmatprep.subr.mxu0 0.0
  %6695 = vmatpush1.msra.mxu0 0.0
  %6696 = vmatprep.subr.mxu0 0.0
  %6697 = vmatpush1.msra.mxu0 0.0
  %6698 = vmatprep.subr.mxu0 0.0
  %6699 = vmatpush1.msra.mxu0 0.0
  %6700 = vmatprep.subr.mxu0 0.0
  %6701 = vmatpush1.msra.mxu0 0.0
  %6702 = vmatprep.subr.mxu0 0.0
  %6703 = vmatpush1.msra.mxu0 0.0
  %6704 = vmatprep.subr.mxu0 0.0
  %6705 = vmatpush1.msra.mxu0 0.0
  %6706 = vmatprep.subr.mxu0 0.0
  %6707 = vmatpush1.msra.mxu0 0.0
  %6708 = vmatprep.subr.mxu0 0.0
  %6709 = vmatpush1.msra.mxu0 0.0
  %6710 = vmatprep.subr.mxu0 0.0
  %6711 = vmatpush1.msra.mxu0 0.0
  %6712 = vmatprep.subr.mxu0 0.0
  %6713 = vmatpush1.msra.mxu0 0.0
  %6714 = vmatprep.subr.mxu0 0.0
  %6715 = vmatpush1.msra.mxu0 0.0
  %6716 = vmatprep.subr.mxu0 0.0
  %6717 = vmatpush1.msra.mxu0 0.0
  %6718 = vmatprep.subr.mxu0 %v6615
  %6719 = vmatpush1.msra.mxu0 %v6612
  %6720 = vmatprep.subr.mxu0 0.0
  %6721 = vmatpush2.msra.mxu0 0.0
  %6722 = vmatprep.subr.mxu0 0.0
  %6723 = vmatpush2.msra.mxu0 0.0
  %6724 = vmatprep.subr.mxu0 0.0
  %6725 = vmatpush2.msra.mxu0 0.0
  %6726 = vmatprep.subr.mxu0 0.0
  %6727 = vmatpush2.msra.mxu0 0.0
  %6728 = vmatprep.subr.mxu0 0.0
  %6729 = vmatpush2.msra.mxu0 0.0
  %6730 = vmatprep.subr.mxu0 0.0
  %6731 = vmatpush2.msra.mxu0 0.0
  %6732 = vmatprep.subr.mxu0 0.0
  %6733 = vmatpush2.msra.mxu0 0.0
  %6734 = vmatprep.subr.mxu0 0.0
  %6735 = vmatpush2.msra.mxu0 0.0
  %6736 = vmatprep.subr.mxu0 0.0
  %6737 = vmatpush2.msra.mxu0 0.0
  %6738 = vmatprep.subr.mxu0 0.0
  %6739 = vmatpush2.msra.mxu0 0.0
  %6740 = vmatprep.subr.mxu0 0.0
  %6741 = vmatpush2.msra.mxu0 0.0
  %6742 = vmatprep.subr.mxu0 0.0
  %6743 = vmatpush2.msra.mxu0 0.0
  %6744 = vmatprep.subr.mxu0 0.0
  %6745 = vmatpush2.msra.mxu0 0.0
  %6746 = vmatprep.subr.mxu0 0.0
  %6747 = vmatpush2.msra.mxu0 0.0
  %6748 = vmatprep.subr.mxu0 0.0
  %6749 = vmatpush2.msra.mxu0 0.0
  %6750 = vmatprep.subr.mxu0 0.0
  %6751 = vmatpush2.msra.mxu0 0.0
  %6752 = vmatprep.mubr.f32.mxu0 0.0
  %6753 = vmatmul.mubr.f32.gmra.mxu0 %v6603
  %v6754 = vpop.f32.mrf.mxu0
  %v6755 = vadd.f32 0.0, %v6754
  %v6756 = vpop.f32.mrf.mxu0
  %v6757 = vadd.f32 0.0, %v6756
  %6758 = vdwg.mxu0
  %v6759 = vadd.f32 %v6557, %v6684
  %v6760 = vadd.f32 %v6558, %v6686
  %v6761 = vadd.f32 %v6559, %v6755
  %v6762 = vadd.f32 %v6560, %v6757
  %6763 = vrot.lane.b32.xlu0 %v2546, 96
  %v6764 = vpop.permute.xlu0 %6763
  %6765 = vrot.lane.b32.xlu0 %v2547, 96
  %v6766 = vpop.permute.xlu0 %6765
  %6767 = vrot.lane.b32.xlu0 %v2548, 96
  %v6768 = vpop.permute.xlu0 %6767
  %6769 = vrot.lane.b32.xlu0 %v2549, 96
  %v6770 = vpop.permute.xlu0 %6769
  %vm6771 = vcmp.lt.s32.totalorder %v345, 96
  %v6772 = vsel %vm6771, %v6768, %v6770
  %v6773 = vsel %vm6771, %v6766, %v6768
  %v6774 = vsel %vm6771, %v6764, %v6766
  %v6775 = vsel %vm6771, %v6770, %v6764
  %v6776 = vsel %vm6371, 1, 0
  %v6777 = vlaneseq
  %v6778 = vshrl.u32 %v6777, 7
  %v6779 = vsub.s32 0, %v6778
  %v6780 = vrot.slane %v6776, %v6779
  %v6781 = vlaneseq
  %v6782 = vshrl.u32 %v6781, 7
  %v6783 = vsub.s32 1, %v6782
  %v6784 = vrot.slane %v6776, %v6783
  %v6785 = vlaneseq
  %v6786 = vshrl.u32 %v6785, 7
  %v6787 = vsub.s32 2, %v6786
  %v6788 = vrot.slane %v6776, %v6787
  %v6789 = vlaneseq
  %v6790 = vshrl.u32 %v6789, 7
  %v6791 = vsub.s32 3, %v6790
  %v6792 = vrot.slane %v6776, %v6791
  %vm6793 = vcmp.eq.s32.totalorder %v6780, 1
  %vm6794 = vcmp.eq.s32.totalorder %v6784, 1
  %vm6795 = vcmp.eq.s32.totalorder %v6788, 1
  %vm6796 = vcmp.eq.s32.totalorder %v6792, 1
  %v6797 = vsel %vm6793, %v6774, 0.0
  %v6798 = vsel %vm6794, %v6773, 0.0
  %v6799 = vsel %vm6795, %v6772, 0.0
  %v6800 = vsel %vm6796, %v6775, 0.0
  %s6801 = scalar_lea.vmem %s9, 176
  %v6802 = vld [vmem:[%s6801] sm:$0xff]
  %v6804 = vsel %vm60, %v6802, 0
  %v6807 = vsel %vm67, %v6797, 0
  %v6810 = vsel %vm67, %v6798, 0
  %v6813 = vsel %vm67, %v6799, 0
  %v6816 = vsel %vm67, %v6800, 0
  %6818 = vmatprep.subr.mxu0 0.0
  %6819 = vmatpush1.msra.mxu0 0.0
  %6820 = vmatprep.subr.mxu0 0.0
  %6821 = vmatpush1.msra.mxu0 0.0
  %6822 = vmatprep.subr.mxu0 0.0
  %6823 = vmatpush1.msra.mxu0 0.0
  %6824 = vmatprep.subr.mxu0 0.0
  %6825 = vmatpush1.msra.mxu0 0.0
  %6826 = vmatprep.subr.mxu0 0.0
  %6827 = vmatpush1.msra.mxu0 0.0
  %6828 = vmatprep.subr.mxu0 0.0
  %6829 = vmatpush1.msra.mxu0 0.0
  %6830 = vmatprep.subr.mxu0 0.0
  %6831 = vmatpush1.msra.mxu0 0.0
  %6832 = vmatprep.subr.mxu0 0.0
  %6833 = vmatpush1.msra.mxu0 0.0
  %6834 = vmatprep.subr.mxu0 0.0
  %6835 = vmatpush1.msra.mxu0 0.0
  %6836 = vmatprep.subr.mxu0 0.0
  %6837 = vmatpush1.msra.mxu0 0.0
  %6838 = vmatprep.subr.mxu0 0.0
  %6839 = vmatpush1.msra.mxu0 0.0
  %6840 = vmatprep.subr.mxu0 0.0
  %6841 = vmatpush1.msra.mxu0 0.0
  %6842 = vmatprep.subr.mxu0 0.0
  %6843 = vmatpush1.msra.mxu0 0.0
  %6844 = vmatprep.subr.mxu0 0.0
  %6845 = vmatpush1.msra.mxu0 0.0
  %6846 = vmatprep.subr.mxu0 0.0
  %6847 = vmatpush1.msra.mxu0 0.0
  %6848 = vmatprep.subr.mxu0 %v6810
  %6849 = vmatpush1.msra.mxu0 %v6807
  %6850 = vmatprep.subr.mxu0 0.0
  %6851 = vmatpush2.msra.mxu0 0.0
  %6852 = vmatprep.subr.mxu0 0.0
  %6853 = vmatpush2.msra.mxu0 0.0
  %6854 = vmatprep.subr.mxu0 0.0
  %6855 = vmatpush2.msra.mxu0 0.0
  %6856 = vmatprep.subr.mxu0 0.0
  %6857 = vmatpush2.msra.mxu0 0.0
  %6858 = vmatprep.subr.mxu0 0.0
  %6859 = vmatpush2.msra.mxu0 0.0
  %6860 = vmatprep.subr.mxu0 0.0
  %6861 = vmatpush2.msra.mxu0 0.0
  %6862 = vmatprep.subr.mxu0 0.0
  %6863 = vmatpush2.msra.mxu0 0.0
  %6864 = vmatprep.subr.mxu0 0.0
  %6865 = vmatpush2.msra.mxu0 0.0
  %6866 = vmatprep.subr.mxu0 0.0
  %6867 = vmatpush2.msra.mxu0 0.0
  %6868 = vmatprep.subr.mxu0 0.0
  %6869 = vmatpush2.msra.mxu0 0.0
  %6870 = vmatprep.subr.mxu0 0.0
  %6871 = vmatpush2.msra.mxu0 0.0
  %6872 = vmatprep.subr.mxu0 0.0
  %6873 = vmatpush2.msra.mxu0 0.0
  %6874 = vmatprep.subr.mxu0 0.0
  %6875 = vmatpush2.msra.mxu0 0.0
  %6876 = vmatprep.subr.mxu0 0.0
  %6877 = vmatpush2.msra.mxu0 0.0
  %6878 = vmatprep.subr.mxu0 0.0
  %6879 = vmatpush2.msra.mxu0 0.0
  %6880 = vmatprep.subr.mxu0 0.0
  %6881 = vmatpush2.msra.mxu0 0.0
  %6882 = vmatprep.mubr.f32.mxu0 0.0
  %6883 = vmatmul.mubr.f32.gmra.mxu0 %v6804
  %v6884 = vpop.f32.mrf.mxu0
  %v6885 = vadd.f32 0.0, %v6884
  %v6886 = vpop.f32.mrf.mxu0
  %v6887 = vadd.f32 0.0, %v6886
  %6888 = vdwg.mxu0
  %6889 = vmatprep.subr.mxu0 0.0
  %6890 = vmatpush1.msra.mxu0 0.0
  %6891 = vmatprep.subr.mxu0 0.0
  %6892 = vmatpush1.msra.mxu0 0.0
  %6893 = vmatprep.subr.mxu0 0.0
  %6894 = vmatpush1.msra.mxu0 0.0
  %6895 = vmatprep.subr.mxu0 0.0
  %6896 = vmatpush1.msra.mxu0 0.0
  %6897 = vmatprep.subr.mxu0 0.0
  %6898 = vmatpush1.msra.mxu0 0.0
  %6899 = vmatprep.subr.mxu0 0.0
  %6900 = vmatpush1.msra.mxu0 0.0
  %6901 = vmatprep.subr.mxu0 0.0
  %6902 = vmatpush1.msra.mxu0 0.0
  %6903 = vmatprep.subr.mxu0 0.0
  %6904 = vmatpush1.msra.mxu0 0.0
  %6905 = vmatprep.subr.mxu0 0.0
  %6906 = vmatpush1.msra.mxu0 0.0
  %6907 = vmatprep.subr.mxu0 0.0
  %6908 = vmatpush1.msra.mxu0 0.0
  %6909 = vmatprep.subr.mxu0 0.0
  %6910 = vmatpush1.msra.mxu0 0.0
  %6911 = vmatprep.subr.mxu0 0.0
  %6912 = vmatpush1.msra.mxu0 0.0
  %6913 = vmatprep.subr.mxu0 0.0
  %6914 = vmatpush1.msra.mxu0 0.0
  %6915 = vmatprep.subr.mxu0 0.0
  %6916 = vmatpush1.msra.mxu0 0.0
  %6917 = vmatprep.subr.mxu0 0.0
  %6918 = vmatpush1.msra.mxu0 0.0
  %6919 = vmatprep.subr.mxu0 %v6816
  %6920 = vmatpush1.msra.mxu0 %v6813
  %6921 = vmatprep.subr.mxu0 0.0
  %6922 = vmatpush2.msra.mxu0 0.0
  %6923 = vmatprep.subr.mxu0 0.0
  %6924 = vmatpush2.msra.mxu0 0.0
  %6925 = vmatprep.subr.mxu0 0.0
  %6926 = vmatpush2.msra.mxu0 0.0
  %6927 = vmatprep.subr.mxu0 0.0
  %6928 = vmatpush2.msra.mxu0 0.0
  %6929 = vmatprep.subr.mxu0 0.0
  %6930 = vmatpush2.msra.mxu0 0.0
  %6931 = vmatprep.subr.mxu0 0.0
  %6932 = vmatpush2.msra.mxu0 0.0
  %6933 = vmatprep.subr.mxu0 0.0
  %6934 = vmatpush2.msra.mxu0 0.0
  %6935 = vmatprep.subr.mxu0 0.0
  %6936 = vmatpush2.msra.mxu0 0.0
  %6937 = vmatprep.subr.mxu0 0.0
  %6938 = vmatpush2.msra.mxu0 0.0
  %6939 = vmatprep.subr.mxu0 0.0
  %6940 = vmatpush2.msra.mxu0 0.0
  %6941 = vmatprep.subr.mxu0 0.0
  %6942 = vmatpush2.msra.mxu0 0.0
  %6943 = vmatprep.subr.mxu0 0.0
  %6944 = vmatpush2.msra.mxu0 0.0
  %6945 = vmatprep.subr.mxu0 0.0
  %6946 = vmatpush2.msra.mxu0 0.0
  %6947 = vmatprep.subr.mxu0 0.0
  %6948 = vmatpush2.msra.mxu0 0.0
  %6949 = vmatprep.subr.mxu0 0.0
  %6950 = vmatpush2.msra.mxu0 0.0
  %6951 = vmatprep.subr.mxu0 0.0
  %6952 = vmatpush2.msra.mxu0 0.0
  %6953 = vmatprep.mubr.f32.mxu0 0.0
  %6954 = vmatmul.mubr.f32.gmra.mxu0 %v6804
  %v6955 = vpop.f32.mrf.mxu0
  %v6956 = vadd.f32 0.0, %v6955
  %v6957 = vpop.f32.mrf.mxu0
  %v6958 = vadd.f32 0.0, %v6957
  %6959 = vdwg.mxu0
  %v6960 = vadd.f32 %v6759, %v6885
  %v6961 = vadd.f32 %v6760, %v6887
  %v6962 = vadd.f32 %v6761, %v6956
  %v6963 = vadd.f32 %v6762, %v6958
  %6964 = vrot.lane.b32.xlu0 %v2546, 95
  %v6965 = vpop.permute.xlu0 %6964
  %6966 = vrot.lane.b32.xlu0 %v2547, 95
  %v6967 = vpop.permute.xlu0 %6966
  %6968 = vrot.lane.b32.xlu0 %v2548, 95
  %v6969 = vpop.permute.xlu0 %6968
  %6970 = vrot.lane.b32.xlu0 %v2549, 95
  %v6971 = vpop.permute.xlu0 %6970
  %vm6972 = vcmp.lt.s32.totalorder %v345, 95
  %v6973 = vsel %vm6972, %v6969, %v6971
  %v6974 = vsel %vm6972, %v6967, %v6969
  %v6975 = vsel %vm6972, %v6965, %v6967
  %v6976 = vsel %vm6972, %v6971, %v6965
  %vm6977 = vmand %vm6371, %vm450
  %v6978 = vsel %vm6977, 1, 0
  %v6979 = vlaneseq
  %v6980 = vshrl.u32 %v6979, 7
  %v6981 = vsub.s32 0, %v6980
  %v6982 = vrot.slane %v6978, %v6981
  %v6983 = vlaneseq
  %v6984 = vshrl.u32 %v6983, 7
  %v6985 = vsub.s32 1, %v6984
  %v6986 = vrot.slane %v6978, %v6985
  %v6987 = vlaneseq
  %v6988 = vshrl.u32 %v6987, 7
  %v6989 = vsub.s32 2, %v6988
  %v6990 = vrot.slane %v6978, %v6989
  %v6991 = vlaneseq
  %v6992 = vshrl.u32 %v6991, 7
  %v6993 = vsub.s32 3, %v6992
  %v6994 = vrot.slane %v6978, %v6993
  %vm6995 = vcmp.eq.s32.totalorder %v6982, 1
  %vm6996 = vcmp.eq.s32.totalorder %v6986, 1
  %vm6997 = vcmp.eq.s32.totalorder %v6990, 1
  %vm6998 = vcmp.eq.s32.totalorder %v6994, 1
  %v6999 = vsel %vm6995, %v6975, 0.0
  %v7000 = vsel %vm6996, %v6974, 0.0
  %v7001 = vsel %vm6997, %v6973, 0.0
  %v7002 = vsel %vm6998, %v6976, 0.0
  %s7003 = scalar_lea.vmem %s9, 184
  %v7004 = vld [vmem:[%s7003] sm:$0xff]
  %v7006 = vsel %vm60, %v7004, 0
  %v7009 = vsel %vm67, %v6999, 0
  %v7012 = vsel %vm67, %v7000, 0
  %v7015 = vsel %vm67, %v7001, 0
  %v7018 = vsel %vm67, %v7002, 0
  %7020 = vmatprep.subr.mxu0 0.0
  %7021 = vmatpush1.msra.mxu0 0.0
  %7022 = vmatprep.subr.mxu0 0.0
  %7023 = vmatpush1.msra.mxu0 0.0
  %7024 = vmatprep.subr.mxu0 0.0
  %7025 = vmatpush1.msra.mxu0 0.0
  %7026 = vmatprep.subr.mxu0 0.0
  %7027 = vmatpush1.msra.mxu0 0.0
  %7028 = vmatprep.subr.mxu0 0.0
  %7029 = vmatpush1.msra.mxu0 0.0
  %7030 = vmatprep.subr.mxu0 0.0
  %7031 = vmatpush1.msra.mxu0 0.0
  %7032 = vmatprep.subr.mxu0 0.0
  %7033 = vmatpush1.msra.mxu0 0.0
  %7034 = vmatprep.subr.mxu0 0.0
  %7035 = vmatpush1.msra.mxu0 0.0
  %7036 = vmatprep.subr.mxu0 0.0
  %7037 = vmatpush1.msra.mxu0 0.0
  %7038 = vmatprep.subr.mxu0 0.0
  %7039 = vmatpush1.msra.mxu0 0.0
  %7040 = vmatprep.subr.mxu0 0.0
  %7041 = vmatpush1.msra.mxu0 0.0
  %7042 = vmatprep.subr.mxu0 0.0
  %7043 = vmatpush1.msra.mxu0 0.0
  %7044 = vmatprep.subr.mxu0 0.0
  %7045 = vmatpush1.msra.mxu0 0.0
  %7046 = vmatprep.subr.mxu0 0.0
  %7047 = vmatpush1.msra.mxu0 0.0
  %7048 = vmatprep.subr.mxu0 0.0
  %7049 = vmatpush1.msra.mxu0 0.0
  %7050 = vmatprep.subr.mxu0 %v7012
  %7051 = vmatpush1.msra.mxu0 %v7009
  %7052 = vmatprep.subr.mxu0 0.0
  %7053 = vmatpush2.msra.mxu0 0.0
  %7054 = vmatprep.subr.mxu0 0.0
  %7055 = vmatpush2.msra.mxu0 0.0
  %7056 = vmatprep.subr.mxu0 0.0
  %7057 = vmatpush2.msra.mxu0 0.0
  %7058 = vmatprep.subr.mxu0 0.0
  %7059 = vmatpush2.msra.mxu0 0.0
  %7060 = vmatprep.subr.mxu0 0.0
  %7061 = vmatpush2.msra.mxu0 0.0
  %7062 = vmatprep.subr.mxu0 0.0
  %7063 = vmatpush2.msra.mxu0 0.0
  %7064 = vmatprep.subr.mxu0 0.0
  %7065 = vmatpush2.msra.mxu0 0.0
  %7066 = vmatprep.subr.mxu0 0.0
  %7067 = vmatpush2.msra.mxu0 0.0
  %7068 = vmatprep.subr.mxu0 0.0
  %7069 = vmatpush2.msra.mxu0 0.0
  %7070 = vmatprep.subr.mxu0 0.0
  %7071 = vmatpush2.msra.mxu0 0.0
  %7072 = vmatprep.subr.mxu0 0.0
  %7073 = vmatpush2.msra.mxu0 0.0
  %7074 = vmatprep.subr.mxu0 0.0
  %7075 = vmatpush2.msra.mxu0 0.0
  %7076 = vmatprep.subr.mxu0 0.0
  %7077 = vmatpush2.msra.mxu0 0.0
  %7078 = vmatprep.subr.mxu0 0.0
  %7079 = vmatpush2.msra.mxu0 0.0
  %7080 = vmatprep.subr.mxu0 0.0
  %7081 = vmatpush2.msra.mxu0 0.0
  %7082 = vmatprep.subr.mxu0 0.0
  %7083 = vmatpush2.msra.mxu0 0.0
  %7084 = vmatprep.mubr.f32.mxu0 0.0
  %7085 = vmatmul.mubr.f32.gmra.mxu0 %v7006
  %v7086 = vpop.f32.mrf.mxu0
  %v7087 = vadd.f32 0.0, %v7086
  %v7088 = vpop.f32.mrf.mxu0
  %v7089 = vadd.f32 0.0, %v7088
  %7090 = vdwg.mxu0
  %7091 = vmatprep.subr.mxu0 0.0
  %7092 = vmatpush1.msra.mxu0 0.0
  %7093 = vmatprep.subr.mxu0 0.0
  %7094 = vmatpush1.msra.mxu0 0.0
  %7095 = vmatprep.subr.mxu0 0.0
  %7096 = vmatpush1.msra.mxu0 0.0
  %7097 = vmatprep.subr.mxu0 0.0
  %7098 = vmatpush1.msra.mxu0 0.0
  %7099 = vmatprep.subr.mxu0 0.0
  %7100 = vmatpush1.msra.mxu0 0.0
  %7101 = vmatprep.subr.mxu0 0.0
  %7102 = vmatpush1.msra.mxu0 0.0
  %7103 = vmatprep.subr.mxu0 0.0
  %7104 = vmatpush1.msra.mxu0 0.0
  %7105 = vmatprep.subr.mxu0 0.0
  %7106 = vmatpush1.msra.mxu0 0.0
  %7107 = vmatprep.subr.mxu0 0.0
  %7108 = vmatpush1.msra.mxu0 0.0
  %7109 = vmatprep.subr.mxu0 0.0
  %7110 = vmatpush1.msra.mxu0 0.0
  %7111 = vmatprep.subr.mxu0 0.0
  %7112 = vmatpush1.msra.mxu0 0.0
  %7113 = vmatprep.subr.mxu0 0.0
  %7114 = vmatpush1.msra.mxu0 0.0
  %7115 = vmatprep.subr.mxu0 0.0
  %7116 = vmatpush1.msra.mxu0 0.0
  %7117 = vmatprep.subr.mxu0 0.0
  %7118 = vmatpush1.msra.mxu0 0.0
  %7119 = vmatprep.subr.mxu0 0.0
  %7120 = vmatpush1.msra.mxu0 0.0
  %7121 = vmatprep.subr.mxu0 %v7018
  %7122 = vmatpush1.msra.mxu0 %v7015
  %7123 = vmatprep.subr.mxu0 0.0
  %7124 = vmatpush2.msra.mxu0 0.0
  %7125 = vmatprep.subr.mxu0 0.0
  %7126 = vmatpush2.msra.mxu0 0.0
  %7127 = vmatprep.subr.mxu0 0.0
  %7128 = vmatpush2.msra.mxu0 0.0
  %7129 = vmatprep.subr.mxu0 0.0
  %7130 = vmatpush2.msra.mxu0 0.0
  %7131 = vmatprep.subr.mxu0 0.0
  %7132 = vmatpush2.msra.mxu0 0.0
  %7133 = vmatprep.subr.mxu0 0.0
  %7134 = vmatpush2.msra.mxu0 0.0
  %7135 = vmatprep.subr.mxu0 0.0
  %7136 = vmatpush2.msra.mxu0 0.0
  %7137 = vmatprep.subr.mxu0 0.0
  %7138 = vmatpush2.msra.mxu0 0.0
  %7139 = vmatprep.subr.mxu0 0.0
  %7140 = vmatpush2.msra.mxu0 0.0
  %7141 = vmatprep.subr.mxu0 0.0
  %7142 = vmatpush2.msra.mxu0 0.0
  %7143 = vmatprep.subr.mxu0 0.0
  %7144 = vmatpush2.msra.mxu0 0.0
  %7145 = vmatprep.subr.mxu0 0.0
  %7146 = vmatpush2.msra.mxu0 0.0
  %7147 = vmatprep.subr.mxu0 0.0
  %7148 = vmatpush2.msra.mxu0 0.0
  %7149 = vmatprep.subr.mxu0 0.0
  %7150 = vmatpush2.msra.mxu0 0.0
  %7151 = vmatprep.subr.mxu0 0.0
  %7152 = vmatpush2.msra.mxu0 0.0
  %7153 = vmatprep.subr.mxu0 0.0
  %7154 = vmatpush2.msra.mxu0 0.0
  %7155 = vmatprep.mubr.f32.mxu0 0.0
  %7156 = vmatmul.mubr.f32.gmra.mxu0 %v7006
  %v7157 = vpop.f32.mrf.mxu0
  %v7158 = vadd.f32 0.0, %v7157
  %v7159 = vpop.f32.mrf.mxu0
  %v7160 = vadd.f32 0.0, %v7159
  %7161 = vdwg.mxu0
  %v7162 = vadd.f32 %v6960, %v7087
  %v7163 = vadd.f32 %v6961, %v7089
  %v7164 = vadd.f32 %v6962, %v7158
  %v7165 = vadd.f32 %v6963, %v7160
  %7166 = vrot.lane.b32.xlu0 %v2546, 94
  %v7167 = vpop.permute.xlu0 %7166
  %7168 = vrot.lane.b32.xlu0 %v2547, 94
  %v7169 = vpop.permute.xlu0 %7168
  %7170 = vrot.lane.b32.xlu0 %v2548, 94
  %v7171 = vpop.permute.xlu0 %7170
  %7172 = vrot.lane.b32.xlu0 %v2549, 94
  %v7173 = vpop.permute.xlu0 %7172
  %vm7174 = vcmp.lt.s32.totalorder %v345, 94
  %v7175 = vsel %vm7174, %v7171, %v7173
  %v7176 = vsel %vm7174, %v7169, %v7171
  %v7177 = vsel %vm7174, %v7167, %v7169
  %v7178 = vsel %vm7174, %v7173, %v7167
  %vm7179 = vmand %vm6371, %vm3367
  %v7180 = vsel %vm7179, 1, 0
  %v7181 = vlaneseq
  %v7182 = vshrl.u32 %v7181, 7
  %v7183 = vsub.s32 0, %v7182
  %v7184 = vrot.slane %v7180, %v7183
  %v7185 = vlaneseq
  %v7186 = vshrl.u32 %v7185, 7
  %v7187 = vsub.s32 1, %v7186
  %v7188 = vrot.slane %v7180, %v7187
  %v7189 = vlaneseq
  %v7190 = vshrl.u32 %v7189, 7
  %v7191 = vsub.s32 2, %v7190
  %v7192 = vrot.slane %v7180, %v7191
  %v7193 = vlaneseq
  %v7194 = vshrl.u32 %v7193, 7
  %v7195 = vsub.s32 3, %v7194
  %v7196 = vrot.slane %v7180, %v7195
  %vm7197 = vcmp.eq.s32.totalorder %v7184, 1
  %vm7198 = vcmp.eq.s32.totalorder %v7188, 1
  %vm7199 = vcmp.eq.s32.totalorder %v7192, 1
  %vm7200 = vcmp.eq.s32.totalorder %v7196, 1
  %v7201 = vsel %vm7197, %v7177, 0.0
  %v7202 = vsel %vm7198, %v7176, 0.0
  %v7203 = vsel %vm7199, %v7175, 0.0
  %v7204 = vsel %vm7200, %v7178, 0.0
  %s7205 = scalar_lea.vmem %s9, 192
  %v7206 = vld [vmem:[%s7205] sm:$0xff]
  %v7208 = vsel %vm60, %v7206, 0
  %v7211 = vsel %vm67, %v7201, 0
  %v7214 = vsel %vm67, %v7202, 0
  %v7217 = vsel %vm67, %v7203, 0
  %v7220 = vsel %vm67, %v7204, 0
  %7222 = vmatprep.subr.mxu0 0.0
  %7223 = vmatpush1.msra.mxu0 0.0
  %7224 = vmatprep.subr.mxu0 0.0
  %7225 = vmatpush1.msra.mxu0 0.0
  %7226 = vmatprep.subr.mxu0 0.0
  %7227 = vmatpush1.msra.mxu0 0.0
  %7228 = vmatprep.subr.mxu0 0.0
  %7229 = vmatpush1.msra.mxu0 0.0
  %7230 = vmatprep.subr.mxu0 0.0
  %7231 = vmatpush1.msra.mxu0 0.0
  %7232 = vmatprep.subr.mxu0 0.0
  %7233 = vmatpush1.msra.mxu0 0.0
  %7234 = vmatprep.subr.mxu0 0.0
  %7235 = vmatpush1.msra.mxu0 0.0
  %7236 = vmatprep.subr.mxu0 0.0
  %7237 = vmatpush1.msra.mxu0 0.0
  %7238 = vmatprep.subr.mxu0 0.0
  %7239 = vmatpush1.msra.mxu0 0.0
  %7240 = vmatprep.subr.mxu0 0.0
  %7241 = vmatpush1.msra.mxu0 0.0
  %7242 = vmatprep.subr.mxu0 0.0
  %7243 = vmatpush1.msra.mxu0 0.0
  %7244 = vmatprep.subr.mxu0 0.0
  %7245 = vmatpush1.msra.mxu0 0.0
  %7246 = vmatprep.subr.mxu0 0.0
  %7247 = vmatpush1.msra.mxu0 0.0
  %7248 = vmatprep.subr.mxu0 0.0
  %7249 = vmatpush1.msra.mxu0 0.0
  %7250 = vmatprep.subr.mxu0 0.0
  %7251 = vmatpush1.msra.mxu0 0.0
  %7252 = vmatprep.subr.mxu0 %v7214
  %7253 = vmatpush1.msra.mxu0 %v7211
  %7254 = vmatprep.subr.mxu0 0.0
  %7255 = vmatpush2.msra.mxu0 0.0
  %7256 = vmatprep.subr.mxu0 0.0
  %7257 = vmatpush2.msra.mxu0 0.0
  %7258 = vmatprep.subr.mxu0 0.0
  %7259 = vmatpush2.msra.mxu0 0.0
  %7260 = vmatprep.subr.mxu0 0.0
  %7261 = vmatpush2.msra.mxu0 0.0
  %7262 = vmatprep.subr.mxu0 0.0
  %7263 = vmatpush2.msra.mxu0 0.0
  %7264 = vmatprep.subr.mxu0 0.0
  %7265 = vmatpush2.msra.mxu0 0.0
  %7266 = vmatprep.subr.mxu0 0.0
  %7267 = vmatpush2.msra.mxu0 0.0
  %7268 = vmatprep.subr.mxu0 0.0
  %7269 = vmatpush2.msra.mxu0 0.0
  %7270 = vmatprep.subr.mxu0 0.0
  %7271 = vmatpush2.msra.mxu0 0.0
  %7272 = vmatprep.subr.mxu0 0.0
  %7273 = vmatpush2.msra.mxu0 0.0
  %7274 = vmatprep.subr.mxu0 0.0
  %7275 = vmatpush2.msra.mxu0 0.0
  %7276 = vmatprep.subr.mxu0 0.0
  %7277 = vmatpush2.msra.mxu0 0.0
  %7278 = vmatprep.subr.mxu0 0.0
  %7279 = vmatpush2.msra.mxu0 0.0
  %7280 = vmatprep.subr.mxu0 0.0
  %7281 = vmatpush2.msra.mxu0 0.0
  %7282 = vmatprep.subr.mxu0 0.0
  %7283 = vmatpush2.msra.mxu0 0.0
  %7284 = vmatprep.subr.mxu0 0.0
  %7285 = vmatpush2.msra.mxu0 0.0
  %7286 = vmatprep.mubr.f32.mxu0 0.0
  %7287 = vmatmul.mubr.f32.gmra.mxu0 %v7208
  %v7288 = vpop.f32.mrf.mxu0
  %v7289 = vadd.f32 0.0, %v7288
  %v7290 = vpop.f32.mrf.mxu0
  %v7291 = vadd.f32 0.0, %v7290
  %7292 = vdwg.mxu0
  %7293 = vmatprep.subr.mxu0 0.0
  %7294 = vmatpush1.msra.mxu0 0.0
  %7295 = vmatprep.subr.mxu0 0.0
  %7296 = vmatpush1.msra.mxu0 0.0
  %7297 = vmatprep.subr.mxu0 0.0
  %7298 = vmatpush1.msra.mxu0 0.0
  %7299 = vmatprep.subr.mxu0 0.0
  %7300 = vmatpush1.msra.mxu0 0.0
  %7301 = vmatprep.subr.mxu0 0.0
  %7302 = vmatpush1.msra.mxu0 0.0
  %7303 = vmatprep.subr.mxu0 0.0
  %7304 = vmatpush1.msra.mxu0 0.0
  %7305 = vmatprep.subr.mxu0 0.0
  %7306 = vmatpush1.msra.mxu0 0.0
  %7307 = vmatprep.subr.mxu0 0.0
  %7308 = vmatpush1.msra.mxu0 0.0
  %7309 = vmatprep.subr.mxu0 0.0
  %7310 = vmatpush1.msra.mxu0 0.0
  %7311 = vmatprep.subr.mxu0 0.0
  %7312 = vmatpush1.msra.mxu0 0.0
  %7313 = vmatprep.subr.mxu0 0.0
  %7314 = vmatpush1.msra.mxu0 0.0
  %7315 = vmatprep.subr.mxu0 0.0
  %7316 = vmatpush1.msra.mxu0 0.0
  %7317 = vmatprep.subr.mxu0 0.0
  %7318 = vmatpush1.msra.mxu0 0.0
  %7319 = vmatprep.subr.mxu0 0.0
  %7320 = vmatpush1.msra.mxu0 0.0
  %7321 = vmatprep.subr.mxu0 0.0
  %7322 = vmatpush1.msra.mxu0 0.0
  %7323 = vmatprep.subr.mxu0 %v7220
  %7324 = vmatpush1.msra.mxu0 %v7217
  %7325 = vmatprep.subr.mxu0 0.0
  %7326 = vmatpush2.msra.mxu0 0.0
  %7327 = vmatprep.subr.mxu0 0.0
  %7328 = vmatpush2.msra.mxu0 0.0
  %7329 = vmatprep.subr.mxu0 0.0
  %7330 = vmatpush2.msra.mxu0 0.0
  %7331 = vmatprep.subr.mxu0 0.0
  %7332 = vmatpush2.msra.mxu0 0.0
  %7333 = vmatprep.subr.mxu0 0.0
  %7334 = vmatpush2.msra.mxu0 0.0
  %7335 = vmatprep.subr.mxu0 0.0
  %7336 = vmatpush2.msra.mxu0 0.0
  %7337 = vmatprep.subr.mxu0 0.0
  %7338 = vmatpush2.msra.mxu0 0.0
  %7339 = vmatprep.subr.mxu0 0.0
  %7340 = vmatpush2.msra.mxu0 0.0
  %7341 = vmatprep.subr.mxu0 0.0
  %7342 = vmatpush2.msra.mxu0 0.0
  %7343 = vmatprep.subr.mxu0 0.0
  %7344 = vmatpush2.msra.mxu0 0.0
  %7345 = vmatprep.subr.mxu0 0.0
  %7346 = vmatpush2.msra.mxu0 0.0
  %7347 = vmatprep.subr.mxu0 0.0
  %7348 = vmatpush2.msra.mxu0 0.0
  %7349 = vmatprep.subr.mxu0 0.0
  %7350 = vmatpush2.msra.mxu0 0.0
  %7351 = vmatprep.subr.mxu0 0.0
  %7352 = vmatpush2.msra.mxu0 0.0
  %7353 = vmatprep.subr.mxu0 0.0
  %7354 = vmatpush2.msra.mxu0 0.0
  %7355 = vmatprep.subr.mxu0 0.0
  %7356 = vmatpush2.msra.mxu0 0.0
  %7357 = vmatprep.mubr.f32.mxu0 0.0
  %7358 = vmatmul.mubr.f32.gmra.mxu0 %v7208
  %v7359 = vpop.f32.mrf.mxu0
  %v7360 = vadd.f32 0.0, %v7359
  %v7361 = vpop.f32.mrf.mxu0
  %v7362 = vadd.f32 0.0, %v7361
  %7363 = vdwg.mxu0
  %v7364 = vadd.f32 %v7162, %v7289
  %v7365 = vadd.f32 %v7163, %v7291
  %v7366 = vadd.f32 %v7164, %v7360
  %v7367 = vadd.f32 %v7165, %v7362
  %v7368 = vld [vmem:[%s10] sm:$0xff]
  %v7369 = vld [vmem:[%s11] sm:$0xff]
  %v7370 = vadd.f32 %v7364, %v7365
  %v7371 = vadd.f32 %v7370, %v7366
  %v7372 = vadd.f32 %v7371, %v7367
  %7373 = vadd.xlane.f32.xlu0 %v7372
  %v7374 = vpop.xlane.xlu0 %7373
  %v7375 = vmul.f32 %v7374, 0.001953125
  %v7376 = vsub.f32 %v7364, %v7375
  %v7377 = vsub.f32 %v7365, %v7375
  %v7378 = vsub.f32 %v7366, %v7375
  %v7379 = vsub.f32 %v7367, %v7375
  %v7380 = vmul.f32 %v7376, %v7376
  %v7381 = vmul.f32 %v7377, %v7377
  %v7382 = vmul.f32 %v7378, %v7378
  %v7383 = vmul.f32 %v7379, %v7379
  %v7384 = vadd.f32 %v7380, %v7381
  %v7385 = vadd.f32 %v7384, %v7382
  %v7386 = vadd.f32 %v7385, %v7383
  %7387 = vadd.xlane.f32.xlu0 %v7386
  %v7388 = vpop.xlane.xlu0 %7387
  %v7389 = vmul.f32 %v7388, 0.001953125
  %v7390 = vadd.f32 %v7389, 0.001
  %v7391 = vrsqrt.pop %v7390
  %v7392 = vmul.f32 %v7376, %v7391
  %v7393 = vmul.f32 %v7377, %v7391
  %v7394 = vmul.f32 %v7378, %v7391
  %v7395 = vmul.f32 %v7379, %v7391
  %7397 = vset.pattern.permute.xlu0 0
  %7398 = vperm.xlu0 %7397, %v7368
  %v7399 = vpop.permute.xlu0 %7398
  %v7401 = vmul.f32 %v7392, %v7399
  %v7402 = vmul.f32 %v7393, %v7399
  %v7403 = vmul.f32 %v7394, %v7399
  %v7404 = vmul.f32 %v7395, %v7399
  %7406 = vset.pattern.permute.xlu0 0
  %7407 = vperm.xlu0 %7406, %v7369
  %v7408 = vpop.permute.xlu0 %7407
  %v7410 = vadd.f32 %v7401, %v7408
  %v7411 = vadd.f32 %v7402, %v7408
  %v7412 = vadd.f32 %v7403, %v7408
  %v7413 = vadd.f32 %v7404, %v7408
  %v7414 = vmax.f32 %v7410, 0.0
  %v7415 = vmax.f32 %v7411, 0.0
  %v7416 = vmax.f32 %v7412, 0.0
  %v7417 = vmax.f32 %v7413, 0.0
  %7418 = vst [vmem:[%s15 + $0x40] sm:$0xff] %v7414
  %7419 = vst [vmem:[%s15 + $0x48] sm:$0xff] %v7415
  %7420 = vst [vmem:[%s15 + $0x50] sm:$0xff] %v7416
  %7421 = vst [vmem:[%s15 + $0x58] sm:$0xff] %v7417
  // Predicated region
  $region62: #{_inception_forward_impl.1} parent=0 // pred_check
    _
  $region63: #{_inception_forward_impl.1} parent=0 // pred_check_branch
    %7423 = sbr.rel (0) target = $region65
  $region64: #{_inception_forward_impl.1} parent=0 // pred_region
    _
  $region65: #{_inception_forward_impl.1} parent=0 // pred_fallthru
    _
  // Predicated region
  $region66: #{_inception_forward_impl.1} parent=0 // pred_check
    _
  $region67: #{_inception_forward_impl.1} parent=0 // pred_check_branch
    %7425 = sbr.rel (0) target = $region69
  $region68: #{_inception_forward_impl.1} parent=0 // pred_region
    _
  $region69: #{_inception_forward_impl.1} parent=0 // pred_fallthru
    _

</llo_original>
